<compile_context>
chip_gen: v5e
topology: v5e:2x2
jax: 0.10.0
libtpu: 0.0.40
codegen_flags: <defaults>
</compile_context>

<pallas_src>
import numpy as np
import jax
import jax.numpy as jnp
from jax.experimental import pallas as pl
from jax.experimental.pallas import tpu as pltpu

EMB = 64
VOCAB = 10
LN_EPS = 1e-5


def _round_up(x, m):
    return (x + m - 1) // m * m


# ----------------------------------------------------------------------------
# Deterministic parameter construction (PyTorch-default-style init shapes).
# ----------------------------------------------------------------------------
def _linear(key, fan_in, fan_out):
    kw, kb = jax.random.split(key)
    bound = 1.0 / float(np.sqrt(fan_in))
    w = jax.random.uniform(kw, (fan_in, fan_out), jnp.float32, -bound, bound)
    b = jax.random.uniform(kb, (1, fan_out), jnp.float32, -bound, bound)
    return w, b


def _mlp_params(key, dims):
    keys = jax.random.split(key, len(dims) - 1)
    out = []
    for k, din, dout in zip(keys, dims[:-1], dims[1:]):
        w, b = _linear(k, din, dout)
        out += [w, b]
    return out


def init_params(key, emb=EMB, vocab=VOCAB):
    ks = jax.random.split(key, 8)
    p = {}
    p["tok_emb"] = jax.random.normal(ks[0], (vocab, emb), jnp.float32)   # nn.Embedding ~ N(0,1)
    p["beg_lt"] = list(_linear(ks[1], emb, emb))
    p["beg_st"] = list(_linear(ks[2], emb, emb))
    p["mlp_mul"] = _mlp_params(ks[3], [2 * emb, 4 * emb, 8 * emb, 4 * emb, 2 * emb, emb])
    p["mlp_sig"] = _mlp_params(ks[4], [2 * emb, 4 * emb, 2 * emb, emb])
    p["mlp_tanh"] = _mlp_params(ks[5], [2 * emb, 4 * emb, 2 * emb, emb])
    p["mlp_lt_st"] = _mlp_params(ks[6], [2 * emb, 4 * emb, 2 * emb, emb])
    p["ln_g"] = jnp.ones((1, emb), jnp.float32)     # _init_weights: LayerNorm weight=1
    p["ln_b"] = jnp.zeros((1, emb), jnp.float32)    # _init_weights: LayerNorm bias=0
    p["head"] = _mlp_params(ks[7], [emb, 1024, 2048, vocab])
    return p


# ----------------------------------------------------------------------------
# Shared math helpers.
# ----------------------------------------------------------------------------
def _layer_norm(x, g, b):
    mu = jnp.mean(x, axis=-1, keepdims=True)
    var = jnp.mean((x - mu) ** 2, axis=-1, keepdims=True)
    return (x - mu) * jax.lax.rsqrt(var + LN_EPS) * g + b


def _dot(x, w, b):
    return jnp.dot(x, w, preferred_element_type=jnp.float32) + b


def _run_mlp(x, wb, final):
    """Reference-only Linear/ReLU stack with a final activation."""
    n = len(wb) // 2
    h = x
    for j in range(n):
        h = jnp.dot(h, wb[2 * j], preferred_element_type=jnp.float32) + wb[2 * j + 1]
        if j < n - 1:
            h = jnp.maximum(h, 0.0)
    if final == "sigmoid":
        h = jax.nn.sigmoid(h)
    elif final == "tanh":
        h = jnp.tanh(h)
    return h


# ----------------------------------------------------------------------------
# Pallas kernels.
# ----------------------------------------------------------------------------
def gates_kernel(xe_ref, xs_ref, *rest):
    """Batched gate MLPs for all timesteps at once.

    xe_ref : (TILE_M, EMB)   rows = xe[t] with row = (t-1)*B + b.
    xs_ref : (TILE_M, EMB)   rows = x_s[b]  (first-token embedding, repeated).
    out    : (TILE_M, 4*EMB) lanes = [mul | sig | lt_st | tanh], sigmoid/tanh
                             already applied (sigmoid on 0:3E, tanh on 3E:4E).
    All matmuls: bf16 operands, f32 accumulation; activations in f32.
    """
    o_ref = rest[-1]
    (w1t, w1b, b1,
     mw2, mb2, mw3, mb3, mw4, mb4,
     sw2, sb2, tw2, tb2, lw2, lb2,
     wt, bt) = rest[:-1]

    xe = xe_ref[...].astype(jnp.bfloat16)
    xs = xs_ref[...].astype(jnp.bfloat16)

    # Fused first layer of all four MLPs: concat(xe, x_s) @ W1 is split into
    # two K=64 matmuls (no xcat materialization), output 16*EMB lanes.
    h1 = jnp.dot(xe, w1t[...], preferred_element_type=jnp.float32)
    h1 = h1 + jnp.dot(xs, w1b[...], preferred_element_type=jnp.float32)
    h1 = jnp.maximum(h1 + b1[...], 0.0)                       # (M, 16*EMB) f32
    h_mul = h1[:, 0 * 4 * EMB:1 * 4 * EMB].astype(jnp.bfloat16)
    h_sig = h1[:, 1 * 4 * EMB:2 * 4 * EMB].astype(jnp.bfloat16)
    h_tan = h1[:, 2 * 4 * EMB:3 * 4 * EMB].astype(jnp.bfloat16)
    h_lts = h1[:, 3 * 4 * EMB:4 * 4 * EMB].astype(jnp.bfloat16)

    def dot_relu(x, w, b):
        h = jnp.dot(x, w[...], preferred_element_type=jnp.float32) + b[...]
        return jnp.maximum(h, 0.0).astype(jnp.bfloat16)

    # mlp_st_lt_mul hidden stack: 4E -> 8E -> 4E -> 2E (penultimate)
    h = dot_relu(h_mul, mw2, mb2)
    h = dot_relu(h, mw3, mb3)
    p_mul = dot_relu(h, mw4, mb4)                             # (M, 2E)
    # sig / tanh / lt_st hidden stacks: 4E -> 2E (penultimate)
    p_sig = dot_relu(h_sig, sw2, sb2)
    p_tan = dot_relu(h_tan, tw2, tb2)
    p_lts = dot_relu(h_lts, lw2, lb2)

    # Block-diagonal fused final layers: one (512, 256) matmul produces the
    # lane-dense output slab directly. Lane order: [mul | sig | lt_st | tanh].
    p_cat = jnp.concatenate([p_mul, p_sig, p_lts, p_tan], axis=-1)   # 128-lane aligned chunks
    z = jnp.dot(p_cat, wt[...], preferred_element_type=jnp.float32) + bt[...]   # (M, 4E) f32
    lane = jax.lax.broadcasted_iota(jnp.int32, z.shape, 1)
    o_ref[...] = jnp.where(lane < 3 * EMB, jax.nn.sigmoid(z), jnp.tanh(z))


def scan_kernel(xs_ref, beg_lt_w, beg_lt_b, beg_st_w, beg_st_b,
                gates_ref, ln_g_ref, ln_b_ref, out_ref):
    """Serial element-wise recurrence (the only truly sequential work).

    xs_ref    : (B, EMB)          first-token embeddings
    gates_ref : (T-1, B, 4*EMB)   precomputed, activated gates [mul|sig|lts|tanh]
    out_ref   : (B, T, EMB)       per-step hidden states, written in final layout
    """
    B = xs_ref.shape[0]
    T = out_ref.shape[1]
    g = jnp.broadcast_to(ln_g_ref[...], (B, EMB))
    b = jnp.broadcast_to(ln_b_ref[...], (B, EMB))

    x_s = xs_ref[...]
    x_st = _dot(x_s, beg_st_w[...], beg_st_b[...])
    x_lt = _dot(x_s, beg_lt_w[...], beg_lt_b[...])
    x_lt = _layer_norm(x_lt, g, b)
    x_st = _layer_norm(x_st, g, b)
    # result[:, 0, :] = ln1(x_st): double-LayerNorm, exactly like the torch code.
    out_ref[:, 0, :] = _layer_norm(x_st, g, b)

    # T <= block_size (10): fully unrolled; body is pure VPU/EUP element-wise work.
    for idx in range(1, T):
        gt = gates_ref[idx - 1, :, :]                 # (B, 4*EMB)
        g_mul = gt[:, 0 * EMB:1 * EMB]
        g_sig = gt[:, 1 * EMB:2 * EMB]
        g_lts = gt[:, 2 * EMB:3 * EMB]
        g_tan = gt[:, 3 * EMB:4 * EMB]
        x_lt = g_mul * x_lt + g_sig * g_tan
        x_st = jnp.tanh(x_lt) * g_lts
        x_lt = _layer_norm(x_lt, g, b)
        x_st = _layer_norm(x_st, g, b)
        out_ref[:, idx, :] = x_st


def head_kernel(x_ref, w1_ref, b1_ref, w2_ref, b2_ref, w3_ref, b3_ref, o_ref):
    """head on the embedding table: (VOCAB,64)->1024->2048->128 (lane-padded),
    bf16 weights / f32 accumulation."""
    x = x_ref[...].astype(jnp.bfloat16)
    h = jnp.maximum(jnp.dot(x, w1_ref[...], preferred_element_type=jnp.float32)
                    + b1_ref[...], 0.0)
    h = jnp.maximum(jnp.dot(h.astype(jnp.bfloat16), w2_ref[...],
                            preferred_element_type=jnp.float32) + b2_ref[...], 0.0)
    o_ref[...] = (jnp.dot(h.astype(jnp.bfloat16), w3_ref[...],
                          preferred_element_type=jnp.float32) + b3_ref[...])


# ----------------------------------------------------------------------------
# Wrapper-side weight preparation.
# ----------------------------------------------------------------------------
def _build_gate_weights(params):
    bf = lambda w: w.astype(jnp.bfloat16)

    # Fused first layer (order [mul | sig | tanh | lt_st] over the 16E lanes),
    # split by concat-half (top = xe rows, bottom = x_s rows).
    w1f = jnp.concatenate([params["mlp_mul"][0], params["mlp_sig"][0],
                           params["mlp_tanh"][0], params["mlp_lt_st"][0]], axis=1)
    b1f = jnp.concatenate([params["mlp_mul"][1], params["mlp_sig"][1],
                           params["mlp_tanh"][1], params["mlp_lt_st"][1]], axis=1)
    w1t, w1b = w1f[:EMB], w1f[EMB:]

    # Block-diagonal fused final layer, output lane order [mul | sig | lt_st | tanh].
    mw5, mb5 = params["mlp_mul"][8], params["mlp_mul"][9]
    sw3, sb3 = params["mlp_sig"][4], params["mlp_sig"][5]
    tw3, tb3 = params["mlp_tanh"][4], params["mlp_tanh"][5]
    lw3, lb3 = params["mlp_lt_st"][4], params["mlp_lt_st"][5]
    w_tail = jnp.zeros((4 * 2 * EMB, 4 * EMB), jnp.float32)
    for i, w in enumerate([mw5, sw3, lw3, tw3]):
        w_tail = w_tail.at[i * 2 * EMB:(i + 1) * 2 * EMB, i * EMB:(i + 1) * EMB].set(w)
    b_tail = jnp.concatenate([mb5, sb3, lb3, tb3], axis=1)

    # Weight matrices bf16 (MXU operands); biases stay f32 (added post-accumulation).
    return [bf(w1t), bf(w1b), b1f,
            bf(params["mlp_mul"][2]), params["mlp_mul"][3],
            bf(params["mlp_mul"][4]), params["mlp_mul"][5],
            bf(params["mlp_mul"][6]), params["mlp_mul"][7],
            bf(params["mlp_sig"][2]), params["mlp_sig"][3],
            bf(params["mlp_tanh"][2]), params["mlp_tanh"][3],
            bf(params["mlp_lt_st"][2]), params["mlp_lt_st"][3],
            bf(w_tail), b_tail]


def compute_logits_table(params):
    """Param-only logits table over the VOCAB distinct embedding rows.
    Computed ONCE per parameter set (hoisted out of the per-forward path)."""
    emb_tab = params["tok_emb"]
    hw1, hb1, hw2, hb2, hw3, hb3 = params["head"]
    w3p = jnp.pad(hw3, ((0, 0), (0, 128 - VOCAB)))     # lane-dense 128-wide output
    b3p = jnp.pad(hb3, ((0, 0), (0, 128 - VOCAB)))
    args = [emb_tab,
            hw1.astype(jnp.bfloat16), hb1,
            hw2.astype(jnp.bfloat16), hb2,
            w3p.astype(jnp.bfloat16), b3p]
    return pl.pallas_call(
        head_kernel,
        out_shape=jax.ShapeDtypeStruct((VOCAB, 128), jnp.float32),
        in_specs=[pl.BlockSpec(memory_space=pltpu.MemorySpace.VMEM)] * 7,
        out_specs=pl.BlockSpec(memory_space=pltpu.MemorySpace.VMEM),
    )(*args)


# ----------------------------------------------------------------------------
# Forward pass.
# ----------------------------------------------------------------------------
def lstm_forward(params, tokens, logits_tab=None):
    """Returns (logits, result).  `result` is the per-step hidden-state buffer the
    torch module fills (it does not feed the logits, matching the original).
    loss is None (targets=None path).  Assumes T >= 2 (block_size >= 2)."""
    B, T = tokens.shape
    emb_tab = params["tok_emb"]                         # (VOCAB, EMB)

    # Time-major embedding gather (no (M, E) transpose needed later).
    xe_tm = jnp.take(emb_tab, tokens.T, axis=0)         # (T, B, EMB)
    x_s = xe_tm[0]                                      # (B, EMB) first-token embedding
    M = (T - 1) * B
    xe_tail = xe_tm[1:].reshape(M, EMB)                 # row = (t-1)*B + b
    xs_rep = jnp.tile(x_s, (T - 1, 1))                  # row (t-1)*B + b -> x_s[b]

    # ---- 1) batched gate MLPs over all timesteps (M rows) ------------------
    # Balanced tiles (<8 padded rows per tile); >=2 tiles so v7x megacore is fed.
    MAX_TILE = 512
    n_tiles = max(1, pl.cdiv(M, MAX_TILE))
    if n_tiles == 1 and M >= 16:
        n_tiles = 2
    TILE_M = _round_up(pl.cdiv(M, n_tiles), 8)
    Mp = n_tiles * TILE_M
    if Mp != M:
        xe_tail = jnp.pad(xe_tail, ((0, Mp - M), (0, 0)))
        xs_rep = jnp.pad(xs_rep, ((0, Mp - M), (0, 0)))

    gate_ws = _build_gate_weights(params)
    gates = pl.pallas_call(
        gates_kernel,
        out_shape=jax.ShapeDtypeStruct((Mp, 4 * EMB), jnp.float32),
        grid=(n_tiles,),
        in_specs=[pl.BlockSpec((TILE_M, EMB), lambda i: (i, 0)),
                  pl.BlockSpec((TILE_M, EMB), lambda i: (i, 0))]
                 + [pl.BlockSpec(w.shape, lambda i: (0, 0)) for w in gate_ws],
        out_specs=pl.BlockSpec((TILE_M, 4 * EMB), lambda i: (i, 0)),
        compiler_params=pltpu.CompilerParams(dimension_semantics=("parallel",)),
    )(xe_tail, xs_rep, *gate_ws)
    gates = gates[:M].reshape(T - 1, B, 4 * EMB)

    # ---- 2) cheap serial element-wise scan, written directly as (B, T, EMB) -
    scan_in = [x_s,
               params["beg_lt"][0], params["beg_lt"][1],
               params["beg_st"][0], params["beg_st"][1],
               gates, params["ln_g"], params["ln_b"]]
    result = pl.pallas_call(
        scan_kernel,
        out_shape=jax.ShapeDtypeStruct((B, T, EMB), jnp.float32),
        in_specs=[pl.BlockSpec(memory_space=pltpu.MemorySpace.VMEM)] * len(scan_in),
        out_specs=pl.BlockSpec(memory_space=pltpu.MemorySpace.VMEM),
    )(*scan_in)

    # ---- 3) head: gather from the param-only logits table ------------------
    if logits_tab is None:
        logits_tab = compute_logits_table(params)
    logits = jnp.take(logits_tab[:, :VOCAB], tokens, axis=0)   # (B, T, VOCAB)

    return logits, result


# ----------------------------------------------------------------------------
# Pure-JAX reference (mirrors the torch forward) for validation.
# ----------------------------------------------------------------------------
def forward_ref(params, tokens):
    xe = jnp.take(params["tok_emb"], tokens, axis=0)   # (B, T, EMB)
    B, T, C = xe.shape
    g, bln = params["ln_g"], params["ln_b"]
    x_s = xe[:, 0, :]
    x_st = jnp.dot(x_s, params["beg_st"][0]) + params["beg_st"][1]
    x_lt = jnp.dot(x_s, params["beg_lt"][0]) + params["beg_lt"][1]
    x_lt = _layer_norm(x_lt, g, bln)
    x_st = _layer_norm(x_st, g, bln)
    outs = [_layer_norm(x_st, g, bln)]
    for idx in range(1, T):
        x_cat = jnp.concatenate([xe[:, idx, :], x_s], axis=-1)
        x_lt = _run_mlp(x_cat, params["mlp_mul"], "sigmoid") * x_lt
        x_lt = x_lt + _run_mlp(x_cat, params["mlp_sig"], "sigmoid") * _run_mlp(x_cat, params["mlp_tanh"], "tanh")
        x_st = jnp.tanh(x_lt) * _run_mlp(x_cat, params["mlp_lt_st"], "sigmoid")
        x_lt = _layer_norm(x_lt, g, bln)
        x_st = _layer_norm(x_st, g, bln)
        outs.append(x_st)
    result = jnp.stack(outs, axis=1)
    logits = _run_mlp(xe.reshape(B * T, C), params["head"], None).reshape(B, T, VOCAB)
    return logits, result


if __name__ == "__main__":
    key = jax.random.PRNGKey(0)
    pkey, dkey = jax.random.split(key)
    params = init_params(pkey)

    B, T = 2, 8   # T <= block_size (10)
    tokens = jax.random.randint(dkey, (B, T), 0, VOCAB, dtype=jnp.int32)

    logits_tab = compute_logits_table(params)            # once per parameter set
    logits, result = lstm_forward(params, tokens, logits_tab)
    logits, result = jax.block_until_ready((logits, result))

    ref_logits, ref_result = forward_ref(params, tokens)
    np.testing.assert_allclose(np.asarray(logits), np.asarray(ref_logits), rtol=2e-2, atol=2e-2)
    np.testing.assert_allclose(np.asarray(result), np.asarray(ref_result), rtol=2e-2, atol=2e-2)

    assert logits.shape == (B, T, VOCAB)
    assert result.shape == (B, T, EMB)
    loss = None   # targets=None path, matching the torch forward
    print("KERNEL_OK")
</pallas_src>

<mosaic_0001>
module attributes {stable_mosaic.version = 11 : i64} {
  func.func @head_kernel(%arg0: memref<10x64xf32, #tpu.memory_space<vmem>>, %arg1: memref<64x1024xbf16, #tpu.memory_space<vmem>>, %arg2: memref<1x1024xf32, #tpu.memory_space<vmem>>, %arg3: memref<1024x2048xbf16, #tpu.memory_space<vmem>>, %arg4: memref<1x2048xf32, #tpu.memory_space<vmem>>, %arg5: memref<2048x128xbf16, #tpu.memory_space<vmem>>, %arg6: memref<1x128xf32, #tpu.memory_space<vmem>>, %arg7: memref<10x128xf32, #tpu.memory_space<vmem>>) attributes {dimension_semantics = [], scalar_prefetch = 0 : i64, scratch_operands = 0 : i64, tpu.core_type = #tpu.core_type<tc>} {
    %c0 = arith.constant 0 : index
    %c0_0 = arith.constant 0 : index
    %0 = vector.load %arg0[%c0, %c0_0] : memref<10x64xf32, #tpu.memory_space<vmem>>, vector<10x64xf32>
    %1 = arith.truncf %0 : vector<10x64xf32> to vector<10x64xbf16>
    %c0_1 = arith.constant 0 : index
    %c0_2 = arith.constant 0 : index
    %2 = vector.load %arg1[%c0_1, %c0_2] : memref<64x1024xbf16, #tpu.memory_space<vmem>>, vector<64x1024xbf16>
    %cst = arith.constant dense<0.000000e+00> : vector<10x1024xf32>
    %3 = tpu.matmul %1, %2, %cst {dimension_numbers = #tpu.dot_dimension_numbers<[1], [0], [0], [1], [0, 0, 1, 1], [], []>} : vector<10x64xbf16>, vector<64x1024xbf16>, vector<10x1024xf32> -> vector<10x1024xf32>
    %c0_3 = arith.constant 0 : index
    %c0_4 = arith.constant 0 : index
    %4 = vector.load %arg2[%c0_3, %c0_4] : memref<1x1024xf32, #tpu.memory_space<vmem>>, vector<1x1024xf32>
    %5 = vector.broadcast %4 : vector<1x1024xf32> to vector<10x1024xf32>
    %6 = arith.addf %3, %5 : vector<10x1024xf32>
    %cst_5 = arith.constant 0.000000e+00 : f32
    %7 = vector.broadcast %cst_5 : f32 to vector<10x1024xf32>
    %8 = arith.maximumf %6, %7 : vector<10x1024xf32>
    %9 = arith.truncf %8 : vector<10x1024xf32> to vector<10x1024xbf16>
    %c0_6 = arith.constant 0 : index
    %c0_7 = arith.constant 0 : index
    %10 = vector.load %arg3[%c0_6, %c0_7] : memref<1024x2048xbf16, #tpu.memory_space<vmem>>, vector<1024x2048xbf16>
    %cst_8 = arith.constant dense<0.000000e+00> : vector<10x2048xf32>
    %11 = tpu.matmul %9, %10, %cst_8 {dimension_numbers = #tpu.dot_dimension_numbers<[1], [0], [0], [1], [0, 0, 1, 1], [], []>} : vector<10x1024xbf16>, vector<1024x2048xbf16>, vector<10x2048xf32> -> vector<10x2048xf32>
    %c0_9 = arith.constant 0 : index
    %c0_10 = arith.constant 0 : index
    %12 = vector.load %arg4[%c0_9, %c0_10] : memref<1x2048xf32, #tpu.memory_space<vmem>>, vector<1x2048xf32>
    %13 = vector.broadcast %12 : vector<1x2048xf32> to vector<10x2048xf32>
    %14 = arith.addf %11, %13 : vector<10x2048xf32>
    %cst_11 = arith.constant 0.000000e+00 : f32
    %15 = vector.broadcast %cst_11 : f32 to vector<10x2048xf32>
    %16 = arith.maximumf %14, %15 : vector<10x2048xf32>
    %17 = arith.truncf %16 : vector<10x2048xf32> to vector<10x2048xbf16>
    %c0_12 = arith.constant 0 : index
    %c0_13 = arith.constant 0 : index
    %18 = vector.load %arg5[%c0_12, %c0_13] : memref<2048x128xbf16, #tpu.memory_space<vmem>>, vector<2048x128xbf16>
    %cst_14 = arith.constant dense<0.000000e+00> : vector<10x128xf32>
    %19 = tpu.matmul %17, %18, %cst_14 {dimension_numbers = #tpu.dot_dimension_numbers<[1], [0], [0], [1], [0, 0, 1, 1], [], []>} : vector<10x2048xbf16>, vector<2048x128xbf16>, vector<10x128xf32> -> vector<10x128xf32>
    %c0_15 = arith.constant 0 : index
    %c0_16 = arith.constant 0 : index
    %20 = vector.load %arg6[%c0_15, %c0_16] : memref<1x128xf32, #tpu.memory_space<vmem>>, vector<1x128xf32>
    %21 = vector.broadcast %20 : vector<1x128xf32> to vector<10x128xf32>
    %22 = arith.addf %19, %21 : vector<10x128xf32>
    %c0_17 = arith.constant 0 : index
    %c0_18 = arith.constant 0 : index
    %23 = vector.load %arg7[%c0_17, %c0_18] : memref<10x128xf32, #tpu.memory_space<vmem>>, vector<10x128xf32>
    tpu.vector_store %arg7[%c0_17, %c0_18], %22 {strides = array<i32>} : memref<10x128xf32, #tpu.memory_space<vmem>>, vector<10x128xf32>,
    return
  }
}

</mosaic_0001>

<llo_original>
// kernel: tpu_custom_call.1
$region0: #{tpu_custom_call.1}
  #allocation0 [shape = 'u32[]', space=smem, size = 0x4, offset = 0x4, fixed_abs, tag = 'smem constant byte address 0x4 - core index']
  #allocation1 [shape = 'u32[72,128]{1,0:T(1,128)}', space=vmem, size = 0x9000, scoped, tag = 'internal scratch']
  %s0 = inlined_call_operand.hbm [shape: f32[10,64], index: 0, kind: input, shape index: {}]
  %s1 = inlined_call_operand.hbm [shape: bf16[64,1024], index: 1, kind: input, shape index: {}]
  %s2 = inlined_call_operand.hbm [shape: f32[1,1024], index: 2, kind: input, shape index: {}]
  %s3 = inlined_call_operand.hbm [shape: bf16[1024,2048], index: 3, kind: input, shape index: {}]
  %s4 = inlined_call_operand.hbm [shape: f32[1,2048], index: 4, kind: input, shape index: {}]
  %s5 = inlined_call_operand.hbm [shape: bf16[2048,128], index: 5, kind: input, shape index: {}]
  %s6 = inlined_call_operand.hbm [shape: f32[1,128], index: 6, kind: input, shape index: {}]
  %s7 = inlined_call_operand.hbm [shape: f32[10,128], index: 7, kind: output, shape index: {}]
  %s8 = sld [smem:[#allocation0]]
  $region66: #{tpu_custom_call.1} parent=0
    _
  %s10 = ssub.s32 1, %s8
  %s11 = scalar_select 0, %s10, %s8
  $region1: #{tpu_custom_call.1} parent=0
    #allocation2 [shape = 'u8[8192]{0}', space=vmem, size = 0x2000, scoped, tag = 'input window, operand 0, single buffered']
    #allocation3 [shape = 's32[1]{0}', space=sflag, size = 0x4, scoped, tag = 'scoped memory for tpu_custom_call.1']
    #allocation4 [shape = 's32[1]{0}', space=sflag, size = 0x4, scoped, tag = 'scoped memory for tpu_custom_call.1']
    #allocation5 [shape = 'u8[131072]{0}', space=vmem, size = 0x20000, scoped, tag = 'input window, operand 1, single buffered']
    #allocation6 [shape = 's32[1]{0}', space=sflag, size = 0x4, scoped, tag = 'scoped memory for tpu_custom_call.1']
    #allocation7 [shape = 'u8[4096]{0}', space=vmem, size = 0x1000, scoped, tag = 'input window, operand 2, single buffered']
    #allocation8 [shape = 'u8[4194304]{0}', space=vmem, size = 0x400000, scoped, tag = 'input window, operand 3, single buffered']
    #allocation9 [shape = 's32[1]{0}', space=sflag, size = 0x4, scoped, tag = 'scoped memory for tpu_custom_call.1']
    #allocation10 [shape = 'u8[8192]{0}', space=vmem, size = 0x2000, scoped, tag = 'input window, operand 4, single buffered']
    #allocation11 [shape = 'u8[524288]{0}', space=vmem, size = 0x80000, scoped, tag = 'input window, operand 5, single buffered']
    #allocation12 [shape = 's32[1]{0}', space=sflag, size = 0x4, scoped, tag = 'scoped memory for tpu_custom_call.1']
    #allocation13 [shape = 'u8[512]{0}', space=vmem, size = 0x400, scoped, tag = 'input window, operand 6, single buffered']
    #allocation14 [shape = 'u8[8192]{0}', space=vmem, size = 0x2000, scoped, tag = 'output window, operand 0, single buffered']
    %12 = vsyncpa [#allocation3], 0
    %13 = vsyncpa [#allocation6], 0
    %14 = vsyncpa [#allocation9], 0
    %15 = vsyncpa [#allocation12], 0
    %16 = vsyncpa [#allocation4], 0
    // Predicated region
    $region2: #{tpu_custom_call.1} parent=1 // pred_check
      _
    $region3: #{tpu_custom_call.1} parent=1 // pred_check_branch
      %18 = sbr.rel (0) target = $region5
    $region4: #{tpu_custom_call.1} parent=1 // pred_region
      %20 = vsyncadd [#allocation3], 0
      %s21 = sshll.u32 %s0, 4
      %s22 = int_to_ptr.hbm [resolvable:$true] %s21
      %s23 = sshll.u32 [#allocation2], 4
      %s24 = int_to_ptr.vmem [resolvable:$true] %s23
      %29 = dma.hbm_to_vmem [thread:$0]  %s22, 256, %s24, [#allocation3], 128, 128, 8
    $region5: #{tpu_custom_call.1} parent=1 // pred_fallthru
      _
    // Predicated region
    $region6: #{tpu_custom_call.1} parent=1 // pred_check
      _
    $region7: #{tpu_custom_call.1} parent=1 // pred_check_branch
      %31 = sbr.rel (0) target = $region9
    $region8: #{tpu_custom_call.1} parent=1 // pred_region
      %33 = vsyncadd [#allocation6], 0
      %s34 = sshll.u32 %s1, 4
      %s35 = int_to_ptr.hbm [resolvable:$true] %s34
      %s36 = sshll.u32 [#allocation5], 4
      %s37 = int_to_ptr.vmem [resolvable:$true] %s36
      %42 = dma.hbm_to_vmem [thread:$0]  %s35, 4096, %s37, [#allocation6], 512, 512, 32
    $region9: #{tpu_custom_call.1} parent=1 // pred_fallthru
      _
    // Predicated region
    $region10: #{tpu_custom_call.1} parent=1 // pred_check
      _
    $region11: #{tpu_custom_call.1} parent=1 // pred_check_branch
      %44 = sbr.rel (0) target = $region13
    $region12: #{tpu_custom_call.1} parent=1 // pred_region
      %46 = vsyncadd [#allocation6], 0
      %s48 = sshll.u32 %s2, 4
      %s49 = int_to_ptr.hbm [resolvable:$true] %s48
      %s50 = sshll.u32 [#allocation7], 4
      %s51 = int_to_ptr.vmem [resolvable:$true] %s50
      %53 = dma.hbm_to_vmem [thread:$0]  %s49, 128, %s51, [#allocation6]
    $region13: #{tpu_custom_call.1} parent=1 // pred_fallthru
      _
    // Predicated region
    $region14: #{tpu_custom_call.1} parent=1 // pred_check
      _
    $region15: #{tpu_custom_call.1} parent=1 // pred_check_branch
      %55 = sbr.rel (0) target = $region17
    $region16: #{tpu_custom_call.1} parent=1 // pred_region
      %57 = vsyncadd [#allocation9], 0
      %s58 = sshll.u32 %s3, 4
      %s59 = int_to_ptr.hbm [resolvable:$true] %s58
      %s60 = sshll.u32 [#allocation8], 4
      %s61 = int_to_ptr.vmem [resolvable:$true] %s60
      %66 = dma.hbm_to_vmem [thread:$0]  %s59, 131072, %s61, [#allocation9], 1024, 1024, 64
    $region17: #{tpu_custom_call.1} parent=1 // pred_fallthru
      _
    // Predicated region
    $region18: #{tpu_custom_call.1} parent=1 // pred_check
      _
    $region19: #{tpu_custom_call.1} parent=1 // pred_check_branch
      %68 = sbr.rel (0) target = $region21
    $region20: #{tpu_custom_call.1} parent=1 // pred_region
      %70 = vsyncadd [#allocation9], 0
      %s72 = sshll.u32 %s4, 4
      %s73 = int_to_ptr.hbm [resolvable:$true] %s72
      %s74 = sshll.u32 [#allocation10], 4
      %s75 = int_to_ptr.vmem [resolvable:$true] %s74
      %77 = dma.hbm_to_vmem [thread:$0]  %s73, 256, %s75, [#allocation9]
    $region21: #{tpu_custom_call.1} parent=1 // pred_fallthru
      _
    // Predicated region
    $region22: #{tpu_custom_call.1} parent=1 // pred_check
      _
    $region23: #{tpu_custom_call.1} parent=1 // pred_check_branch
      %79 = sbr.rel (0) target = $region25
    $region24: #{tpu_custom_call.1} parent=1 // pred_region
      %81 = vsyncadd [#allocation12], 0
      %s82 = sshll.u32 %s5, 4
      %s83 = int_to_ptr.hbm [resolvable:$true] %s82
      %s84 = sshll.u32 [#allocation11], 4
      %s85 = int_to_ptr.vmem [resolvable:$true] %s84
      %90 = dma.hbm_to_vmem [thread:$0]  %s83, 16384, %s85, [#allocation12], 64, 64, 4
    $region25: #{tpu_custom_call.1} parent=1 // pred_fallthru
      _
    // Predicated region
    $region26: #{tpu_custom_call.1} parent=1 // pred_check
      _
    $region27: #{tpu_custom_call.1} parent=1 // pred_check_branch
      %92 = sbr.rel (0) target = $region29
    $region28: #{tpu_custom_call.1} parent=1 // pred_region
      %94 = vsyncadd [#allocation12], 0
      %s96 = sshll.u32 %s6, 4
      %s97 = int_to_ptr.hbm [resolvable:$true] %s96
      %s98 = sshll.u32 [#allocation13], 4
      %s99 = int_to_ptr.vmem [resolvable:$true] %s98
      %101 = dma.hbm_to_vmem [thread:$0]  %s97, 16, %s99, [#allocation12]
    $region29: #{tpu_custom_call.1} parent=1 // pred_fallthru
      _
    // Predicated region
    $region30: #{tpu_custom_call.1} parent=1 // pred_check
      _
    $region31: #{tpu_custom_call.1} parent=1 // pred_check_branch
      %103 = sbr.rel (0) target = $region33
    $region32: #{tpu_custom_call.1} parent=1 // pred_region
      %105 = dma.done [#allocation3], 256
    $region33: #{tpu_custom_call.1} parent=1 // pred_fallthru
      _
    // Predicated region
    $region34: #{tpu_custom_call.1} parent=1 // pred_check
      _
    $region35: #{tpu_custom_call.1} parent=1 // pred_check_branch
      %107 = sbr.rel (0) target = $region37
    $region36: #{tpu_custom_call.1} parent=1 // pred_region
      %109 = dma.done [#allocation6], 4096
    $region37: #{tpu_custom_call.1} parent=1 // pred_fallthru
      _
    // Predicated region
    $region38: #{tpu_custom_call.1} parent=1 // pred_check
      _
    $region39: #{tpu_custom_call.1} parent=1 // pred_check_branch
      %111 = sbr.rel (0) target = $region41
    $region40: #{tpu_custom_call.1} parent=1 // pred_region
      %113 = dma.done [#allocation6], 128
    $region41: #{tpu_custom_call.1} parent=1 // pred_fallthru
      _
    // Predicated region
    $region42: #{tpu_custom_call.1} parent=1 // pred_check
      _
    $region43: #{tpu_custom_call.1} parent=1 // pred_check_branch
      %115 = sbr.rel (0) target = $region45
    $region44: #{tpu_custom_call.1} parent=1 // pred_region
      %117 = dma.done [#allocation9], 131072
    $region45: #{tpu_custom_call.1} parent=1 // pred_fallthru
      _
    // Predicated region
    $region46: #{tpu_custom_call.1} parent=1 // pred_check
      _
    $region47: #{tpu_custom_call.1} parent=1 // pred_check_branch
      %119 = sbr.rel (0) target = $region49
    $region48: #{tpu_custom_call.1} parent=1 // pred_region
      %121 = dma.done [#allocation9], 256
    $region49: #{tpu_custom_call.1} parent=1 // pred_fallthru
      _
    // Predicated region
    $region50: #{tpu_custom_call.1} parent=1 // pred_check
      _
    $region51: #{tpu_custom_call.1} parent=1 // pred_check_branch
      %123 = sbr.rel (0) target = $region53
    $region52: #{tpu_custom_call.1} parent=1 // pred_region
      %125 = dma.done [#allocation12], 16384
    $region53: #{tpu_custom_call.1} parent=1 // pred_fallthru
      _
    // Predicated region
    $region54: #{tpu_custom_call.1} parent=1 // pred_check
      _
    $region55: #{tpu_custom_call.1} parent=1 // pred_check_branch
      %127 = sbr.rel (0) target = $region57
    $region56: #{tpu_custom_call.1} parent=1 // pred_region
      %129 = dma.done [#allocation12], 16
    $region57: #{tpu_custom_call.1} parent=1 // pred_fallthru
      _
    %v131 = vld [vmem:[#allocation2] sm:$0xff]
    %v132 = vld [vmem:[#allocation2 + $0x8] sm:$0x3]
    %v133 = vpack.c.bf16 %v132, %v131
    %v134 = vld [vmem:[#allocation5] sm:$0xff]
    %v135 = vld [vmem:[#allocation5 + $0x8] sm:$0xff]
    %v136 = vld [vmem:[#allocation5 + $0x10] sm:$0xff]
    %v137 = vld [vmem:[#allocation5 + $0x18] sm:$0xff]
    %v138 = vld [vmem:[#allocation5 + $0x20] sm:$0xff]
    %v139 = vld [vmem:[#allocation5 + $0x28] sm:$0xff]
    %v140 = vld [vmem:[#allocation5 + $0x30] sm:$0xff]
    %v141 = vld [vmem:[#allocation5 + $0x38] sm:$0xff]
    %v142 = vld [vmem:[#allocation5 + $0x40] sm:$0xff]
    %v143 = vld [vmem:[#allocation5 + $0x48] sm:$0xff]
    %v144 = vld [vmem:[#allocation5 + $0x50] sm:$0xff]
    %v145 = vld [vmem:[#allocation5 + $0x58] sm:$0xff]
    %v146 = vld [vmem:[#allocation5 + $0x60] sm:$0xff]
    %v147 = vld [vmem:[#allocation5 + $0x68] sm:$0xff]
    %v148 = vld [vmem:[#allocation5 + $0x70] sm:$0xff]
    %v149 = vld [vmem:[#allocation5 + $0x78] sm:$0xff]
    %v150 = vld [vmem:[#allocation5 + $0x80] sm:$0xff]
    %v151 = vld [vmem:[#allocation5 + $0x88] sm:$0xff]
    %v152 = vld [vmem:[#allocation5 + $0x90] sm:$0xff]
    %v153 = vld [vmem:[#allocation5 + $0x98] sm:$0xff]
    %v154 = vld [vmem:[#allocation5 + $0xa0] sm:$0xff]
    %v155 = vld [vmem:[#allocation5 + $0xa8] sm:$0xff]
    %v156 = vld [vmem:[#allocation5 + $0xb0] sm:$0xff]
    %v157 = vld [vmem:[#allocation5 + $0xb8] sm:$0xff]
    %v158 = vld [vmem:[#allocation5 + $0xc0] sm:$0xff]
    %v159 = vld [vmem:[#allocation5 + $0xc8] sm:$0xff]
    %v160 = vld [vmem:[#allocation5 + $0xd0] sm:$0xff]
    %v161 = vld [vmem:[#allocation5 + $0xd8] sm:$0xff]
    %v162 = vld [vmem:[#allocation5 + $0xe0] sm:$0xff]
    %v163 = vld [vmem:[#allocation5 + $0xe8] sm:$0xff]
    %v164 = vld [vmem:[#allocation5 + $0xf0] sm:$0xff]
    %v165 = vld [vmem:[#allocation5 + $0xf8] sm:$0xff]
    %v166 = vld [vmem:[#allocation7] sm:$0xff]
    %v168 = vperm.slane %v166, 0
    %v169 = vperm.slane %v166, 1
    %v170 = vperm.slane %v166, 2
    %v171 = vperm.slane %v166, 3
    %v172 = vperm.slane %v166, 4
    %v173 = vperm.slane %v166, 5
    %v174 = vperm.slane %v166, 6
    %v175 = vperm.slane %v166, 7
    %v216 = vunpack.c.l.b16 %v134
    %v217 = vunpack.c.h.b16 %v134
    %v218 = vunpack.c.l.b16 %v135
    %v219 = vunpack.c.h.b16 %v135
    %v220 = vunpack.c.l.b16 %v136
    %v221 = vunpack.c.h.b16 %v136
    %v222 = vunpack.c.l.b16 %v137
    %v223 = vunpack.c.h.b16 %v137
    %v224 = vunpack.c.l.b16 %v138
    %v225 = vunpack.c.h.b16 %v138
    %v226 = vunpack.c.l.b16 %v139
    %v227 = vunpack.c.h.b16 %v139
    %v228 = vunpack.c.l.b16 %v140
    %v229 = vunpack.c.h.b16 %v140
    %v230 = vunpack.c.l.b16 %v141
    %v231 = vunpack.c.h.b16 %v141
    %v232 = vunpack.c.l.b16 %v142
    %v233 = vunpack.c.h.b16 %v142
    %v234 = vunpack.c.l.b16 %v143
    %v235 = vunpack.c.h.b16 %v143
    %v236 = vunpack.c.l.b16 %v144
    %v237 = vunpack.c.h.b16 %v144
    %v238 = vunpack.c.l.b16 %v145
    %v239 = vunpack.c.h.b16 %v145
    %v240 = vunpack.c.l.b16 %v146
    %v241 = vunpack.c.h.b16 %v146
    %v242 = vunpack.c.l.b16 %v147
    %v243 = vunpack.c.h.b16 %v147
    %v244 = vunpack.c.l.b16 %v148
    %v245 = vunpack.c.h.b16 %v148
    %v246 = vunpack.c.l.b16 %v149
    %v247 = vunpack.c.h.b16 %v149
    %v248 = vunpack.c.l.b16 %v150
    %v249 = vunpack.c.h.b16 %v150
    %v250 = vunpack.c.l.b16 %v151
    %v251 = vunpack.c.h.b16 %v151
    %v252 = vunpack.c.l.b16 %v152
    %v253 = vunpack.c.h.b16 %v152
    %v254 = vunpack.c.l.b16 %v153
    %v255 = vunpack.c.h.b16 %v153
    %v256 = vunpack.c.l.b16 %v154
    %v257 = vunpack.c.h.b16 %v154
    %v258 = vunpack.c.l.b16 %v155
    %v259 = vunpack.c.h.b16 %v155
    %v260 = vunpack.c.l.b16 %v156
    %v261 = vunpack.c.h.b16 %v156
    %v262 = vunpack.c.l.b16 %v157
    %v263 = vunpack.c.h.b16 %v157
    %v264 = vunpack.c.l.b16 %v158
    %v265 = vunpack.c.h.b16 %v158
    %v266 = vunpack.c.l.b16 %v159
    %v267 = vunpack.c.h.b16 %v159
    %v268 = vunpack.c.l.b16 %v160
    %v269 = vunpack.c.h.b16 %v160
    %v270 = vunpack.c.l.b16 %v161
    %v271 = vunpack.c.h.b16 %v161
    %v272 = vunpack.c.l.b16 %v162
    %v273 = vunpack.c.h.b16 %v162
    %v274 = vunpack.c.l.b16 %v163
    %v275 = vunpack.c.h.b16 %v163
    %v276 = vunpack.c.l.b16 %v164
    %v277 = vunpack.c.h.b16 %v164
    %v278 = vunpack.c.l.b16 %v165
    %v279 = vunpack.c.h.b16 %v165
    %v280 = vpack.c.b16 %v224, %v216
    %v281 = vpack.c.b16 %v225, %v217
    %v282 = vpack.c.b16 %v226, %v218
    %v283 = vpack.c.b16 %v227, %v219
    %v284 = vpack.c.b16 %v228, %v220
    %v285 = vpack.c.b16 %v229, %v221
    %v286 = vpack.c.b16 %v230, %v222
    %v287 = vpack.c.b16 %v231, %v223
    %v288 = vpack.c.b16 %v240, %v232
    %v289 = vpack.c.b16 %v241, %v233
    %v290 = vpack.c.b16 %v242, %v234
    %v291 = vpack.c.b16 %v243, %v235
    %v292 = vpack.c.b16 %v244, %v236
    %v293 = vpack.c.b16 %v245, %v237
    %v294 = vpack.c.b16 %v246, %v238
    %v295 = vpack.c.b16 %v247, %v239
    %v296 = vpack.c.b16 %v256, %v248
    %v297 = vpack.c.b16 %v257, %v249
    %v298 = vpack.c.b16 %v258, %v250
    %v299 = vpack.c.b16 %v259, %v251
    %v300 = vpack.c.b16 %v260, %v252
    %v301 = vpack.c.b16 %v261, %v253
    %v302 = vpack.c.b16 %v262, %v254
    %v303 = vpack.c.b16 %v263, %v255
    %v304 = vpack.c.b16 %v272, %v264
    %v305 = vpack.c.b16 %v273, %v265
    %v306 = vpack.c.b16 %v274, %v266
    %v307 = vpack.c.b16 %v275, %v267
    %v308 = vpack.c.b16 %v276, %v268
    %v309 = vpack.c.b16 %v277, %v269
    %v310 = vpack.c.b16 %v278, %v270
    %v311 = vpack.c.b16 %v279, %v271
    %vm344 = vcmask 523264
    %v346 = vsel %vm344, %v133, 0
    %348 = vmatpush.bf16.msra.mxu0 0
    %349 = vmatpush.bf16.msra.mxu0 0
    %350 = vmatpush.bf16.msra.mxu0 0
    %351 = vmatpush.bf16.msra.mxu0 0
    %352 = vmatpush.bf16.msra.mxu0 %v304
    %353 = vmatpush.bf16.msra.mxu0 %v296
    %354 = vmatpush.bf16.msra.mxu0 %v288
    %355 = vmatpush.bf16.msra.mxu0 %v280
    %356 = vmatmul.bf16.gmra.mxu0 %v346
    %v357 = vpop.f32.mrf.mxu0
    %v358 = vadd.f32 %v168, %v357
    %v359 = vpop.f32.mrf.mxu0
    %v360 = vadd.f32 %v168, %v359
    %361 = vdwg.mxu0
    %362 = vmatpush.bf16.msra.mxu0 0
    %363 = vmatpush.bf16.msra.mxu0 0
    %364 = vmatpush.bf16.msra.mxu0 0
    %365 = vmatpush.bf16.msra.mxu0 0
    %366 = vmatpush.bf16.msra.mxu0 %v305
    %367 = vmatpush.bf16.msra.mxu0 %v297
    %368 = vmatpush.bf16.msra.mxu0 %v289
    %369 = vmatpush.bf16.msra.mxu0 %v281
    %370 = vmatmul.bf16.gmra.mxu0 %v346
    %v371 = vpop.f32.mrf.mxu0
    %v372 = vadd.f32 %v169, %v371
    %v373 = vpop.f32.mrf.mxu0
    %v374 = vadd.f32 %v169, %v373
    %375 = vdwg.mxu0
    %376 = vmatpush.bf16.msra.mxu0 0
    %377 = vmatpush.bf16.msra.mxu0 0
    %378 = vmatpush.bf16.msra.mxu0 0
    %379 = vmatpush.bf16.msra.mxu0 0
    %380 = vmatpush.bf16.msra.mxu0 %v306
    %381 = vmatpush.bf16.msra.mxu0 %v298
    %382 = vmatpush.bf16.msra.mxu0 %v290
    %383 = vmatpush.bf16.msra.mxu0 %v282
    %384 = vmatmul.bf16.gmra.mxu0 %v346
    %v385 = vpop.f32.mrf.mxu0
    %v386 = vadd.f32 %v170, %v385
    %v387 = vpop.f32.mrf.mxu0
    %v388 = vadd.f32 %v170, %v387
    %389 = vdwg.mxu0
    %390 = vmatpush.bf16.msra.mxu0 0
    %391 = vmatpush.bf16.msra.mxu0 0
    %392 = vmatpush.bf16.msra.mxu0 0
    %393 = vmatpush.bf16.msra.mxu0 0
    %394 = vmatpush.bf16.msra.mxu0 %v307
    %395 = vmatpush.bf16.msra.mxu0 %v299
    %396 = vmatpush.bf16.msra.mxu0 %v291
    %397 = vmatpush.bf16.msra.mxu0 %v283
    %398 = vmatmul.bf16.gmra.mxu0 %v346
    %v399 = vpop.f32.mrf.mxu0
    %v400 = vadd.f32 %v171, %v399
    %v401 = vpop.f32.mrf.mxu0
    %v402 = vadd.f32 %v171, %v401
    %403 = vdwg.mxu0
    %404 = vmatpush.bf16.msra.mxu0 0
    %405 = vmatpush.bf16.msra.mxu0 0
    %406 = vmatpush.bf16.msra.mxu0 0
    %407 = vmatpush.bf16.msra.mxu0 0
    %408 = vmatpush.bf16.msra.mxu0 %v308
    %409 = vmatpush.bf16.msra.mxu0 %v300
    %410 = vmatpush.bf16.msra.mxu0 %v292
    %411 = vmatpush.bf16.msra.mxu0 %v284
    %412 = vmatmul.bf16.gmra.mxu0 %v346
    %v413 = vpop.f32.mrf.mxu0
    %v414 = vadd.f32 %v172, %v413
    %v415 = vpop.f32.mrf.mxu0
    %v416 = vadd.f32 %v172, %v415
    %417 = vdwg.mxu0
    %418 = vmatpush.bf16.msra.mxu0 0
    %419 = vmatpush.bf16.msra.mxu0 0
    %420 = vmatpush.bf16.msra.mxu0 0
    %421 = vmatpush.bf16.msra.mxu0 0
    %422 = vmatpush.bf16.msra.mxu0 %v309
    %423 = vmatpush.bf16.msra.mxu0 %v301
    %424 = vmatpush.bf16.msra.mxu0 %v293
    %425 = vmatpush.bf16.msra.mxu0 %v285
    %426 = vmatmul.bf16.gmra.mxu0 %v346
    %v427 = vpop.f32.mrf.mxu0
    %v428 = vadd.f32 %v173, %v427
    %v429 = vpop.f32.mrf.mxu0
    %v430 = vadd.f32 %v173, %v429
    %431 = vdwg.mxu0
    %432 = vmatpush.bf16.msra.mxu0 0
    %433 = vmatpush.bf16.msra.mxu0 0
    %434 = vmatpush.bf16.msra.mxu0 0
    %435 = vmatpush.bf16.msra.mxu0 0
    %436 = vmatpush.bf16.msra.mxu0 %v310
    %437 = vmatpush.bf16.msra.mxu0 %v302
    %438 = vmatpush.bf16.msra.mxu0 %v294
    %439 = vmatpush.bf16.msra.mxu0 %v286
    %440 = vmatmul.bf16.gmra.mxu0 %v346
    %v441 = vpop.f32.mrf.mxu0
    %v442 = vadd.f32 %v174, %v441
    %v443 = vpop.f32.mrf.mxu0
    %v444 = vadd.f32 %v174, %v443
    %445 = vdwg.mxu0
    %446 = vmatpush.bf16.msra.mxu0 0
    %447 = vmatpush.bf16.msra.mxu0 0
    %448 = vmatpush.bf16.msra.mxu0 0
    %449 = vmatpush.bf16.msra.mxu0 0
    %450 = vmatpush.bf16.msra.mxu0 %v311
    %451 = vmatpush.bf16.msra.mxu0 %v303
    %452 = vmatpush.bf16.msra.mxu0 %v295
    %453 = vmatpush.bf16.msra.mxu0 %v287
    %454 = vmatmul.bf16.gmra.mxu0 %v346
    %v455 = vpop.f32.mrf.mxu0
    %v456 = vadd.f32 %v175, %v455
    %v457 = vpop.f32.mrf.mxu0
    %v458 = vadd.f32 %v175, %v457
    %459 = vdwg.mxu0
    %v460 = vmax.f32 %v358, 0.0
    %v461 = vmax.f32 %v372, 0.0
    %v462 = vmax.f32 %v386, 0.0
    %v463 = vmax.f32 %v400, 0.0
    %v464 = vmax.f32 %v414, 0.0
    %v465 = vmax.f32 %v428, 0.0
    %v466 = vmax.f32 %v442, 0.0
    %v467 = vmax.f32 %v456, 0.0
    %v468 = vmax.f32 %v360, 0.0
    %v469 = vmax.f32 %v374, 0.0
    %v470 = vmax.f32 %v388, 0.0
    %v471 = vmax.f32 %v402, 0.0
    %v472 = vmax.f32 %v416, 0.0
    %v473 = vmax.f32 %v430, 0.0
    %v474 = vmax.f32 %v444, 0.0
    %v475 = vmax.f32 %v458, 0.0
    %v476 = vpack.c.bf16 %v468, %v460
    %v477 = vpack.c.bf16 %v469, %v461
    %v478 = vpack.c.bf16 %v470, %v462
    %v479 = vpack.c.bf16 %v471, %v463
    %v480 = vpack.c.bf16 %v472, %v464
    %v481 = vpack.c.bf16 %v473, %v465
    %v482 = vpack.c.bf16 %v474, %v466
    %v483 = vpack.c.bf16 %v475, %v467
    %v484 = vld [vmem:[#allocation8] sm:$0xff]
    %v485 = vld [vmem:[#allocation8 + $0x8] sm:$0xff]
    %v486 = vld [vmem:[#allocation8 + $0x10] sm:$0xff]
    %v487 = vld [vmem:[#allocation8 + $0x18] sm:$0xff]
    %v488 = vld [vmem:[#allocation8 + $0x20] sm:$0xff]
    %v489 = vld [vmem:[#allocation8 + $0x28] sm:$0xff]
    %v490 = vld [vmem:[#allocation8 + $0x30] sm:$0xff]
    %v491 = vld [vmem:[#allocation8 + $0x38] sm:$0xff]
    %v492 = vld [vmem:[#allocation8 + $0x40] sm:$0xff]
    %v493 = vld [vmem:[#allocation8 + $0x48] sm:$0xff]
    %v494 = vld [vmem:[#allocation8 + $0x50] sm:$0xff]
    %v495 = vld [vmem:[#allocation8 + $0x58] sm:$0xff]
    %v496 = vld [vmem:[#allocation8 + $0x60] sm:$0xff]
    %v497 = vld [vmem:[#allocation8 + $0x68] sm:$0xff]
    %v498 = vld [vmem:[#allocation8 + $0x70] sm:$0xff]
    %v499 = vld [vmem:[#allocation8 + $0x78] sm:$0xff]
    %v500 = vld [vmem:[#allocation8 + $0x80] sm:$0xff]
    %v501 = vld [vmem:[#allocation8 + $0x88] sm:$0xff]
    %v502 = vld [vmem:[#allocation8 + $0x90] sm:$0xff]
    %v503 = vld [vmem:[#allocation8 + $0x98] sm:$0xff]
    %v504 = vld [vmem:[#allocation8 + $0xa0] sm:$0xff]
    %v505 = vld [vmem:[#allocation8 + $0xa8] sm:$0xff]
    %v506 = vld [vmem:[#allocation8 + $0xb0] sm:$0xff]
    %v507 = vld [vmem:[#allocation8 + $0xb8] sm:$0xff]
    %v508 = vld [vmem:[#allocation8 + $0xc0] sm:$0xff]
    %v509 = vld [vmem:[#allocation8 + $0xc8] sm:$0xff]
    %v510 = vld [vmem:[#allocation8 + $0xd0] sm:$0xff]
    %v511 = vld [vmem:[#allocation8 + $0xd8] sm:$0xff]
    %v512 = vld [vmem:[#allocation8 + $0xe0] sm:$0xff]
    %v513 = vld [vmem:[#allocation8 + $0xe8] sm:$0xff]
    %v514 = vld [vmem:[#allocation8 + $0xf0] sm:$0xff]
    %v515 = vld [vmem:[#allocation8 + $0xf8] sm:$0xff]
    %v516 = vld [vmem:[#allocation8 + $0x100] sm:$0xff]
    %v517 = vld [vmem:[#allocation8 + $0x108] sm:$0xff]
    %v518 = vld [vmem:[#allocation8 + $0x110] sm:$0xff]
    %v519 = vld [vmem:[#allocation8 + $0x118] sm:$0xff]
    %v520 = vld [vmem:[#allocation8 + $0x120] sm:$0xff]
    %v521 = vld [vmem:[#allocation8 + $0x128] sm:$0xff]
    %v522 = vld [vmem:[#allocation8 + $0x130] sm:$0xff]
    %v523 = vld [vmem:[#allocation8 + $0x138] sm:$0xff]
    %v524 = vld [vmem:[#allocation8 + $0x140] sm:$0xff]
    %v525 = vld [vmem:[#allocation8 + $0x148] sm:$0xff]
    %v526 = vld [vmem:[#allocation8 + $0x150] sm:$0xff]
    %v527 = vld [vmem:[#allocation8 + $0x158] sm:$0xff]
    %v528 = vld [vmem:[#allocation8 + $0x160] sm:$0xff]
    %v529 = vld [vmem:[#allocation8 + $0x168] sm:$0xff]
    %v530 = vld [vmem:[#allocation8 + $0x170] sm:$0xff]
    %v531 = vld [vmem:[#allocation8 + $0x178] sm:$0xff]
    %v532 = vld [vmem:[#allocation8 + $0x180] sm:$0xff]
    %v533 = vld [vmem:[#allocation8 + $0x188] sm:$0xff]
    %v534 = vld [vmem:[#allocation8 + $0x190] sm:$0xff]
    %v535 = vld [vmem:[#allocation8 + $0x198] sm:$0xff]
    %v536 = vld [vmem:[#allocation8 + $0x1a0] sm:$0xff]
    %v537 = vld [vmem:[#allocation8 + $0x1a8] sm:$0xff]
    %v538 = vld [vmem:[#allocation8 + $0x1b0] sm:$0xff]
    %v539 = vld [vmem:[#allocation8 + $0x1b8] sm:$0xff]
    %v540 = vld [vmem:[#allocation8 + $0x1c0] sm:$0xff]
    %v541 = vld [vmem:[#allocation8 + $0x1c8] sm:$0xff]
    %v542 = vld [vmem:[#allocation8 + $0x1d0] sm:$0xff]
    %v543 = vld [vmem:[#allocation8 + $0x1d8] sm:$0xff]
    %v544 = vld [vmem:[#allocation8 + $0x1e0] sm:$0xff]
    %v545 = vld [vmem:[#allocation8 + $0x1e8] sm:$0xff]
    %v546 = vld [vmem:[#allocation8 + $0x1f0] sm:$0xff]
    %v547 = vld [vmem:[#allocation8 + $0x1f8] sm:$0xff]
    %v548 = vld [vmem:[#allocation8 + $0x200] sm:$0xff]
    %v549 = vld [vmem:[#allocation8 + $0x208] sm:$0xff]
    %v550 = vld [vmem:[#allocation8 + $0x210] sm:$0xff]
    %v551 = vld [vmem:[#allocation8 + $0x218] sm:$0xff]
    %v552 = vld [vmem:[#allocation8 + $0x220] sm:$0xff]
    %v553 = vld [vmem:[#allocation8 + $0x228] sm:$0xff]
    %v554 = vld [vmem:[#allocation8 + $0x230] sm:$0xff]
    %v555 = vld [vmem:[#allocation8 + $0x238] sm:$0xff]
    %v556 = vld [vmem:[#allocation8 + $0x240] sm:$0xff]
    %v557 = vld [vmem:[#allocation8 + $0x248] sm:$0xff]
    %v558 = vld [vmem:[#allocation8 + $0x250] sm:$0xff]
    %v559 = vld [vmem:[#allocation8 + $0x258] sm:$0xff]
    %v560 = vld [vmem:[#allocation8 + $0x260] sm:$0xff]
    %v561 = vld [vmem:[#allocation8 + $0x268] sm:$0xff]
    %v562 = vld [vmem:[#allocation8 + $0x270] sm:$0xff]
    %v563 = vld [vmem:[#allocation8 + $0x278] sm:$0xff]
    %v564 = vld [vmem:[#allocation8 + $0x280] sm:$0xff]
    %v565 = vld [vmem:[#allocation8 + $0x288] sm:$0xff]
    %v566 = vld [vmem:[#allocation8 + $0x290] sm:$0xff]
    %v567 = vld [vmem:[#allocation8 + $0x298] sm:$0xff]
    %v568 = vld [vmem:[#allocation8 + $0x2a0] sm:$0xff]
    %v569 = vld [vmem:[#allocation8 + $0x2a8] sm:$0xff]
    %v570 = vld [vmem:[#allocation8 + $0x2b0] sm:$0xff]
    %v571 = vld [vmem:[#allocation8 + $0x2b8] sm:$0xff]
    %v572 = vld [vmem:[#allocation8 + $0x2c0] sm:$0xff]
    %v573 = vld [vmem:[#allocation8 + $0x2c8] sm:$0xff]
    %v574 = vld [vmem:[#allocation8 + $0x2d0] sm:$0xff]
    %v575 = vld [vmem:[#allocation8 + $0x2d8] sm:$0xff]
    %v576 = vld [vmem:[#allocation8 + $0x2e0] sm:$0xff]
    %v577 = vld [vmem:[#allocation8 + $0x2e8] sm:$0xff]
    %v578 = vld [vmem:[#allocation8 + $0x2f0] sm:$0xff]
    %v579 = vld [vmem:[#allocation8 + $0x2f8] sm:$0xff]
    %v580 = vld [vmem:[#allocation8 + $0x300] sm:$0xff]
    %v581 = vld [vmem:[#allocation8 + $0x308] sm:$0xff]
    %v582 = vld [vmem:[#allocation8 + $0x310] sm:$0xff]
    %v583 = vld [vmem:[#allocation8 + $0x318] sm:$0xff]
    %v584 = vld [vmem:[#allocation8 + $0x320] sm:$0xff]
    %v585 = vld [vmem:[#allocation8 + $0x328] sm:$0xff]
    %v586 = vld [vmem:[#allocation8 + $0x330] sm:$0xff]
    %v587 = vld [vmem:[#allocation8 + $0x338] sm:$0xff]
    %v588 = vld [vmem:[#allocation8 + $0x340] sm:$0xff]
    %v589 = vld [vmem:[#allocation8 + $0x348] sm:$0xff]
    %v590 = vld [vmem:[#allocation8 + $0x350] sm:$0xff]
    %v591 = vld [vmem:[#allocation8 + $0x358] sm:$0xff]
    %v592 = vld [vmem:[#allocation8 + $0x360] sm:$0xff]
    %v593 = vld [vmem:[#allocation8 + $0x368] sm:$0xff]
    %v594 = vld [vmem:[#allocation8 + $0x370] sm:$0xff]
    %v595 = vld [vmem:[#allocation8 + $0x378] sm:$0xff]
    %v596 = vld [vmem:[#allocation8 + $0x380] sm:$0xff]
    %v597 = vld [vmem:[#allocation8 + $0x388] sm:$0xff]
    %v598 = vld [vmem:[#allocation8 + $0x390] sm:$0xff]
    %v599 = vld [vmem:[#allocation8 + $0x398] sm:$0xff]
    %v600 = vld [vmem:[#allocation8 + $0x3a0] sm:$0xff]
    %v601 = vld [vmem:[#allocation8 + $0x3a8] sm:$0xff]
    %v602 = vld [vmem:[#allocation8 + $0x3b0] sm:$0xff]
    %v603 = vld [vmem:[#allocation8 + $0x3b8] sm:$0xff]
    %v604 = vld [vmem:[#allocation8 + $0x3c0] sm:$0xff]
    %v605 = vld [vmem:[#allocation8 + $0x3c8] sm:$0xff]
    %v606 = vld [vmem:[#allocation8 + $0x3d0] sm:$0xff]
    %v607 = vld [vmem:[#allocation8 + $0x3d8] sm:$0xff]
    %v608 = vld [vmem:[#allocation8 + $0x3e0] sm:$0xff]
    %v609 = vld [vmem:[#allocation8 + $0x3e8] sm:$0xff]
    %v610 = vld [vmem:[#allocation8 + $0x3f0] sm:$0xff]
    %v611 = vld [vmem:[#allocation8 + $0x3f8] sm:$0xff]
    %v612 = vld [vmem:[#allocation8 + $0x400] sm:$0xff]
    %v613 = vld [vmem:[#allocation8 + $0x408] sm:$0xff]
    %v614 = vld [vmem:[#allocation8 + $0x410] sm:$0xff]
    %v615 = vld [vmem:[#allocation8 + $0x418] sm:$0xff]
    %v616 = vld [vmem:[#allocation8 + $0x420] sm:$0xff]
    %v617 = vld [vmem:[#allocation8 + $0x428] sm:$0xff]
    %v618 = vld [vmem:[#allocation8 + $0x430] sm:$0xff]
    %v619 = vld [vmem:[#allocation8 + $0x438] sm:$0xff]
    %v620 = vld [vmem:[#allocation8 + $0x440] sm:$0xff]
    %v621 = vld [vmem:[#allocation8 + $0x448] sm:$0xff]
    %v622 = vld [vmem:[#allocation8 + $0x450] sm:$0xff]
    %v623 = vld [vmem:[#allocation8 + $0x458] sm:$0xff]
    %v624 = vld [vmem:[#allocation8 + $0x460] sm:$0xff]
    %v625 = vld [vmem:[#allocation8 + $0x468] sm:$0xff]
    %v626 = vld [vmem:[#allocation8 + $0x470] sm:$0xff]
    %v627 = vld [vmem:[#allocation8 + $0x478] sm:$0xff]
    %v628 = vld [vmem:[#allocation8 + $0x480] sm:$0xff]
    %v629 = vld [vmem:[#allocation8 + $0x488] sm:$0xff]
    %v630 = vld [vmem:[#allocation8 + $0x490] sm:$0xff]
    %v631 = vld [vmem:[#allocation8 + $0x498] sm:$0xff]
    %v632 = vld [vmem:[#allocation8 + $0x4a0] sm:$0xff]
    %v633 = vld [vmem:[#allocation8 + $0x4a8] sm:$0xff]
    %v634 = vld [vmem:[#allocation8 + $0x4b0] sm:$0xff]
    %v635 = vld [vmem:[#allocation8 + $0x4b8] sm:$0xff]
    %v636 = vld [vmem:[#allocation8 + $0x4c0] sm:$0xff]
    %v637 = vld [vmem:[#allocation8 + $0x4c8] sm:$0xff]
    %v638 = vld [vmem:[#allocation8 + $0x4d0] sm:$0xff]
    %v639 = vld [vmem:[#allocation8 + $0x4d8] sm:$0xff]
    %v640 = vld [vmem:[#allocation8 + $0x4e0] sm:$0xff]
    %v641 = vld [vmem:[#allocation8 + $0x4e8] sm:$0xff]
    %v642 = vld [vmem:[#allocation8 + $0x4f0] sm:$0xff]
    %v643 = vld [vmem:[#allocation8 + $0x4f8] sm:$0xff]
    %v644 = vld [vmem:[#allocation8 + $0x500] sm:$0xff]
    %v645 = vld [vmem:[#allocation8 + $0x508] sm:$0xff]
    %v646 = vld [vmem:[#allocation8 + $0x510] sm:$0xff]
    %v647 = vld [vmem:[#allocation8 + $0x518] sm:$0xff]
    %v648 = vld [vmem:[#allocation8 + $0x520] sm:$0xff]
    %v649 = vld [vmem:[#allocation8 + $0x528] sm:$0xff]
    %v650 = vld [vmem:[#allocation8 + $0x530] sm:$0xff]
    %v651 = vld [vmem:[#allocation8 + $0x538] sm:$0xff]
    %v652 = vld [vmem:[#allocation8 + $0x540] sm:$0xff]
    %v653 = vld [vmem:[#allocation8 + $0x548] sm:$0xff]
    %v654 = vld [vmem:[#allocation8 + $0x550] sm:$0xff]
    %v655 = vld [vmem:[#allocation8 + $0x558] sm:$0xff]
    %v656 = vld [vmem:[#allocation8 + $0x560] sm:$0xff]
    %v657 = vld [vmem:[#allocation8 + $0x568] sm:$0xff]
    %v658 = vld [vmem:[#allocation8 + $0x570] sm:$0xff]
    %v659 = vld [vmem:[#allocation8 + $0x578] sm:$0xff]
    %v660 = vld [vmem:[#allocation8 + $0x580] sm:$0xff]
    %v661 = vld [vmem:[#allocation8 + $0x588] sm:$0xff]
    %v662 = vld [vmem:[#allocation8 + $0x590] sm:$0xff]
    %v663 = vld [vmem:[#allocation8 + $0x598] sm:$0xff]
    %v664 = vld [vmem:[#allocation8 + $0x5a0] sm:$0xff]
    %v665 = vld [vmem:[#allocation8 + $0x5a8] sm:$0xff]
    %v666 = vld [vmem:[#allocation8 + $0x5b0] sm:$0xff]
    %v667 = vld [vmem:[#allocation8 + $0x5b8] sm:$0xff]
    %v668 = vld [vmem:[#allocation8 + $0x5c0] sm:$0xff]
    %v669 = vld [vmem:[#allocation8 + $0x5c8] sm:$0xff]
    %v670 = vld [vmem:[#allocation8 + $0x5d0] sm:$0xff]
    %v671 = vld [vmem:[#allocation8 + $0x5d8] sm:$0xff]
    %v672 = vld [vmem:[#allocation8 + $0x5e0] sm:$0xff]
    %v673 = vld [vmem:[#allocation8 + $0x5e8] sm:$0xff]
    %v674 = vld [vmem:[#allocation8 + $0x5f0] sm:$0xff]
    %v675 = vld [vmem:[#allocation8 + $0x5f8] sm:$0xff]
    %v676 = vld [vmem:[#allocation8 + $0x600] sm:$0xff]
    %v677 = vld [vmem:[#allocation8 + $0x608] sm:$0xff]
    %v678 = vld [vmem:[#allocation8 + $0x610] sm:$0xff]
    %v679 = vld [vmem:[#allocation8 + $0x618] sm:$0xff]
    %v680 = vld [vmem:[#allocation8 + $0x620] sm:$0xff]
    %v681 = vld [vmem:[#allocation8 + $0x628] sm:$0xff]
    %v682 = vld [vmem:[#allocation8 + $0x630] sm:$0xff]
    %v683 = vld [vmem:[#allocation8 + $0x638] sm:$0xff]
    %v684 = vld [vmem:[#allocation8 + $0x640] sm:$0xff]
    %v685 = vld [vmem:[#allocation8 + $0x648] sm:$0xff]
    %v686 = vld [vmem:[#allocation8 + $0x650] sm:$0xff]
    %v687 = vld [vmem:[#allocation8 + $0x658] sm:$0xff]
    %v688 = vld [vmem:[#allocation8 + $0x660] sm:$0xff]
    %v689 = vld [vmem:[#allocation8 + $0x668] sm:$0xff]
    %v690 = vld [vmem:[#allocation8 + $0x670] sm:$0xff]
    %v691 = vld [vmem:[#allocation8 + $0x678] sm:$0xff]
    %v692 = vld [vmem:[#allocation8 + $0x680] sm:$0xff]
    %v693 = vld [vmem:[#allocation8 + $0x688] sm:$0xff]
    %v694 = vld [vmem:[#allocation8 + $0x690] sm:$0xff]
    %v695 = vld [vmem:[#allocation8 + $0x698] sm:$0xff]
    %v696 = vld [vmem:[#allocation8 + $0x6a0] sm:$0xff]
    %v697 = vld [vmem:[#allocation8 + $0x6a8] sm:$0xff]
    %v698 = vld [vmem:[#allocation8 + $0x6b0] sm:$0xff]
    %v699 = vld [vmem:[#allocation8 + $0x6b8] sm:$0xff]
    %v700 = vld [vmem:[#allocation8 + $0x6c0] sm:$0xff]
    %v701 = vld [vmem:[#allocation8 + $0x6c8] sm:$0xff]
    %v702 = vld [vmem:[#allocation8 + $0x6d0] sm:$0xff]
    %v703 = vld [vmem:[#allocation8 + $0x6d8] sm:$0xff]
    %v704 = vld [vmem:[#allocation8 + $0x6e0] sm:$0xff]
    %v705 = vld [vmem:[#allocation8 + $0x6e8] sm:$0xff]
    %v706 = vld [vmem:[#allocation8 + $0x6f0] sm:$0xff]
    %v707 = vld [vmem:[#allocation8 + $0x6f8] sm:$0xff]
    %v708 = vld [vmem:[#allocation8 + $0x700] sm:$0xff]
    %v709 = vld [vmem:[#allocation8 + $0x708] sm:$0xff]
    %v710 = vld [vmem:[#allocation8 + $0x710] sm:$0xff]
    %v711 = vld [vmem:[#allocation8 + $0x718] sm:$0xff]
    %v712 = vld [vmem:[#allocation8 + $0x720] sm:$0xff]
    %v713 = vld [vmem:[#allocation8 + $0x728] sm:$0xff]
    %v714 = vld [vmem:[#allocation8 + $0x730] sm:$0xff]
    %v715 = vld [vmem:[#allocation8 + $0x738] sm:$0xff]
    %v716 = vld [vmem:[#allocation8 + $0x740] sm:$0xff]
    %v717 = vld [vmem:[#allocation8 + $0x748] sm:$0xff]
    %v718 = vld [vmem:[#allocation8 + $0x750] sm:$0xff]
    %v719 = vld [vmem:[#allocation8 + $0x758] sm:$0xff]
    %v720 = vld [vmem:[#allocation8 + $0x760] sm:$0xff]
    %v721 = vld [vmem:[#allocation8 + $0x768] sm:$0xff]
    %v722 = vld [vmem:[#allocation8 + $0x770] sm:$0xff]
    %v723 = vld [vmem:[#allocation8 + $0x778] sm:$0xff]
    %v724 = vld [vmem:[#allocation8 + $0x780] sm:$0xff]
    %v725 = vld [vmem:[#allocation8 + $0x788] sm:$0xff]
    %v726 = vld [vmem:[#allocation8 + $0x790] sm:$0xff]
    %v727 = vld [vmem:[#allocation8 + $0x798] sm:$0xff]
    %v728 = vld [vmem:[#allocation8 + $0x7a0] sm:$0xff]
    %v729 = vld [vmem:[#allocation8 + $0x7a8] sm:$0xff]
    %v730 = vld [vmem:[#allocation8 + $0x7b0] sm:$0xff]
    %v731 = vld [vmem:[#allocation8 + $0x7b8] sm:$0xff]
    %v732 = vld [vmem:[#allocation8 + $0x7c0] sm:$0xff]
    %v733 = vld [vmem:[#allocation8 + $0x7c8] sm:$0xff]
    %v734 = vld [vmem:[#allocation8 + $0x7d0] sm:$0xff]
    %v735 = vld [vmem:[#allocation8 + $0x7d8] sm:$0xff]
    %v736 = vld [vmem:[#allocation8 + $0x7e0] sm:$0xff]
    %v737 = vld [vmem:[#allocation8 + $0x7e8] sm:$0xff]
    %v738 = vld [vmem:[#allocation8 + $0x7f0] sm:$0xff]
    %v739 = vld [vmem:[#allocation8 + $0x7f8] sm:$0xff]
    %v740 = vld [vmem:[#allocation8 + $0x800] sm:$0xff]
    %v741 = vld [vmem:[#allocation8 + $0x808] sm:$0xff]
    %v742 = vld [vmem:[#allocation8 + $0x810] sm:$0xff]
    %v743 = vld [vmem:[#allocation8 + $0x818] sm:$0xff]
    %v744 = vld [vmem:[#allocation8 + $0x820] sm:$0xff]
    %v745 = vld [vmem:[#allocation8 + $0x828] sm:$0xff]
    %v746 = vld [vmem:[#allocation8 + $0x830] sm:$0xff]
    %v747 = vld [vmem:[#allocation8 + $0x838] sm:$0xff]
    %v748 = vld [vmem:[#allocation8 + $0x840] sm:$0xff]
    %v749 = vld [vmem:[#allocation8 + $0x848] sm:$0xff]
    %v750 = vld [vmem:[#allocation8 + $0x850] sm:$0xff]
    %v751 = vld [vmem:[#allocation8 + $0x858] sm:$0xff]
    %v752 = vld [vmem:[#allocation8 + $0x860] sm:$0xff]
    %v753 = vld [vmem:[#allocation8 + $0x868] sm:$0xff]
    %v754 = vld [vmem:[#allocation8 + $0x870] sm:$0xff]
    %v755 = vld [vmem:[#allocation8 + $0x878] sm:$0xff]
    %v756 = vld [vmem:[#allocation8 + $0x880] sm:$0xff]
    %v757 = vld [vmem:[#allocation8 + $0x888] sm:$0xff]
    %v758 = vld [vmem:[#allocation8 + $0x890] sm:$0xff]
    %v759 = vld [vmem:[#allocation8 + $0x898] sm:$0xff]
    %v760 = vld [vmem:[#allocation8 + $0x8a0] sm:$0xff]
    %v761 = vld [vmem:[#allocation8 + $0x8a8] sm:$0xff]
    %v762 = vld [vmem:[#allocation8 + $0x8b0] sm:$0xff]
    %v763 = vld [vmem:[#allocation8 + $0x8b8] sm:$0xff]
    %v764 = vld [vmem:[#allocation8 + $0x8c0] sm:$0xff]
    %v765 = vld [vmem:[#allocation8 + $0x8c8] sm:$0xff]
    %v766 = vld [vmem:[#allocation8 + $0x8d0] sm:$0xff]
    %v767 = vld [vmem:[#allocation8 + $0x8d8] sm:$0xff]
    %v768 = vld [vmem:[#allocation8 + $0x8e0] sm:$0xff]
    %v769 = vld [vmem:[#allocation8 + $0x8e8] sm:$0xff]
    %v770 = vld [vmem:[#allocation8 + $0x8f0] sm:$0xff]
    %v771 = vld [vmem:[#allocation8 + $0x8f8] sm:$0xff]
    %v772 = vld [vmem:[#allocation8 + $0x900] sm:$0xff]
    %v773 = vld [vmem:[#allocation8 + $0x908] sm:$0xff]
    %v774 = vld [vmem:[#allocation8 + $0x910] sm:$0xff]
    %v775 = vld [vmem:[#allocation8 + $0x918] sm:$0xff]
    %v776 = vld [vmem:[#allocation8 + $0x920] sm:$0xff]
    %v777 = vld [vmem:[#allocation8 + $0x928] sm:$0xff]
    %v778 = vld [vmem:[#allocation8 + $0x930] sm:$0xff]
    %v779 = vld [vmem:[#allocation8 + $0x938] sm:$0xff]
    %v780 = vld [vmem:[#allocation8 + $0x940] sm:$0xff]
    %v781 = vld [vmem:[#allocation8 + $0x948] sm:$0xff]
    %v782 = vld [vmem:[#allocation8 + $0x950] sm:$0xff]
    %v783 = vld [vmem:[#allocation8 + $0x958] sm:$0xff]
    %v784 = vld [vmem:[#allocation8 + $0x960] sm:$0xff]
    %v785 = vld [vmem:[#allocation8 + $0x968] sm:$0xff]
    %v786 = vld [vmem:[#allocation8 + $0x970] sm:$0xff]
    %v787 = vld [vmem:[#allocation8 + $0x978] sm:$0xff]
    %v788 = vld [vmem:[#allocation8 + $0x980] sm:$0xff]
    %v789 = vld [vmem:[#allocation8 + $0x988] sm:$0xff]
    %v790 = vld [vmem:[#allocation8 + $0x990] sm:$0xff]
    %v791 = vld [vmem:[#allocation8 + $0x998] sm:$0xff]
    %v792 = vld [vmem:[#allocation8 + $0x9a0] sm:$0xff]
    %v793 = vld [vmem:[#allocation8 + $0x9a8] sm:$0xff]
    %v794 = vld [vmem:[#allocation8 + $0x9b0] sm:$0xff]
    %v795 = vld [vmem:[#allocation8 + $0x9b8] sm:$0xff]
    %v796 = vld [vmem:[#allocation8 + $0x9c0] sm:$0xff]
    %v797 = vld [vmem:[#allocation8 + $0x9c8] sm:$0xff]
    %v798 = vld [vmem:[#allocation8 + $0x9d0] sm:$0xff]
    %v799 = vld [vmem:[#allocation8 + $0x9d8] sm:$0xff]
    %v800 = vld [vmem:[#allocation8 + $0x9e0] sm:$0xff]
    %v801 = vld [vmem:[#allocation8 + $0x9e8] sm:$0xff]
    %v802 = vld [vmem:[#allocation8 + $0x9f0] sm:$0xff]
    %v803 = vld [vmem:[#allocation8 + $0x9f8] sm:$0xff]
    %v804 = vld [vmem:[#allocation8 + $0xa00] sm:$0xff]
    %v805 = vld [vmem:[#allocation8 + $0xa08] sm:$0xff]
    %v806 = vld [vmem:[#allocation8 + $0xa10] sm:$0xff]
    %v807 = vld [vmem:[#allocation8 + $0xa18] sm:$0xff]
    %v808 = vld [vmem:[#allocation8 + $0xa20] sm:$0xff]
    %v809 = vld [vmem:[#allocation8 + $0xa28] sm:$0xff]
    %v810 = vld [vmem:[#allocation8 + $0xa30] sm:$0xff]
    %v811 = vld [vmem:[#allocation8 + $0xa38] sm:$0xff]
    %v812 = vld [vmem:[#allocation8 + $0xa40] sm:$0xff]
    %v813 = vld [vmem:[#allocation8 + $0xa48] sm:$0xff]
    %v814 = vld [vmem:[#allocation8 + $0xa50] sm:$0xff]
    %v815 = vld [vmem:[#allocation8 + $0xa58] sm:$0xff]
    %v816 = vld [vmem:[#allocation8 + $0xa60] sm:$0xff]
    %v817 = vld [vmem:[#allocation8 + $0xa68] sm:$0xff]
    %v818 = vld [vmem:[#allocation8 + $0xa70] sm:$0xff]
    %v819 = vld [vmem:[#allocation8 + $0xa78] sm:$0xff]
    %v820 = vld [vmem:[#allocation8 + $0xa80] sm:$0xff]
    %v821 = vld [vmem:[#allocation8 + $0xa88] sm:$0xff]
    %v822 = vld [vmem:[#allocation8 + $0xa90] sm:$0xff]
    %v823 = vld [vmem:[#allocation8 + $0xa98] sm:$0xff]
    %v824 = vld [vmem:[#allocation8 + $0xaa0] sm:$0xff]
    %v825 = vld [vmem:[#allocation8 + $0xaa8] sm:$0xff]
    %v826 = vld [vmem:[#allocation8 + $0xab0] sm:$0xff]
    %v827 = vld [vmem:[#allocation8 + $0xab8] sm:$0xff]
    %v828 = vld [vmem:[#allocation8 + $0xac0] sm:$0xff]
    %v829 = vld [vmem:[#allocation8 + $0xac8] sm:$0xff]
    %v830 = vld [vmem:[#allocation8 + $0xad0] sm:$0xff]
    %v831 = vld [vmem:[#allocation8 + $0xad8] sm:$0xff]
    %v832 = vld [vmem:[#allocation8 + $0xae0] sm:$0xff]
    %v833 = vld [vmem:[#allocation8 + $0xae8] sm:$0xff]
    %v834 = vld [vmem:[#allocation8 + $0xaf0] sm:$0xff]
    %v835 = vld [vmem:[#allocation8 + $0xaf8] sm:$0xff]
    %v836 = vld [vmem:[#allocation8 + $0xb00] sm:$0xff]
    %v837 = vld [vmem:[#allocation8 + $0xb08] sm:$0xff]
    %v838 = vld [vmem:[#allocation8 + $0xb10] sm:$0xff]
    %v839 = vld [vmem:[#allocation8 + $0xb18] sm:$0xff]
    %v840 = vld [vmem:[#allocation8 + $0xb20] sm:$0xff]
    %v841 = vld [vmem:[#allocation8 + $0xb28] sm:$0xff]
    %v842 = vld [vmem:[#allocation8 + $0xb30] sm:$0xff]
    %v843 = vld [vmem:[#allocation8 + $0xb38] sm:$0xff]
    %v844 = vld [vmem:[#allocation8 + $0xb40] sm:$0xff]
    %v845 = vld [vmem:[#allocation8 + $0xb48] sm:$0xff]
    %v846 = vld [vmem:[#allocation8 + $0xb50] sm:$0xff]
    %v847 = vld [vmem:[#allocation8 + $0xb58] sm:$0xff]
    %v848 = vld [vmem:[#allocation8 + $0xb60] sm:$0xff]
    %v849 = vld [vmem:[#allocation8 + $0xb68] sm:$0xff]
    %v850 = vld [vmem:[#allocation8 + $0xb70] sm:$0xff]
    %v851 = vld [vmem:[#allocation8 + $0xb78] sm:$0xff]
    %v852 = vld [vmem:[#allocation8 + $0xb80] sm:$0xff]
    %v853 = vld [vmem:[#allocation8 + $0xb88] sm:$0xff]
    %v854 = vld [vmem:[#allocation8 + $0xb90] sm:$0xff]
    %v855 = vld [vmem:[#allocation8 + $0xb98] sm:$0xff]
    %v856 = vld [vmem:[#allocation8 + $0xba0] sm:$0xff]
    %v857 = vld [vmem:[#allocation8 + $0xba8] sm:$0xff]
    %v858 = vld [vmem:[#allocation8 + $0xbb0] sm:$0xff]
    %v859 = vld [vmem:[#allocation8 + $0xbb8] sm:$0xff]
    %v860 = vld [vmem:[#allocation8 + $0xbc0] sm:$0xff]
    %v861 = vld [vmem:[#allocation8 + $0xbc8] sm:$0xff]
    %v862 = vld [vmem:[#allocation8 + $0xbd0] sm:$0xff]
    %v863 = vld [vmem:[#allocation8 + $0xbd8] sm:$0xff]
    %v864 = vld [vmem:[#allocation8 + $0xbe0] sm:$0xff]
    %v865 = vld [vmem:[#allocation8 + $0xbe8] sm:$0xff]
    %v866 = vld [vmem:[#allocation8 + $0xbf0] sm:$0xff]
    %v867 = vld [vmem:[#allocation8 + $0xbf8] sm:$0xff]
    %v868 = vld [vmem:[#allocation8 + $0xc00] sm:$0xff]
    %v869 = vld [vmem:[#allocation8 + $0xc08] sm:$0xff]
    %v870 = vld [vmem:[#allocation8 + $0xc10] sm:$0xff]
    %v871 = vld [vmem:[#allocation8 + $0xc18] sm:$0xff]
    %v872 = vld [vmem:[#allocation8 + $0xc20] sm:$0xff]
    %v873 = vld [vmem:[#allocation8 + $0xc28] sm:$0xff]
    %v874 = vld [vmem:[#allocation8 + $0xc30] sm:$0xff]
    %v875 = vld [vmem:[#allocation8 + $0xc38] sm:$0xff]
    %v876 = vld [vmem:[#allocation8 + $0xc40] sm:$0xff]
    %v877 = vld [vmem:[#allocation8 + $0xc48] sm:$0xff]
    %v878 = vld [vmem:[#allocation8 + $0xc50] sm:$0xff]
    %v879 = vld [vmem:[#allocation8 + $0xc58] sm:$0xff]
    %v880 = vld [vmem:[#allocation8 + $0xc60] sm:$0xff]
    %v881 = vld [vmem:[#allocation8 + $0xc68] sm:$0xff]
    %v882 = vld [vmem:[#allocation8 + $0xc70] sm:$0xff]
    %v883 = vld [vmem:[#allocation8 + $0xc78] sm:$0xff]
    %v884 = vld [vmem:[#allocation8 + $0xc80] sm:$0xff]
    %v885 = vld [vmem:[#allocation8 + $0xc88] sm:$0xff]
    %v886 = vld [vmem:[#allocation8 + $0xc90] sm:$0xff]
    %v887 = vld [vmem:[#allocation8 + $0xc98] sm:$0xff]
    %v888 = vld [vmem:[#allocation8 + $0xca0] sm:$0xff]
    %v889 = vld [vmem:[#allocation8 + $0xca8] sm:$0xff]
    %v890 = vld [vmem:[#allocation8 + $0xcb0] sm:$0xff]
    %v891 = vld [vmem:[#allocation8 + $0xcb8] sm:$0xff]
    %v892 = vld [vmem:[#allocation8 + $0xcc0] sm:$0xff]
    %v893 = vld [vmem:[#allocation8 + $0xcc8] sm:$0xff]
    %v894 = vld [vmem:[#allocation8 + $0xcd0] sm:$0xff]
    %v895 = vld [vmem:[#allocation8 + $0xcd8] sm:$0xff]
    %v896 = vld [vmem:[#allocation8 + $0xce0] sm:$0xff]
    %v897 = vld [vmem:[#allocation8 + $0xce8] sm:$0xff]
    %v898 = vld [vmem:[#allocation8 + $0xcf0] sm:$0xff]
    %v899 = vld [vmem:[#allocation8 + $0xcf8] sm:$0xff]
    %v900 = vld [vmem:[#allocation8 + $0xd00] sm:$0xff]
    %v901 = vld [vmem:[#allocation8 + $0xd08] sm:$0xff]
    %v902 = vld [vmem:[#allocation8 + $0xd10] sm:$0xff]
    %v903 = vld [vmem:[#allocation8 + $0xd18] sm:$0xff]
    %v904 = vld [vmem:[#allocation8 + $0xd20] sm:$0xff]
    %v905 = vld [vmem:[#allocation8 + $0xd28] sm:$0xff]
    %v906 = vld [vmem:[#allocation8 + $0xd30] sm:$0xff]
    %v907 = vld [vmem:[#allocation8 + $0xd38] sm:$0xff]
    %v908 = vld [vmem:[#allocation8 + $0xd40] sm:$0xff]
    %v909 = vld [vmem:[#allocation8 + $0xd48] sm:$0xff]
    %v910 = vld [vmem:[#allocation8 + $0xd50] sm:$0xff]
    %v911 = vld [vmem:[#allocation8 + $0xd58] sm:$0xff]
    %v912 = vld [vmem:[#allocation8 + $0xd60] sm:$0xff]
    %v913 = vld [vmem:[#allocation8 + $0xd68] sm:$0xff]
    %v914 = vld [vmem:[#allocation8 + $0xd70] sm:$0xff]
    %v915 = vld [vmem:[#allocation8 + $0xd78] sm:$0xff]
    %v916 = vld [vmem:[#allocation8 + $0xd80] sm:$0xff]
    %v917 = vld [vmem:[#allocation8 + $0xd88] sm:$0xff]
    %v918 = vld [vmem:[#allocation8 + $0xd90] sm:$0xff]
    %v919 = vld [vmem:[#allocation8 + $0xd98] sm:$0xff]
    %v920 = vld [vmem:[#allocation8 + $0xda0] sm:$0xff]
    %v921 = vld [vmem:[#allocation8 + $0xda8] sm:$0xff]
    %v922 = vld [vmem:[#allocation8 + $0xdb0] sm:$0xff]
    %v923 = vld [vmem:[#allocation8 + $0xdb8] sm:$0xff]
    %v924 = vld [vmem:[#allocation8 + $0xdc0] sm:$0xff]
    %v925 = vld [vmem:[#allocation8 + $0xdc8] sm:$0xff]
    %v926 = vld [vmem:[#allocation8 + $0xdd0] sm:$0xff]
    %v927 = vld [vmem:[#allocation8 + $0xdd8] sm:$0xff]
    %v928 = vld [vmem:[#allocation8 + $0xde0] sm:$0xff]
    %v929 = vld [vmem:[#allocation8 + $0xde8] sm:$0xff]
    %v930 = vld [vmem:[#allocation8 + $0xdf0] sm:$0xff]
    %v931 = vld [vmem:[#allocation8 + $0xdf8] sm:$0xff]
    %v932 = vld [vmem:[#allocation8 + $0xe00] sm:$0xff]
    %v933 = vld [vmem:[#allocation8 + $0xe08] sm:$0xff]
    %v934 = vld [vmem:[#allocation8 + $0xe10] sm:$0xff]
    %v935 = vld [vmem:[#allocation8 + $0xe18] sm:$0xff]
    %v936 = vld [vmem:[#allocation8 + $0xe20] sm:$0xff]
    %v937 = vld [vmem:[#allocation8 + $0xe28] sm:$0xff]
    %v938 = vld [vmem:[#allocation8 + $0xe30] sm:$0xff]
    %v939 = vld [vmem:[#allocation8 + $0xe38] sm:$0xff]
    %v940 = vld [vmem:[#allocation8 + $0xe40] sm:$0xff]
    %v941 = vld [vmem:[#allocation8 + $0xe48] sm:$0xff]
    %v942 = vld [vmem:[#allocation8 + $0xe50] sm:$0xff]
    %v943 = vld [vmem:[#allocation8 + $0xe58] sm:$0xff]
    %v944 = vld [vmem:[#allocation8 + $0xe60] sm:$0xff]
    %v945 = vld [vmem:[#allocation8 + $0xe68] sm:$0xff]
    %v946 = vld [vmem:[#allocation8 + $0xe70] sm:$0xff]
    %v947 = vld [vmem:[#allocation8 + $0xe78] sm:$0xff]
    %v948 = vld [vmem:[#allocation8 + $0xe80] sm:$0xff]
    %v949 = vld [vmem:[#allocation8 + $0xe88] sm:$0xff]
    %v950 = vld [vmem:[#allocation8 + $0xe90] sm:$0xff]
    %v951 = vld [vmem:[#allocation8 + $0xe98] sm:$0xff]
    %v952 = vld [vmem:[#allocation8 + $0xea0] sm:$0xff]
    %v953 = vld [vmem:[#allocation8 + $0xea8] sm:$0xff]
    %v954 = vld [vmem:[#allocation8 + $0xeb0] sm:$0xff]
    %v955 = vld [vmem:[#allocation8 + $0xeb8] sm:$0xff]
    %v956 = vld [vmem:[#allocation8 + $0xec0] sm:$0xff]
    %v957 = vld [vmem:[#allocation8 + $0xec8] sm:$0xff]
    %v958 = vld [vmem:[#allocation8 + $0xed0] sm:$0xff]
    %v959 = vld [vmem:[#allocation8 + $0xed8] sm:$0xff]
    %v960 = vld [vmem:[#allocation8 + $0xee0] sm:$0xff]
    %v961 = vld [vmem:[#allocation8 + $0xee8] sm:$0xff]
    %v962 = vld [vmem:[#allocation8 + $0xef0] sm:$0xff]
    %v963 = vld [vmem:[#allocation8 + $0xef8] sm:$0xff]
    %v964 = vld [vmem:[#allocation8 + $0xf00] sm:$0xff]
    %v965 = vld [vmem:[#allocation8 + $0xf08] sm:$0xff]
    %v966 = vld [vmem:[#allocation8 + $0xf10] sm:$0xff]
    %v967 = vld [vmem:[#allocation8 + $0xf18] sm:$0xff]
    %v968 = vld [vmem:[#allocation8 + $0xf20] sm:$0xff]
    %v969 = vld [vmem:[#allocation8 + $0xf28] sm:$0xff]
    %v970 = vld [vmem:[#allocation8 + $0xf30] sm:$0xff]
    %v971 = vld [vmem:[#allocation8 + $0xf38] sm:$0xff]
    %v972 = vld [vmem:[#allocation8 + $0xf40] sm:$0xff]
    %v973 = vld [vmem:[#allocation8 + $0xf48] sm:$0xff]
    %v974 = vld [vmem:[#allocation8 + $0xf50] sm:$0xff]
    %v975 = vld [vmem:[#allocation8 + $0xf58] sm:$0xff]
    %v976 = vld [vmem:[#allocation8 + $0xf60] sm:$0xff]
    %v977 = vld [vmem:[#allocation8 + $0xf68] sm:$0xff]
    %v978 = vld [vmem:[#allocation8 + $0xf70] sm:$0xff]
    %v979 = vld [vmem:[#allocation8 + $0xf78] sm:$0xff]
    %v980 = vld [vmem:[#allocation8 + $0xf80] sm:$0xff]
    %v981 = vld [vmem:[#allocation8 + $0xf88] sm:$0xff]
    %v982 = vld [vmem:[#allocation8 + $0xf90] sm:$0xff]
    %v983 = vld [vmem:[#allocation8 + $0xf98] sm:$0xff]
    %v984 = vld [vmem:[#allocation8 + $0xfa0] sm:$0xff]
    %v985 = vld [vmem:[#allocation8 + $0xfa8] sm:$0xff]
    %v986 = vld [vmem:[#allocation8 + $0xfb0] sm:$0xff]
    %v987 = vld [vmem:[#allocation8 + $0xfb8] sm:$0xff]
    %v988 = vld [vmem:[#allocation8 + $0xfc0] sm:$0xff]
    %v989 = vld [vmem:[#allocation8 + $0xfc8] sm:$0xff]
    %v990 = vld [vmem:[#allocation8 + $0xfd0] sm:$0xff]
    %v991 = vld [vmem:[#allocation8 + $0xfd8] sm:$0xff]
    %v992 = vld [vmem:[#allocation8 + $0xfe0] sm:$0xff]
    %v993 = vld [vmem:[#allocation8 + $0xfe8] sm:$0xff]
    %v994 = vld [vmem:[#allocation8 + $0xff0] sm:$0xff]
    %v995 = vld [vmem:[#allocation8 + $0xff8] sm:$0xff]
    %v996 = vld [vmem:[#allocation8 + $0x1000] sm:$0xff]
    %v997 = vld [vmem:[#allocation8 + $0x1008] sm:$0xff]
    %v998 = vld [vmem:[#allocation8 + $0x1010] sm:$0xff]
    %v999 = vld [vmem:[#allocation8 + $0x1018] sm:$0xff]
    %v1000 = vld [vmem:[#allocation8 + $0x1020] sm:$0xff]
    %v1001 = vld [vmem:[#allocation8 + $0x1028] sm:$0xff]
    %v1002 = vld [vmem:[#allocation8 + $0x1030] sm:$0xff]
    %v1003 = vld [vmem:[#allocation8 + $0x1038] sm:$0xff]
    %v1004 = vld [vmem:[#allocation8 + $0x1040] sm:$0xff]
    %v1005 = vld [vmem:[#allocation8 + $0x1048] sm:$0xff]
    %v1006 = vld [vmem:[#allocation8 + $0x1050] sm:$0xff]
    %v1007 = vld [vmem:[#allocation8 + $0x1058] sm:$0xff]
    %v1008 = vld [vmem:[#allocation8 + $0x1060] sm:$0xff]
    %v1009 = vld [vmem:[#allocation8 + $0x1068] sm:$0xff]
    %v1010 = vld [vmem:[#allocation8 + $0x1070] sm:$0xff]
    %v1011 = vld [vmem:[#allocation8 + $0x1078] sm:$0xff]
    %v1012 = vld [vmem:[#allocation8 + $0x1080] sm:$0xff]
    %v1013 = vld [vmem:[#allocation8 + $0x1088] sm:$0xff]
    %v1014 = vld [vmem:[#allocation8 + $0x1090] sm:$0xff]
    %v1015 = vld [vmem:[#allocation8 + $0x1098] sm:$0xff]
    %v1016 = vld [vmem:[#allocation8 + $0x10a0] sm:$0xff]
    %v1017 = vld [vmem:[#allocation8 + $0x10a8] sm:$0xff]
    %v1018 = vld [vmem:[#allocation8 + $0x10b0] sm:$0xff]
    %v1019 = vld [vmem:[#allocation8 + $0x10b8] sm:$0xff]
    %v1020 = vld [vmem:[#allocation8 + $0x10c0] sm:$0xff]
    %v1021 = vld [vmem:[#allocation8 + $0x10c8] sm:$0xff]
    %v1022 = vld [vmem:[#allocation8 + $0x10d0] sm:$0xff]
    %v1023 = vld [vmem:[#allocation8 + $0x10d8] sm:$0xff]
    %v1024 = vld [vmem:[#allocation8 + $0x10e0] sm:$0xff]
    %v1025 = vld [vmem:[#allocation8 + $0x10e8] sm:$0xff]
    %v1026 = vld [vmem:[#allocation8 + $0x10f0] sm:$0xff]
    %v1027 = vld [vmem:[#allocation8 + $0x10f8] sm:$0xff]
    %v1028 = vld [vmem:[#allocation8 + $0x1100] sm:$0xff]
    %v1029 = vld [vmem:[#allocation8 + $0x1108] sm:$0xff]
    %v1030 = vld [vmem:[#allocation8 + $0x1110] sm:$0xff]
    %v1031 = vld [vmem:[#allocation8 + $0x1118] sm:$0xff]
    %v1032 = vld [vmem:[#allocation8 + $0x1120] sm:$0xff]
    %v1033 = vld [vmem:[#allocation8 + $0x1128] sm:$0xff]
    %v1034 = vld [vmem:[#allocation8 + $0x1130] sm:$0xff]
    %v1035 = vld [vmem:[#allocation8 + $0x1138] sm:$0xff]
    %v1036 = vld [vmem:[#allocation8 + $0x1140] sm:$0xff]
    %v1037 = vld [vmem:[#allocation8 + $0x1148] sm:$0xff]
    %v1038 = vld [vmem:[#allocation8 + $0x1150] sm:$0xff]
    %v1039 = vld [vmem:[#allocation8 + $0x1158] sm:$0xff]
    %v1040 = vld [vmem:[#allocation8 + $0x1160] sm:$0xff]
    %v1041 = vld [vmem:[#allocation8 + $0x1168] sm:$0xff]
    %v1042 = vld [vmem:[#allocation8 + $0x1170] sm:$0xff]
    %v1043 = vld [vmem:[#allocation8 + $0x1178] sm:$0xff]
    %v1044 = vld [vmem:[#allocation8 + $0x1180] sm:$0xff]
    %v1045 = vld [vmem:[#allocation8 + $0x1188] sm:$0xff]
    %v1046 = vld [vmem:[#allocation8 + $0x1190] sm:$0xff]
    %v1047 = vld [vmem:[#allocation8 + $0x1198] sm:$0xff]
    %v1048 = vld [vmem:[#allocation8 + $0x11a0] sm:$0xff]
    %v1049 = vld [vmem:[#allocation8 + $0x11a8] sm:$0xff]
    %v1050 = vld [vmem:[#allocation8 + $0x11b0] sm:$0xff]
    %v1051 = vld [vmem:[#allocation8 + $0x11b8] sm:$0xff]
    %v1052 = vld [vmem:[#allocation8 + $0x11c0] sm:$0xff]
    %v1053 = vld [vmem:[#allocation8 + $0x11c8] sm:$0xff]
    %v1054 = vld [vmem:[#allocation8 + $0x11d0] sm:$0xff]
    %v1055 = vld [vmem:[#allocation8 + $0x11d8] sm:$0xff]
    %v1056 = vld [vmem:[#allocation8 + $0x11e0] sm:$0xff]
    %v1057 = vld [vmem:[#allocation8 + $0x11e8] sm:$0xff]
    %v1058 = vld [vmem:[#allocation8 + $0x11f0] sm:$0xff]
    %v1059 = vld [vmem:[#allocation8 + $0x11f8] sm:$0xff]
    %v1060 = vld [vmem:[#allocation8 + $0x1200] sm:$0xff]
    %v1061 = vld [vmem:[#allocation8 + $0x1208] sm:$0xff]
    %v1062 = vld [vmem:[#allocation8 + $0x1210] sm:$0xff]
    %v1063 = vld [vmem:[#allocation8 + $0x1218] sm:$0xff]
    %v1064 = vld [vmem:[#allocation8 + $0x1220] sm:$0xff]
    %v1065 = vld [vmem:[#allocation8 + $0x1228] sm:$0xff]
    %v1066 = vld [vmem:[#allocation8 + $0x1230] sm:$0xff]
    %v1067 = vld [vmem:[#allocation8 + $0x1238] sm:$0xff]
    %v1068 = vld [vmem:[#allocation8 + $0x1240] sm:$0xff]
    %v1069 = vld [vmem:[#allocation8 + $0x1248] sm:$0xff]
    %v1070 = vld [vmem:[#allocation8 + $0x1250] sm:$0xff]
    %v1071 = vld [vmem:[#allocation8 + $0x1258] sm:$0xff]
    %v1072 = vld [vmem:[#allocation8 + $0x1260] sm:$0xff]
    %v1073 = vld [vmem:[#allocation8 + $0x1268] sm:$0xff]
    %v1074 = vld [vmem:[#allocation8 + $0x1270] sm:$0xff]
    %v1075 = vld [vmem:[#allocation8 + $0x1278] sm:$0xff]
    %v1076 = vld [vmem:[#allocation8 + $0x1280] sm:$0xff]
    %v1077 = vld [vmem:[#allocation8 + $0x1288] sm:$0xff]
    %v1078 = vld [vmem:[#allocation8 + $0x1290] sm:$0xff]
    %v1079 = vld [vmem:[#allocation8 + $0x1298] sm:$0xff]
    %v1080 = vld [vmem:[#allocation8 + $0x12a0] sm:$0xff]
    %v1081 = vld [vmem:[#allocation8 + $0x12a8] sm:$0xff]
    %v1082 = vld [vmem:[#allocation8 + $0x12b0] sm:$0xff]
    %v1083 = vld [vmem:[#allocation8 + $0x12b8] sm:$0xff]
    %v1084 = vld [vmem:[#allocation8 + $0x12c0] sm:$0xff]
    %v1085 = vld [vmem:[#allocation8 + $0x12c8] sm:$0xff]
    %v1086 = vld [vmem:[#allocation8 + $0x12d0] sm:$0xff]
    %v1087 = vld [vmem:[#allocation8 + $0x12d8] sm:$0xff]
    %v1088 = vld [vmem:[#allocation8 + $0x12e0] sm:$0xff]
    %v1089 = vld [vmem:[#allocation8 + $0x12e8] sm:$0xff]
    %v1090 = vld [vmem:[#allocation8 + $0x12f0] sm:$0xff]
    %v1091 = vld [vmem:[#allocation8 + $0x12f8] sm:$0xff]
    %v1092 = vld [vmem:[#allocation8 + $0x1300] sm:$0xff]
    %v1093 = vld [vmem:[#allocation8 + $0x1308] sm:$0xff]
    %v1094 = vld [vmem:[#allocation8 + $0x1310] sm:$0xff]
    %v1095 = vld [vmem:[#allocation8 + $0x1318] sm:$0xff]
    %v1096 = vld [vmem:[#allocation8 + $0x1320] sm:$0xff]
    %v1097 = vld [vmem:[#allocation8 + $0x1328] sm:$0xff]
    %v1098 = vld [vmem:[#allocation8 + $0x1330] sm:$0xff]
    %v1099 = vld [vmem:[#allocation8 + $0x1338] sm:$0xff]
    %v1100 = vld [vmem:[#allocation8 + $0x1340] sm:$0xff]
    %v1101 = vld [vmem:[#allocation8 + $0x1348] sm:$0xff]
    %v1102 = vld [vmem:[#allocation8 + $0x1350] sm:$0xff]
    %v1103 = vld [vmem:[#allocation8 + $0x1358] sm:$0xff]
    %v1104 = vld [vmem:[#allocation8 + $0x1360] sm:$0xff]
    %v1105 = vld [vmem:[#allocation8 + $0x1368] sm:$0xff]
    %v1106 = vld [vmem:[#allocation8 + $0x1370] sm:$0xff]
    %v1107 = vld [vmem:[#allocation8 + $0x1378] sm:$0xff]
    %v1108 = vld [vmem:[#allocation8 + $0x1380] sm:$0xff]
    %v1109 = vld [vmem:[#allocation8 + $0x1388] sm:$0xff]
    %v1110 = vld [vmem:[#allocation8 + $0x1390] sm:$0xff]
    %v1111 = vld [vmem:[#allocation8 + $0x1398] sm:$0xff]
    %v1112 = vld [vmem:[#allocation8 + $0x13a0] sm:$0xff]
    %v1113 = vld [vmem:[#allocation8 + $0x13a8] sm:$0xff]
    %v1114 = vld [vmem:[#allocation8 + $0x13b0] sm:$0xff]
    %v1115 = vld [vmem:[#allocation8 + $0x13b8] sm:$0xff]
    %v1116 = vld [vmem:[#allocation8 + $0x13c0] sm:$0xff]
    %v1117 = vld [vmem:[#allocation8 + $0x13c8] sm:$0xff]
    %v1118 = vld [vmem:[#allocation8 + $0x13d0] sm:$0xff]
    %v1119 = vld [vmem:[#allocation8 + $0x13d8] sm:$0xff]
    %v1120 = vld [vmem:[#allocation8 + $0x13e0] sm:$0xff]
    %v1121 = vld [vmem:[#allocation8 + $0x13e8] sm:$0xff]
    %v1122 = vld [vmem:[#allocation8 + $0x13f0] sm:$0xff]
    %v1123 = vld [vmem:[#allocation8 + $0x13f8] sm:$0xff]
    %v1124 = vld [vmem:[#allocation8 + $0x1400] sm:$0xff]
    %v1125 = vld [vmem:[#allocation8 + $0x1408] sm:$0xff]
    %v1126 = vld [vmem:[#allocation8 + $0x1410] sm:$0xff]
    %v1127 = vld [vmem:[#allocation8 + $0x1418] sm:$0xff]
    %v1128 = vld [vmem:[#allocation8 + $0x1420] sm:$0xff]
    %v1129 = vld [vmem:[#allocation8 + $0x1428] sm:$0xff]
    %v1130 = vld [vmem:[#allocation8 + $0x1430] sm:$0xff]
    %v1131 = vld [vmem:[#allocation8 + $0x1438] sm:$0xff]
    %v1132 = vld [vmem:[#allocation8 + $0x1440] sm:$0xff]
    %v1133 = vld [vmem:[#allocation8 + $0x1448] sm:$0xff]
    %v1134 = vld [vmem:[#allocation8 + $0x1450] sm:$0xff]
    %v1135 = vld [vmem:[#allocation8 + $0x1458] sm:$0xff]
    %v1136 = vld [vmem:[#allocation8 + $0x1460] sm:$0xff]
    %v1137 = vld [vmem:[#allocation8 + $0x1468] sm:$0xff]
    %v1138 = vld [vmem:[#allocation8 + $0x1470] sm:$0xff]
    %v1139 = vld [vmem:[#allocation8 + $0x1478] sm:$0xff]
    %v1140 = vld [vmem:[#allocation8 + $0x1480] sm:$0xff]
    %v1141 = vld [vmem:[#allocation8 + $0x1488] sm:$0xff]
    %v1142 = vld [vmem:[#allocation8 + $0x1490] sm:$0xff]
    %v1143 = vld [vmem:[#allocation8 + $0x1498] sm:$0xff]
    %v1144 = vld [vmem:[#allocation8 + $0x14a0] sm:$0xff]
    %v1145 = vld [vmem:[#allocation8 + $0x14a8] sm:$0xff]
    %v1146 = vld [vmem:[#allocation8 + $0x14b0] sm:$0xff]
    %v1147 = vld [vmem:[#allocation8 + $0x14b8] sm:$0xff]
    %v1148 = vld [vmem:[#allocation8 + $0x14c0] sm:$0xff]
    %v1149 = vld [vmem:[#allocation8 + $0x14c8] sm:$0xff]
    %v1150 = vld [vmem:[#allocation8 + $0x14d0] sm:$0xff]
    %v1151 = vld [vmem:[#allocation8 + $0x14d8] sm:$0xff]
    %v1152 = vld [vmem:[#allocation8 + $0x14e0] sm:$0xff]
    %v1153 = vld [vmem:[#allocation8 + $0x14e8] sm:$0xff]
    %v1154 = vld [vmem:[#allocation8 + $0x14f0] sm:$0xff]
    %v1155 = vld [vmem:[#allocation8 + $0x14f8] sm:$0xff]
    %v1156 = vld [vmem:[#allocation8 + $0x1500] sm:$0xff]
    %v1157 = vld [vmem:[#allocation8 + $0x1508] sm:$0xff]
    %v1158 = vld [vmem:[#allocation8 + $0x1510] sm:$0xff]
    %v1159 = vld [vmem:[#allocation8 + $0x1518] sm:$0xff]
    %v1160 = vld [vmem:[#allocation8 + $0x1520] sm:$0xff]
    %v1161 = vld [vmem:[#allocation8 + $0x1528] sm:$0xff]
    %v1162 = vld [vmem:[#allocation8 + $0x1530] sm:$0xff]
    %v1163 = vld [vmem:[#allocation8 + $0x1538] sm:$0xff]
    %v1164 = vld [vmem:[#allocation8 + $0x1540] sm:$0xff]
    %v1165 = vld [vmem:[#allocation8 + $0x1548] sm:$0xff]
    %v1166 = vld [vmem:[#allocation8 + $0x1550] sm:$0xff]
    %v1167 = vld [vmem:[#allocation8 + $0x1558] sm:$0xff]
    %v1168 = vld [vmem:[#allocation8 + $0x1560] sm:$0xff]
    %v1169 = vld [vmem:[#allocation8 + $0x1568] sm:$0xff]
    %v1170 = vld [vmem:[#allocation8 + $0x1570] sm:$0xff]
    %v1171 = vld [vmem:[#allocation8 + $0x1578] sm:$0xff]
    %v1172 = vld [vmem:[#allocation8 + $0x1580] sm:$0xff]
    %v1173 = vld [vmem:[#allocation8 + $0x1588] sm:$0xff]
    %v1174 = vld [vmem:[#allocation8 + $0x1590] sm:$0xff]
    %v1175 = vld [vmem:[#allocation8 + $0x1598] sm:$0xff]
    %v1176 = vld [vmem:[#allocation8 + $0x15a0] sm:$0xff]
    %v1177 = vld [vmem:[#allocation8 + $0x15a8] sm:$0xff]
    %v1178 = vld [vmem:[#allocation8 + $0x15b0] sm:$0xff]
    %v1179 = vld [vmem:[#allocation8 + $0x15b8] sm:$0xff]
    %v1180 = vld [vmem:[#allocation8 + $0x15c0] sm:$0xff]
    %v1181 = vld [vmem:[#allocation8 + $0x15c8] sm:$0xff]
    %v1182 = vld [vmem:[#allocation8 + $0x15d0] sm:$0xff]
    %v1183 = vld [vmem:[#allocation8 + $0x15d8] sm:$0xff]
    %v1184 = vld [vmem:[#allocation8 + $0x15e0] sm:$0xff]
    %v1185 = vld [vmem:[#allocation8 + $0x15e8] sm:$0xff]
    %v1186 = vld [vmem:[#allocation8 + $0x15f0] sm:$0xff]
    %v1187 = vld [vmem:[#allocation8 + $0x15f8] sm:$0xff]
    %v1188 = vld [vmem:[#allocation8 + $0x1600] sm:$0xff]
    %v1189 = vld [vmem:[#allocation8 + $0x1608] sm:$0xff]
    %v1190 = vld [vmem:[#allocation8 + $0x1610] sm:$0xff]
    %v1191 = vld [vmem:[#allocation8 + $0x1618] sm:$0xff]
    %v1192 = vld [vmem:[#allocation8 + $0x1620] sm:$0xff]
    %v1193 = vld [vmem:[#allocation8 + $0x1628] sm:$0xff]
    %v1194 = vld [vmem:[#allocation8 + $0x1630] sm:$0xff]
    %v1195 = vld [vmem:[#allocation8 + $0x1638] sm:$0xff]
    %v1196 = vld [vmem:[#allocation8 + $0x1640] sm:$0xff]
    %v1197 = vld [vmem:[#allocation8 + $0x1648] sm:$0xff]
    %v1198 = vld [vmem:[#allocation8 + $0x1650] sm:$0xff]
    %v1199 = vld [vmem:[#allocation8 + $0x1658] sm:$0xff]
    %v1200 = vld [vmem:[#allocation8 + $0x1660] sm:$0xff]
    %v1201 = vld [vmem:[#allocation8 + $0x1668] sm:$0xff]
    %v1202 = vld [vmem:[#allocation8 + $0x1670] sm:$0xff]
    %v1203 = vld [vmem:[#allocation8 + $0x1678] sm:$0xff]
    %v1204 = vld [vmem:[#allocation8 + $0x1680] sm:$0xff]
    %v1205 = vld [vmem:[#allocation8 + $0x1688] sm:$0xff]
    %v1206 = vld [vmem:[#allocation8 + $0x1690] sm:$0xff]
    %v1207 = vld [vmem:[#allocation8 + $0x1698] sm:$0xff]
    %v1208 = vld [vmem:[#allocation8 + $0x16a0] sm:$0xff]
    %v1209 = vld [vmem:[#allocation8 + $0x16a8] sm:$0xff]
    %v1210 = vld [vmem:[#allocation8 + $0x16b0] sm:$0xff]
    %v1211 = vld [vmem:[#allocation8 + $0x16b8] sm:$0xff]
    %v1212 = vld [vmem:[#allocation8 + $0x16c0] sm:$0xff]
    %v1213 = vld [vmem:[#allocation8 + $0x16c8] sm:$0xff]
    %v1214 = vld [vmem:[#allocation8 + $0x16d0] sm:$0xff]
    %v1215 = vld [vmem:[#allocation8 + $0x16d8] sm:$0xff]
    %v1216 = vld [vmem:[#allocation8 + $0x16e0] sm:$0xff]
    %v1217 = vld [vmem:[#allocation8 + $0x16e8] sm:$0xff]
    %v1218 = vld [vmem:[#allocation8 + $0x16f0] sm:$0xff]
    %v1219 = vld [vmem:[#allocation8 + $0x16f8] sm:$0xff]
    %v1220 = vld [vmem:[#allocation8 + $0x1700] sm:$0xff]
    %v1221 = vld [vmem:[#allocation8 + $0x1708] sm:$0xff]
    %v1222 = vld [vmem:[#allocation8 + $0x1710] sm:$0xff]
    %v1223 = vld [vmem:[#allocation8 + $0x1718] sm:$0xff]
    %v1224 = vld [vmem:[#allocation8 + $0x1720] sm:$0xff]
    %v1225 = vld [vmem:[#allocation8 + $0x1728] sm:$0xff]
    %v1226 = vld [vmem:[#allocation8 + $0x1730] sm:$0xff]
    %v1227 = vld [vmem:[#allocation8 + $0x1738] sm:$0xff]
    %v1228 = vld [vmem:[#allocation8 + $0x1740] sm:$0xff]
    %v1229 = vld [vmem:[#allocation8 + $0x1748] sm:$0xff]
    %v1230 = vld [vmem:[#allocation8 + $0x1750] sm:$0xff]
    %v1231 = vld [vmem:[#allocation8 + $0x1758] sm:$0xff]
    %v1232 = vld [vmem:[#allocation8 + $0x1760] sm:$0xff]
    %v1233 = vld [vmem:[#allocation8 + $0x1768] sm:$0xff]
    %v1234 = vld [vmem:[#allocation8 + $0x1770] sm:$0xff]
    %v1235 = vld [vmem:[#allocation8 + $0x1778] sm:$0xff]
    %v1236 = vld [vmem:[#allocation8 + $0x1780] sm:$0xff]
    %v1237 = vld [vmem:[#allocation8 + $0x1788] sm:$0xff]
    %v1238 = vld [vmem:[#allocation8 + $0x1790] sm:$0xff]
    %v1239 = vld [vmem:[#allocation8 + $0x1798] sm:$0xff]
    %v1240 = vld [vmem:[#allocation8 + $0x17a0] sm:$0xff]
    %v1241 = vld [vmem:[#allocation8 + $0x17a8] sm:$0xff]
    %v1242 = vld [vmem:[#allocation8 + $0x17b0] sm:$0xff]
    %v1243 = vld [vmem:[#allocation8 + $0x17b8] sm:$0xff]
    %v1244 = vld [vmem:[#allocation8 + $0x17c0] sm:$0xff]
    %v1245 = vld [vmem:[#allocation8 + $0x17c8] sm:$0xff]
    %v1246 = vld [vmem:[#allocation8 + $0x17d0] sm:$0xff]
    %v1247 = vld [vmem:[#allocation8 + $0x17d8] sm:$0xff]
    %v1248 = vld [vmem:[#allocation8 + $0x17e0] sm:$0xff]
    %v1249 = vld [vmem:[#allocation8 + $0x17e8] sm:$0xff]
    %v1250 = vld [vmem:[#allocation8 + $0x17f0] sm:$0xff]
    %v1251 = vld [vmem:[#allocation8 + $0x17f8] sm:$0xff]
    %v1252 = vld [vmem:[#allocation8 + $0x1800] sm:$0xff]
    %v1253 = vld [vmem:[#allocation8 + $0x1808] sm:$0xff]
    %v1254 = vld [vmem:[#allocation8 + $0x1810] sm:$0xff]
    %v1255 = vld [vmem:[#allocation8 + $0x1818] sm:$0xff]
    %v1256 = vld [vmem:[#allocation8 + $0x1820] sm:$0xff]
    %v1257 = vld [vmem:[#allocation8 + $0x1828] sm:$0xff]
    %v1258 = vld [vmem:[#allocation8 + $0x1830] sm:$0xff]
    %v1259 = vld [vmem:[#allocation8 + $0x1838] sm:$0xff]
    %v1260 = vld [vmem:[#allocation8 + $0x1840] sm:$0xff]
    %v1261 = vld [vmem:[#allocation8 + $0x1848] sm:$0xff]
    %v1262 = vld [vmem:[#allocation8 + $0x1850] sm:$0xff]
    %v1263 = vld [vmem:[#allocation8 + $0x1858] sm:$0xff]
    %v1264 = vld [vmem:[#allocation8 + $0x1860] sm:$0xff]
    %v1265 = vld [vmem:[#allocation8 + $0x1868] sm:$0xff]
    %v1266 = vld [vmem:[#allocation8 + $0x1870] sm:$0xff]
    %v1267 = vld [vmem:[#allocation8 + $0x1878] sm:$0xff]
    %v1268 = vld [vmem:[#allocation8 + $0x1880] sm:$0xff]
    %v1269 = vld [vmem:[#allocation8 + $0x1888] sm:$0xff]
    %v1270 = vld [vmem:[#allocation8 + $0x1890] sm:$0xff]
    %v1271 = vld [vmem:[#allocation8 + $0x1898] sm:$0xff]
    %v1272 = vld [vmem:[#allocation8 + $0x18a0] sm:$0xff]
    %v1273 = vld [vmem:[#allocation8 + $0x18a8] sm:$0xff]
    %v1274 = vld [vmem:[#allocation8 + $0x18b0] sm:$0xff]
    %v1275 = vld [vmem:[#allocation8 + $0x18b8] sm:$0xff]
    %v1276 = vld [vmem:[#allocation8 + $0x18c0] sm:$0xff]
    %v1277 = vld [vmem:[#allocation8 + $0x18c8] sm:$0xff]
    %v1278 = vld [vmem:[#allocation8 + $0x18d0] sm:$0xff]
    %v1279 = vld [vmem:[#allocation8 + $0x18d8] sm:$0xff]
    %v1280 = vld [vmem:[#allocation8 + $0x18e0] sm:$0xff]
    %v1281 = vld [vmem:[#allocation8 + $0x18e8] sm:$0xff]
    %v1282 = vld [vmem:[#allocation8 + $0x18f0] sm:$0xff]
    %v1283 = vld [vmem:[#allocation8 + $0x18f8] sm:$0xff]
    %v1284 = vld [vmem:[#allocation8 + $0x1900] sm:$0xff]
    %v1285 = vld [vmem:[#allocation8 + $0x1908] sm:$0xff]
    %v1286 = vld [vmem:[#allocation8 + $0x1910] sm:$0xff]
    %v1287 = vld [vmem:[#allocation8 + $0x1918] sm:$0xff]
    %v1288 = vld [vmem:[#allocation8 + $0x1920] sm:$0xff]
    %v1289 = vld [vmem:[#allocation8 + $0x1928] sm:$0xff]
    %v1290 = vld [vmem:[#allocation8 + $0x1930] sm:$0xff]
    %v1291 = vld [vmem:[#allocation8 + $0x1938] sm:$0xff]
    %v1292 = vld [vmem:[#allocation8 + $0x1940] sm:$0xff]
    %v1293 = vld [vmem:[#allocation8 + $0x1948] sm:$0xff]
    %v1294 = vld [vmem:[#allocation8 + $0x1950] sm:$0xff]
    %v1295 = vld [vmem:[#allocation8 + $0x1958] sm:$0xff]
    %v1296 = vld [vmem:[#allocation8 + $0x1960] sm:$0xff]
    %v1297 = vld [vmem:[#allocation8 + $0x1968] sm:$0xff]
    %v1298 = vld [vmem:[#allocation8 + $0x1970] sm:$0xff]
    %v1299 = vld [vmem:[#allocation8 + $0x1978] sm:$0xff]
    %v1300 = vld [vmem:[#allocation8 + $0x1980] sm:$0xff]
    %v1301 = vld [vmem:[#allocation8 + $0x1988] sm:$0xff]
    %v1302 = vld [vmem:[#allocation8 + $0x1990] sm:$0xff]
    %v1303 = vld [vmem:[#allocation8 + $0x1998] sm:$0xff]
    %v1304 = vld [vmem:[#allocation8 + $0x19a0] sm:$0xff]
    %v1305 = vld [vmem:[#allocation8 + $0x19a8] sm:$0xff]
    %v1306 = vld [vmem:[#allocation8 + $0x19b0] sm:$0xff]
    %v1307 = vld [vmem:[#allocation8 + $0x19b8] sm:$0xff]
    %v1308 = vld [vmem:[#allocation8 + $0x19c0] sm:$0xff]
    %v1309 = vld [vmem:[#allocation8 + $0x19c8] sm:$0xff]
    %v1310 = vld [vmem:[#allocation8 + $0x19d0] sm:$0xff]
    %v1311 = vld [vmem:[#allocation8 + $0x19d8] sm:$0xff]
    %v1312 = vld [vmem:[#allocation8 + $0x19e0] sm:$0xff]
    %v1313 = vld [vmem:[#allocation8 + $0x19e8] sm:$0xff]
    %v1314 = vld [vmem:[#allocation8 + $0x19f0] sm:$0xff]
    %v1315 = vld [vmem:[#allocation8 + $0x19f8] sm:$0xff]
    %v1316 = vld [vmem:[#allocation8 + $0x1a00] sm:$0xff]
    %v1317 = vld [vmem:[#allocation8 + $0x1a08] sm:$0xff]
    %v1318 = vld [vmem:[#allocation8 + $0x1a10] sm:$0xff]
    %v1319 = vld [vmem:[#allocation8 + $0x1a18] sm:$0xff]
    %v1320 = vld [vmem:[#allocation8 + $0x1a20] sm:$0xff]
    %v1321 = vld [vmem:[#allocation8 + $0x1a28] sm:$0xff]
    %v1322 = vld [vmem:[#allocation8 + $0x1a30] sm:$0xff]
    %v1323 = vld [vmem:[#allocation8 + $0x1a38] sm:$0xff]
    %v1324 = vld [vmem:[#allocation8 + $0x1a40] sm:$0xff]
    %v1325 = vld [vmem:[#allocation8 + $0x1a48] sm:$0xff]
    %v1326 = vld [vmem:[#allocation8 + $0x1a50] sm:$0xff]
    %v1327 = vld [vmem:[#allocation8 + $0x1a58] sm:$0xff]
    %v1328 = vld [vmem:[#allocation8 + $0x1a60] sm:$0xff]
    %v1329 = vld [vmem:[#allocation8 + $0x1a68] sm:$0xff]
    %v1330 = vld [vmem:[#allocation8 + $0x1a70] sm:$0xff]
    %v1331 = vld [vmem:[#allocation8 + $0x1a78] sm:$0xff]
    %v1332 = vld [vmem:[#allocation8 + $0x1a80] sm:$0xff]
    %v1333 = vld [vmem:[#allocation8 + $0x1a88] sm:$0xff]
    %v1334 = vld [vmem:[#allocation8 + $0x1a90] sm:$0xff]
    %v1335 = vld [vmem:[#allocation8 + $0x1a98] sm:$0xff]
    %v1336 = vld [vmem:[#allocation8 + $0x1aa0] sm:$0xff]
    %v1337 = vld [vmem:[#allocation8 + $0x1aa8] sm:$0xff]
    %v1338 = vld [vmem:[#allocation8 + $0x1ab0] sm:$0xff]
    %v1339 = vld [vmem:[#allocation8 + $0x1ab8] sm:$0xff]
    %v1340 = vld [vmem:[#allocation8 + $0x1ac0] sm:$0xff]
    %v1341 = vld [vmem:[#allocation8 + $0x1ac8] sm:$0xff]
    %v1342 = vld [vmem:[#allocation8 + $0x1ad0] sm:$0xff]
    %v1343 = vld [vmem:[#allocation8 + $0x1ad8] sm:$0xff]
    %v1344 = vld [vmem:[#allocation8 + $0x1ae0] sm:$0xff]
    %v1345 = vld [vmem:[#allocation8 + $0x1ae8] sm:$0xff]
    %v1346 = vld [vmem:[#allocation8 + $0x1af0] sm:$0xff]
    %v1347 = vld [vmem:[#allocation8 + $0x1af8] sm:$0xff]
    %v1348 = vld [vmem:[#allocation8 + $0x1b00] sm:$0xff]
    %v1349 = vld [vmem:[#allocation8 + $0x1b08] sm:$0xff]
    %v1350 = vld [vmem:[#allocation8 + $0x1b10] sm:$0xff]
    %v1351 = vld [vmem:[#allocation8 + $0x1b18] sm:$0xff]
    %v1352 = vld [vmem:[#allocation8 + $0x1b20] sm:$0xff]
    %v1353 = vld [vmem:[#allocation8 + $0x1b28] sm:$0xff]
    %v1354 = vld [vmem:[#allocation8 + $0x1b30] sm:$0xff]
    %v1355 = vld [vmem:[#allocation8 + $0x1b38] sm:$0xff]
    %v1356 = vld [vmem:[#allocation8 + $0x1b40] sm:$0xff]
    %v1357 = vld [vmem:[#allocation8 + $0x1b48] sm:$0xff]
    %v1358 = vld [vmem:[#allocation8 + $0x1b50] sm:$0xff]
    %v1359 = vld [vmem:[#allocation8 + $0x1b58] sm:$0xff]
    %v1360 = vld [vmem:[#allocation8 + $0x1b60] sm:$0xff]
    %v1361 = vld [vmem:[#allocation8 + $0x1b68] sm:$0xff]
    %v1362 = vld [vmem:[#allocation8 + $0x1b70] sm:$0xff]
    %v1363 = vld [vmem:[#allocation8 + $0x1b78] sm:$0xff]
    %v1364 = vld [vmem:[#allocation8 + $0x1b80] sm:$0xff]
    %v1365 = vld [vmem:[#allocation8 + $0x1b88] sm:$0xff]
    %v1366 = vld [vmem:[#allocation8 + $0x1b90] sm:$0xff]
    %v1367 = vld [vmem:[#allocation8 + $0x1b98] sm:$0xff]
    %v1368 = vld [vmem:[#allocation8 + $0x1ba0] sm:$0xff]
    %v1369 = vld [vmem:[#allocation8 + $0x1ba8] sm:$0xff]
    %v1370 = vld [vmem:[#allocation8 + $0x1bb0] sm:$0xff]
    %v1371 = vld [vmem:[#allocation8 + $0x1bb8] sm:$0xff]
    %v1372 = vld [vmem:[#allocation8 + $0x1bc0] sm:$0xff]
    %v1373 = vld [vmem:[#allocation8 + $0x1bc8] sm:$0xff]
    %v1374 = vld [vmem:[#allocation8 + $0x1bd0] sm:$0xff]
    %v1375 = vld [vmem:[#allocation8 + $0x1bd8] sm:$0xff]
    %v1376 = vld [vmem:[#allocation8 + $0x1be0] sm:$0xff]
    %v1377 = vld [vmem:[#allocation8 + $0x1be8] sm:$0xff]
    %v1378 = vld [vmem:[#allocation8 + $0x1bf0] sm:$0xff]
    %v1379 = vld [vmem:[#allocation8 + $0x1bf8] sm:$0xff]
    %v1380 = vld [vmem:[#allocation8 + $0x1c00] sm:$0xff]
    %v1381 = vld [vmem:[#allocation8 + $0x1c08] sm:$0xff]
    %v1382 = vld [vmem:[#allocation8 + $0x1c10] sm:$0xff]
    %v1383 = vld [vmem:[#allocation8 + $0x1c18] sm:$0xff]
    %v1384 = vld [vmem:[#allocation8 + $0x1c20] sm:$0xff]
    %v1385 = vld [vmem:[#allocation8 + $0x1c28] sm:$0xff]
    %v1386 = vld [vmem:[#allocation8 + $0x1c30] sm:$0xff]
    %v1387 = vld [vmem:[#allocation8 + $0x1c38] sm:$0xff]
    %v1388 = vld [vmem:[#allocation8 + $0x1c40] sm:$0xff]
    %v1389 = vld [vmem:[#allocation8 + $0x1c48] sm:$0xff]
    %v1390 = vld [vmem:[#allocation8 + $0x1c50] sm:$0xff]
    %v1391 = vld [vmem:[#allocation8 + $0x1c58] sm:$0xff]
    %v1392 = vld [vmem:[#allocation8 + $0x1c60] sm:$0xff]
    %v1393 = vld [vmem:[#allocation8 + $0x1c68] sm:$0xff]
    %v1394 = vld [vmem:[#allocation8 + $0x1c70] sm:$0xff]
    %v1395 = vld [vmem:[#allocation8 + $0x1c78] sm:$0xff]
    %v1396 = vld [vmem:[#allocation8 + $0x1c80] sm:$0xff]
    %v1397 = vld [vmem:[#allocation8 + $0x1c88] sm:$0xff]
    %v1398 = vld [vmem:[#allocation8 + $0x1c90] sm:$0xff]
    %v1399 = vld [vmem:[#allocation8 + $0x1c98] sm:$0xff]
    %v1400 = vld [vmem:[#allocation8 + $0x1ca0] sm:$0xff]
    %v1401 = vld [vmem:[#allocation8 + $0x1ca8] sm:$0xff]
    %v1402 = vld [vmem:[#allocation8 + $0x1cb0] sm:$0xff]
    %v1403 = vld [vmem:[#allocation8 + $0x1cb8] sm:$0xff]
    %v1404 = vld [vmem:[#allocation8 + $0x1cc0] sm:$0xff]
    %v1405 = vld [vmem:[#allocation8 + $0x1cc8] sm:$0xff]
    %v1406 = vld [vmem:[#allocation8 + $0x1cd0] sm:$0xff]
    %v1407 = vld [vmem:[#allocation8 + $0x1cd8] sm:$0xff]
    %v1408 = vld [vmem:[#allocation8 + $0x1ce0] sm:$0xff]
    %v1409 = vld [vmem:[#allocation8 + $0x1ce8] sm:$0xff]
    %v1410 = vld [vmem:[#allocation8 + $0x1cf0] sm:$0xff]
    %v1411 = vld [vmem:[#allocation8 + $0x1cf8] sm:$0xff]
    %v1412 = vld [vmem:[#allocation8 + $0x1d00] sm:$0xff]
    %v1413 = vld [vmem:[#allocation8 + $0x1d08] sm:$0xff]
    %v1414 = vld [vmem:[#allocation8 + $0x1d10] sm:$0xff]
    %v1415 = vld [vmem:[#allocation8 + $0x1d18] sm:$0xff]
    %v1416 = vld [vmem:[#allocation8 + $0x1d20] sm:$0xff]
    %v1417 = vld [vmem:[#allocation8 + $0x1d28] sm:$0xff]
    %v1418 = vld [vmem:[#allocation8 + $0x1d30] sm:$0xff]
    %v1419 = vld [vmem:[#allocation8 + $0x1d38] sm:$0xff]
    %v1420 = vld [vmem:[#allocation8 + $0x1d40] sm:$0xff]
    %v1421 = vld [vmem:[#allocation8 + $0x1d48] sm:$0xff]
    %v1422 = vld [vmem:[#allocation8 + $0x1d50] sm:$0xff]
    %v1423 = vld [vmem:[#allocation8 + $0x1d58] sm:$0xff]
    %v1424 = vld [vmem:[#allocation8 + $0x1d60] sm:$0xff]
    %v1425 = vld [vmem:[#allocation8 + $0x1d68] sm:$0xff]
    %v1426 = vld [vmem:[#allocation8 + $0x1d70] sm:$0xff]
    %v1427 = vld [vmem:[#allocation8 + $0x1d78] sm:$0xff]
    %v1428 = vld [vmem:[#allocation8 + $0x1d80] sm:$0xff]
    %v1429 = vld [vmem:[#allocation8 + $0x1d88] sm:$0xff]
    %v1430 = vld [vmem:[#allocation8 + $0x1d90] sm:$0xff]
    %v1431 = vld [vmem:[#allocation8 + $0x1d98] sm:$0xff]
    %v1432 = vld [vmem:[#allocation8 + $0x1da0] sm:$0xff]
    %v1433 = vld [vmem:[#allocation8 + $0x1da8] sm:$0xff]
    %v1434 = vld [vmem:[#allocation8 + $0x1db0] sm:$0xff]
    %v1435 = vld [vmem:[#allocation8 + $0x1db8] sm:$0xff]
    %v1436 = vld [vmem:[#allocation8 + $0x1dc0] sm:$0xff]
    %v1437 = vld [vmem:[#allocation8 + $0x1dc8] sm:$0xff]
    %v1438 = vld [vmem:[#allocation8 + $0x1dd0] sm:$0xff]
    %v1439 = vld [vmem:[#allocation8 + $0x1dd8] sm:$0xff]
    %v1440 = vld [vmem:[#allocation8 + $0x1de0] sm:$0xff]
    %v1441 = vld [vmem:[#allocation8 + $0x1de8] sm:$0xff]
    %v1442 = vld [vmem:[#allocation8 + $0x1df0] sm:$0xff]
    %v1443 = vld [vmem:[#allocation8 + $0x1df8] sm:$0xff]
    %v1444 = vld [vmem:[#allocation8 + $0x1e00] sm:$0xff]
    %v1445 = vld [vmem:[#allocation8 + $0x1e08] sm:$0xff]
    %v1446 = vld [vmem:[#allocation8 + $0x1e10] sm:$0xff]
    %v1447 = vld [vmem:[#allocation8 + $0x1e18] sm:$0xff]
    %v1448 = vld [vmem:[#allocation8 + $0x1e20] sm:$0xff]
    %v1449 = vld [vmem:[#allocation8 + $0x1e28] sm:$0xff]
    %v1450 = vld [vmem:[#allocation8 + $0x1e30] sm:$0xff]
    %v1451 = vld [vmem:[#allocation8 + $0x1e38] sm:$0xff]
    %v1452 = vld [vmem:[#allocation8 + $0x1e40] sm:$0xff]
    %v1453 = vld [vmem:[#allocation8 + $0x1e48] sm:$0xff]
    %v1454 = vld [vmem:[#allocation8 + $0x1e50] sm:$0xff]
    %v1455 = vld [vmem:[#allocation8 + $0x1e58] sm:$0xff]
    %v1456 = vld [vmem:[#allocation8 + $0x1e60] sm:$0xff]
    %v1457 = vld [vmem:[#allocation8 + $0x1e68] sm:$0xff]
    %v1458 = vld [vmem:[#allocation8 + $0x1e70] sm:$0xff]
    %v1459 = vld [vmem:[#allocation8 + $0x1e78] sm:$0xff]
    %v1460 = vld [vmem:[#allocation8 + $0x1e80] sm:$0xff]
    %v1461 = vld [vmem:[#allocation8 + $0x1e88] sm:$0xff]
    %v1462 = vld [vmem:[#allocation8 + $0x1e90] sm:$0xff]
    %v1463 = vld [vmem:[#allocation8 + $0x1e98] sm:$0xff]
    %v1464 = vld [vmem:[#allocation8 + $0x1ea0] sm:$0xff]
    %v1465 = vld [vmem:[#allocation8 + $0x1ea8] sm:$0xff]
    %v1466 = vld [vmem:[#allocation8 + $0x1eb0] sm:$0xff]
    %v1467 = vld [vmem:[#allocation8 + $0x1eb8] sm:$0xff]
    %v1468 = vld [vmem:[#allocation8 + $0x1ec0] sm:$0xff]
    %v1469 = vld [vmem:[#allocation8 + $0x1ec8] sm:$0xff]
    %v1470 = vld [vmem:[#allocation8 + $0x1ed0] sm:$0xff]
    %v1471 = vld [vmem:[#allocation8 + $0x1ed8] sm:$0xff]
    %v1472 = vld [vmem:[#allocation8 + $0x1ee0] sm:$0xff]
    %v1473 = vld [vmem:[#allocation8 + $0x1ee8] sm:$0xff]
    %v1474 = vld [vmem:[#allocation8 + $0x1ef0] sm:$0xff]
    %v1475 = vld [vmem:[#allocation8 + $0x1ef8] sm:$0xff]
    %v1476 = vld [vmem:[#allocation8 + $0x1f00] sm:$0xff]
    %v1477 = vld [vmem:[#allocation8 + $0x1f08] sm:$0xff]
    %v1478 = vld [vmem:[#allocation8 + $0x1f10] sm:$0xff]
    %v1479 = vld [vmem:[#allocation8 + $0x1f18] sm:$0xff]
    %v1480 = vld [vmem:[#allocation8 + $0x1f20] sm:$0xff]
    %v1481 = vld [vmem:[#allocation8 + $0x1f28] sm:$0xff]
    %v1482 = vld [vmem:[#allocation8 + $0x1f30] sm:$0xff]
    %v1483 = vld [vmem:[#allocation8 + $0x1f38] sm:$0xff]
    %v1484 = vld [vmem:[#allocation8 + $0x1f40] sm:$0xff]
    %v1485 = vld [vmem:[#allocation8 + $0x1f48] sm:$0xff]
    %v1486 = vld [vmem:[#allocation8 + $0x1f50] sm:$0xff]
    %v1487 = vld [vmem:[#allocation8 + $0x1f58] sm:$0xff]
    %v1488 = vld [vmem:[#allocation8 + $0x1f60] sm:$0xff]
    %v1489 = vld [vmem:[#allocation8 + $0x1f68] sm:$0xff]
    %v1490 = vld [vmem:[#allocation8 + $0x1f70] sm:$0xff]
    %v1491 = vld [vmem:[#allocation8 + $0x1f78] sm:$0xff]
    %v1492 = vld [vmem:[#allocation8 + $0x1f80] sm:$0xff]
    %v1493 = vld [vmem:[#allocation8 + $0x1f88] sm:$0xff]
    %v1494 = vld [vmem:[#allocation8 + $0x1f90] sm:$0xff]
    %v1495 = vld [vmem:[#allocation8 + $0x1f98] sm:$0xff]
    %v1496 = vld [vmem:[#allocation8 + $0x1fa0] sm:$0xff]
    %v1497 = vld [vmem:[#allocation8 + $0x1fa8] sm:$0xff]
    %v1498 = vld [vmem:[#allocation8 + $0x1fb0] sm:$0xff]
    %v1499 = vld [vmem:[#allocation8 + $0x1fb8] sm:$0xff]
    %v1500 = vld [vmem:[#allocation8 + $0x1fc0] sm:$0xff]
    %v1501 = vld [vmem:[#allocation8 + $0x1fc8] sm:$0xff]
    %v1502 = vld [vmem:[#allocation8 + $0x1fd0] sm:$0xff]
    %v1503 = vld [vmem:[#allocation8 + $0x1fd8] sm:$0xff]
    %v1504 = vld [vmem:[#allocation8 + $0x1fe0] sm:$0xff]
    %v1505 = vld [vmem:[#allocation8 + $0x1fe8] sm:$0xff]
    %v1506 = vld [vmem:[#allocation8 + $0x1ff0] sm:$0xff]
    %v1507 = vld [vmem:[#allocation8 + $0x1ff8] sm:$0xff]
    %v1508 = vld [vmem:[#allocation10] sm:$0xff]
    %v1509 = vld [vmem:[#allocation10 + $0x8] sm:$0xff]
    %v1512 = vperm.slane %v1508, 0
    %v1513 = vperm.slane %v1508, 1
    %v1514 = vperm.slane %v1508, 2
    %v1515 = vperm.slane %v1508, 3
    %v1516 = vperm.slane %v1508, 4
    %v1517 = vperm.slane %v1508, 5
    %v1518 = vperm.slane %v1508, 6
    %v1519 = vperm.slane %v1508, 7
    %v1520 = vperm.slane %v1509, 0
    %v1521 = vperm.slane %v1509, 1
    %v1522 = vperm.slane %v1509, 2
    %v1523 = vperm.slane %v1509, 3
    %v1524 = vperm.slane %v1509, 4
    %v1525 = vperm.slane %v1509, 5
    %v1526 = vperm.slane %v1509, 6
    %v1527 = vperm.slane %v1509, 7
    %v2568 = vunpack.c.l.b16 %v484
    %v2569 = vunpack.c.h.b16 %v484
    %v2570 = vunpack.c.l.b16 %v485
    %v2571 = vunpack.c.h.b16 %v485
    %v2572 = vunpack.c.l.b16 %v486
    %v2573 = vunpack.c.h.b16 %v486
    %v2574 = vunpack.c.l.b16 %v487
    %v2575 = vunpack.c.h.b16 %v487
    %v2576 = vunpack.c.l.b16 %v488
    %v2577 = vunpack.c.h.b16 %v488
    %v2578 = vunpack.c.l.b16 %v489
    %v2579 = vunpack.c.h.b16 %v489
    %v2580 = vunpack.c.l.b16 %v490
    %v2581 = vunpack.c.h.b16 %v490
    %v2582 = vunpack.c.l.b16 %v491
    %v2583 = vunpack.c.h.b16 %v491
    %v2584 = vunpack.c.l.b16 %v492
    %v2585 = vunpack.c.h.b16 %v492
    %v2586 = vunpack.c.l.b16 %v493
    %v2587 = vunpack.c.h.b16 %v493
    %v2588 = vunpack.c.l.b16 %v494
    %v2589 = vunpack.c.h.b16 %v494
    %v2590 = vunpack.c.l.b16 %v495
    %v2591 = vunpack.c.h.b16 %v495
    %v2592 = vunpack.c.l.b16 %v496
    %v2593 = vunpack.c.h.b16 %v496
    %v2594 = vunpack.c.l.b16 %v497
    %v2595 = vunpack.c.h.b16 %v497
    %v2596 = vunpack.c.l.b16 %v498
    %v2597 = vunpack.c.h.b16 %v498
    %v2598 = vunpack.c.l.b16 %v499
    %v2599 = vunpack.c.h.b16 %v499
    %v2600 = vunpack.c.l.b16 %v500
    %v2601 = vunpack.c.h.b16 %v500
    %v2602 = vunpack.c.l.b16 %v501
    %v2603 = vunpack.c.h.b16 %v501
    %v2604 = vunpack.c.l.b16 %v502
    %v2605 = vunpack.c.h.b16 %v502
    %v2606 = vunpack.c.l.b16 %v503
    %v2607 = vunpack.c.h.b16 %v503
    %v2608 = vunpack.c.l.b16 %v504
    %v2609 = vunpack.c.h.b16 %v504
    %v2610 = vunpack.c.l.b16 %v505
    %v2611 = vunpack.c.h.b16 %v505
    %v2612 = vunpack.c.l.b16 %v506
    %v2613 = vunpack.c.h.b16 %v506
    %v2614 = vunpack.c.l.b16 %v507
    %v2615 = vunpack.c.h.b16 %v507
    %v2616 = vunpack.c.l.b16 %v508
    %v2617 = vunpack.c.h.b16 %v508
    %v2618 = vunpack.c.l.b16 %v509
    %v2619 = vunpack.c.h.b16 %v509
    %v2620 = vunpack.c.l.b16 %v510
    %v2621 = vunpack.c.h.b16 %v510
    %v2622 = vunpack.c.l.b16 %v511
    %v2623 = vunpack.c.h.b16 %v511
    %v2624 = vunpack.c.l.b16 %v512
    %v2625 = vunpack.c.h.b16 %v512
    %v2626 = vunpack.c.l.b16 %v513
    %v2627 = vunpack.c.h.b16 %v513
    %v2628 = vunpack.c.l.b16 %v514
    %v2629 = vunpack.c.h.b16 %v514
    %v2630 = vunpack.c.l.b16 %v515
    %v2631 = vunpack.c.h.b16 %v515
    %v2632 = vunpack.c.l.b16 %v516
    %v2633 = vunpack.c.h.b16 %v516
    %v2634 = vunpack.c.l.b16 %v517
    %v2635 = vunpack.c.h.b16 %v517
    %v2636 = vunpack.c.l.b16 %v518
    %v2637 = vunpack.c.h.b16 %v518
    %v2638 = vunpack.c.l.b16 %v519
    %v2639 = vunpack.c.h.b16 %v519
    %v2640 = vunpack.c.l.b16 %v520
    %v2641 = vunpack.c.h.b16 %v520
    %v2642 = vunpack.c.l.b16 %v521
    %v2643 = vunpack.c.h.b16 %v521
    %v2644 = vunpack.c.l.b16 %v522
    %v2645 = vunpack.c.h.b16 %v522
    %v2646 = vunpack.c.l.b16 %v523
    %v2647 = vunpack.c.h.b16 %v523
    %v2648 = vunpack.c.l.b16 %v524
    %v2649 = vunpack.c.h.b16 %v524
    %v2650 = vunpack.c.l.b16 %v525
    %v2651 = vunpack.c.h.b16 %v525
    %v2652 = vunpack.c.l.b16 %v526
    %v2653 = vunpack.c.h.b16 %v526
    %v2654 = vunpack.c.l.b16 %v527
    %v2655 = vunpack.c.h.b16 %v527
    %v2656 = vunpack.c.l.b16 %v528
    %v2657 = vunpack.c.h.b16 %v528
    %v2658 = vunpack.c.l.b16 %v529
    %v2659 = vunpack.c.h.b16 %v529
    %v2660 = vunpack.c.l.b16 %v530
    %v2661 = vunpack.c.h.b16 %v530
    %v2662 = vunpack.c.l.b16 %v531
    %v2663 = vunpack.c.h.b16 %v531
    %v2664 = vunpack.c.l.b16 %v532
    %v2665 = vunpack.c.h.b16 %v532
    %v2666 = vunpack.c.l.b16 %v533
    %v2667 = vunpack.c.h.b16 %v533
    %v2668 = vunpack.c.l.b16 %v534
    %v2669 = vunpack.c.h.b16 %v534
    %v2670 = vunpack.c.l.b16 %v535
    %v2671 = vunpack.c.h.b16 %v535
    %v2672 = vunpack.c.l.b16 %v536
    %v2673 = vunpack.c.h.b16 %v536
    %v2674 = vunpack.c.l.b16 %v537
    %v2675 = vunpack.c.h.b16 %v537
    %v2676 = vunpack.c.l.b16 %v538
    %v2677 = vunpack.c.h.b16 %v538
    %v2678 = vunpack.c.l.b16 %v539
    %v2679 = vunpack.c.h.b16 %v539
    %v2680 = vunpack.c.l.b16 %v540
    %v2681 = vunpack.c.h.b16 %v540
    %v2682 = vunpack.c.l.b16 %v541
    %v2683 = vunpack.c.h.b16 %v541
    %v2684 = vunpack.c.l.b16 %v542
    %v2685 = vunpack.c.h.b16 %v542
    %v2686 = vunpack.c.l.b16 %v543
    %v2687 = vunpack.c.h.b16 %v543
    %v2688 = vunpack.c.l.b16 %v544
    %v2689 = vunpack.c.h.b16 %v544
    %v2690 = vunpack.c.l.b16 %v545
    %v2691 = vunpack.c.h.b16 %v545
    %v2692 = vunpack.c.l.b16 %v546
    %v2693 = vunpack.c.h.b16 %v546
    %v2694 = vunpack.c.l.b16 %v547
    %v2695 = vunpack.c.h.b16 %v547
    %v2696 = vunpack.c.l.b16 %v548
    %v2697 = vunpack.c.h.b16 %v548
    %v2698 = vunpack.c.l.b16 %v549
    %v2699 = vunpack.c.h.b16 %v549
    %v2700 = vunpack.c.l.b16 %v550
    %v2701 = vunpack.c.h.b16 %v550
    %v2702 = vunpack.c.l.b16 %v551
    %v2703 = vunpack.c.h.b16 %v551
    %v2704 = vunpack.c.l.b16 %v552
    %v2705 = vunpack.c.h.b16 %v552
    %v2706 = vunpack.c.l.b16 %v553
    %v2707 = vunpack.c.h.b16 %v553
    %v2708 = vunpack.c.l.b16 %v554
    %v2709 = vunpack.c.h.b16 %v554
    %v2710 = vunpack.c.l.b16 %v555
    %v2711 = vunpack.c.h.b16 %v555
    %v2712 = vunpack.c.l.b16 %v556
    %v2713 = vunpack.c.h.b16 %v556
    %v2714 = vunpack.c.l.b16 %v557
    %v2715 = vunpack.c.h.b16 %v557
    %v2716 = vunpack.c.l.b16 %v558
    %v2717 = vunpack.c.h.b16 %v558
    %v2718 = vunpack.c.l.b16 %v559
    %v2719 = vunpack.c.h.b16 %v559
    %v2720 = vunpack.c.l.b16 %v560
    %v2721 = vunpack.c.h.b16 %v560
    %v2722 = vunpack.c.l.b16 %v561
    %v2723 = vunpack.c.h.b16 %v561
    %v2724 = vunpack.c.l.b16 %v562
    %v2725 = vunpack.c.h.b16 %v562
    %v2726 = vunpack.c.l.b16 %v563
    %v2727 = vunpack.c.h.b16 %v563
    %v2728 = vunpack.c.l.b16 %v564
    %v2729 = vunpack.c.h.b16 %v564
    %v2730 = vunpack.c.l.b16 %v565
    %v2731 = vunpack.c.h.b16 %v565
    %v2732 = vunpack.c.l.b16 %v566
    %v2733 = vunpack.c.h.b16 %v566
    %v2734 = vunpack.c.l.b16 %v567
    %v2735 = vunpack.c.h.b16 %v567
    %v2736 = vunpack.c.l.b16 %v568
    %v2737 = vunpack.c.h.b16 %v568
    %v2738 = vunpack.c.l.b16 %v569
    %v2739 = vunpack.c.h.b16 %v569
    %v2740 = vunpack.c.l.b16 %v570
    %v2741 = vunpack.c.h.b16 %v570
    %v2742 = vunpack.c.l.b16 %v571
    %v2743 = vunpack.c.h.b16 %v571
    %v2744 = vunpack.c.l.b16 %v572
    %v2745 = vunpack.c.h.b16 %v572
    %v2746 = vunpack.c.l.b16 %v573
    %v2747 = vunpack.c.h.b16 %v573
    %v2748 = vunpack.c.l.b16 %v574
    %v2749 = vunpack.c.h.b16 %v574
    %v2750 = vunpack.c.l.b16 %v575
    %v2751 = vunpack.c.h.b16 %v575
    %v2752 = vunpack.c.l.b16 %v576
    %v2753 = vunpack.c.h.b16 %v576
    %v2754 = vunpack.c.l.b16 %v577
    %v2755 = vunpack.c.h.b16 %v577
    %v2756 = vunpack.c.l.b16 %v578
    %v2757 = vunpack.c.h.b16 %v578
    %v2758 = vunpack.c.l.b16 %v579
    %v2759 = vunpack.c.h.b16 %v579
    %v2760 = vunpack.c.l.b16 %v580
    %v2761 = vunpack.c.h.b16 %v580
    %v2762 = vunpack.c.l.b16 %v581
    %v2763 = vunpack.c.h.b16 %v581
    %v2764 = vunpack.c.l.b16 %v582
    %v2765 = vunpack.c.h.b16 %v582
    %v2766 = vunpack.c.l.b16 %v583
    %v2767 = vunpack.c.h.b16 %v583
    %v2768 = vunpack.c.l.b16 %v584
    %v2769 = vunpack.c.h.b16 %v584
    %v2770 = vunpack.c.l.b16 %v585
    %v2771 = vunpack.c.h.b16 %v585
    %v2772 = vunpack.c.l.b16 %v586
    %v2773 = vunpack.c.h.b16 %v586
    %v2774 = vunpack.c.l.b16 %v587
    %v2775 = vunpack.c.h.b16 %v587
    %v2776 = vunpack.c.l.b16 %v588
    %v2777 = vunpack.c.h.b16 %v588
    %v2778 = vunpack.c.l.b16 %v589
    %v2779 = vunpack.c.h.b16 %v589
    %v2780 = vunpack.c.l.b16 %v590
    %v2781 = vunpack.c.h.b16 %v590
    %v2782 = vunpack.c.l.b16 %v591
    %v2783 = vunpack.c.h.b16 %v591
    %v2784 = vunpack.c.l.b16 %v592
    %v2785 = vunpack.c.h.b16 %v592
    %v2786 = vunpack.c.l.b16 %v593
    %v2787 = vunpack.c.h.b16 %v593
    %v2788 = vunpack.c.l.b16 %v594
    %v2789 = vunpack.c.h.b16 %v594
    %v2790 = vunpack.c.l.b16 %v595
    %v2791 = vunpack.c.h.b16 %v595
    %v2792 = vunpack.c.l.b16 %v596
    %v2793 = vunpack.c.h.b16 %v596
    %v2794 = vunpack.c.l.b16 %v597
    %v2795 = vunpack.c.h.b16 %v597
    %v2796 = vunpack.c.l.b16 %v598
    %v2797 = vunpack.c.h.b16 %v598
    %v2798 = vunpack.c.l.b16 %v599
    %v2799 = vunpack.c.h.b16 %v599
    %v2800 = vunpack.c.l.b16 %v600
    %v2801 = vunpack.c.h.b16 %v600
    %v2802 = vunpack.c.l.b16 %v601
    %v2803 = vunpack.c.h.b16 %v601
    %v2804 = vunpack.c.l.b16 %v602
    %v2805 = vunpack.c.h.b16 %v602
    %v2806 = vunpack.c.l.b16 %v603
    %v2807 = vunpack.c.h.b16 %v603
    %v2808 = vunpack.c.l.b16 %v604
    %v2809 = vunpack.c.h.b16 %v604
    %v2810 = vunpack.c.l.b16 %v605
    %v2811 = vunpack.c.h.b16 %v605
    %v2812 = vunpack.c.l.b16 %v606
    %v2813 = vunpack.c.h.b16 %v606
    %v2814 = vunpack.c.l.b16 %v607
    %v2815 = vunpack.c.h.b16 %v607
    %v2816 = vunpack.c.l.b16 %v608
    %v2817 = vunpack.c.h.b16 %v608
    %v2818 = vunpack.c.l.b16 %v609
    %v2819 = vunpack.c.h.b16 %v609
    %v2820 = vunpack.c.l.b16 %v610
    %v2821 = vunpack.c.h.b16 %v610
    %v2822 = vunpack.c.l.b16 %v611
    %v2823 = vunpack.c.h.b16 %v611
    %v2824 = vunpack.c.l.b16 %v612
    %v2825 = vunpack.c.h.b16 %v612
    %v2826 = vunpack.c.l.b16 %v613
    %v2827 = vunpack.c.h.b16 %v613
    %v2828 = vunpack.c.l.b16 %v614
    %v2829 = vunpack.c.h.b16 %v614
    %v2830 = vunpack.c.l.b16 %v615
    %v2831 = vunpack.c.h.b16 %v615
    %v2832 = vunpack.c.l.b16 %v616
    %v2833 = vunpack.c.h.b16 %v616
    %v2834 = vunpack.c.l.b16 %v617
    %v2835 = vunpack.c.h.b16 %v617
    %v2836 = vunpack.c.l.b16 %v618
    %v2837 = vunpack.c.h.b16 %v618
    %v2838 = vunpack.c.l.b16 %v619
    %v2839 = vunpack.c.h.b16 %v619
    %v2840 = vunpack.c.l.b16 %v620
    %v2841 = vunpack.c.h.b16 %v620
    %v2842 = vunpack.c.l.b16 %v621
    %v2843 = vunpack.c.h.b16 %v621
    %v2844 = vunpack.c.l.b16 %v622
    %v2845 = vunpack.c.h.b16 %v622
    %v2846 = vunpack.c.l.b16 %v623
    %v2847 = vunpack.c.h.b16 %v623
    %v2848 = vunpack.c.l.b16 %v624
    %v2849 = vunpack.c.h.b16 %v624
    %v2850 = vunpack.c.l.b16 %v625
    %v2851 = vunpack.c.h.b16 %v625
    %v2852 = vunpack.c.l.b16 %v626
    %v2853 = vunpack.c.h.b16 %v626
    %v2854 = vunpack.c.l.b16 %v627
    %v2855 = vunpack.c.h.b16 %v627
    %v2856 = vunpack.c.l.b16 %v628
    %v2857 = vunpack.c.h.b16 %v628
    %v2858 = vunpack.c.l.b16 %v629
    %v2859 = vunpack.c.h.b16 %v629
    %v2860 = vunpack.c.l.b16 %v630
    %v2861 = vunpack.c.h.b16 %v630
    %v2862 = vunpack.c.l.b16 %v631
    %v2863 = vunpack.c.h.b16 %v631
    %v2864 = vunpack.c.l.b16 %v632
    %v2865 = vunpack.c.h.b16 %v632
    %v2866 = vunpack.c.l.b16 %v633
    %v2867 = vunpack.c.h.b16 %v633
    %v2868 = vunpack.c.l.b16 %v634
    %v2869 = vunpack.c.h.b16 %v634
    %v2870 = vunpack.c.l.b16 %v635
    %v2871 = vunpack.c.h.b16 %v635
    %v2872 = vunpack.c.l.b16 %v636
    %v2873 = vunpack.c.h.b16 %v636
    %v2874 = vunpack.c.l.b16 %v637
    %v2875 = vunpack.c.h.b16 %v637
    %v2876 = vunpack.c.l.b16 %v638
    %v2877 = vunpack.c.h.b16 %v638
    %v2878 = vunpack.c.l.b16 %v639
    %v2879 = vunpack.c.h.b16 %v639
    %v2880 = vunpack.c.l.b16 %v640
    %v2881 = vunpack.c.h.b16 %v640
    %v2882 = vunpack.c.l.b16 %v641
    %v2883 = vunpack.c.h.b16 %v641
    %v2884 = vunpack.c.l.b16 %v642
    %v2885 = vunpack.c.h.b16 %v642
    %v2886 = vunpack.c.l.b16 %v643
    %v2887 = vunpack.c.h.b16 %v643
    %v2888 = vunpack.c.l.b16 %v644
    %v2889 = vunpack.c.h.b16 %v644
    %v2890 = vunpack.c.l.b16 %v645
    %v2891 = vunpack.c.h.b16 %v645
    %v2892 = vunpack.c.l.b16 %v646
    %v2893 = vunpack.c.h.b16 %v646
    %v2894 = vunpack.c.l.b16 %v647
    %v2895 = vunpack.c.h.b16 %v647
    %v2896 = vunpack.c.l.b16 %v648
    %v2897 = vunpack.c.h.b16 %v648
    %v2898 = vunpack.c.l.b16 %v649
    %v2899 = vunpack.c.h.b16 %v649
    %v2900 = vunpack.c.l.b16 %v650
    %v2901 = vunpack.c.h.b16 %v650
    %v2902 = vunpack.c.l.b16 %v651
    %v2903 = vunpack.c.h.b16 %v651
    %v2904 = vunpack.c.l.b16 %v652
    %v2905 = vunpack.c.h.b16 %v652
    %v2906 = vunpack.c.l.b16 %v653
    %v2907 = vunpack.c.h.b16 %v653
    %v2908 = vunpack.c.l.b16 %v654
    %v2909 = vunpack.c.h.b16 %v654
    %v2910 = vunpack.c.l.b16 %v655
    %v2911 = vunpack.c.h.b16 %v655
    %v2912 = vunpack.c.l.b16 %v656
    %v2913 = vunpack.c.h.b16 %v656
    %v2914 = vunpack.c.l.b16 %v657
    %v2915 = vunpack.c.h.b16 %v657
    %v2916 = vunpack.c.l.b16 %v658
    %v2917 = vunpack.c.h.b16 %v658
    %v2918 = vunpack.c.l.b16 %v659
    %v2919 = vunpack.c.h.b16 %v659
    %v2920 = vunpack.c.l.b16 %v660
    %v2921 = vunpack.c.h.b16 %v660
    %v2922 = vunpack.c.l.b16 %v661
    %v2923 = vunpack.c.h.b16 %v661
    %v2924 = vunpack.c.l.b16 %v662
    %v2925 = vunpack.c.h.b16 %v662
    %v2926 = vunpack.c.l.b16 %v663
    %v2927 = vunpack.c.h.b16 %v663
    %v2928 = vunpack.c.l.b16 %v664
    %v2929 = vunpack.c.h.b16 %v664
    %v2930 = vunpack.c.l.b16 %v665
    %v2931 = vunpack.c.h.b16 %v665
    %v2932 = vunpack.c.l.b16 %v666
    %v2933 = vunpack.c.h.b16 %v666
    %v2934 = vunpack.c.l.b16 %v667
    %v2935 = vunpack.c.h.b16 %v667
    %v2936 = vunpack.c.l.b16 %v668
    %v2937 = vunpack.c.h.b16 %v668
    %v2938 = vunpack.c.l.b16 %v669
    %v2939 = vunpack.c.h.b16 %v669
    %v2940 = vunpack.c.l.b16 %v670
    %v2941 = vunpack.c.h.b16 %v670
    %v2942 = vunpack.c.l.b16 %v671
    %v2943 = vunpack.c.h.b16 %v671
    %v2944 = vunpack.c.l.b16 %v672
    %v2945 = vunpack.c.h.b16 %v672
    %v2946 = vunpack.c.l.b16 %v673
    %v2947 = vunpack.c.h.b16 %v673
    %v2948 = vunpack.c.l.b16 %v674
    %v2949 = vunpack.c.h.b16 %v674
    %v2950 = vunpack.c.l.b16 %v675
    %v2951 = vunpack.c.h.b16 %v675
    %v2952 = vunpack.c.l.b16 %v676
    %v2953 = vunpack.c.h.b16 %v676
    %v2954 = vunpack.c.l.b16 %v677
    %v2955 = vunpack.c.h.b16 %v677
    %v2956 = vunpack.c.l.b16 %v678
    %v2957 = vunpack.c.h.b16 %v678
    %v2958 = vunpack.c.l.b16 %v679
    %v2959 = vunpack.c.h.b16 %v679
    %v2960 = vunpack.c.l.b16 %v680
    %v2961 = vunpack.c.h.b16 %v680
    %v2962 = vunpack.c.l.b16 %v681
    %v2963 = vunpack.c.h.b16 %v681
    %v2964 = vunpack.c.l.b16 %v682
    %v2965 = vunpack.c.h.b16 %v682
    %v2966 = vunpack.c.l.b16 %v683
    %v2967 = vunpack.c.h.b16 %v683
    %v2968 = vunpack.c.l.b16 %v684
    %v2969 = vunpack.c.h.b16 %v684
    %v2970 = vunpack.c.l.b16 %v685
    %v2971 = vunpack.c.h.b16 %v685
    %v2972 = vunpack.c.l.b16 %v686
    %v2973 = vunpack.c.h.b16 %v686
    %v2974 = vunpack.c.l.b16 %v687
    %v2975 = vunpack.c.h.b16 %v687
    %v2976 = vunpack.c.l.b16 %v688
    %v2977 = vunpack.c.h.b16 %v688
    %v2978 = vunpack.c.l.b16 %v689
    %v2979 = vunpack.c.h.b16 %v689
    %v2980 = vunpack.c.l.b16 %v690
    %v2981 = vunpack.c.h.b16 %v690
    %v2982 = vunpack.c.l.b16 %v691
    %v2983 = vunpack.c.h.b16 %v691
    %v2984 = vunpack.c.l.b16 %v692
    %v2985 = vunpack.c.h.b16 %v692
    %v2986 = vunpack.c.l.b16 %v693
    %v2987 = vunpack.c.h.b16 %v693
    %v2988 = vunpack.c.l.b16 %v694
    %v2989 = vunpack.c.h.b16 %v694
    %v2990 = vunpack.c.l.b16 %v695
    %v2991 = vunpack.c.h.b16 %v695
    %v2992 = vunpack.c.l.b16 %v696
    %v2993 = vunpack.c.h.b16 %v696
    %v2994 = vunpack.c.l.b16 %v697
    %v2995 = vunpack.c.h.b16 %v697
    %v2996 = vunpack.c.l.b16 %v698
    %v2997 = vunpack.c.h.b16 %v698
    %v2998 = vunpack.c.l.b16 %v699
    %v2999 = vunpack.c.h.b16 %v699
    %v3000 = vunpack.c.l.b16 %v700
    %v3001 = vunpack.c.h.b16 %v700
    %v3002 = vunpack.c.l.b16 %v701
    %v3003 = vunpack.c.h.b16 %v701
    %v3004 = vunpack.c.l.b16 %v702
    %v3005 = vunpack.c.h.b16 %v702
    %v3006 = vunpack.c.l.b16 %v703
    %v3007 = vunpack.c.h.b16 %v703
    %v3008 = vunpack.c.l.b16 %v704
    %v3009 = vunpack.c.h.b16 %v704
    %v3010 = vunpack.c.l.b16 %v705
    %v3011 = vunpack.c.h.b16 %v705
    %v3012 = vunpack.c.l.b16 %v706
    %v3013 = vunpack.c.h.b16 %v706
    %v3014 = vunpack.c.l.b16 %v707
    %v3015 = vunpack.c.h.b16 %v707
    %v3016 = vunpack.c.l.b16 %v708
    %v3017 = vunpack.c.h.b16 %v708
    %v3018 = vunpack.c.l.b16 %v709
    %v3019 = vunpack.c.h.b16 %v709
    %v3020 = vunpack.c.l.b16 %v710
    %v3021 = vunpack.c.h.b16 %v710
    %v3022 = vunpack.c.l.b16 %v711
    %v3023 = vunpack.c.h.b16 %v711
    %v3024 = vunpack.c.l.b16 %v712
    %v3025 = vunpack.c.h.b16 %v712
    %v3026 = vunpack.c.l.b16 %v713
    %v3027 = vunpack.c.h.b16 %v713
    %v3028 = vunpack.c.l.b16 %v714
    %v3029 = vunpack.c.h.b16 %v714
    %v3030 = vunpack.c.l.b16 %v715
    %v3031 = vunpack.c.h.b16 %v715
    %v3032 = vunpack.c.l.b16 %v716
    %v3033 = vunpack.c.h.b16 %v716
    %v3034 = vunpack.c.l.b16 %v717
    %v3035 = vunpack.c.h.b16 %v717
    %v3036 = vunpack.c.l.b16 %v718
    %v3037 = vunpack.c.h.b16 %v718
    %v3038 = vunpack.c.l.b16 %v719
    %v3039 = vunpack.c.h.b16 %v719
    %v3040 = vunpack.c.l.b16 %v720
    %v3041 = vunpack.c.h.b16 %v720
    %v3042 = vunpack.c.l.b16 %v721
    %v3043 = vunpack.c.h.b16 %v721
    %v3044 = vunpack.c.l.b16 %v722
    %v3045 = vunpack.c.h.b16 %v722
    %v3046 = vunpack.c.l.b16 %v723
    %v3047 = vunpack.c.h.b16 %v723
    %v3048 = vunpack.c.l.b16 %v724
    %v3049 = vunpack.c.h.b16 %v724
    %v3050 = vunpack.c.l.b16 %v725
    %v3051 = vunpack.c.h.b16 %v725
    %v3052 = vunpack.c.l.b16 %v726
    %v3053 = vunpack.c.h.b16 %v726
    %v3054 = vunpack.c.l.b16 %v727
    %v3055 = vunpack.c.h.b16 %v727
    %v3056 = vunpack.c.l.b16 %v728
    %v3057 = vunpack.c.h.b16 %v728
    %v3058 = vunpack.c.l.b16 %v729
    %v3059 = vunpack.c.h.b16 %v729
    %v3060 = vunpack.c.l.b16 %v730
    %v3061 = vunpack.c.h.b16 %v730
    %v3062 = vunpack.c.l.b16 %v731
    %v3063 = vunpack.c.h.b16 %v731
    %v3064 = vunpack.c.l.b16 %v732
    %v3065 = vunpack.c.h.b16 %v732
    %v3066 = vunpack.c.l.b16 %v733
    %v3067 = vunpack.c.h.b16 %v733
    %v3068 = vunpack.c.l.b16 %v734
    %v3069 = vunpack.c.h.b16 %v734
    %v3070 = vunpack.c.l.b16 %v735
    %v3071 = vunpack.c.h.b16 %v735
    %v3072 = vunpack.c.l.b16 %v736
    %v3073 = vunpack.c.h.b16 %v736
    %v3074 = vunpack.c.l.b16 %v737
    %v3075 = vunpack.c.h.b16 %v737
    %v3076 = vunpack.c.l.b16 %v738
    %v3077 = vunpack.c.h.b16 %v738
    %v3078 = vunpack.c.l.b16 %v739
    %v3079 = vunpack.c.h.b16 %v739
    %v3080 = vunpack.c.l.b16 %v740
    %v3081 = vunpack.c.h.b16 %v740
    %v3082 = vunpack.c.l.b16 %v741
    %v3083 = vunpack.c.h.b16 %v741
    %v3084 = vunpack.c.l.b16 %v742
    %v3085 = vunpack.c.h.b16 %v742
    %v3086 = vunpack.c.l.b16 %v743
    %v3087 = vunpack.c.h.b16 %v743
    %v3088 = vunpack.c.l.b16 %v744
    %v3089 = vunpack.c.h.b16 %v744
    %v3090 = vunpack.c.l.b16 %v745
    %v3091 = vunpack.c.h.b16 %v745
    %v3092 = vunpack.c.l.b16 %v746
    %v3093 = vunpack.c.h.b16 %v746
    %v3094 = vunpack.c.l.b16 %v747
    %v3095 = vunpack.c.h.b16 %v747
    %v3096 = vunpack.c.l.b16 %v748
    %v3097 = vunpack.c.h.b16 %v748
    %v3098 = vunpack.c.l.b16 %v749
    %v3099 = vunpack.c.h.b16 %v749
    %v3100 = vunpack.c.l.b16 %v750
    %v3101 = vunpack.c.h.b16 %v750
    %v3102 = vunpack.c.l.b16 %v751
    %v3103 = vunpack.c.h.b16 %v751
    %v3104 = vunpack.c.l.b16 %v752
    %v3105 = vunpack.c.h.b16 %v752
    %v3106 = vunpack.c.l.b16 %v753
    %v3107 = vunpack.c.h.b16 %v753
    %v3108 = vunpack.c.l.b16 %v754
    %v3109 = vunpack.c.h.b16 %v754
    %v3110 = vunpack.c.l.b16 %v755
    %v3111 = vunpack.c.h.b16 %v755
    %v3112 = vunpack.c.l.b16 %v756
    %v3113 = vunpack.c.h.b16 %v756
    %v3114 = vunpack.c.l.b16 %v757
    %v3115 = vunpack.c.h.b16 %v757
    %v3116 = vunpack.c.l.b16 %v758
    %v3117 = vunpack.c.h.b16 %v758
    %v3118 = vunpack.c.l.b16 %v759
    %v3119 = vunpack.c.h.b16 %v759
    %v3120 = vunpack.c.l.b16 %v760
    %v3121 = vunpack.c.h.b16 %v760
    %v3122 = vunpack.c.l.b16 %v761
    %v3123 = vunpack.c.h.b16 %v761
    %v3124 = vunpack.c.l.b16 %v762
    %v3125 = vunpack.c.h.b16 %v762
    %v3126 = vunpack.c.l.b16 %v763
    %v3127 = vunpack.c.h.b16 %v763
    %v3128 = vunpack.c.l.b16 %v764
    %v3129 = vunpack.c.h.b16 %v764
    %v3130 = vunpack.c.l.b16 %v765
    %v3131 = vunpack.c.h.b16 %v765
    %v3132 = vunpack.c.l.b16 %v766
    %v3133 = vunpack.c.h.b16 %v766
    %v3134 = vunpack.c.l.b16 %v767
    %v3135 = vunpack.c.h.b16 %v767
    %v3136 = vunpack.c.l.b16 %v768
    %v3137 = vunpack.c.h.b16 %v768
    %v3138 = vunpack.c.l.b16 %v769
    %v3139 = vunpack.c.h.b16 %v769
    %v3140 = vunpack.c.l.b16 %v770
    %v3141 = vunpack.c.h.b16 %v770
    %v3142 = vunpack.c.l.b16 %v771
    %v3143 = vunpack.c.h.b16 %v771
    %v3144 = vunpack.c.l.b16 %v772
    %v3145 = vunpack.c.h.b16 %v772
    %v3146 = vunpack.c.l.b16 %v773
    %v3147 = vunpack.c.h.b16 %v773
    %v3148 = vunpack.c.l.b16 %v774
    %v3149 = vunpack.c.h.b16 %v774
    %v3150 = vunpack.c.l.b16 %v775
    %v3151 = vunpack.c.h.b16 %v775
    %v3152 = vunpack.c.l.b16 %v776
    %v3153 = vunpack.c.h.b16 %v776
    %v3154 = vunpack.c.l.b16 %v777
    %v3155 = vunpack.c.h.b16 %v777
    %v3156 = vunpack.c.l.b16 %v778
    %v3157 = vunpack.c.h.b16 %v778
    %v3158 = vunpack.c.l.b16 %v779
    %v3159 = vunpack.c.h.b16 %v779
    %v3160 = vunpack.c.l.b16 %v780
    %v3161 = vunpack.c.h.b16 %v780
    %v3162 = vunpack.c.l.b16 %v781
    %v3163 = vunpack.c.h.b16 %v781
    %v3164 = vunpack.c.l.b16 %v782
    %v3165 = vunpack.c.h.b16 %v782
    %v3166 = vunpack.c.l.b16 %v783
    %v3167 = vunpack.c.h.b16 %v783
    %v3168 = vunpack.c.l.b16 %v784
    %v3169 = vunpack.c.h.b16 %v784
    %v3170 = vunpack.c.l.b16 %v785
    %v3171 = vunpack.c.h.b16 %v785
    %v3172 = vunpack.c.l.b16 %v786
    %v3173 = vunpack.c.h.b16 %v786
    %v3174 = vunpack.c.l.b16 %v787
    %v3175 = vunpack.c.h.b16 %v787
    %v3176 = vunpack.c.l.b16 %v788
    %v3177 = vunpack.c.h.b16 %v788
    %v3178 = vunpack.c.l.b16 %v789
    %v3179 = vunpack.c.h.b16 %v789
    %v3180 = vunpack.c.l.b16 %v790
    %v3181 = vunpack.c.h.b16 %v790
    %v3182 = vunpack.c.l.b16 %v791
    %v3183 = vunpack.c.h.b16 %v791
    %v3184 = vunpack.c.l.b16 %v792
    %v3185 = vunpack.c.h.b16 %v792
    %v3186 = vunpack.c.l.b16 %v793
    %v3187 = vunpack.c.h.b16 %v793
    %v3188 = vunpack.c.l.b16 %v794
    %v3189 = vunpack.c.h.b16 %v794
    %v3190 = vunpack.c.l.b16 %v795
    %v3191 = vunpack.c.h.b16 %v795
    %v3192 = vunpack.c.l.b16 %v796
    %v3193 = vunpack.c.h.b16 %v796
    %v3194 = vunpack.c.l.b16 %v797
    %v3195 = vunpack.c.h.b16 %v797
    %v3196 = vunpack.c.l.b16 %v798
    %v3197 = vunpack.c.h.b16 %v798
    %v3198 = vunpack.c.l.b16 %v799
    %v3199 = vunpack.c.h.b16 %v799
    %v3200 = vunpack.c.l.b16 %v800
    %v3201 = vunpack.c.h.b16 %v800
    %v3202 = vunpack.c.l.b16 %v801
    %v3203 = vunpack.c.h.b16 %v801
    %v3204 = vunpack.c.l.b16 %v802
    %v3205 = vunpack.c.h.b16 %v802
    %v3206 = vunpack.c.l.b16 %v803
    %v3207 = vunpack.c.h.b16 %v803
    %v3208 = vunpack.c.l.b16 %v804
    %v3209 = vunpack.c.h.b16 %v804
    %v3210 = vunpack.c.l.b16 %v805
    %v3211 = vunpack.c.h.b16 %v805
    %v3212 = vunpack.c.l.b16 %v806
    %v3213 = vunpack.c.h.b16 %v806
    %v3214 = vunpack.c.l.b16 %v807
    %v3215 = vunpack.c.h.b16 %v807
    %v3216 = vunpack.c.l.b16 %v808
    %v3217 = vunpack.c.h.b16 %v808
    %v3218 = vunpack.c.l.b16 %v809
    %v3219 = vunpack.c.h.b16 %v809
    %v3220 = vunpack.c.l.b16 %v810
    %v3221 = vunpack.c.h.b16 %v810
    %v3222 = vunpack.c.l.b16 %v811
    %v3223 = vunpack.c.h.b16 %v811
    %v3224 = vunpack.c.l.b16 %v812
    %v3225 = vunpack.c.h.b16 %v812
    %v3226 = vunpack.c.l.b16 %v813
    %v3227 = vunpack.c.h.b16 %v813
    %v3228 = vunpack.c.l.b16 %v814
    %v3229 = vunpack.c.h.b16 %v814
    %v3230 = vunpack.c.l.b16 %v815
    %v3231 = vunpack.c.h.b16 %v815
    %v3232 = vunpack.c.l.b16 %v816
    %v3233 = vunpack.c.h.b16 %v816
    %v3234 = vunpack.c.l.b16 %v817
    %v3235 = vunpack.c.h.b16 %v817
    %v3236 = vunpack.c.l.b16 %v818
    %v3237 = vunpack.c.h.b16 %v818
    %v3238 = vunpack.c.l.b16 %v819
    %v3239 = vunpack.c.h.b16 %v819
    %v3240 = vunpack.c.l.b16 %v820
    %v3241 = vunpack.c.h.b16 %v820
    %v3242 = vunpack.c.l.b16 %v821
    %v3243 = vunpack.c.h.b16 %v821
    %v3244 = vunpack.c.l.b16 %v822
    %v3245 = vunpack.c.h.b16 %v822
    %v3246 = vunpack.c.l.b16 %v823
    %v3247 = vunpack.c.h.b16 %v823
    %v3248 = vunpack.c.l.b16 %v824
    %v3249 = vunpack.c.h.b16 %v824
    %v3250 = vunpack.c.l.b16 %v825
    %v3251 = vunpack.c.h.b16 %v825
    %v3252 = vunpack.c.l.b16 %v826
    %v3253 = vunpack.c.h.b16 %v826
    %v3254 = vunpack.c.l.b16 %v827
    %v3255 = vunpack.c.h.b16 %v827
    %v3256 = vunpack.c.l.b16 %v828
    %v3257 = vunpack.c.h.b16 %v828
    %v3258 = vunpack.c.l.b16 %v829
    %v3259 = vunpack.c.h.b16 %v829
    %v3260 = vunpack.c.l.b16 %v830
    %v3261 = vunpack.c.h.b16 %v830
    %v3262 = vunpack.c.l.b16 %v831
    %v3263 = vunpack.c.h.b16 %v831
    %v3264 = vunpack.c.l.b16 %v832
    %v3265 = vunpack.c.h.b16 %v832
    %v3266 = vunpack.c.l.b16 %v833
    %v3267 = vunpack.c.h.b16 %v833
    %v3268 = vunpack.c.l.b16 %v834
    %v3269 = vunpack.c.h.b16 %v834
    %v3270 = vunpack.c.l.b16 %v835
    %v3271 = vunpack.c.h.b16 %v835
    %v3272 = vunpack.c.l.b16 %v836
    %v3273 = vunpack.c.h.b16 %v836
    %v3274 = vunpack.c.l.b16 %v837
    %v3275 = vunpack.c.h.b16 %v837
    %v3276 = vunpack.c.l.b16 %v838
    %v3277 = vunpack.c.h.b16 %v838
    %v3278 = vunpack.c.l.b16 %v839
    %v3279 = vunpack.c.h.b16 %v839
    %v3280 = vunpack.c.l.b16 %v840
    %v3281 = vunpack.c.h.b16 %v840
    %v3282 = vunpack.c.l.b16 %v841
    %v3283 = vunpack.c.h.b16 %v841
    %v3284 = vunpack.c.l.b16 %v842
    %v3285 = vunpack.c.h.b16 %v842
    %v3286 = vunpack.c.l.b16 %v843
    %v3287 = vunpack.c.h.b16 %v843
    %v3288 = vunpack.c.l.b16 %v844
    %v3289 = vunpack.c.h.b16 %v844
    %v3290 = vunpack.c.l.b16 %v845
    %v3291 = vunpack.c.h.b16 %v845
    %v3292 = vunpack.c.l.b16 %v846
    %v3293 = vunpack.c.h.b16 %v846
    %v3294 = vunpack.c.l.b16 %v847
    %v3295 = vunpack.c.h.b16 %v847
    %v3296 = vunpack.c.l.b16 %v848
    %v3297 = vunpack.c.h.b16 %v848
    %v3298 = vunpack.c.l.b16 %v849
    %v3299 = vunpack.c.h.b16 %v849
    %v3300 = vunpack.c.l.b16 %v850
    %v3301 = vunpack.c.h.b16 %v850
    %v3302 = vunpack.c.l.b16 %v851
    %v3303 = vunpack.c.h.b16 %v851
    %v3304 = vunpack.c.l.b16 %v852
    %v3305 = vunpack.c.h.b16 %v852
    %v3306 = vunpack.c.l.b16 %v853
    %v3307 = vunpack.c.h.b16 %v853
    %v3308 = vunpack.c.l.b16 %v854
    %v3309 = vunpack.c.h.b16 %v854
    %v3310 = vunpack.c.l.b16 %v855
    %v3311 = vunpack.c.h.b16 %v855
    %v3312 = vunpack.c.l.b16 %v856
    %v3313 = vunpack.c.h.b16 %v856
    %v3314 = vunpack.c.l.b16 %v857
    %v3315 = vunpack.c.h.b16 %v857
    %v3316 = vunpack.c.l.b16 %v858
    %v3317 = vunpack.c.h.b16 %v858
    %v3318 = vunpack.c.l.b16 %v859
    %v3319 = vunpack.c.h.b16 %v859
    %v3320 = vunpack.c.l.b16 %v860
    %v3321 = vunpack.c.h.b16 %v860
    %v3322 = vunpack.c.l.b16 %v861
    %v3323 = vunpack.c.h.b16 %v861
    %v3324 = vunpack.c.l.b16 %v862
    %v3325 = vunpack.c.h.b16 %v862
    %v3326 = vunpack.c.l.b16 %v863
    %v3327 = vunpack.c.h.b16 %v863
    %v3328 = vunpack.c.l.b16 %v864
    %v3329 = vunpack.c.h.b16 %v864
    %v3330 = vunpack.c.l.b16 %v865
    %v3331 = vunpack.c.h.b16 %v865
    %v3332 = vunpack.c.l.b16 %v866
    %v3333 = vunpack.c.h.b16 %v866
    %v3334 = vunpack.c.l.b16 %v867
    %v3335 = vunpack.c.h.b16 %v867
    %v3336 = vunpack.c.l.b16 %v868
    %v3337 = vunpack.c.h.b16 %v868
    %v3338 = vunpack.c.l.b16 %v869
    %v3339 = vunpack.c.h.b16 %v869
    %v3340 = vunpack.c.l.b16 %v870
    %v3341 = vunpack.c.h.b16 %v870
    %v3342 = vunpack.c.l.b16 %v871
    %v3343 = vunpack.c.h.b16 %v871
    %v3344 = vunpack.c.l.b16 %v872
    %v3345 = vunpack.c.h.b16 %v872
    %v3346 = vunpack.c.l.b16 %v873
    %v3347 = vunpack.c.h.b16 %v873
    %v3348 = vunpack.c.l.b16 %v874
    %v3349 = vunpack.c.h.b16 %v874
    %v3350 = vunpack.c.l.b16 %v875
    %v3351 = vunpack.c.h.b16 %v875
    %v3352 = vunpack.c.l.b16 %v876
    %v3353 = vunpack.c.h.b16 %v876
    %v3354 = vunpack.c.l.b16 %v877
    %v3355 = vunpack.c.h.b16 %v877
    %v3356 = vunpack.c.l.b16 %v878
    %v3357 = vunpack.c.h.b16 %v878
    %v3358 = vunpack.c.l.b16 %v879
    %v3359 = vunpack.c.h.b16 %v879
    %v3360 = vunpack.c.l.b16 %v880
    %v3361 = vunpack.c.h.b16 %v880
    %v3362 = vunpack.c.l.b16 %v881
    %v3363 = vunpack.c.h.b16 %v881
    %v3364 = vunpack.c.l.b16 %v882
    %v3365 = vunpack.c.h.b16 %v882
    %v3366 = vunpack.c.l.b16 %v883
    %v3367 = vunpack.c.h.b16 %v883
    %v3368 = vunpack.c.l.b16 %v884
    %v3369 = vunpack.c.h.b16 %v884
    %v3370 = vunpack.c.l.b16 %v885
    %v3371 = vunpack.c.h.b16 %v885
    %v3372 = vunpack.c.l.b16 %v886
    %v3373 = vunpack.c.h.b16 %v886
    %v3374 = vunpack.c.l.b16 %v887
    %v3375 = vunpack.c.h.b16 %v887
    %v3376 = vunpack.c.l.b16 %v888
    %v3377 = vunpack.c.h.b16 %v888
    %v3378 = vunpack.c.l.b16 %v889
    %v3379 = vunpack.c.h.b16 %v889
    %v3380 = vunpack.c.l.b16 %v890
    %v3381 = vunpack.c.h.b16 %v890
    %v3382 = vunpack.c.l.b16 %v891
    %v3383 = vunpack.c.h.b16 %v891
    %v3384 = vunpack.c.l.b16 %v892
    %v3385 = vunpack.c.h.b16 %v892
    %v3386 = vunpack.c.l.b16 %v893
    %v3387 = vunpack.c.h.b16 %v893
    %v3388 = vunpack.c.l.b16 %v894
    %v3389 = vunpack.c.h.b16 %v894
    %v3390 = vunpack.c.l.b16 %v895
    %v3391 = vunpack.c.h.b16 %v895
    %v3392 = vunpack.c.l.b16 %v896
    %v3393 = vunpack.c.h.b16 %v896
    %v3394 = vunpack.c.l.b16 %v897
    %v3395 = vunpack.c.h.b16 %v897
    %v3396 = vunpack.c.l.b16 %v898
    %v3397 = vunpack.c.h.b16 %v898
    %v3398 = vunpack.c.l.b16 %v899
    %v3399 = vunpack.c.h.b16 %v899
    %v3400 = vunpack.c.l.b16 %v900
    %v3401 = vunpack.c.h.b16 %v900
    %v3402 = vunpack.c.l.b16 %v901
    %v3403 = vunpack.c.h.b16 %v901
    %v3404 = vunpack.c.l.b16 %v902
    %v3405 = vunpack.c.h.b16 %v902
    %v3406 = vunpack.c.l.b16 %v903
    %v3407 = vunpack.c.h.b16 %v903
    %v3408 = vunpack.c.l.b16 %v904
    %v3409 = vunpack.c.h.b16 %v904
    %v3410 = vunpack.c.l.b16 %v905
    %v3411 = vunpack.c.h.b16 %v905
    %v3412 = vunpack.c.l.b16 %v906
    %v3413 = vunpack.c.h.b16 %v906
    %v3414 = vunpack.c.l.b16 %v907
    %v3415 = vunpack.c.h.b16 %v907
    %v3416 = vunpack.c.l.b16 %v908
    %v3417 = vunpack.c.h.b16 %v908
    %v3418 = vunpack.c.l.b16 %v909
    %v3419 = vunpack.c.h.b16 %v909
    %v3420 = vunpack.c.l.b16 %v910
    %v3421 = vunpack.c.h.b16 %v910
    %v3422 = vunpack.c.l.b16 %v911
    %v3423 = vunpack.c.h.b16 %v911
    %v3424 = vunpack.c.l.b16 %v912
    %v3425 = vunpack.c.h.b16 %v912
    %v3426 = vunpack.c.l.b16 %v913
    %v3427 = vunpack.c.h.b16 %v913
    %v3428 = vunpack.c.l.b16 %v914
    %v3429 = vunpack.c.h.b16 %v914
    %v3430 = vunpack.c.l.b16 %v915
    %v3431 = vunpack.c.h.b16 %v915
    %v3432 = vunpack.c.l.b16 %v916
    %v3433 = vunpack.c.h.b16 %v916
    %v3434 = vunpack.c.l.b16 %v917
    %v3435 = vunpack.c.h.b16 %v917
    %v3436 = vunpack.c.l.b16 %v918
    %v3437 = vunpack.c.h.b16 %v918
    %v3438 = vunpack.c.l.b16 %v919
    %v3439 = vunpack.c.h.b16 %v919
    %v3440 = vunpack.c.l.b16 %v920
    %v3441 = vunpack.c.h.b16 %v920
    %v3442 = vunpack.c.l.b16 %v921
    %v3443 = vunpack.c.h.b16 %v921
    %v3444 = vunpack.c.l.b16 %v922
    %v3445 = vunpack.c.h.b16 %v922
    %v3446 = vunpack.c.l.b16 %v923
    %v3447 = vunpack.c.h.b16 %v923
    %v3448 = vunpack.c.l.b16 %v924
    %v3449 = vunpack.c.h.b16 %v924
    %v3450 = vunpack.c.l.b16 %v925
    %v3451 = vunpack.c.h.b16 %v925
    %v3452 = vunpack.c.l.b16 %v926
    %v3453 = vunpack.c.h.b16 %v926
    %v3454 = vunpack.c.l.b16 %v927
    %v3455 = vunpack.c.h.b16 %v927
    %v3456 = vunpack.c.l.b16 %v928
    %v3457 = vunpack.c.h.b16 %v928
    %v3458 = vunpack.c.l.b16 %v929
    %v3459 = vunpack.c.h.b16 %v929
    %v3460 = vunpack.c.l.b16 %v930
    %v3461 = vunpack.c.h.b16 %v930
    %v3462 = vunpack.c.l.b16 %v931
    %v3463 = vunpack.c.h.b16 %v931
    %v3464 = vunpack.c.l.b16 %v932
    %v3465 = vunpack.c.h.b16 %v932
    %v3466 = vunpack.c.l.b16 %v933
    %v3467 = vunpack.c.h.b16 %v933
    %v3468 = vunpack.c.l.b16 %v934
    %v3469 = vunpack.c.h.b16 %v934
    %v3470 = vunpack.c.l.b16 %v935
    %v3471 = vunpack.c.h.b16 %v935
    %v3472 = vunpack.c.l.b16 %v936
    %v3473 = vunpack.c.h.b16 %v936
    %v3474 = vunpack.c.l.b16 %v937
    %v3475 = vunpack.c.h.b16 %v937
    %v3476 = vunpack.c.l.b16 %v938
    %v3477 = vunpack.c.h.b16 %v938
    %v3478 = vunpack.c.l.b16 %v939
    %v3479 = vunpack.c.h.b16 %v939
    %v3480 = vunpack.c.l.b16 %v940
    %v3481 = vunpack.c.h.b16 %v940
    %v3482 = vunpack.c.l.b16 %v941
    %v3483 = vunpack.c.h.b16 %v941
    %v3484 = vunpack.c.l.b16 %v942
    %v3485 = vunpack.c.h.b16 %v942
    %v3486 = vunpack.c.l.b16 %v943
    %v3487 = vunpack.c.h.b16 %v943
    %v3488 = vunpack.c.l.b16 %v944
    %v3489 = vunpack.c.h.b16 %v944
    %v3490 = vunpack.c.l.b16 %v945
    %v3491 = vunpack.c.h.b16 %v945
    %v3492 = vunpack.c.l.b16 %v946
    %v3493 = vunpack.c.h.b16 %v946
    %v3494 = vunpack.c.l.b16 %v947
    %v3495 = vunpack.c.h.b16 %v947
    %v3496 = vunpack.c.l.b16 %v948
    %v3497 = vunpack.c.h.b16 %v948
    %v3498 = vunpack.c.l.b16 %v949
    %v3499 = vunpack.c.h.b16 %v949
    %v3500 = vunpack.c.l.b16 %v950
    %v3501 = vunpack.c.h.b16 %v950
    %v3502 = vunpack.c.l.b16 %v951
    %v3503 = vunpack.c.h.b16 %v951
    %v3504 = vunpack.c.l.b16 %v952
    %v3505 = vunpack.c.h.b16 %v952
    %v3506 = vunpack.c.l.b16 %v953
    %v3507 = vunpack.c.h.b16 %v953
    %v3508 = vunpack.c.l.b16 %v954
    %v3509 = vunpack.c.h.b16 %v954
    %v3510 = vunpack.c.l.b16 %v955
    %v3511 = vunpack.c.h.b16 %v955
    %v3512 = vunpack.c.l.b16 %v956
    %v3513 = vunpack.c.h.b16 %v956
    %v3514 = vunpack.c.l.b16 %v957
    %v3515 = vunpack.c.h.b16 %v957
    %v3516 = vunpack.c.l.b16 %v958
    %v3517 = vunpack.c.h.b16 %v958
    %v3518 = vunpack.c.l.b16 %v959
    %v3519 = vunpack.c.h.b16 %v959
    %v3520 = vunpack.c.l.b16 %v960
    %v3521 = vunpack.c.h.b16 %v960
    %v3522 = vunpack.c.l.b16 %v961
    %v3523 = vunpack.c.h.b16 %v961
    %v3524 = vunpack.c.l.b16 %v962
    %v3525 = vunpack.c.h.b16 %v962
    %v3526 = vunpack.c.l.b16 %v963
    %v3527 = vunpack.c.h.b16 %v963
    %v3528 = vunpack.c.l.b16 %v964
    %v3529 = vunpack.c.h.b16 %v964
    %v3530 = vunpack.c.l.b16 %v965
    %v3531 = vunpack.c.h.b16 %v965
    %v3532 = vunpack.c.l.b16 %v966
    %v3533 = vunpack.c.h.b16 %v966
    %v3534 = vunpack.c.l.b16 %v967
    %v3535 = vunpack.c.h.b16 %v967
    %v3536 = vunpack.c.l.b16 %v968
    %v3537 = vunpack.c.h.b16 %v968
    %v3538 = vunpack.c.l.b16 %v969
    %v3539 = vunpack.c.h.b16 %v969
    %v3540 = vunpack.c.l.b16 %v970
    %v3541 = vunpack.c.h.b16 %v970
    %v3542 = vunpack.c.l.b16 %v971
    %v3543 = vunpack.c.h.b16 %v971
    %v3544 = vunpack.c.l.b16 %v972
    %v3545 = vunpack.c.h.b16 %v972
    %v3546 = vunpack.c.l.b16 %v973
    %v3547 = vunpack.c.h.b16 %v973
    %v3548 = vunpack.c.l.b16 %v974
    %v3549 = vunpack.c.h.b16 %v974
    %v3550 = vunpack.c.l.b16 %v975
    %v3551 = vunpack.c.h.b16 %v975
    %v3552 = vunpack.c.l.b16 %v976
    %v3553 = vunpack.c.h.b16 %v976
    %v3554 = vunpack.c.l.b16 %v977
    %v3555 = vunpack.c.h.b16 %v977
    %v3556 = vunpack.c.l.b16 %v978
    %v3557 = vunpack.c.h.b16 %v978
    %v3558 = vunpack.c.l.b16 %v979
    %v3559 = vunpack.c.h.b16 %v979
    %v3560 = vunpack.c.l.b16 %v980
    %v3561 = vunpack.c.h.b16 %v980
    %v3562 = vunpack.c.l.b16 %v981
    %v3563 = vunpack.c.h.b16 %v981
    %v3564 = vunpack.c.l.b16 %v982
    %v3565 = vunpack.c.h.b16 %v982
    %v3566 = vunpack.c.l.b16 %v983
    %v3567 = vunpack.c.h.b16 %v983
    %v3568 = vunpack.c.l.b16 %v984
    %v3569 = vunpack.c.h.b16 %v984
    %v3570 = vunpack.c.l.b16 %v985
    %v3571 = vunpack.c.h.b16 %v985
    %v3572 = vunpack.c.l.b16 %v986
    %v3573 = vunpack.c.h.b16 %v986
    %v3574 = vunpack.c.l.b16 %v987
    %v3575 = vunpack.c.h.b16 %v987
    %v3576 = vunpack.c.l.b16 %v988
    %v3577 = vunpack.c.h.b16 %v988
    %v3578 = vunpack.c.l.b16 %v989
    %v3579 = vunpack.c.h.b16 %v989
    %v3580 = vunpack.c.l.b16 %v990
    %v3581 = vunpack.c.h.b16 %v990
    %v3582 = vunpack.c.l.b16 %v991
    %v3583 = vunpack.c.h.b16 %v991
    %v3584 = vunpack.c.l.b16 %v992
    %v3585 = vunpack.c.h.b16 %v992
    %v3586 = vunpack.c.l.b16 %v993
    %v3587 = vunpack.c.h.b16 %v993
    %v3588 = vunpack.c.l.b16 %v994
    %v3589 = vunpack.c.h.b16 %v994
    %v3590 = vunpack.c.l.b16 %v995
    %v3591 = vunpack.c.h.b16 %v995
    %v3592 = vunpack.c.l.b16 %v996
    %v3593 = vunpack.c.h.b16 %v996
    %v3594 = vunpack.c.l.b16 %v997
    %v3595 = vunpack.c.h.b16 %v997
    %v3596 = vunpack.c.l.b16 %v998
    %v3597 = vunpack.c.h.b16 %v998
    %v3598 = vunpack.c.l.b16 %v999
    %v3599 = vunpack.c.h.b16 %v999
    %v3600 = vunpack.c.l.b16 %v1000
    %v3601 = vunpack.c.h.b16 %v1000
    %v3602 = vunpack.c.l.b16 %v1001
    %v3603 = vunpack.c.h.b16 %v1001
    %v3604 = vunpack.c.l.b16 %v1002
    %v3605 = vunpack.c.h.b16 %v1002
    %v3606 = vunpack.c.l.b16 %v1003
    %v3607 = vunpack.c.h.b16 %v1003
    %v3608 = vunpack.c.l.b16 %v1004
    %v3609 = vunpack.c.h.b16 %v1004
    %v3610 = vunpack.c.l.b16 %v1005
    %v3611 = vunpack.c.h.b16 %v1005
    %v3612 = vunpack.c.l.b16 %v1006
    %v3613 = vunpack.c.h.b16 %v1006
    %v3614 = vunpack.c.l.b16 %v1007
    %v3615 = vunpack.c.h.b16 %v1007
    %v3616 = vunpack.c.l.b16 %v1008
    %v3617 = vunpack.c.h.b16 %v1008
    %v3618 = vunpack.c.l.b16 %v1009
    %v3619 = vunpack.c.h.b16 %v1009
    %v3620 = vunpack.c.l.b16 %v1010
    %v3621 = vunpack.c.h.b16 %v1010
    %v3622 = vunpack.c.l.b16 %v1011
    %v3623 = vunpack.c.h.b16 %v1011
    %v3624 = vunpack.c.l.b16 %v1012
    %v3625 = vunpack.c.h.b16 %v1012
    %v3626 = vunpack.c.l.b16 %v1013
    %v3627 = vunpack.c.h.b16 %v1013
    %v3628 = vunpack.c.l.b16 %v1014
    %v3629 = vunpack.c.h.b16 %v1014
    %v3630 = vunpack.c.l.b16 %v1015
    %v3631 = vunpack.c.h.b16 %v1015
    %v3632 = vunpack.c.l.b16 %v1016
    %v3633 = vunpack.c.h.b16 %v1016
    %v3634 = vunpack.c.l.b16 %v1017
    %v3635 = vunpack.c.h.b16 %v1017
    %v3636 = vunpack.c.l.b16 %v1018
    %v3637 = vunpack.c.h.b16 %v1018
    %v3638 = vunpack.c.l.b16 %v1019
    %v3639 = vunpack.c.h.b16 %v1019
    %v3640 = vunpack.c.l.b16 %v1020
    %v3641 = vunpack.c.h.b16 %v1020
    %v3642 = vunpack.c.l.b16 %v1021
    %v3643 = vunpack.c.h.b16 %v1021
    %v3644 = vunpack.c.l.b16 %v1022
    %v3645 = vunpack.c.h.b16 %v1022
    %v3646 = vunpack.c.l.b16 %v1023
    %v3647 = vunpack.c.h.b16 %v1023
    %v3648 = vunpack.c.l.b16 %v1024
    %v3649 = vunpack.c.h.b16 %v1024
    %v3650 = vunpack.c.l.b16 %v1025
    %v3651 = vunpack.c.h.b16 %v1025
    %v3652 = vunpack.c.l.b16 %v1026
    %v3653 = vunpack.c.h.b16 %v1026
    %v3654 = vunpack.c.l.b16 %v1027
    %v3655 = vunpack.c.h.b16 %v1027
    %v3656 = vunpack.c.l.b16 %v1028
    %v3657 = vunpack.c.h.b16 %v1028
    %v3658 = vunpack.c.l.b16 %v1029
    %v3659 = vunpack.c.h.b16 %v1029
    %v3660 = vunpack.c.l.b16 %v1030
    %v3661 = vunpack.c.h.b16 %v1030
    %v3662 = vunpack.c.l.b16 %v1031
    %v3663 = vunpack.c.h.b16 %v1031
    %v3664 = vunpack.c.l.b16 %v1032
    %v3665 = vunpack.c.h.b16 %v1032
    %v3666 = vunpack.c.l.b16 %v1033
    %v3667 = vunpack.c.h.b16 %v1033
    %v3668 = vunpack.c.l.b16 %v1034
    %v3669 = vunpack.c.h.b16 %v1034
    %v3670 = vunpack.c.l.b16 %v1035
    %v3671 = vunpack.c.h.b16 %v1035
    %v3672 = vunpack.c.l.b16 %v1036
    %v3673 = vunpack.c.h.b16 %v1036
    %v3674 = vunpack.c.l.b16 %v1037
    %v3675 = vunpack.c.h.b16 %v1037
    %v3676 = vunpack.c.l.b16 %v1038
    %v3677 = vunpack.c.h.b16 %v1038
    %v3678 = vunpack.c.l.b16 %v1039
    %v3679 = vunpack.c.h.b16 %v1039
    %v3680 = vunpack.c.l.b16 %v1040
    %v3681 = vunpack.c.h.b16 %v1040
    %v3682 = vunpack.c.l.b16 %v1041
    %v3683 = vunpack.c.h.b16 %v1041
    %v3684 = vunpack.c.l.b16 %v1042
    %v3685 = vunpack.c.h.b16 %v1042
    %v3686 = vunpack.c.l.b16 %v1043
    %v3687 = vunpack.c.h.b16 %v1043
    %v3688 = vunpack.c.l.b16 %v1044
    %v3689 = vunpack.c.h.b16 %v1044
    %v3690 = vunpack.c.l.b16 %v1045
    %v3691 = vunpack.c.h.b16 %v1045
    %v3692 = vunpack.c.l.b16 %v1046
    %v3693 = vunpack.c.h.b16 %v1046
    %v3694 = vunpack.c.l.b16 %v1047
    %v3695 = vunpack.c.h.b16 %v1047
    %v3696 = vunpack.c.l.b16 %v1048
    %v3697 = vunpack.c.h.b16 %v1048
    %v3698 = vunpack.c.l.b16 %v1049
    %v3699 = vunpack.c.h.b16 %v1049
    %v3700 = vunpack.c.l.b16 %v1050
    %v3701 = vunpack.c.h.b16 %v1050
    %v3702 = vunpack.c.l.b16 %v1051
    %v3703 = vunpack.c.h.b16 %v1051
    %v3704 = vunpack.c.l.b16 %v1052
    %v3705 = vunpack.c.h.b16 %v1052
    %v3706 = vunpack.c.l.b16 %v1053
    %v3707 = vunpack.c.h.b16 %v1053
    %v3708 = vunpack.c.l.b16 %v1054
    %v3709 = vunpack.c.h.b16 %v1054
    %v3710 = vunpack.c.l.b16 %v1055
    %v3711 = vunpack.c.h.b16 %v1055
    %v3712 = vunpack.c.l.b16 %v1056
    %v3713 = vunpack.c.h.b16 %v1056
    %v3714 = vunpack.c.l.b16 %v1057
    %v3715 = vunpack.c.h.b16 %v1057
    %v3716 = vunpack.c.l.b16 %v1058
    %v3717 = vunpack.c.h.b16 %v1058
    %v3718 = vunpack.c.l.b16 %v1059
    %v3719 = vunpack.c.h.b16 %v1059
    %v3720 = vunpack.c.l.b16 %v1060
    %v3721 = vunpack.c.h.b16 %v1060
    %v3722 = vunpack.c.l.b16 %v1061
    %v3723 = vunpack.c.h.b16 %v1061
    %v3724 = vunpack.c.l.b16 %v1062
    %v3725 = vunpack.c.h.b16 %v1062
    %v3726 = vunpack.c.l.b16 %v1063
    %v3727 = vunpack.c.h.b16 %v1063
    %v3728 = vunpack.c.l.b16 %v1064
    %v3729 = vunpack.c.h.b16 %v1064
    %v3730 = vunpack.c.l.b16 %v1065
    %v3731 = vunpack.c.h.b16 %v1065
    %v3732 = vunpack.c.l.b16 %v1066
    %v3733 = vunpack.c.h.b16 %v1066
    %v3734 = vunpack.c.l.b16 %v1067
    %v3735 = vunpack.c.h.b16 %v1067
    %v3736 = vunpack.c.l.b16 %v1068
    %v3737 = vunpack.c.h.b16 %v1068
    %v3738 = vunpack.c.l.b16 %v1069
    %v3739 = vunpack.c.h.b16 %v1069
    %v3740 = vunpack.c.l.b16 %v1070
    %v3741 = vunpack.c.h.b16 %v1070
    %v3742 = vunpack.c.l.b16 %v1071
    %v3743 = vunpack.c.h.b16 %v1071
    %v3744 = vunpack.c.l.b16 %v1072
    %v3745 = vunpack.c.h.b16 %v1072
    %v3746 = vunpack.c.l.b16 %v1073
    %v3747 = vunpack.c.h.b16 %v1073
    %v3748 = vunpack.c.l.b16 %v1074
    %v3749 = vunpack.c.h.b16 %v1074
    %v3750 = vunpack.c.l.b16 %v1075
    %v3751 = vunpack.c.h.b16 %v1075
    %v3752 = vunpack.c.l.b16 %v1076
    %v3753 = vunpack.c.h.b16 %v1076
    %v3754 = vunpack.c.l.b16 %v1077
    %v3755 = vunpack.c.h.b16 %v1077
    %v3756 = vunpack.c.l.b16 %v1078
    %v3757 = vunpack.c.h.b16 %v1078
    %v3758 = vunpack.c.l.b16 %v1079
    %v3759 = vunpack.c.h.b16 %v1079
    %v3760 = vunpack.c.l.b16 %v1080
    %v3761 = vunpack.c.h.b16 %v1080
    %v3762 = vunpack.c.l.b16 %v1081
    %v3763 = vunpack.c.h.b16 %v1081
    %v3764 = vunpack.c.l.b16 %v1082
    %v3765 = vunpack.c.h.b16 %v1082
    %v3766 = vunpack.c.l.b16 %v1083
    %v3767 = vunpack.c.h.b16 %v1083
    %v3768 = vunpack.c.l.b16 %v1084
    %v3769 = vunpack.c.h.b16 %v1084
    %v3770 = vunpack.c.l.b16 %v1085
    %v3771 = vunpack.c.h.b16 %v1085
    %v3772 = vunpack.c.l.b16 %v1086
    %v3773 = vunpack.c.h.b16 %v1086
    %v3774 = vunpack.c.l.b16 %v1087
    %v3775 = vunpack.c.h.b16 %v1087
    %v3776 = vunpack.c.l.b16 %v1088
    %v3777 = vunpack.c.h.b16 %v1088
    %v3778 = vunpack.c.l.b16 %v1089
    %v3779 = vunpack.c.h.b16 %v1089
    %v3780 = vunpack.c.l.b16 %v1090
    %v3781 = vunpack.c.h.b16 %v1090
    %v3782 = vunpack.c.l.b16 %v1091
    %v3783 = vunpack.c.h.b16 %v1091
    %v3784 = vunpack.c.l.b16 %v1092
    %v3785 = vunpack.c.h.b16 %v1092
    %v3786 = vunpack.c.l.b16 %v1093
    %v3787 = vunpack.c.h.b16 %v1093
    %v3788 = vunpack.c.l.b16 %v1094
    %v3789 = vunpack.c.h.b16 %v1094
    %v3790 = vunpack.c.l.b16 %v1095
    %v3791 = vunpack.c.h.b16 %v1095
    %v3792 = vunpack.c.l.b16 %v1096
    %v3793 = vunpack.c.h.b16 %v1096
    %v3794 = vunpack.c.l.b16 %v1097
    %v3795 = vunpack.c.h.b16 %v1097
    %v3796 = vunpack.c.l.b16 %v1098
    %v3797 = vunpack.c.h.b16 %v1098
    %v3798 = vunpack.c.l.b16 %v1099
    %v3799 = vunpack.c.h.b16 %v1099
    %v3800 = vunpack.c.l.b16 %v1100
    %v3801 = vunpack.c.h.b16 %v1100
    %v3802 = vunpack.c.l.b16 %v1101
    %v3803 = vunpack.c.h.b16 %v1101
    %v3804 = vunpack.c.l.b16 %v1102
    %v3805 = vunpack.c.h.b16 %v1102
    %v3806 = vunpack.c.l.b16 %v1103
    %v3807 = vunpack.c.h.b16 %v1103
    %v3808 = vunpack.c.l.b16 %v1104
    %v3809 = vunpack.c.h.b16 %v1104
    %v3810 = vunpack.c.l.b16 %v1105
    %v3811 = vunpack.c.h.b16 %v1105
    %v3812 = vunpack.c.l.b16 %v1106
    %v3813 = vunpack.c.h.b16 %v1106
    %v3814 = vunpack.c.l.b16 %v1107
    %v3815 = vunpack.c.h.b16 %v1107
    %v3816 = vunpack.c.l.b16 %v1108
    %v3817 = vunpack.c.h.b16 %v1108
    %v3818 = vunpack.c.l.b16 %v1109
    %v3819 = vunpack.c.h.b16 %v1109
    %v3820 = vunpack.c.l.b16 %v1110
    %v3821 = vunpack.c.h.b16 %v1110
    %v3822 = vunpack.c.l.b16 %v1111
    %v3823 = vunpack.c.h.b16 %v1111
    %v3824 = vunpack.c.l.b16 %v1112
    %v3825 = vunpack.c.h.b16 %v1112
    %v3826 = vunpack.c.l.b16 %v1113
    %v3827 = vunpack.c.h.b16 %v1113
    %v3828 = vunpack.c.l.b16 %v1114
    %v3829 = vunpack.c.h.b16 %v1114
    %v3830 = vunpack.c.l.b16 %v1115
    %v3831 = vunpack.c.h.b16 %v1115
    %v3832 = vunpack.c.l.b16 %v1116
    %v3833 = vunpack.c.h.b16 %v1116
    %v3834 = vunpack.c.l.b16 %v1117
    %v3835 = vunpack.c.h.b16 %v1117
    %v3836 = vunpack.c.l.b16 %v1118
    %v3837 = vunpack.c.h.b16 %v1118
    %v3838 = vunpack.c.l.b16 %v1119
    %v3839 = vunpack.c.h.b16 %v1119
    %v3840 = vunpack.c.l.b16 %v1120
    %v3841 = vunpack.c.h.b16 %v1120
    %v3842 = vunpack.c.l.b16 %v1121
    %v3843 = vunpack.c.h.b16 %v1121
    %v3844 = vunpack.c.l.b16 %v1122
    %v3845 = vunpack.c.h.b16 %v1122
    %v3846 = vunpack.c.l.b16 %v1123
    %v3847 = vunpack.c.h.b16 %v1123
    %v3848 = vunpack.c.l.b16 %v1124
    %v3849 = vunpack.c.h.b16 %v1124
    %v3850 = vunpack.c.l.b16 %v1125
    %v3851 = vunpack.c.h.b16 %v1125
    %v3852 = vunpack.c.l.b16 %v1126
    %v3853 = vunpack.c.h.b16 %v1126
    %v3854 = vunpack.c.l.b16 %v1127
    %v3855 = vunpack.c.h.b16 %v1127
    %v3856 = vunpack.c.l.b16 %v1128
    %v3857 = vunpack.c.h.b16 %v1128
    %v3858 = vunpack.c.l.b16 %v1129
    %v3859 = vunpack.c.h.b16 %v1129
    %v3860 = vunpack.c.l.b16 %v1130
    %v3861 = vunpack.c.h.b16 %v1130
    %v3862 = vunpack.c.l.b16 %v1131
    %v3863 = vunpack.c.h.b16 %v1131
    %v3864 = vunpack.c.l.b16 %v1132
    %v3865 = vunpack.c.h.b16 %v1132
    %v3866 = vunpack.c.l.b16 %v1133
    %v3867 = vunpack.c.h.b16 %v1133
    %v3868 = vunpack.c.l.b16 %v1134
    %v3869 = vunpack.c.h.b16 %v1134
    %v3870 = vunpack.c.l.b16 %v1135
    %v3871 = vunpack.c.h.b16 %v1135
    %v3872 = vunpack.c.l.b16 %v1136
    %v3873 = vunpack.c.h.b16 %v1136
    %v3874 = vunpack.c.l.b16 %v1137
    %v3875 = vunpack.c.h.b16 %v1137
    %v3876 = vunpack.c.l.b16 %v1138
    %v3877 = vunpack.c.h.b16 %v1138
    %v3878 = vunpack.c.l.b16 %v1139
    %v3879 = vunpack.c.h.b16 %v1139
    %v3880 = vunpack.c.l.b16 %v1140
    %v3881 = vunpack.c.h.b16 %v1140
    %v3882 = vunpack.c.l.b16 %v1141
    %v3883 = vunpack.c.h.b16 %v1141
    %v3884 = vunpack.c.l.b16 %v1142
    %v3885 = vunpack.c.h.b16 %v1142
    %v3886 = vunpack.c.l.b16 %v1143
    %v3887 = vunpack.c.h.b16 %v1143
    %v3888 = vunpack.c.l.b16 %v1144
    %v3889 = vunpack.c.h.b16 %v1144
    %v3890 = vunpack.c.l.b16 %v1145
    %v3891 = vunpack.c.h.b16 %v1145
    %v3892 = vunpack.c.l.b16 %v1146
    %v3893 = vunpack.c.h.b16 %v1146
    %v3894 = vunpack.c.l.b16 %v1147
    %v3895 = vunpack.c.h.b16 %v1147
    %v3896 = vunpack.c.l.b16 %v1148
    %v3897 = vunpack.c.h.b16 %v1148
    %v3898 = vunpack.c.l.b16 %v1149
    %v3899 = vunpack.c.h.b16 %v1149
    %v3900 = vunpack.c.l.b16 %v1150
    %v3901 = vunpack.c.h.b16 %v1150
    %v3902 = vunpack.c.l.b16 %v1151
    %v3903 = vunpack.c.h.b16 %v1151
    %v3904 = vunpack.c.l.b16 %v1152
    %v3905 = vunpack.c.h.b16 %v1152
    %v3906 = vunpack.c.l.b16 %v1153
    %v3907 = vunpack.c.h.b16 %v1153
    %v3908 = vunpack.c.l.b16 %v1154
    %v3909 = vunpack.c.h.b16 %v1154
    %v3910 = vunpack.c.l.b16 %v1155
    %v3911 = vunpack.c.h.b16 %v1155
    %v3912 = vunpack.c.l.b16 %v1156
    %v3913 = vunpack.c.h.b16 %v1156
    %v3914 = vunpack.c.l.b16 %v1157
    %v3915 = vunpack.c.h.b16 %v1157
    %v3916 = vunpack.c.l.b16 %v1158
    %v3917 = vunpack.c.h.b16 %v1158
    %v3918 = vunpack.c.l.b16 %v1159
    %v3919 = vunpack.c.h.b16 %v1159
    %v3920 = vunpack.c.l.b16 %v1160
    %v3921 = vunpack.c.h.b16 %v1160
    %v3922 = vunpack.c.l.b16 %v1161
    %v3923 = vunpack.c.h.b16 %v1161
    %v3924 = vunpack.c.l.b16 %v1162
    %v3925 = vunpack.c.h.b16 %v1162
    %v3926 = vunpack.c.l.b16 %v1163
    %v3927 = vunpack.c.h.b16 %v1163
    %v3928 = vunpack.c.l.b16 %v1164
    %v3929 = vunpack.c.h.b16 %v1164
    %v3930 = vunpack.c.l.b16 %v1165
    %v3931 = vunpack.c.h.b16 %v1165
    %v3932 = vunpack.c.l.b16 %v1166
    %v3933 = vunpack.c.h.b16 %v1166
    %v3934 = vunpack.c.l.b16 %v1167
    %v3935 = vunpack.c.h.b16 %v1167
    %v3936 = vunpack.c.l.b16 %v1168
    %v3937 = vunpack.c.h.b16 %v1168
    %v3938 = vunpack.c.l.b16 %v1169
    %v3939 = vunpack.c.h.b16 %v1169
    %v3940 = vunpack.c.l.b16 %v1170
    %v3941 = vunpack.c.h.b16 %v1170
    %v3942 = vunpack.c.l.b16 %v1171
    %v3943 = vunpack.c.h.b16 %v1171
    %v3944 = vunpack.c.l.b16 %v1172
    %v3945 = vunpack.c.h.b16 %v1172
    %v3946 = vunpack.c.l.b16 %v1173
    %v3947 = vunpack.c.h.b16 %v1173
    %v3948 = vunpack.c.l.b16 %v1174
    %v3949 = vunpack.c.h.b16 %v1174
    %v3950 = vunpack.c.l.b16 %v1175
    %v3951 = vunpack.c.h.b16 %v1175
    %v3952 = vunpack.c.l.b16 %v1176
    %v3953 = vunpack.c.h.b16 %v1176
    %v3954 = vunpack.c.l.b16 %v1177
    %v3955 = vunpack.c.h.b16 %v1177
    %v3956 = vunpack.c.l.b16 %v1178
    %v3957 = vunpack.c.h.b16 %v1178
    %v3958 = vunpack.c.l.b16 %v1179
    %v3959 = vunpack.c.h.b16 %v1179
    %v3960 = vunpack.c.l.b16 %v1180
    %v3961 = vunpack.c.h.b16 %v1180
    %v3962 = vunpack.c.l.b16 %v1181
    %v3963 = vunpack.c.h.b16 %v1181
    %v3964 = vunpack.c.l.b16 %v1182
    %v3965 = vunpack.c.h.b16 %v1182
    %v3966 = vunpack.c.l.b16 %v1183
    %v3967 = vunpack.c.h.b16 %v1183
    %v3968 = vunpack.c.l.b16 %v1184
    %v3969 = vunpack.c.h.b16 %v1184
    %v3970 = vunpack.c.l.b16 %v1185
    %v3971 = vunpack.c.h.b16 %v1185
    %v3972 = vunpack.c.l.b16 %v1186
    %v3973 = vunpack.c.h.b16 %v1186
    %v3974 = vunpack.c.l.b16 %v1187
    %v3975 = vunpack.c.h.b16 %v1187
    %v3976 = vunpack.c.l.b16 %v1188
    %v3977 = vunpack.c.h.b16 %v1188
    %v3978 = vunpack.c.l.b16 %v1189
    %v3979 = vunpack.c.h.b16 %v1189
    %v3980 = vunpack.c.l.b16 %v1190
    %v3981 = vunpack.c.h.b16 %v1190
    %v3982 = vunpack.c.l.b16 %v1191
    %v3983 = vunpack.c.h.b16 %v1191
    %v3984 = vunpack.c.l.b16 %v1192
    %v3985 = vunpack.c.h.b16 %v1192
    %v3986 = vunpack.c.l.b16 %v1193
    %v3987 = vunpack.c.h.b16 %v1193
    %v3988 = vunpack.c.l.b16 %v1194
    %v3989 = vunpack.c.h.b16 %v1194
    %v3990 = vunpack.c.l.b16 %v1195
    %v3991 = vunpack.c.h.b16 %v1195
    %v3992 = vunpack.c.l.b16 %v1196
    %v3993 = vunpack.c.h.b16 %v1196
    %v3994 = vunpack.c.l.b16 %v1197
    %v3995 = vunpack.c.h.b16 %v1197
    %v3996 = vunpack.c.l.b16 %v1198
    %v3997 = vunpack.c.h.b16 %v1198
    %v3998 = vunpack.c.l.b16 %v1199
    %v3999 = vunpack.c.h.b16 %v1199
    %v4000 = vunpack.c.l.b16 %v1200
    %v4001 = vunpack.c.h.b16 %v1200
    %v4002 = vunpack.c.l.b16 %v1201
    %v4003 = vunpack.c.h.b16 %v1201
    %v4004 = vunpack.c.l.b16 %v1202
    %v4005 = vunpack.c.h.b16 %v1202
    %v4006 = vunpack.c.l.b16 %v1203
    %v4007 = vunpack.c.h.b16 %v1203
    %v4008 = vunpack.c.l.b16 %v1204
    %v4009 = vunpack.c.h.b16 %v1204
    %v4010 = vunpack.c.l.b16 %v1205
    %v4011 = vunpack.c.h.b16 %v1205
    %v4012 = vunpack.c.l.b16 %v1206
    %v4013 = vunpack.c.h.b16 %v1206
    %v4014 = vunpack.c.l.b16 %v1207
    %v4015 = vunpack.c.h.b16 %v1207
    %v4016 = vunpack.c.l.b16 %v1208
    %v4017 = vunpack.c.h.b16 %v1208
    %v4018 = vunpack.c.l.b16 %v1209
    %v4019 = vunpack.c.h.b16 %v1209
    %v4020 = vunpack.c.l.b16 %v1210
    %v4021 = vunpack.c.h.b16 %v1210
    %v4022 = vunpack.c.l.b16 %v1211
    %v4023 = vunpack.c.h.b16 %v1211
    %v4024 = vunpack.c.l.b16 %v1212
    %v4025 = vunpack.c.h.b16 %v1212
    %v4026 = vunpack.c.l.b16 %v1213
    %v4027 = vunpack.c.h.b16 %v1213
    %v4028 = vunpack.c.l.b16 %v1214
    %v4029 = vunpack.c.h.b16 %v1214
    %v4030 = vunpack.c.l.b16 %v1215
    %v4031 = vunpack.c.h.b16 %v1215
    %v4032 = vunpack.c.l.b16 %v1216
    %v4033 = vunpack.c.h.b16 %v1216
    %v4034 = vunpack.c.l.b16 %v1217
    %v4035 = vunpack.c.h.b16 %v1217
    %v4036 = vunpack.c.l.b16 %v1218
    %v4037 = vunpack.c.h.b16 %v1218
    %v4038 = vunpack.c.l.b16 %v1219
    %v4039 = vunpack.c.h.b16 %v1219
    %v4040 = vunpack.c.l.b16 %v1220
    %v4041 = vunpack.c.h.b16 %v1220
    %v4042 = vunpack.c.l.b16 %v1221
    %v4043 = vunpack.c.h.b16 %v1221
    %v4044 = vunpack.c.l.b16 %v1222
    %v4045 = vunpack.c.h.b16 %v1222
    %v4046 = vunpack.c.l.b16 %v1223
    %v4047 = vunpack.c.h.b16 %v1223
    %v4048 = vunpack.c.l.b16 %v1224
    %v4049 = vunpack.c.h.b16 %v1224
    %v4050 = vunpack.c.l.b16 %v1225
    %v4051 = vunpack.c.h.b16 %v1225
    %v4052 = vunpack.c.l.b16 %v1226
    %v4053 = vunpack.c.h.b16 %v1226
    %v4054 = vunpack.c.l.b16 %v1227
    %v4055 = vunpack.c.h.b16 %v1227
    %v4056 = vunpack.c.l.b16 %v1228
    %v4057 = vunpack.c.h.b16 %v1228
    %v4058 = vunpack.c.l.b16 %v1229
    %v4059 = vunpack.c.h.b16 %v1229
    %v4060 = vunpack.c.l.b16 %v1230
    %v4061 = vunpack.c.h.b16 %v1230
    %v4062 = vunpack.c.l.b16 %v1231
    %v4063 = vunpack.c.h.b16 %v1231
    %v4064 = vunpack.c.l.b16 %v1232
    %v4065 = vunpack.c.h.b16 %v1232
    %v4066 = vunpack.c.l.b16 %v1233
    %v4067 = vunpack.c.h.b16 %v1233
    %v4068 = vunpack.c.l.b16 %v1234
    %v4069 = vunpack.c.h.b16 %v1234
    %v4070 = vunpack.c.l.b16 %v1235
    %v4071 = vunpack.c.h.b16 %v1235
    %v4072 = vunpack.c.l.b16 %v1236
    %v4073 = vunpack.c.h.b16 %v1236
    %v4074 = vunpack.c.l.b16 %v1237
    %v4075 = vunpack.c.h.b16 %v1237
    %v4076 = vunpack.c.l.b16 %v1238
    %v4077 = vunpack.c.h.b16 %v1238
    %v4078 = vunpack.c.l.b16 %v1239
    %v4079 = vunpack.c.h.b16 %v1239
    %v4080 = vunpack.c.l.b16 %v1240
    %v4081 = vunpack.c.h.b16 %v1240
    %v4082 = vunpack.c.l.b16 %v1241
    %v4083 = vunpack.c.h.b16 %v1241
    %v4084 = vunpack.c.l.b16 %v1242
    %v4085 = vunpack.c.h.b16 %v1242
    %v4086 = vunpack.c.l.b16 %v1243
    %v4087 = vunpack.c.h.b16 %v1243
    %v4088 = vunpack.c.l.b16 %v1244
    %v4089 = vunpack.c.h.b16 %v1244
    %v4090 = vunpack.c.l.b16 %v1245
    %v4091 = vunpack.c.h.b16 %v1245
    %v4092 = vunpack.c.l.b16 %v1246
    %v4093 = vunpack.c.h.b16 %v1246
    %v4094 = vunpack.c.l.b16 %v1247
    %v4095 = vunpack.c.h.b16 %v1247
    %v4096 = vunpack.c.l.b16 %v1248
    %v4097 = vunpack.c.h.b16 %v1248
    %v4098 = vunpack.c.l.b16 %v1249
    %v4099 = vunpack.c.h.b16 %v1249
    %v4100 = vunpack.c.l.b16 %v1250
    %v4101 = vunpack.c.h.b16 %v1250
    %v4102 = vunpack.c.l.b16 %v1251
    %v4103 = vunpack.c.h.b16 %v1251
    %v4104 = vunpack.c.l.b16 %v1252
    %v4105 = vunpack.c.h.b16 %v1252
    %v4106 = vunpack.c.l.b16 %v1253
    %v4107 = vunpack.c.h.b16 %v1253
    %v4108 = vunpack.c.l.b16 %v1254
    %v4109 = vunpack.c.h.b16 %v1254
    %v4110 = vunpack.c.l.b16 %v1255
    %v4111 = vunpack.c.h.b16 %v1255
    %v4112 = vunpack.c.l.b16 %v1256
    %v4113 = vunpack.c.h.b16 %v1256
    %v4114 = vunpack.c.l.b16 %v1257
    %v4115 = vunpack.c.h.b16 %v1257
    %v4116 = vunpack.c.l.b16 %v1258
    %v4117 = vunpack.c.h.b16 %v1258
    %v4118 = vunpack.c.l.b16 %v1259
    %v4119 = vunpack.c.h.b16 %v1259
    %v4120 = vunpack.c.l.b16 %v1260
    %v4121 = vunpack.c.h.b16 %v1260
    %v4122 = vunpack.c.l.b16 %v1261
    %v4123 = vunpack.c.h.b16 %v1261
    %v4124 = vunpack.c.l.b16 %v1262
    %v4125 = vunpack.c.h.b16 %v1262
    %v4126 = vunpack.c.l.b16 %v1263
    %v4127 = vunpack.c.h.b16 %v1263
    %v4128 = vunpack.c.l.b16 %v1264
    %v4129 = vunpack.c.h.b16 %v1264
    %v4130 = vunpack.c.l.b16 %v1265
    %v4131 = vunpack.c.h.b16 %v1265
    %v4132 = vunpack.c.l.b16 %v1266
    %v4133 = vunpack.c.h.b16 %v1266
    %v4134 = vunpack.c.l.b16 %v1267
    %v4135 = vunpack.c.h.b16 %v1267
    %v4136 = vunpack.c.l.b16 %v1268
    %v4137 = vunpack.c.h.b16 %v1268
    %v4138 = vunpack.c.l.b16 %v1269
    %v4139 = vunpack.c.h.b16 %v1269
    %v4140 = vunpack.c.l.b16 %v1270
    %v4141 = vunpack.c.h.b16 %v1270
    %v4142 = vunpack.c.l.b16 %v1271
    %v4143 = vunpack.c.h.b16 %v1271
    %v4144 = vunpack.c.l.b16 %v1272
    %v4145 = vunpack.c.h.b16 %v1272
    %v4146 = vunpack.c.l.b16 %v1273
    %v4147 = vunpack.c.h.b16 %v1273
    %v4148 = vunpack.c.l.b16 %v1274
    %v4149 = vunpack.c.h.b16 %v1274
    %v4150 = vunpack.c.l.b16 %v1275
    %v4151 = vunpack.c.h.b16 %v1275
    %v4152 = vunpack.c.l.b16 %v1276
    %v4153 = vunpack.c.h.b16 %v1276
    %v4154 = vunpack.c.l.b16 %v1277
    %v4155 = vunpack.c.h.b16 %v1277
    %v4156 = vunpack.c.l.b16 %v1278
    %v4157 = vunpack.c.h.b16 %v1278
    %v4158 = vunpack.c.l.b16 %v1279
    %v4159 = vunpack.c.h.b16 %v1279
    %v4160 = vunpack.c.l.b16 %v1280
    %v4161 = vunpack.c.h.b16 %v1280
    %v4162 = vunpack.c.l.b16 %v1281
    %v4163 = vunpack.c.h.b16 %v1281
    %v4164 = vunpack.c.l.b16 %v1282
    %v4165 = vunpack.c.h.b16 %v1282
    %v4166 = vunpack.c.l.b16 %v1283
    %v4167 = vunpack.c.h.b16 %v1283
    %v4168 = vunpack.c.l.b16 %v1284
    %v4169 = vunpack.c.h.b16 %v1284
    %v4170 = vunpack.c.l.b16 %v1285
    %v4171 = vunpack.c.h.b16 %v1285
    %v4172 = vunpack.c.l.b16 %v1286
    %v4173 = vunpack.c.h.b16 %v1286
    %v4174 = vunpack.c.l.b16 %v1287
    %v4175 = vunpack.c.h.b16 %v1287
    %v4176 = vunpack.c.l.b16 %v1288
    %v4177 = vunpack.c.h.b16 %v1288
    %v4178 = vunpack.c.l.b16 %v1289
    %v4179 = vunpack.c.h.b16 %v1289
    %v4180 = vunpack.c.l.b16 %v1290
    %v4181 = vunpack.c.h.b16 %v1290
    %v4182 = vunpack.c.l.b16 %v1291
    %v4183 = vunpack.c.h.b16 %v1291
    %v4184 = vunpack.c.l.b16 %v1292
    %v4185 = vunpack.c.h.b16 %v1292
    %v4186 = vunpack.c.l.b16 %v1293
    %v4187 = vunpack.c.h.b16 %v1293
    %v4188 = vunpack.c.l.b16 %v1294
    %v4189 = vunpack.c.h.b16 %v1294
    %v4190 = vunpack.c.l.b16 %v1295
    %v4191 = vunpack.c.h.b16 %v1295
    %v4192 = vunpack.c.l.b16 %v1296
    %v4193 = vunpack.c.h.b16 %v1296
    %v4194 = vunpack.c.l.b16 %v1297
    %v4195 = vunpack.c.h.b16 %v1297
    %v4196 = vunpack.c.l.b16 %v1298
    %v4197 = vunpack.c.h.b16 %v1298
    %v4198 = vunpack.c.l.b16 %v1299
    %v4199 = vunpack.c.h.b16 %v1299
    %v4200 = vunpack.c.l.b16 %v1300
    %v4201 = vunpack.c.h.b16 %v1300
    %v4202 = vunpack.c.l.b16 %v1301
    %v4203 = vunpack.c.h.b16 %v1301
    %v4204 = vunpack.c.l.b16 %v1302
    %v4205 = vunpack.c.h.b16 %v1302
    %v4206 = vunpack.c.l.b16 %v1303
    %v4207 = vunpack.c.h.b16 %v1303
    %v4208 = vunpack.c.l.b16 %v1304
    %v4209 = vunpack.c.h.b16 %v1304
    %v4210 = vunpack.c.l.b16 %v1305
    %v4211 = vunpack.c.h.b16 %v1305
    %v4212 = vunpack.c.l.b16 %v1306
    %v4213 = vunpack.c.h.b16 %v1306
    %v4214 = vunpack.c.l.b16 %v1307
    %v4215 = vunpack.c.h.b16 %v1307
    %v4216 = vunpack.c.l.b16 %v1308
    %v4217 = vunpack.c.h.b16 %v1308
    %v4218 = vunpack.c.l.b16 %v1309
    %v4219 = vunpack.c.h.b16 %v1309
    %v4220 = vunpack.c.l.b16 %v1310
    %v4221 = vunpack.c.h.b16 %v1310
    %v4222 = vunpack.c.l.b16 %v1311
    %v4223 = vunpack.c.h.b16 %v1311
    %v4224 = vunpack.c.l.b16 %v1312
    %v4225 = vunpack.c.h.b16 %v1312
    %v4226 = vunpack.c.l.b16 %v1313
    %v4227 = vunpack.c.h.b16 %v1313
    %v4228 = vunpack.c.l.b16 %v1314
    %v4229 = vunpack.c.h.b16 %v1314
    %v4230 = vunpack.c.l.b16 %v1315
    %v4231 = vunpack.c.h.b16 %v1315
    %v4232 = vunpack.c.l.b16 %v1316
    %v4233 = vunpack.c.h.b16 %v1316
    %v4234 = vunpack.c.l.b16 %v1317
    %v4235 = vunpack.c.h.b16 %v1317
    %v4236 = vunpack.c.l.b16 %v1318
    %v4237 = vunpack.c.h.b16 %v1318
    %v4238 = vunpack.c.l.b16 %v1319
    %v4239 = vunpack.c.h.b16 %v1319
    %v4240 = vunpack.c.l.b16 %v1320
    %v4241 = vunpack.c.h.b16 %v1320
    %v4242 = vunpack.c.l.b16 %v1321
    %v4243 = vunpack.c.h.b16 %v1321
    %v4244 = vunpack.c.l.b16 %v1322
    %v4245 = vunpack.c.h.b16 %v1322
    %v4246 = vunpack.c.l.b16 %v1323
    %v4247 = vunpack.c.h.b16 %v1323
    %v4248 = vunpack.c.l.b16 %v1324
    %v4249 = vunpack.c.h.b16 %v1324
    %v4250 = vunpack.c.l.b16 %v1325
    %v4251 = vunpack.c.h.b16 %v1325
    %v4252 = vunpack.c.l.b16 %v1326
    %v4253 = vunpack.c.h.b16 %v1326
    %v4254 = vunpack.c.l.b16 %v1327
    %v4255 = vunpack.c.h.b16 %v1327
    %v4256 = vunpack.c.l.b16 %v1328
    %v4257 = vunpack.c.h.b16 %v1328
    %v4258 = vunpack.c.l.b16 %v1329
    %v4259 = vunpack.c.h.b16 %v1329
    %v4260 = vunpack.c.l.b16 %v1330
    %v4261 = vunpack.c.h.b16 %v1330
    %v4262 = vunpack.c.l.b16 %v1331
    %v4263 = vunpack.c.h.b16 %v1331
    %v4264 = vunpack.c.l.b16 %v1332
    %v4265 = vunpack.c.h.b16 %v1332
    %v4266 = vunpack.c.l.b16 %v1333
    %v4267 = vunpack.c.h.b16 %v1333
    %v4268 = vunpack.c.l.b16 %v1334
    %v4269 = vunpack.c.h.b16 %v1334
    %v4270 = vunpack.c.l.b16 %v1335
    %v4271 = vunpack.c.h.b16 %v1335
    %v4272 = vunpack.c.l.b16 %v1336
    %v4273 = vunpack.c.h.b16 %v1336
    %v4274 = vunpack.c.l.b16 %v1337
    %v4275 = vunpack.c.h.b16 %v1337
    %v4276 = vunpack.c.l.b16 %v1338
    %v4277 = vunpack.c.h.b16 %v1338
    %v4278 = vunpack.c.l.b16 %v1339
    %v4279 = vunpack.c.h.b16 %v1339
    %v4280 = vunpack.c.l.b16 %v1340
    %v4281 = vunpack.c.h.b16 %v1340
    %v4282 = vunpack.c.l.b16 %v1341
    %v4283 = vunpack.c.h.b16 %v1341
    %v4284 = vunpack.c.l.b16 %v1342
    %v4285 = vunpack.c.h.b16 %v1342
    %v4286 = vunpack.c.l.b16 %v1343
    %v4287 = vunpack.c.h.b16 %v1343
    %v4288 = vunpack.c.l.b16 %v1344
    %v4289 = vunpack.c.h.b16 %v1344
    %v4290 = vunpack.c.l.b16 %v1345
    %v4291 = vunpack.c.h.b16 %v1345
    %v4292 = vunpack.c.l.b16 %v1346
    %v4293 = vunpack.c.h.b16 %v1346
    %v4294 = vunpack.c.l.b16 %v1347
    %v4295 = vunpack.c.h.b16 %v1347
    %v4296 = vunpack.c.l.b16 %v1348
    %v4297 = vunpack.c.h.b16 %v1348
    %v4298 = vunpack.c.l.b16 %v1349
    %v4299 = vunpack.c.h.b16 %v1349
    %v4300 = vunpack.c.l.b16 %v1350
    %v4301 = vunpack.c.h.b16 %v1350
    %v4302 = vunpack.c.l.b16 %v1351
    %v4303 = vunpack.c.h.b16 %v1351
    %v4304 = vunpack.c.l.b16 %v1352
    %v4305 = vunpack.c.h.b16 %v1352
    %v4306 = vunpack.c.l.b16 %v1353
    %v4307 = vunpack.c.h.b16 %v1353
    %v4308 = vunpack.c.l.b16 %v1354
    %v4309 = vunpack.c.h.b16 %v1354
    %v4310 = vunpack.c.l.b16 %v1355
    %v4311 = vunpack.c.h.b16 %v1355
    %v4312 = vunpack.c.l.b16 %v1356
    %v4313 = vunpack.c.h.b16 %v1356
    %v4314 = vunpack.c.l.b16 %v1357
    %v4315 = vunpack.c.h.b16 %v1357
    %v4316 = vunpack.c.l.b16 %v1358
    %v4317 = vunpack.c.h.b16 %v1358
    %v4318 = vunpack.c.l.b16 %v1359
    %v4319 = vunpack.c.h.b16 %v1359
    %v4320 = vunpack.c.l.b16 %v1360
    %v4321 = vunpack.c.h.b16 %v1360
    %v4322 = vunpack.c.l.b16 %v1361
    %v4323 = vunpack.c.h.b16 %v1361
    %v4324 = vunpack.c.l.b16 %v1362
    %v4325 = vunpack.c.h.b16 %v1362
    %v4326 = vunpack.c.l.b16 %v1363
    %v4327 = vunpack.c.h.b16 %v1363
    %v4328 = vunpack.c.l.b16 %v1364
    %v4329 = vunpack.c.h.b16 %v1364
    %v4330 = vunpack.c.l.b16 %v1365
    %v4331 = vunpack.c.h.b16 %v1365
    %v4332 = vunpack.c.l.b16 %v1366
    %v4333 = vunpack.c.h.b16 %v1366
    %v4334 = vunpack.c.l.b16 %v1367
    %v4335 = vunpack.c.h.b16 %v1367
    %v4336 = vunpack.c.l.b16 %v1368
    %v4337 = vunpack.c.h.b16 %v1368
    %v4338 = vunpack.c.l.b16 %v1369
    %v4339 = vunpack.c.h.b16 %v1369
    %v4340 = vunpack.c.l.b16 %v1370
    %v4341 = vunpack.c.h.b16 %v1370
    %v4342 = vunpack.c.l.b16 %v1371
    %v4343 = vunpack.c.h.b16 %v1371
    %v4344 = vunpack.c.l.b16 %v1372
    %v4345 = vunpack.c.h.b16 %v1372
    %v4346 = vunpack.c.l.b16 %v1373
    %v4347 = vunpack.c.h.b16 %v1373
    %v4348 = vunpack.c.l.b16 %v1374
    %v4349 = vunpack.c.h.b16 %v1374
    %v4350 = vunpack.c.l.b16 %v1375
    %v4351 = vunpack.c.h.b16 %v1375
    %v4352 = vunpack.c.l.b16 %v1376
    %v4353 = vunpack.c.h.b16 %v1376
    %v4354 = vunpack.c.l.b16 %v1377
    %v4355 = vunpack.c.h.b16 %v1377
    %v4356 = vunpack.c.l.b16 %v1378
    %v4357 = vunpack.c.h.b16 %v1378
    %v4358 = vunpack.c.l.b16 %v1379
    %v4359 = vunpack.c.h.b16 %v1379
    %v4360 = vunpack.c.l.b16 %v1380
    %v4361 = vunpack.c.h.b16 %v1380
    %v4362 = vunpack.c.l.b16 %v1381
    %v4363 = vunpack.c.h.b16 %v1381
    %v4364 = vunpack.c.l.b16 %v1382
    %v4365 = vunpack.c.h.b16 %v1382
    %v4366 = vunpack.c.l.b16 %v1383
    %v4367 = vunpack.c.h.b16 %v1383
    %v4368 = vunpack.c.l.b16 %v1384
    %v4369 = vunpack.c.h.b16 %v1384
    %v4370 = vunpack.c.l.b16 %v1385
    %v4371 = vunpack.c.h.b16 %v1385
    %v4372 = vunpack.c.l.b16 %v1386
    %v4373 = vunpack.c.h.b16 %v1386
    %v4374 = vunpack.c.l.b16 %v1387
    %v4375 = vunpack.c.h.b16 %v1387
    %v4376 = vunpack.c.l.b16 %v1388
    %v4377 = vunpack.c.h.b16 %v1388
    %v4378 = vunpack.c.l.b16 %v1389
    %v4379 = vunpack.c.h.b16 %v1389
    %v4380 = vunpack.c.l.b16 %v1390
    %v4381 = vunpack.c.h.b16 %v1390
    %v4382 = vunpack.c.l.b16 %v1391
    %v4383 = vunpack.c.h.b16 %v1391
    %v4384 = vunpack.c.l.b16 %v1392
    %v4385 = vunpack.c.h.b16 %v1392
    %v4386 = vunpack.c.l.b16 %v1393
    %v4387 = vunpack.c.h.b16 %v1393
    %v4388 = vunpack.c.l.b16 %v1394
    %v4389 = vunpack.c.h.b16 %v1394
    %v4390 = vunpack.c.l.b16 %v1395
    %v4391 = vunpack.c.h.b16 %v1395
    %v4392 = vunpack.c.l.b16 %v1396
    %v4393 = vunpack.c.h.b16 %v1396
    %v4394 = vunpack.c.l.b16 %v1397
    %v4395 = vunpack.c.h.b16 %v1397
    %v4396 = vunpack.c.l.b16 %v1398
    %v4397 = vunpack.c.h.b16 %v1398
    %v4398 = vunpack.c.l.b16 %v1399
    %v4399 = vunpack.c.h.b16 %v1399
    %v4400 = vunpack.c.l.b16 %v1400
    %v4401 = vunpack.c.h.b16 %v1400
    %v4402 = vunpack.c.l.b16 %v1401
    %v4403 = vunpack.c.h.b16 %v1401
    %v4404 = vunpack.c.l.b16 %v1402
    %v4405 = vunpack.c.h.b16 %v1402
    %v4406 = vunpack.c.l.b16 %v1403
    %v4407 = vunpack.c.h.b16 %v1403
    %v4408 = vunpack.c.l.b16 %v1404
    %v4409 = vunpack.c.h.b16 %v1404
    %v4410 = vunpack.c.l.b16 %v1405
    %v4411 = vunpack.c.h.b16 %v1405
    %v4412 = vunpack.c.l.b16 %v1406
    %v4413 = vunpack.c.h.b16 %v1406
    %v4414 = vunpack.c.l.b16 %v1407
    %v4415 = vunpack.c.h.b16 %v1407
    %v4416 = vunpack.c.l.b16 %v1408
    %v4417 = vunpack.c.h.b16 %v1408
    %v4418 = vunpack.c.l.b16 %v1409
    %v4419 = vunpack.c.h.b16 %v1409
    %v4420 = vunpack.c.l.b16 %v1410
    %v4421 = vunpack.c.h.b16 %v1410
    %v4422 = vunpack.c.l.b16 %v1411
    %v4423 = vunpack.c.h.b16 %v1411
    %v4424 = vunpack.c.l.b16 %v1412
    %v4425 = vunpack.c.h.b16 %v1412
    %v4426 = vunpack.c.l.b16 %v1413
    %v4427 = vunpack.c.h.b16 %v1413
    %v4428 = vunpack.c.l.b16 %v1414
    %v4429 = vunpack.c.h.b16 %v1414
    %v4430 = vunpack.c.l.b16 %v1415
    %v4431 = vunpack.c.h.b16 %v1415
    %v4432 = vunpack.c.l.b16 %v1416
    %v4433 = vunpack.c.h.b16 %v1416
    %v4434 = vunpack.c.l.b16 %v1417
    %v4435 = vunpack.c.h.b16 %v1417
    %v4436 = vunpack.c.l.b16 %v1418
    %v4437 = vunpack.c.h.b16 %v1418
    %v4438 = vunpack.c.l.b16 %v1419
    %v4439 = vunpack.c.h.b16 %v1419
    %v4440 = vunpack.c.l.b16 %v1420
    %v4441 = vunpack.c.h.b16 %v1420
    %v4442 = vunpack.c.l.b16 %v1421
    %v4443 = vunpack.c.h.b16 %v1421
    %v4444 = vunpack.c.l.b16 %v1422
    %v4445 = vunpack.c.h.b16 %v1422
    %v4446 = vunpack.c.l.b16 %v1423
    %v4447 = vunpack.c.h.b16 %v1423
    %v4448 = vunpack.c.l.b16 %v1424
    %v4449 = vunpack.c.h.b16 %v1424
    %v4450 = vunpack.c.l.b16 %v1425
    %v4451 = vunpack.c.h.b16 %v1425
    %v4452 = vunpack.c.l.b16 %v1426
    %v4453 = vunpack.c.h.b16 %v1426
    %v4454 = vunpack.c.l.b16 %v1427
    %v4455 = vunpack.c.h.b16 %v1427
    %v4456 = vunpack.c.l.b16 %v1428
    %v4457 = vunpack.c.h.b16 %v1428
    %v4458 = vunpack.c.l.b16 %v1429
    %v4459 = vunpack.c.h.b16 %v1429
    %v4460 = vunpack.c.l.b16 %v1430
    %v4461 = vunpack.c.h.b16 %v1430
    %v4462 = vunpack.c.l.b16 %v1431
    %v4463 = vunpack.c.h.b16 %v1431
    %v4464 = vunpack.c.l.b16 %v1432
    %v4465 = vunpack.c.h.b16 %v1432
    %v4466 = vunpack.c.l.b16 %v1433
    %v4467 = vunpack.c.h.b16 %v1433
    %v4468 = vunpack.c.l.b16 %v1434
    %v4469 = vunpack.c.h.b16 %v1434
    %v4470 = vunpack.c.l.b16 %v1435
    %v4471 = vunpack.c.h.b16 %v1435
    %v4472 = vunpack.c.l.b16 %v1436
    %v4473 = vunpack.c.h.b16 %v1436
    %v4474 = vunpack.c.l.b16 %v1437
    %v4475 = vunpack.c.h.b16 %v1437
    %v4476 = vunpack.c.l.b16 %v1438
    %v4477 = vunpack.c.h.b16 %v1438
    %v4478 = vunpack.c.l.b16 %v1439
    %v4479 = vunpack.c.h.b16 %v1439
    %v4480 = vunpack.c.l.b16 %v1440
    %v4481 = vunpack.c.h.b16 %v1440
    %v4482 = vunpack.c.l.b16 %v1441
    %v4483 = vunpack.c.h.b16 %v1441
    %v4484 = vunpack.c.l.b16 %v1442
    %v4485 = vunpack.c.h.b16 %v1442
    %v4486 = vunpack.c.l.b16 %v1443
    %v4487 = vunpack.c.h.b16 %v1443
    %v4488 = vunpack.c.l.b16 %v1444
    %v4489 = vunpack.c.h.b16 %v1444
    %v4490 = vunpack.c.l.b16 %v1445
    %v4491 = vunpack.c.h.b16 %v1445
    %v4492 = vunpack.c.l.b16 %v1446
    %v4493 = vunpack.c.h.b16 %v1446
    %v4494 = vunpack.c.l.b16 %v1447
    %v4495 = vunpack.c.h.b16 %v1447
    %v4496 = vunpack.c.l.b16 %v1448
    %v4497 = vunpack.c.h.b16 %v1448
    %v4498 = vunpack.c.l.b16 %v1449
    %v4499 = vunpack.c.h.b16 %v1449
    %v4500 = vunpack.c.l.b16 %v1450
    %v4501 = vunpack.c.h.b16 %v1450
    %v4502 = vunpack.c.l.b16 %v1451
    %v4503 = vunpack.c.h.b16 %v1451
    %v4504 = vunpack.c.l.b16 %v1452
    %v4505 = vunpack.c.h.b16 %v1452
    %v4506 = vunpack.c.l.b16 %v1453
    %v4507 = vunpack.c.h.b16 %v1453
    %v4508 = vunpack.c.l.b16 %v1454
    %v4509 = vunpack.c.h.b16 %v1454
    %v4510 = vunpack.c.l.b16 %v1455
    %v4511 = vunpack.c.h.b16 %v1455
    %v4512 = vunpack.c.l.b16 %v1456
    %v4513 = vunpack.c.h.b16 %v1456
    %v4514 = vunpack.c.l.b16 %v1457
    %v4515 = vunpack.c.h.b16 %v1457
    %v4516 = vunpack.c.l.b16 %v1458
    %v4517 = vunpack.c.h.b16 %v1458
    %v4518 = vunpack.c.l.b16 %v1459
    %v4519 = vunpack.c.h.b16 %v1459
    %v4520 = vunpack.c.l.b16 %v1460
    %v4521 = vunpack.c.h.b16 %v1460
    %v4522 = vunpack.c.l.b16 %v1461
    %v4523 = vunpack.c.h.b16 %v1461
    %v4524 = vunpack.c.l.b16 %v1462
    %v4525 = vunpack.c.h.b16 %v1462
    %v4526 = vunpack.c.l.b16 %v1463
    %v4527 = vunpack.c.h.b16 %v1463
    %v4528 = vunpack.c.l.b16 %v1464
    %v4529 = vunpack.c.h.b16 %v1464
    %v4530 = vunpack.c.l.b16 %v1465
    %v4531 = vunpack.c.h.b16 %v1465
    %v4532 = vunpack.c.l.b16 %v1466
    %v4533 = vunpack.c.h.b16 %v1466
    %v4534 = vunpack.c.l.b16 %v1467
    %v4535 = vunpack.c.h.b16 %v1467
    %v4536 = vunpack.c.l.b16 %v1468
    %v4537 = vunpack.c.h.b16 %v1468
    %v4538 = vunpack.c.l.b16 %v1469
    %v4539 = vunpack.c.h.b16 %v1469
    %v4540 = vunpack.c.l.b16 %v1470
    %v4541 = vunpack.c.h.b16 %v1470
    %v4542 = vunpack.c.l.b16 %v1471
    %v4543 = vunpack.c.h.b16 %v1471
    %v4544 = vunpack.c.l.b16 %v1472
    %v4545 = vunpack.c.h.b16 %v1472
    %v4546 = vunpack.c.l.b16 %v1473
    %v4547 = vunpack.c.h.b16 %v1473
    %v4548 = vunpack.c.l.b16 %v1474
    %v4549 = vunpack.c.h.b16 %v1474
    %v4550 = vunpack.c.l.b16 %v1475
    %v4551 = vunpack.c.h.b16 %v1475
    %v4552 = vunpack.c.l.b16 %v1476
    %v4553 = vunpack.c.h.b16 %v1476
    %v4554 = vunpack.c.l.b16 %v1477
    %v4555 = vunpack.c.h.b16 %v1477
    %v4556 = vunpack.c.l.b16 %v1478
    %v4557 = vunpack.c.h.b16 %v1478
    %v4558 = vunpack.c.l.b16 %v1479
    %v4559 = vunpack.c.h.b16 %v1479
    %v4560 = vunpack.c.l.b16 %v1480
    %v4561 = vunpack.c.h.b16 %v1480
    %v4562 = vunpack.c.l.b16 %v1481
    %v4563 = vunpack.c.h.b16 %v1481
    %v4564 = vunpack.c.l.b16 %v1482
    %v4565 = vunpack.c.h.b16 %v1482
    %v4566 = vunpack.c.l.b16 %v1483
    %v4567 = vunpack.c.h.b16 %v1483
    %v4568 = vunpack.c.l.b16 %v1484
    %v4569 = vunpack.c.h.b16 %v1484
    %v4570 = vunpack.c.l.b16 %v1485
    %v4571 = vunpack.c.h.b16 %v1485
    %v4572 = vunpack.c.l.b16 %v1486
    %v4573 = vunpack.c.h.b16 %v1486
    %v4574 = vunpack.c.l.b16 %v1487
    %v4575 = vunpack.c.h.b16 %v1487
    %v4576 = vunpack.c.l.b16 %v1488
    %v4577 = vunpack.c.h.b16 %v1488
    %v4578 = vunpack.c.l.b16 %v1489
    %v4579 = vunpack.c.h.b16 %v1489
    %v4580 = vunpack.c.l.b16 %v1490
    %v4581 = vunpack.c.h.b16 %v1490
    %v4582 = vunpack.c.l.b16 %v1491
    %v4583 = vunpack.c.h.b16 %v1491
    %v4584 = vunpack.c.l.b16 %v1492
    %v4585 = vunpack.c.h.b16 %v1492
    %v4586 = vunpack.c.l.b16 %v1493
    %v4587 = vunpack.c.h.b16 %v1493
    %v4588 = vunpack.c.l.b16 %v1494
    %v4589 = vunpack.c.h.b16 %v1494
    %v4590 = vunpack.c.l.b16 %v1495
    %v4591 = vunpack.c.h.b16 %v1495
    %v4592 = vunpack.c.l.b16 %v1496
    %v4593 = vunpack.c.h.b16 %v1496
    %v4594 = vunpack.c.l.b16 %v1497
    %v4595 = vunpack.c.h.b16 %v1497
    %v4596 = vunpack.c.l.b16 %v1498
    %v4597 = vunpack.c.h.b16 %v1498
    %v4598 = vunpack.c.l.b16 %v1499
    %v4599 = vunpack.c.h.b16 %v1499
    %v4600 = vunpack.c.l.b16 %v1500
    %v4601 = vunpack.c.h.b16 %v1500
    %v4602 = vunpack.c.l.b16 %v1501
    %v4603 = vunpack.c.h.b16 %v1501
    %v4604 = vunpack.c.l.b16 %v1502
    %v4605 = vunpack.c.h.b16 %v1502
    %v4606 = vunpack.c.l.b16 %v1503
    %v4607 = vunpack.c.h.b16 %v1503
    %v4608 = vunpack.c.l.b16 %v1504
    %v4609 = vunpack.c.h.b16 %v1504
    %v4610 = vunpack.c.l.b16 %v1505
    %v4611 = vunpack.c.h.b16 %v1505
    %v4612 = vunpack.c.l.b16 %v1506
    %v4613 = vunpack.c.h.b16 %v1506
    %v4614 = vunpack.c.l.b16 %v1507
    %v4615 = vunpack.c.h.b16 %v1507
    %v4616 = vpack.c.b16 %v2584, %v2568
    %v4617 = vpack.c.b16 %v2585, %v2569
    %v4618 = vpack.c.b16 %v2586, %v2570
    %v4619 = vpack.c.b16 %v2587, %v2571
    %v4620 = vpack.c.b16 %v2588, %v2572
    %v4621 = vpack.c.b16 %v2589, %v2573
    %v4622 = vpack.c.b16 %v2590, %v2574
    %v4623 = vpack.c.b16 %v2591, %v2575
    %v4624 = vpack.c.b16 %v2592, %v2576
    %v4625 = vpack.c.b16 %v2593, %v2577
    %v4626 = vpack.c.b16 %v2594, %v2578
    %v4627 = vpack.c.b16 %v2595, %v2579
    %v4628 = vpack.c.b16 %v2596, %v2580
    %v4629 = vpack.c.b16 %v2597, %v2581
    %v4630 = vpack.c.b16 %v2598, %v2582
    %v4631 = vpack.c.b16 %v2599, %v2583
    %v4632 = vpack.c.b16 %v2616, %v2600
    %v4633 = vpack.c.b16 %v2617, %v2601
    %v4634 = vpack.c.b16 %v2618, %v2602
    %v4635 = vpack.c.b16 %v2619, %v2603
    %v4636 = vpack.c.b16 %v2620, %v2604
    %v4637 = vpack.c.b16 %v2621, %v2605
    %v4638 = vpack.c.b16 %v2622, %v2606
    %v4639 = vpack.c.b16 %v2623, %v2607
    %v4640 = vpack.c.b16 %v2624, %v2608
    %v4641 = vpack.c.b16 %v2625, %v2609
    %v4642 = vpack.c.b16 %v2626, %v2610
    %v4643 = vpack.c.b16 %v2627, %v2611
    %v4644 = vpack.c.b16 %v2628, %v2612
    %v4645 = vpack.c.b16 %v2629, %v2613
    %v4646 = vpack.c.b16 %v2630, %v2614
    %v4647 = vpack.c.b16 %v2631, %v2615
    %v4648 = vpack.c.b16 %v2648, %v2632
    %v4649 = vpack.c.b16 %v2649, %v2633
    %v4650 = vpack.c.b16 %v2650, %v2634
    %v4651 = vpack.c.b16 %v2651, %v2635
    %v4652 = vpack.c.b16 %v2652, %v2636
    %v4653 = vpack.c.b16 %v2653, %v2637
    %v4654 = vpack.c.b16 %v2654, %v2638
    %v4655 = vpack.c.b16 %v2655, %v2639
    %v4656 = vpack.c.b16 %v2656, %v2640
    %v4657 = vpack.c.b16 %v2657, %v2641
    %v4658 = vpack.c.b16 %v2658, %v2642
    %v4659 = vpack.c.b16 %v2659, %v2643
    %v4660 = vpack.c.b16 %v2660, %v2644
    %v4661 = vpack.c.b16 %v2661, %v2645
    %v4662 = vpack.c.b16 %v2662, %v2646
    %v4663 = vpack.c.b16 %v2663, %v2647
    %v4664 = vpack.c.b16 %v2680, %v2664
    %v4665 = vpack.c.b16 %v2681, %v2665
    %v4666 = vpack.c.b16 %v2682, %v2666
    %v4667 = vpack.c.b16 %v2683, %v2667
    %v4668 = vpack.c.b16 %v2684, %v2668
    %v4669 = vpack.c.b16 %v2685, %v2669
    %v4670 = vpack.c.b16 %v2686, %v2670
    %v4671 = vpack.c.b16 %v2687, %v2671
    %v4672 = vpack.c.b16 %v2688, %v2672
    %v4673 = vpack.c.b16 %v2689, %v2673
    %v4674 = vpack.c.b16 %v2690, %v2674
    %v4675 = vpack.c.b16 %v2691, %v2675
    %v4676 = vpack.c.b16 %v2692, %v2676
    %v4677 = vpack.c.b16 %v2693, %v2677
    %v4678 = vpack.c.b16 %v2694, %v2678
    %v4679 = vpack.c.b16 %v2695, %v2679
    %v4680 = vpack.c.b16 %v2712, %v2696
    %v4681 = vpack.c.b16 %v2713, %v2697
    %v4682 = vpack.c.b16 %v2714, %v2698
    %v4683 = vpack.c.b16 %v2715, %v2699
    %v4684 = vpack.c.b16 %v2716, %v2700
    %v4685 = vpack.c.b16 %v2717, %v2701
    %v4686 = vpack.c.b16 %v2718, %v2702
    %v4687 = vpack.c.b16 %v2719, %v2703
    %v4688 = vpack.c.b16 %v2720, %v2704
    %v4689 = vpack.c.b16 %v2721, %v2705
    %v4690 = vpack.c.b16 %v2722, %v2706
    %v4691 = vpack.c.b16 %v2723, %v2707
    %v4692 = vpack.c.b16 %v2724, %v2708
    %v4693 = vpack.c.b16 %v2725, %v2709
    %v4694 = vpack.c.b16 %v2726, %v2710
    %v4695 = vpack.c.b16 %v2727, %v2711
    %v4696 = vpack.c.b16 %v2744, %v2728
    %v4697 = vpack.c.b16 %v2745, %v2729
    %v4698 = vpack.c.b16 %v2746, %v2730
    %v4699 = vpack.c.b16 %v2747, %v2731
    %v4700 = vpack.c.b16 %v2748, %v2732
    %v4701 = vpack.c.b16 %v2749, %v2733
    %v4702 = vpack.c.b16 %v2750, %v2734
    %v4703 = vpack.c.b16 %v2751, %v2735
    %v4704 = vpack.c.b16 %v2752, %v2736
    %v4705 = vpack.c.b16 %v2753, %v2737
    %v4706 = vpack.c.b16 %v2754, %v2738
    %v4707 = vpack.c.b16 %v2755, %v2739
    %v4708 = vpack.c.b16 %v2756, %v2740
    %v4709 = vpack.c.b16 %v2757, %v2741
    %v4710 = vpack.c.b16 %v2758, %v2742
    %v4711 = vpack.c.b16 %v2759, %v2743
    %v4712 = vpack.c.b16 %v2776, %v2760
    %v4713 = vpack.c.b16 %v2777, %v2761
    %v4714 = vpack.c.b16 %v2778, %v2762
    %v4715 = vpack.c.b16 %v2779, %v2763
    %v4716 = vpack.c.b16 %v2780, %v2764
    %v4717 = vpack.c.b16 %v2781, %v2765
    %v4718 = vpack.c.b16 %v2782, %v2766
    %v4719 = vpack.c.b16 %v2783, %v2767
    %v4720 = vpack.c.b16 %v2784, %v2768
    %v4721 = vpack.c.b16 %v2785, %v2769
    %v4722 = vpack.c.b16 %v2786, %v2770
    %v4723 = vpack.c.b16 %v2787, %v2771
    %v4724 = vpack.c.b16 %v2788, %v2772
    %v4725 = vpack.c.b16 %v2789, %v2773
    %v4726 = vpack.c.b16 %v2790, %v2774
    %v4727 = vpack.c.b16 %v2791, %v2775
    %v4728 = vpack.c.b16 %v2808, %v2792
    %v4729 = vpack.c.b16 %v2809, %v2793
    %v4730 = vpack.c.b16 %v2810, %v2794
    %v4731 = vpack.c.b16 %v2811, %v2795
    %v4732 = vpack.c.b16 %v2812, %v2796
    %v4733 = vpack.c.b16 %v2813, %v2797
    %v4734 = vpack.c.b16 %v2814, %v2798
    %v4735 = vpack.c.b16 %v2815, %v2799
    %v4736 = vpack.c.b16 %v2816, %v2800
    %v4737 = vpack.c.b16 %v2817, %v2801
    %v4738 = vpack.c.b16 %v2818, %v2802
    %v4739 = vpack.c.b16 %v2819, %v2803
    %v4740 = vpack.c.b16 %v2820, %v2804
    %v4741 = vpack.c.b16 %v2821, %v2805
    %v4742 = vpack.c.b16 %v2822, %v2806
    %v4743 = vpack.c.b16 %v2823, %v2807
    %v4744 = vpack.c.b16 %v2840, %v2824
    %v4745 = vpack.c.b16 %v2841, %v2825
    %v4746 = vpack.c.b16 %v2842, %v2826
    %v4747 = vpack.c.b16 %v2843, %v2827
    %v4748 = vpack.c.b16 %v2844, %v2828
    %v4749 = vpack.c.b16 %v2845, %v2829
    %v4750 = vpack.c.b16 %v2846, %v2830
    %v4751 = vpack.c.b16 %v2847, %v2831
    %v4752 = vpack.c.b16 %v2848, %v2832
    %v4753 = vpack.c.b16 %v2849, %v2833
    %v4754 = vpack.c.b16 %v2850, %v2834
    %v4755 = vpack.c.b16 %v2851, %v2835
    %v4756 = vpack.c.b16 %v2852, %v2836
    %v4757 = vpack.c.b16 %v2853, %v2837
    %v4758 = vpack.c.b16 %v2854, %v2838
    %v4759 = vpack.c.b16 %v2855, %v2839
    %v4760 = vpack.c.b16 %v2872, %v2856
    %v4761 = vpack.c.b16 %v2873, %v2857
    %v4762 = vpack.c.b16 %v2874, %v2858
    %v4763 = vpack.c.b16 %v2875, %v2859
    %v4764 = vpack.c.b16 %v2876, %v2860
    %v4765 = vpack.c.b16 %v2877, %v2861
    %v4766 = vpack.c.b16 %v2878, %v2862
    %v4767 = vpack.c.b16 %v2879, %v2863
    %v4768 = vpack.c.b16 %v2880, %v2864
    %v4769 = vpack.c.b16 %v2881, %v2865
    %v4770 = vpack.c.b16 %v2882, %v2866
    %v4771 = vpack.c.b16 %v2883, %v2867
    %v4772 = vpack.c.b16 %v2884, %v2868
    %v4773 = vpack.c.b16 %v2885, %v2869
    %v4774 = vpack.c.b16 %v2886, %v2870
    %v4775 = vpack.c.b16 %v2887, %v2871
    %v4776 = vpack.c.b16 %v2904, %v2888
    %v4777 = vpack.c.b16 %v2905, %v2889
    %v4778 = vpack.c.b16 %v2906, %v2890
    %v4779 = vpack.c.b16 %v2907, %v2891
    %v4780 = vpack.c.b16 %v2908, %v2892
    %v4781 = vpack.c.b16 %v2909, %v2893
    %v4782 = vpack.c.b16 %v2910, %v2894
    %v4783 = vpack.c.b16 %v2911, %v2895
    %v4784 = vpack.c.b16 %v2912, %v2896
    %v4785 = vpack.c.b16 %v2913, %v2897
    %v4786 = vpack.c.b16 %v2914, %v2898
    %v4787 = vpack.c.b16 %v2915, %v2899
    %v4788 = vpack.c.b16 %v2916, %v2900
    %v4789 = vpack.c.b16 %v2917, %v2901
    %v4790 = vpack.c.b16 %v2918, %v2902
    %v4791 = vpack.c.b16 %v2919, %v2903
    %v4792 = vpack.c.b16 %v2936, %v2920
    %v4793 = vpack.c.b16 %v2937, %v2921
    %v4794 = vpack.c.b16 %v2938, %v2922
    %v4795 = vpack.c.b16 %v2939, %v2923
    %v4796 = vpack.c.b16 %v2940, %v2924
    %v4797 = vpack.c.b16 %v2941, %v2925
    %v4798 = vpack.c.b16 %v2942, %v2926
    %v4799 = vpack.c.b16 %v2943, %v2927
    %v4800 = vpack.c.b16 %v2944, %v2928
    %v4801 = vpack.c.b16 %v2945, %v2929
    %v4802 = vpack.c.b16 %v2946, %v2930
    %v4803 = vpack.c.b16 %v2947, %v2931
    %v4804 = vpack.c.b16 %v2948, %v2932
    %v4805 = vpack.c.b16 %v2949, %v2933
    %v4806 = vpack.c.b16 %v2950, %v2934
    %v4807 = vpack.c.b16 %v2951, %v2935
    %v4808 = vpack.c.b16 %v2968, %v2952
    %v4809 = vpack.c.b16 %v2969, %v2953
    %v4810 = vpack.c.b16 %v2970, %v2954
    %v4811 = vpack.c.b16 %v2971, %v2955
    %v4812 = vpack.c.b16 %v2972, %v2956
    %v4813 = vpack.c.b16 %v2973, %v2957
    %v4814 = vpack.c.b16 %v2974, %v2958
    %v4815 = vpack.c.b16 %v2975, %v2959
    %v4816 = vpack.c.b16 %v2976, %v2960
    %v4817 = vpack.c.b16 %v2977, %v2961
    %v4818 = vpack.c.b16 %v2978, %v2962
    %v4819 = vpack.c.b16 %v2979, %v2963
    %v4820 = vpack.c.b16 %v2980, %v2964
    %v4821 = vpack.c.b16 %v2981, %v2965
    %v4822 = vpack.c.b16 %v2982, %v2966
    %v4823 = vpack.c.b16 %v2983, %v2967
    %v4824 = vpack.c.b16 %v3000, %v2984
    %v4825 = vpack.c.b16 %v3001, %v2985
    %v4826 = vpack.c.b16 %v3002, %v2986
    %v4827 = vpack.c.b16 %v3003, %v2987
    %v4828 = vpack.c.b16 %v3004, %v2988
    %v4829 = vpack.c.b16 %v3005, %v2989
    %v4830 = vpack.c.b16 %v3006, %v2990
    %v4831 = vpack.c.b16 %v3007, %v2991
    %v4832 = vpack.c.b16 %v3008, %v2992
    %v4833 = vpack.c.b16 %v3009, %v2993
    %v4834 = vpack.c.b16 %v3010, %v2994
    %v4835 = vpack.c.b16 %v3011, %v2995
    %v4836 = vpack.c.b16 %v3012, %v2996
    %v4837 = vpack.c.b16 %v3013, %v2997
    %v4838 = vpack.c.b16 %v3014, %v2998
    %v4839 = vpack.c.b16 %v3015, %v2999
    %v4840 = vpack.c.b16 %v3032, %v3016
    %v4841 = vpack.c.b16 %v3033, %v3017
    %v4842 = vpack.c.b16 %v3034, %v3018
    %v4843 = vpack.c.b16 %v3035, %v3019
    %v4844 = vpack.c.b16 %v3036, %v3020
    %v4845 = vpack.c.b16 %v3037, %v3021
    %v4846 = vpack.c.b16 %v3038, %v3022
    %v4847 = vpack.c.b16 %v3039, %v3023
    %v4848 = vpack.c.b16 %v3040, %v3024
    %v4849 = vpack.c.b16 %v3041, %v3025
    %v4850 = vpack.c.b16 %v3042, %v3026
    %v4851 = vpack.c.b16 %v3043, %v3027
    %v4852 = vpack.c.b16 %v3044, %v3028
    %v4853 = vpack.c.b16 %v3045, %v3029
    %v4854 = vpack.c.b16 %v3046, %v3030
    %v4855 = vpack.c.b16 %v3047, %v3031
    %v4856 = vpack.c.b16 %v3064, %v3048
    %v4857 = vpack.c.b16 %v3065, %v3049
    %v4858 = vpack.c.b16 %v3066, %v3050
    %v4859 = vpack.c.b16 %v3067, %v3051
    %v4860 = vpack.c.b16 %v3068, %v3052
    %v4861 = vpack.c.b16 %v3069, %v3053
    %v4862 = vpack.c.b16 %v3070, %v3054
    %v4863 = vpack.c.b16 %v3071, %v3055
    %v4864 = vpack.c.b16 %v3072, %v3056
    %v4865 = vpack.c.b16 %v3073, %v3057
    %v4866 = vpack.c.b16 %v3074, %v3058
    %v4867 = vpack.c.b16 %v3075, %v3059
    %v4868 = vpack.c.b16 %v3076, %v3060
    %v4869 = vpack.c.b16 %v3077, %v3061
    %v4870 = vpack.c.b16 %v3078, %v3062
    %v4871 = vpack.c.b16 %v3079, %v3063
    %v4872 = vpack.c.b16 %v3096, %v3080
    %v4873 = vpack.c.b16 %v3097, %v3081
    %v4874 = vpack.c.b16 %v3098, %v3082
    %v4875 = vpack.c.b16 %v3099, %v3083
    %v4876 = vpack.c.b16 %v3100, %v3084
    %v4877 = vpack.c.b16 %v3101, %v3085
    %v4878 = vpack.c.b16 %v3102, %v3086
    %v4879 = vpack.c.b16 %v3103, %v3087
    %v4880 = vpack.c.b16 %v3104, %v3088
    %v4881 = vpack.c.b16 %v3105, %v3089
    %v4882 = vpack.c.b16 %v3106, %v3090
    %v4883 = vpack.c.b16 %v3107, %v3091
    %v4884 = vpack.c.b16 %v3108, %v3092
    %v4885 = vpack.c.b16 %v3109, %v3093
    %v4886 = vpack.c.b16 %v3110, %v3094
    %v4887 = vpack.c.b16 %v3111, %v3095
    %v4888 = vpack.c.b16 %v3128, %v3112
    %v4889 = vpack.c.b16 %v3129, %v3113
    %v4890 = vpack.c.b16 %v3130, %v3114
    %v4891 = vpack.c.b16 %v3131, %v3115
    %v4892 = vpack.c.b16 %v3132, %v3116
    %v4893 = vpack.c.b16 %v3133, %v3117
    %v4894 = vpack.c.b16 %v3134, %v3118
    %v4895 = vpack.c.b16 %v3135, %v3119
    %v4896 = vpack.c.b16 %v3136, %v3120
    %v4897 = vpack.c.b16 %v3137, %v3121
    %v4898 = vpack.c.b16 %v3138, %v3122
    %v4899 = vpack.c.b16 %v3139, %v3123
    %v4900 = vpack.c.b16 %v3140, %v3124
    %v4901 = vpack.c.b16 %v3141, %v3125
    %v4902 = vpack.c.b16 %v3142, %v3126
    %v4903 = vpack.c.b16 %v3143, %v3127
    %v4904 = vpack.c.b16 %v3160, %v3144
    %v4905 = vpack.c.b16 %v3161, %v3145
    %v4906 = vpack.c.b16 %v3162, %v3146
    %v4907 = vpack.c.b16 %v3163, %v3147
    %v4908 = vpack.c.b16 %v3164, %v3148
    %v4909 = vpack.c.b16 %v3165, %v3149
    %v4910 = vpack.c.b16 %v3166, %v3150
    %v4911 = vpack.c.b16 %v3167, %v3151
    %v4912 = vpack.c.b16 %v3168, %v3152
    %v4913 = vpack.c.b16 %v3169, %v3153
    %v4914 = vpack.c.b16 %v3170, %v3154
    %v4915 = vpack.c.b16 %v3171, %v3155
    %v4916 = vpack.c.b16 %v3172, %v3156
    %v4917 = vpack.c.b16 %v3173, %v3157
    %v4918 = vpack.c.b16 %v3174, %v3158
    %v4919 = vpack.c.b16 %v3175, %v3159
    %v4920 = vpack.c.b16 %v3192, %v3176
    %v4921 = vpack.c.b16 %v3193, %v3177
    %v4922 = vpack.c.b16 %v3194, %v3178
    %v4923 = vpack.c.b16 %v3195, %v3179
    %v4924 = vpack.c.b16 %v3196, %v3180
    %v4925 = vpack.c.b16 %v3197, %v3181
    %v4926 = vpack.c.b16 %v3198, %v3182
    %v4927 = vpack.c.b16 %v3199, %v3183
    %v4928 = vpack.c.b16 %v3200, %v3184
    %v4929 = vpack.c.b16 %v3201, %v3185
    %v4930 = vpack.c.b16 %v3202, %v3186
    %v4931 = vpack.c.b16 %v3203, %v3187
    %v4932 = vpack.c.b16 %v3204, %v3188
    %v4933 = vpack.c.b16 %v3205, %v3189
    %v4934 = vpack.c.b16 %v3206, %v3190
    %v4935 = vpack.c.b16 %v3207, %v3191
    %v4936 = vpack.c.b16 %v3224, %v3208
    %v4937 = vpack.c.b16 %v3225, %v3209
    %v4938 = vpack.c.b16 %v3226, %v3210
    %v4939 = vpack.c.b16 %v3227, %v3211
    %v4940 = vpack.c.b16 %v3228, %v3212
    %v4941 = vpack.c.b16 %v3229, %v3213
    %v4942 = vpack.c.b16 %v3230, %v3214
    %v4943 = vpack.c.b16 %v3231, %v3215
    %v4944 = vpack.c.b16 %v3232, %v3216
    %v4945 = vpack.c.b16 %v3233, %v3217
    %v4946 = vpack.c.b16 %v3234, %v3218
    %v4947 = vpack.c.b16 %v3235, %v3219
    %v4948 = vpack.c.b16 %v3236, %v3220
    %v4949 = vpack.c.b16 %v3237, %v3221
    %v4950 = vpack.c.b16 %v3238, %v3222
    %v4951 = vpack.c.b16 %v3239, %v3223
    %v4952 = vpack.c.b16 %v3256, %v3240
    %v4953 = vpack.c.b16 %v3257, %v3241
    %v4954 = vpack.c.b16 %v3258, %v3242
    %v4955 = vpack.c.b16 %v3259, %v3243
    %v4956 = vpack.c.b16 %v3260, %v3244
    %v4957 = vpack.c.b16 %v3261, %v3245
    %v4958 = vpack.c.b16 %v3262, %v3246
    %v4959 = vpack.c.b16 %v3263, %v3247
    %v4960 = vpack.c.b16 %v3264, %v3248
    %v4961 = vpack.c.b16 %v3265, %v3249
    %v4962 = vpack.c.b16 %v3266, %v3250
    %v4963 = vpack.c.b16 %v3267, %v3251
    %v4964 = vpack.c.b16 %v3268, %v3252
    %v4965 = vpack.c.b16 %v3269, %v3253
    %v4966 = vpack.c.b16 %v3270, %v3254
    %v4967 = vpack.c.b16 %v3271, %v3255
    %v4968 = vpack.c.b16 %v3288, %v3272
    %v4969 = vpack.c.b16 %v3289, %v3273
    %v4970 = vpack.c.b16 %v3290, %v3274
    %v4971 = vpack.c.b16 %v3291, %v3275
    %v4972 = vpack.c.b16 %v3292, %v3276
    %v4973 = vpack.c.b16 %v3293, %v3277
    %v4974 = vpack.c.b16 %v3294, %v3278
    %v4975 = vpack.c.b16 %v3295, %v3279
    %v4976 = vpack.c.b16 %v3296, %v3280
    %v4977 = vpack.c.b16 %v3297, %v3281
    %v4978 = vpack.c.b16 %v3298, %v3282
    %v4979 = vpack.c.b16 %v3299, %v3283
    %v4980 = vpack.c.b16 %v3300, %v3284
    %v4981 = vpack.c.b16 %v3301, %v3285
    %v4982 = vpack.c.b16 %v3302, %v3286
    %v4983 = vpack.c.b16 %v3303, %v3287
    %v4984 = vpack.c.b16 %v3320, %v3304
    %v4985 = vpack.c.b16 %v3321, %v3305
    %v4986 = vpack.c.b16 %v3322, %v3306
    %v4987 = vpack.c.b16 %v3323, %v3307
    %v4988 = vpack.c.b16 %v3324, %v3308
    %v4989 = vpack.c.b16 %v3325, %v3309
    %v4990 = vpack.c.b16 %v3326, %v3310
    %v4991 = vpack.c.b16 %v3327, %v3311
    %v4992 = vpack.c.b16 %v3328, %v3312
    %v4993 = vpack.c.b16 %v3329, %v3313
    %v4994 = vpack.c.b16 %v3330, %v3314
    %v4995 = vpack.c.b16 %v3331, %v3315
    %v4996 = vpack.c.b16 %v3332, %v3316
    %v4997 = vpack.c.b16 %v3333, %v3317
    %v4998 = vpack.c.b16 %v3334, %v3318
    %v4999 = vpack.c.b16 %v3335, %v3319
    %v5000 = vpack.c.b16 %v3352, %v3336
    %v5001 = vpack.c.b16 %v3353, %v3337
    %v5002 = vpack.c.b16 %v3354, %v3338
    %v5003 = vpack.c.b16 %v3355, %v3339
    %v5004 = vpack.c.b16 %v3356, %v3340
    %v5005 = vpack.c.b16 %v3357, %v3341
    %v5006 = vpack.c.b16 %v3358, %v3342
    %v5007 = vpack.c.b16 %v3359, %v3343
    %v5008 = vpack.c.b16 %v3360, %v3344
    %v5009 = vpack.c.b16 %v3361, %v3345
    %v5010 = vpack.c.b16 %v3362, %v3346
    %v5011 = vpack.c.b16 %v3363, %v3347
    %v5012 = vpack.c.b16 %v3364, %v3348
    %v5013 = vpack.c.b16 %v3365, %v3349
    %v5014 = vpack.c.b16 %v3366, %v3350
    %v5015 = vpack.c.b16 %v3367, %v3351
    %v5016 = vpack.c.b16 %v3384, %v3368
    %v5017 = vpack.c.b16 %v3385, %v3369
    %v5018 = vpack.c.b16 %v3386, %v3370
    %v5019 = vpack.c.b16 %v3387, %v3371
    %v5020 = vpack.c.b16 %v3388, %v3372
    %v5021 = vpack.c.b16 %v3389, %v3373
    %v5022 = vpack.c.b16 %v3390, %v3374
    %v5023 = vpack.c.b16 %v3391, %v3375
    %v5024 = vpack.c.b16 %v3392, %v3376
    %v5025 = vpack.c.b16 %v3393, %v3377
    %v5026 = vpack.c.b16 %v3394, %v3378
    %v5027 = vpack.c.b16 %v3395, %v3379
    %v5028 = vpack.c.b16 %v3396, %v3380
    %v5029 = vpack.c.b16 %v3397, %v3381
    %v5030 = vpack.c.b16 %v3398, %v3382
    %v5031 = vpack.c.b16 %v3399, %v3383
    %v5032 = vpack.c.b16 %v3416, %v3400
    %v5033 = vpack.c.b16 %v3417, %v3401
    %v5034 = vpack.c.b16 %v3418, %v3402
    %v5035 = vpack.c.b16 %v3419, %v3403
    %v5036 = vpack.c.b16 %v3420, %v3404
    %v5037 = vpack.c.b16 %v3421, %v3405
    %v5038 = vpack.c.b16 %v3422, %v3406
    %v5039 = vpack.c.b16 %v3423, %v3407
    %v5040 = vpack.c.b16 %v3424, %v3408
    %v5041 = vpack.c.b16 %v3425, %v3409
    %v5042 = vpack.c.b16 %v3426, %v3410
    %v5043 = vpack.c.b16 %v3427, %v3411
    %v5044 = vpack.c.b16 %v3428, %v3412
    %v5045 = vpack.c.b16 %v3429, %v3413
    %v5046 = vpack.c.b16 %v3430, %v3414
    %v5047 = vpack.c.b16 %v3431, %v3415
    %v5048 = vpack.c.b16 %v3448, %v3432
    %v5049 = vpack.c.b16 %v3449, %v3433
    %v5050 = vpack.c.b16 %v3450, %v3434
    %v5051 = vpack.c.b16 %v3451, %v3435
    %v5052 = vpack.c.b16 %v3452, %v3436
    %v5053 = vpack.c.b16 %v3453, %v3437
    %v5054 = vpack.c.b16 %v3454, %v3438
    %v5055 = vpack.c.b16 %v3455, %v3439
    %v5056 = vpack.c.b16 %v3456, %v3440
    %v5057 = vpack.c.b16 %v3457, %v3441
    %v5058 = vpack.c.b16 %v3458, %v3442
    %v5059 = vpack.c.b16 %v3459, %v3443
    %v5060 = vpack.c.b16 %v3460, %v3444
    %v5061 = vpack.c.b16 %v3461, %v3445
    %v5062 = vpack.c.b16 %v3462, %v3446
    %v5063 = vpack.c.b16 %v3463, %v3447
    %v5064 = vpack.c.b16 %v3480, %v3464
    %v5065 = vpack.c.b16 %v3481, %v3465
    %v5066 = vpack.c.b16 %v3482, %v3466
    %v5067 = vpack.c.b16 %v3483, %v3467
    %v5068 = vpack.c.b16 %v3484, %v3468
    %v5069 = vpack.c.b16 %v3485, %v3469
    %v5070 = vpack.c.b16 %v3486, %v3470
    %v5071 = vpack.c.b16 %v3487, %v3471
    %v5072 = vpack.c.b16 %v3488, %v3472
    %v5073 = vpack.c.b16 %v3489, %v3473
    %v5074 = vpack.c.b16 %v3490, %v3474
    %v5075 = vpack.c.b16 %v3491, %v3475
    %v5076 = vpack.c.b16 %v3492, %v3476
    %v5077 = vpack.c.b16 %v3493, %v3477
    %v5078 = vpack.c.b16 %v3494, %v3478
    %v5079 = vpack.c.b16 %v3495, %v3479
    %v5080 = vpack.c.b16 %v3512, %v3496
    %v5081 = vpack.c.b16 %v3513, %v3497
    %v5082 = vpack.c.b16 %v3514, %v3498
    %v5083 = vpack.c.b16 %v3515, %v3499
    %v5084 = vpack.c.b16 %v3516, %v3500
    %v5085 = vpack.c.b16 %v3517, %v3501
    %v5086 = vpack.c.b16 %v3518, %v3502
    %v5087 = vpack.c.b16 %v3519, %v3503
    %v5088 = vpack.c.b16 %v3520, %v3504
    %v5089 = vpack.c.b16 %v3521, %v3505
    %v5090 = vpack.c.b16 %v3522, %v3506
    %v5091 = vpack.c.b16 %v3523, %v3507
    %v5092 = vpack.c.b16 %v3524, %v3508
    %v5093 = vpack.c.b16 %v3525, %v3509
    %v5094 = vpack.c.b16 %v3526, %v3510
    %v5095 = vpack.c.b16 %v3527, %v3511
    %v5096 = vpack.c.b16 %v3544, %v3528
    %v5097 = vpack.c.b16 %v3545, %v3529
    %v5098 = vpack.c.b16 %v3546, %v3530
    %v5099 = vpack.c.b16 %v3547, %v3531
    %v5100 = vpack.c.b16 %v3548, %v3532
    %v5101 = vpack.c.b16 %v3549, %v3533
    %v5102 = vpack.c.b16 %v3550, %v3534
    %v5103 = vpack.c.b16 %v3551, %v3535
    %v5104 = vpack.c.b16 %v3552, %v3536
    %v5105 = vpack.c.b16 %v3553, %v3537
    %v5106 = vpack.c.b16 %v3554, %v3538
    %v5107 = vpack.c.b16 %v3555, %v3539
    %v5108 = vpack.c.b16 %v3556, %v3540
    %v5109 = vpack.c.b16 %v3557, %v3541
    %v5110 = vpack.c.b16 %v3558, %v3542
    %v5111 = vpack.c.b16 %v3559, %v3543
    %v5112 = vpack.c.b16 %v3576, %v3560
    %v5113 = vpack.c.b16 %v3577, %v3561
    %v5114 = vpack.c.b16 %v3578, %v3562
    %v5115 = vpack.c.b16 %v3579, %v3563
    %v5116 = vpack.c.b16 %v3580, %v3564
    %v5117 = vpack.c.b16 %v3581, %v3565
    %v5118 = vpack.c.b16 %v3582, %v3566
    %v5119 = vpack.c.b16 %v3583, %v3567
    %v5120 = vpack.c.b16 %v3584, %v3568
    %v5121 = vpack.c.b16 %v3585, %v3569
    %v5122 = vpack.c.b16 %v3586, %v3570
    %v5123 = vpack.c.b16 %v3587, %v3571
    %v5124 = vpack.c.b16 %v3588, %v3572
    %v5125 = vpack.c.b16 %v3589, %v3573
    %v5126 = vpack.c.b16 %v3590, %v3574
    %v5127 = vpack.c.b16 %v3591, %v3575
    %v5128 = vpack.c.b16 %v3608, %v3592
    %v5129 = vpack.c.b16 %v3609, %v3593
    %v5130 = vpack.c.b16 %v3610, %v3594
    %v5131 = vpack.c.b16 %v3611, %v3595
    %v5132 = vpack.c.b16 %v3612, %v3596
    %v5133 = vpack.c.b16 %v3613, %v3597
    %v5134 = vpack.c.b16 %v3614, %v3598
    %v5135 = vpack.c.b16 %v3615, %v3599
    %v5136 = vpack.c.b16 %v3616, %v3600
    %v5137 = vpack.c.b16 %v3617, %v3601
    %v5138 = vpack.c.b16 %v3618, %v3602
    %v5139 = vpack.c.b16 %v3619, %v3603
    %v5140 = vpack.c.b16 %v3620, %v3604
    %v5141 = vpack.c.b16 %v3621, %v3605
    %v5142 = vpack.c.b16 %v3622, %v3606
    %v5143 = vpack.c.b16 %v3623, %v3607
    %v5144 = vpack.c.b16 %v3640, %v3624
    %v5145 = vpack.c.b16 %v3641, %v3625
    %v5146 = vpack.c.b16 %v3642, %v3626
    %v5147 = vpack.c.b16 %v3643, %v3627
    %v5148 = vpack.c.b16 %v3644, %v3628
    %v5149 = vpack.c.b16 %v3645, %v3629
    %v5150 = vpack.c.b16 %v3646, %v3630
    %v5151 = vpack.c.b16 %v3647, %v3631
    %v5152 = vpack.c.b16 %v3648, %v3632
    %v5153 = vpack.c.b16 %v3649, %v3633
    %v5154 = vpack.c.b16 %v3650, %v3634
    %v5155 = vpack.c.b16 %v3651, %v3635
    %v5156 = vpack.c.b16 %v3652, %v3636
    %v5157 = vpack.c.b16 %v3653, %v3637
    %v5158 = vpack.c.b16 %v3654, %v3638
    %v5159 = vpack.c.b16 %v3655, %v3639
    %v5160 = vpack.c.b16 %v3672, %v3656
    %v5161 = vpack.c.b16 %v3673, %v3657
    %v5162 = vpack.c.b16 %v3674, %v3658
    %v5163 = vpack.c.b16 %v3675, %v3659
    %v5164 = vpack.c.b16 %v3676, %v3660
    %v5165 = vpack.c.b16 %v3677, %v3661
    %v5166 = vpack.c.b16 %v3678, %v3662
    %v5167 = vpack.c.b16 %v3679, %v3663
    %v5168 = vpack.c.b16 %v3680, %v3664
    %v5169 = vpack.c.b16 %v3681, %v3665
    %v5170 = vpack.c.b16 %v3682, %v3666
    %v5171 = vpack.c.b16 %v3683, %v3667
    %v5172 = vpack.c.b16 %v3684, %v3668
    %v5173 = vpack.c.b16 %v3685, %v3669
    %v5174 = vpack.c.b16 %v3686, %v3670
    %v5175 = vpack.c.b16 %v3687, %v3671
    %v5176 = vpack.c.b16 %v3704, %v3688
    %v5177 = vpack.c.b16 %v3705, %v3689
    %v5178 = vpack.c.b16 %v3706, %v3690
    %v5179 = vpack.c.b16 %v3707, %v3691
    %v5180 = vpack.c.b16 %v3708, %v3692
    %v5181 = vpack.c.b16 %v3709, %v3693
    %v5182 = vpack.c.b16 %v3710, %v3694
    %v5183 = vpack.c.b16 %v3711, %v3695
    %v5184 = vpack.c.b16 %v3712, %v3696
    %v5185 = vpack.c.b16 %v3713, %v3697
    %v5186 = vpack.c.b16 %v3714, %v3698
    %v5187 = vpack.c.b16 %v3715, %v3699
    %v5188 = vpack.c.b16 %v3716, %v3700
    %v5189 = vpack.c.b16 %v3717, %v3701
    %v5190 = vpack.c.b16 %v3718, %v3702
    %v5191 = vpack.c.b16 %v3719, %v3703
    %v5192 = vpack.c.b16 %v3736, %v3720
    %v5193 = vpack.c.b16 %v3737, %v3721
    %v5194 = vpack.c.b16 %v3738, %v3722
    %v5195 = vpack.c.b16 %v3739, %v3723
    %v5196 = vpack.c.b16 %v3740, %v3724
    %v5197 = vpack.c.b16 %v3741, %v3725
    %v5198 = vpack.c.b16 %v3742, %v3726
    %v5199 = vpack.c.b16 %v3743, %v3727
    %v5200 = vpack.c.b16 %v3744, %v3728
    %v5201 = vpack.c.b16 %v3745, %v3729
    %v5202 = vpack.c.b16 %v3746, %v3730
    %v5203 = vpack.c.b16 %v3747, %v3731
    %v5204 = vpack.c.b16 %v3748, %v3732
    %v5205 = vpack.c.b16 %v3749, %v3733
    %v5206 = vpack.c.b16 %v3750, %v3734
    %v5207 = vpack.c.b16 %v3751, %v3735
    %v5208 = vpack.c.b16 %v3768, %v3752
    %v5209 = vpack.c.b16 %v3769, %v3753
    %v5210 = vpack.c.b16 %v3770, %v3754
    %v5211 = vpack.c.b16 %v3771, %v3755
    %v5212 = vpack.c.b16 %v3772, %v3756
    %v5213 = vpack.c.b16 %v3773, %v3757
    %v5214 = vpack.c.b16 %v3774, %v3758
    %v5215 = vpack.c.b16 %v3775, %v3759
    %v5216 = vpack.c.b16 %v3776, %v3760
    %v5217 = vpack.c.b16 %v3777, %v3761
    %v5218 = vpack.c.b16 %v3778, %v3762
    %v5219 = vpack.c.b16 %v3779, %v3763
    %v5220 = vpack.c.b16 %v3780, %v3764
    %v5221 = vpack.c.b16 %v3781, %v3765
    %v5222 = vpack.c.b16 %v3782, %v3766
    %v5223 = vpack.c.b16 %v3783, %v3767
    %v5224 = vpack.c.b16 %v3800, %v3784
    %v5225 = vpack.c.b16 %v3801, %v3785
    %v5226 = vpack.c.b16 %v3802, %v3786
    %v5227 = vpack.c.b16 %v3803, %v3787
    %v5228 = vpack.c.b16 %v3804, %v3788
    %v5229 = vpack.c.b16 %v3805, %v3789
    %v5230 = vpack.c.b16 %v3806, %v3790
    %v5231 = vpack.c.b16 %v3807, %v3791
    %v5232 = vpack.c.b16 %v3808, %v3792
    %v5233 = vpack.c.b16 %v3809, %v3793
    %v5234 = vpack.c.b16 %v3810, %v3794
    %v5235 = vpack.c.b16 %v3811, %v3795
    %v5236 = vpack.c.b16 %v3812, %v3796
    %v5237 = vpack.c.b16 %v3813, %v3797
    %v5238 = vpack.c.b16 %v3814, %v3798
    %v5239 = vpack.c.b16 %v3815, %v3799
    %v5240 = vpack.c.b16 %v3832, %v3816
    %v5241 = vpack.c.b16 %v3833, %v3817
    %v5242 = vpack.c.b16 %v3834, %v3818
    %v5243 = vpack.c.b16 %v3835, %v3819
    %v5244 = vpack.c.b16 %v3836, %v3820
    %v5245 = vpack.c.b16 %v3837, %v3821
    %v5246 = vpack.c.b16 %v3838, %v3822
    %v5247 = vpack.c.b16 %v3839, %v3823
    %v5248 = vpack.c.b16 %v3840, %v3824
    %v5249 = vpack.c.b16 %v3841, %v3825
    %v5250 = vpack.c.b16 %v3842, %v3826
    %v5251 = vpack.c.b16 %v3843, %v3827
    %v5252 = vpack.c.b16 %v3844, %v3828
    %v5253 = vpack.c.b16 %v3845, %v3829
    %v5254 = vpack.c.b16 %v3846, %v3830
    %v5255 = vpack.c.b16 %v3847, %v3831
    %v5256 = vpack.c.b16 %v3864, %v3848
    %v5257 = vpack.c.b16 %v3865, %v3849
    %v5258 = vpack.c.b16 %v3866, %v3850
    %v5259 = vpack.c.b16 %v3867, %v3851
    %v5260 = vpack.c.b16 %v3868, %v3852
    %v5261 = vpack.c.b16 %v3869, %v3853
    %v5262 = vpack.c.b16 %v3870, %v3854
    %v5263 = vpack.c.b16 %v3871, %v3855
    %v5264 = vpack.c.b16 %v3872, %v3856
    %v5265 = vpack.c.b16 %v3873, %v3857
    %v5266 = vpack.c.b16 %v3874, %v3858
    %v5267 = vpack.c.b16 %v3875, %v3859
    %v5268 = vpack.c.b16 %v3876, %v3860
    %v5269 = vpack.c.b16 %v3877, %v3861
    %v5270 = vpack.c.b16 %v3878, %v3862
    %v5271 = vpack.c.b16 %v3879, %v3863
    %v5272 = vpack.c.b16 %v3896, %v3880
    %v5273 = vpack.c.b16 %v3897, %v3881
    %v5274 = vpack.c.b16 %v3898, %v3882
    %v5275 = vpack.c.b16 %v3899, %v3883
    %v5276 = vpack.c.b16 %v3900, %v3884
    %v5277 = vpack.c.b16 %v3901, %v3885
    %v5278 = vpack.c.b16 %v3902, %v3886
    %v5279 = vpack.c.b16 %v3903, %v3887
    %v5280 = vpack.c.b16 %v3904, %v3888
    %v5281 = vpack.c.b16 %v3905, %v3889
    %v5282 = vpack.c.b16 %v3906, %v3890
    %v5283 = vpack.c.b16 %v3907, %v3891
    %v5284 = vpack.c.b16 %v3908, %v3892
    %v5285 = vpack.c.b16 %v3909, %v3893
    %v5286 = vpack.c.b16 %v3910, %v3894
    %v5287 = vpack.c.b16 %v3911, %v3895
    %v5288 = vpack.c.b16 %v3928, %v3912
    %v5289 = vpack.c.b16 %v3929, %v3913
    %v5290 = vpack.c.b16 %v3930, %v3914
    %v5291 = vpack.c.b16 %v3931, %v3915
    %v5292 = vpack.c.b16 %v3932, %v3916
    %v5293 = vpack.c.b16 %v3933, %v3917
    %v5294 = vpack.c.b16 %v3934, %v3918
    %v5295 = vpack.c.b16 %v3935, %v3919
    %v5296 = vpack.c.b16 %v3936, %v3920
    %v5297 = vpack.c.b16 %v3937, %v3921
    %v5298 = vpack.c.b16 %v3938, %v3922
    %v5299 = vpack.c.b16 %v3939, %v3923
    %v5300 = vpack.c.b16 %v3940, %v3924
    %v5301 = vpack.c.b16 %v3941, %v3925
    %v5302 = vpack.c.b16 %v3942, %v3926
    %v5303 = vpack.c.b16 %v3943, %v3927
    %v5304 = vpack.c.b16 %v3960, %v3944
    %v5305 = vpack.c.b16 %v3961, %v3945
    %v5306 = vpack.c.b16 %v3962, %v3946
    %v5307 = vpack.c.b16 %v3963, %v3947
    %v5308 = vpack.c.b16 %v3964, %v3948
    %v5309 = vpack.c.b16 %v3965, %v3949
    %v5310 = vpack.c.b16 %v3966, %v3950
    %v5311 = vpack.c.b16 %v3967, %v3951
    %v5312 = vpack.c.b16 %v3968, %v3952
    %v5313 = vpack.c.b16 %v3969, %v3953
    %v5314 = vpack.c.b16 %v3970, %v3954
    %v5315 = vpack.c.b16 %v3971, %v3955
    %v5316 = vpack.c.b16 %v3972, %v3956
    %v5317 = vpack.c.b16 %v3973, %v3957
    %v5318 = vpack.c.b16 %v3974, %v3958
    %v5319 = vpack.c.b16 %v3975, %v3959
    %v5320 = vpack.c.b16 %v3992, %v3976
    %v5321 = vpack.c.b16 %v3993, %v3977
    %v5322 = vpack.c.b16 %v3994, %v3978
    %v5323 = vpack.c.b16 %v3995, %v3979
    %v5324 = vpack.c.b16 %v3996, %v3980
    %v5325 = vpack.c.b16 %v3997, %v3981
    %v5326 = vpack.c.b16 %v3998, %v3982
    %v5327 = vpack.c.b16 %v3999, %v3983
    %v5328 = vpack.c.b16 %v4000, %v3984
    %v5329 = vpack.c.b16 %v4001, %v3985
    %v5330 = vpack.c.b16 %v4002, %v3986
    %v5331 = vpack.c.b16 %v4003, %v3987
    %v5332 = vpack.c.b16 %v4004, %v3988
    %v5333 = vpack.c.b16 %v4005, %v3989
    %v5334 = vpack.c.b16 %v4006, %v3990
    %v5335 = vpack.c.b16 %v4007, %v3991
    %v5336 = vpack.c.b16 %v4024, %v4008
    %v5337 = vpack.c.b16 %v4025, %v4009
    %v5338 = vpack.c.b16 %v4026, %v4010
    %v5339 = vpack.c.b16 %v4027, %v4011
    %v5340 = vpack.c.b16 %v4028, %v4012
    %v5341 = vpack.c.b16 %v4029, %v4013
    %v5342 = vpack.c.b16 %v4030, %v4014
    %v5343 = vpack.c.b16 %v4031, %v4015
    %v5344 = vpack.c.b16 %v4032, %v4016
    %v5345 = vpack.c.b16 %v4033, %v4017
    %v5346 = vpack.c.b16 %v4034, %v4018
    %v5347 = vpack.c.b16 %v4035, %v4019
    %v5348 = vpack.c.b16 %v4036, %v4020
    %v5349 = vpack.c.b16 %v4037, %v4021
    %v5350 = vpack.c.b16 %v4038, %v4022
    %v5351 = vpack.c.b16 %v4039, %v4023
    %v5352 = vpack.c.b16 %v4056, %v4040
    %v5353 = vpack.c.b16 %v4057, %v4041
    %v5354 = vpack.c.b16 %v4058, %v4042
    %v5355 = vpack.c.b16 %v4059, %v4043
    %v5356 = vpack.c.b16 %v4060, %v4044
    %v5357 = vpack.c.b16 %v4061, %v4045
    %v5358 = vpack.c.b16 %v4062, %v4046
    %v5359 = vpack.c.b16 %v4063, %v4047
    %v5360 = vpack.c.b16 %v4064, %v4048
    %v5361 = vpack.c.b16 %v4065, %v4049
    %v5362 = vpack.c.b16 %v4066, %v4050
    %v5363 = vpack.c.b16 %v4067, %v4051
    %v5364 = vpack.c.b16 %v4068, %v4052
    %v5365 = vpack.c.b16 %v4069, %v4053
    %v5366 = vpack.c.b16 %v4070, %v4054
    %v5367 = vpack.c.b16 %v4071, %v4055
    %v5368 = vpack.c.b16 %v4088, %v4072
    %v5369 = vpack.c.b16 %v4089, %v4073
    %v5370 = vpack.c.b16 %v4090, %v4074
    %v5371 = vpack.c.b16 %v4091, %v4075
    %v5372 = vpack.c.b16 %v4092, %v4076
    %v5373 = vpack.c.b16 %v4093, %v4077
    %v5374 = vpack.c.b16 %v4094, %v4078
    %v5375 = vpack.c.b16 %v4095, %v4079
    %v5376 = vpack.c.b16 %v4096, %v4080
    %v5377 = vpack.c.b16 %v4097, %v4081
    %v5378 = vpack.c.b16 %v4098, %v4082
    %v5379 = vpack.c.b16 %v4099, %v4083
    %v5380 = vpack.c.b16 %v4100, %v4084
    %v5381 = vpack.c.b16 %v4101, %v4085
    %v5382 = vpack.c.b16 %v4102, %v4086
    %v5383 = vpack.c.b16 %v4103, %v4087
    %v5384 = vpack.c.b16 %v4120, %v4104
    %v5385 = vpack.c.b16 %v4121, %v4105
    %v5386 = vpack.c.b16 %v4122, %v4106
    %v5387 = vpack.c.b16 %v4123, %v4107
    %v5388 = vpack.c.b16 %v4124, %v4108
    %v5389 = vpack.c.b16 %v4125, %v4109
    %v5390 = vpack.c.b16 %v4126, %v4110
    %v5391 = vpack.c.b16 %v4127, %v4111
    %v5392 = vpack.c.b16 %v4128, %v4112
    %v5393 = vpack.c.b16 %v4129, %v4113
    %v5394 = vpack.c.b16 %v4130, %v4114
    %v5395 = vpack.c.b16 %v4131, %v4115
    %v5396 = vpack.c.b16 %v4132, %v4116
    %v5397 = vpack.c.b16 %v4133, %v4117
    %v5398 = vpack.c.b16 %v4134, %v4118
    %v5399 = vpack.c.b16 %v4135, %v4119
    %v5400 = vpack.c.b16 %v4152, %v4136
    %v5401 = vpack.c.b16 %v4153, %v4137
    %v5402 = vpack.c.b16 %v4154, %v4138
    %v5403 = vpack.c.b16 %v4155, %v4139
    %v5404 = vpack.c.b16 %v4156, %v4140
    %v5405 = vpack.c.b16 %v4157, %v4141
    %v5406 = vpack.c.b16 %v4158, %v4142
    %v5407 = vpack.c.b16 %v4159, %v4143
    %v5408 = vpack.c.b16 %v4160, %v4144
    %v5409 = vpack.c.b16 %v4161, %v4145
    %v5410 = vpack.c.b16 %v4162, %v4146
    %v5411 = vpack.c.b16 %v4163, %v4147
    %v5412 = vpack.c.b16 %v4164, %v4148
    %v5413 = vpack.c.b16 %v4165, %v4149
    %v5414 = vpack.c.b16 %v4166, %v4150
    %v5415 = vpack.c.b16 %v4167, %v4151
    %v5416 = vpack.c.b16 %v4184, %v4168
    %v5417 = vpack.c.b16 %v4185, %v4169
    %v5418 = vpack.c.b16 %v4186, %v4170
    %v5419 = vpack.c.b16 %v4187, %v4171
    %v5420 = vpack.c.b16 %v4188, %v4172
    %v5421 = vpack.c.b16 %v4189, %v4173
    %v5422 = vpack.c.b16 %v4190, %v4174
    %v5423 = vpack.c.b16 %v4191, %v4175
    %v5424 = vpack.c.b16 %v4192, %v4176
    %v5425 = vpack.c.b16 %v4193, %v4177
    %v5426 = vpack.c.b16 %v4194, %v4178
    %v5427 = vpack.c.b16 %v4195, %v4179
    %v5428 = vpack.c.b16 %v4196, %v4180
    %v5429 = vpack.c.b16 %v4197, %v4181
    %v5430 = vpack.c.b16 %v4198, %v4182
    %v5431 = vpack.c.b16 %v4199, %v4183
    %v5432 = vpack.c.b16 %v4216, %v4200
    %v5433 = vpack.c.b16 %v4217, %v4201
    %v5434 = vpack.c.b16 %v4218, %v4202
    %v5435 = vpack.c.b16 %v4219, %v4203
    %v5436 = vpack.c.b16 %v4220, %v4204
    %v5437 = vpack.c.b16 %v4221, %v4205
    %v5438 = vpack.c.b16 %v4222, %v4206
    %v5439 = vpack.c.b16 %v4223, %v4207
    %v5440 = vpack.c.b16 %v4224, %v4208
    %v5441 = vpack.c.b16 %v4225, %v4209
    %v5442 = vpack.c.b16 %v4226, %v4210
    %v5443 = vpack.c.b16 %v4227, %v4211
    %v5444 = vpack.c.b16 %v4228, %v4212
    %v5445 = vpack.c.b16 %v4229, %v4213
    %v5446 = vpack.c.b16 %v4230, %v4214
    %v5447 = vpack.c.b16 %v4231, %v4215
    %v5448 = vpack.c.b16 %v4248, %v4232
    %v5449 = vpack.c.b16 %v4249, %v4233
    %v5450 = vpack.c.b16 %v4250, %v4234
    %v5451 = vpack.c.b16 %v4251, %v4235
    %v5452 = vpack.c.b16 %v4252, %v4236
    %v5453 = vpack.c.b16 %v4253, %v4237
    %v5454 = vpack.c.b16 %v4254, %v4238
    %v5455 = vpack.c.b16 %v4255, %v4239
    %v5456 = vpack.c.b16 %v4256, %v4240
    %v5457 = vpack.c.b16 %v4257, %v4241
    %v5458 = vpack.c.b16 %v4258, %v4242
    %v5459 = vpack.c.b16 %v4259, %v4243
    %v5460 = vpack.c.b16 %v4260, %v4244
    %v5461 = vpack.c.b16 %v4261, %v4245
    %v5462 = vpack.c.b16 %v4262, %v4246
    %v5463 = vpack.c.b16 %v4263, %v4247
    %v5464 = vpack.c.b16 %v4280, %v4264
    %v5465 = vpack.c.b16 %v4281, %v4265
    %v5466 = vpack.c.b16 %v4282, %v4266
    %v5467 = vpack.c.b16 %v4283, %v4267
    %v5468 = vpack.c.b16 %v4284, %v4268
    %v5469 = vpack.c.b16 %v4285, %v4269
    %v5470 = vpack.c.b16 %v4286, %v4270
    %v5471 = vpack.c.b16 %v4287, %v4271
    %v5472 = vpack.c.b16 %v4288, %v4272
    %v5473 = vpack.c.b16 %v4289, %v4273
    %v5474 = vpack.c.b16 %v4290, %v4274
    %v5475 = vpack.c.b16 %v4291, %v4275
    %v5476 = vpack.c.b16 %v4292, %v4276
    %v5477 = vpack.c.b16 %v4293, %v4277
    %v5478 = vpack.c.b16 %v4294, %v4278
    %v5479 = vpack.c.b16 %v4295, %v4279
    %v5480 = vpack.c.b16 %v4312, %v4296
    %v5481 = vpack.c.b16 %v4313, %v4297
    %v5482 = vpack.c.b16 %v4314, %v4298
    %v5483 = vpack.c.b16 %v4315, %v4299
    %v5484 = vpack.c.b16 %v4316, %v4300
    %v5485 = vpack.c.b16 %v4317, %v4301
    %v5486 = vpack.c.b16 %v4318, %v4302
    %v5487 = vpack.c.b16 %v4319, %v4303
    %v5488 = vpack.c.b16 %v4320, %v4304
    %v5489 = vpack.c.b16 %v4321, %v4305
    %v5490 = vpack.c.b16 %v4322, %v4306
    %v5491 = vpack.c.b16 %v4323, %v4307
    %v5492 = vpack.c.b16 %v4324, %v4308
    %v5493 = vpack.c.b16 %v4325, %v4309
    %v5494 = vpack.c.b16 %v4326, %v4310
    %v5495 = vpack.c.b16 %v4327, %v4311
    %v5496 = vpack.c.b16 %v4344, %v4328
    %v5497 = vpack.c.b16 %v4345, %v4329
    %v5498 = vpack.c.b16 %v4346, %v4330
    %v5499 = vpack.c.b16 %v4347, %v4331
    %v5500 = vpack.c.b16 %v4348, %v4332
    %v5501 = vpack.c.b16 %v4349, %v4333
    %v5502 = vpack.c.b16 %v4350, %v4334
    %v5503 = vpack.c.b16 %v4351, %v4335
    %v5504 = vpack.c.b16 %v4352, %v4336
    %v5505 = vpack.c.b16 %v4353, %v4337
    %v5506 = vpack.c.b16 %v4354, %v4338
    %v5507 = vpack.c.b16 %v4355, %v4339
    %v5508 = vpack.c.b16 %v4356, %v4340
    %v5509 = vpack.c.b16 %v4357, %v4341
    %v5510 = vpack.c.b16 %v4358, %v4342
    %v5511 = vpack.c.b16 %v4359, %v4343
    %v5512 = vpack.c.b16 %v4376, %v4360
    %v5513 = vpack.c.b16 %v4377, %v4361
    %v5514 = vpack.c.b16 %v4378, %v4362
    %v5515 = vpack.c.b16 %v4379, %v4363
    %v5516 = vpack.c.b16 %v4380, %v4364
    %v5517 = vpack.c.b16 %v4381, %v4365
    %v5518 = vpack.c.b16 %v4382, %v4366
    %v5519 = vpack.c.b16 %v4383, %v4367
    %v5520 = vpack.c.b16 %v4384, %v4368
    %v5521 = vpack.c.b16 %v4385, %v4369
    %v5522 = vpack.c.b16 %v4386, %v4370
    %v5523 = vpack.c.b16 %v4387, %v4371
    %v5524 = vpack.c.b16 %v4388, %v4372
    %v5525 = vpack.c.b16 %v4389, %v4373
    %v5526 = vpack.c.b16 %v4390, %v4374
    %v5527 = vpack.c.b16 %v4391, %v4375
    %v5528 = vpack.c.b16 %v4408, %v4392
    %v5529 = vpack.c.b16 %v4409, %v4393
    %v5530 = vpack.c.b16 %v4410, %v4394
    %v5531 = vpack.c.b16 %v4411, %v4395
    %v5532 = vpack.c.b16 %v4412, %v4396
    %v5533 = vpack.c.b16 %v4413, %v4397
    %v5534 = vpack.c.b16 %v4414, %v4398
    %v5535 = vpack.c.b16 %v4415, %v4399
    %v5536 = vpack.c.b16 %v4416, %v4400
    %v5537 = vpack.c.b16 %v4417, %v4401
    %v5538 = vpack.c.b16 %v4418, %v4402
    %v5539 = vpack.c.b16 %v4419, %v4403
    %v5540 = vpack.c.b16 %v4420, %v4404
    %v5541 = vpack.c.b16 %v4421, %v4405
    %v5542 = vpack.c.b16 %v4422, %v4406
    %v5543 = vpack.c.b16 %v4423, %v4407
    %v5544 = vpack.c.b16 %v4440, %v4424
    %v5545 = vpack.c.b16 %v4441, %v4425
    %v5546 = vpack.c.b16 %v4442, %v4426
    %v5547 = vpack.c.b16 %v4443, %v4427
    %v5548 = vpack.c.b16 %v4444, %v4428
    %v5549 = vpack.c.b16 %v4445, %v4429
    %v5550 = vpack.c.b16 %v4446, %v4430
    %v5551 = vpack.c.b16 %v4447, %v4431
    %v5552 = vpack.c.b16 %v4448, %v4432
    %v5553 = vpack.c.b16 %v4449, %v4433
    %v5554 = vpack.c.b16 %v4450, %v4434
    %v5555 = vpack.c.b16 %v4451, %v4435
    %v5556 = vpack.c.b16 %v4452, %v4436
    %v5557 = vpack.c.b16 %v4453, %v4437
    %v5558 = vpack.c.b16 %v4454, %v4438
    %v5559 = vpack.c.b16 %v4455, %v4439
    %v5560 = vpack.c.b16 %v4472, %v4456
    %v5561 = vpack.c.b16 %v4473, %v4457
    %v5562 = vpack.c.b16 %v4474, %v4458
    %v5563 = vpack.c.b16 %v4475, %v4459
    %v5564 = vpack.c.b16 %v4476, %v4460
    %v5565 = vpack.c.b16 %v4477, %v4461
    %v5566 = vpack.c.b16 %v4478, %v4462
    %v5567 = vpack.c.b16 %v4479, %v4463
    %v5568 = vpack.c.b16 %v4480, %v4464
    %v5569 = vpack.c.b16 %v4481, %v4465
    %v5570 = vpack.c.b16 %v4482, %v4466
    %v5571 = vpack.c.b16 %v4483, %v4467
    %v5572 = vpack.c.b16 %v4484, %v4468
    %v5573 = vpack.c.b16 %v4485, %v4469
    %v5574 = vpack.c.b16 %v4486, %v4470
    %v5575 = vpack.c.b16 %v4487, %v4471
    %v5576 = vpack.c.b16 %v4504, %v4488
    %v5577 = vpack.c.b16 %v4505, %v4489
    %v5578 = vpack.c.b16 %v4506, %v4490
    %v5579 = vpack.c.b16 %v4507, %v4491
    %v5580 = vpack.c.b16 %v4508, %v4492
    %v5581 = vpack.c.b16 %v4509, %v4493
    %v5582 = vpack.c.b16 %v4510, %v4494
    %v5583 = vpack.c.b16 %v4511, %v4495
    %v5584 = vpack.c.b16 %v4512, %v4496
    %v5585 = vpack.c.b16 %v4513, %v4497
    %v5586 = vpack.c.b16 %v4514, %v4498
    %v5587 = vpack.c.b16 %v4515, %v4499
    %v5588 = vpack.c.b16 %v4516, %v4500
    %v5589 = vpack.c.b16 %v4517, %v4501
    %v5590 = vpack.c.b16 %v4518, %v4502
    %v5591 = vpack.c.b16 %v4519, %v4503
    %v5592 = vpack.c.b16 %v4536, %v4520
    %v5593 = vpack.c.b16 %v4537, %v4521
    %v5594 = vpack.c.b16 %v4538, %v4522
    %v5595 = vpack.c.b16 %v4539, %v4523
    %v5596 = vpack.c.b16 %v4540, %v4524
    %v5597 = vpack.c.b16 %v4541, %v4525
    %v5598 = vpack.c.b16 %v4542, %v4526
    %v5599 = vpack.c.b16 %v4543, %v4527
    %v5600 = vpack.c.b16 %v4544, %v4528
    %v5601 = vpack.c.b16 %v4545, %v4529
    %v5602 = vpack.c.b16 %v4546, %v4530
    %v5603 = vpack.c.b16 %v4547, %v4531
    %v5604 = vpack.c.b16 %v4548, %v4532
    %v5605 = vpack.c.b16 %v4549, %v4533
    %v5606 = vpack.c.b16 %v4550, %v4534
    %v5607 = vpack.c.b16 %v4551, %v4535
    %v5608 = vpack.c.b16 %v4568, %v4552
    %v5609 = vpack.c.b16 %v4569, %v4553
    %v5610 = vpack.c.b16 %v4570, %v4554
    %v5611 = vpack.c.b16 %v4571, %v4555
    %v5612 = vpack.c.b16 %v4572, %v4556
    %v5613 = vpack.c.b16 %v4573, %v4557
    %v5614 = vpack.c.b16 %v4574, %v4558
    %v5615 = vpack.c.b16 %v4575, %v4559
    %v5616 = vpack.c.b16 %v4576, %v4560
    %v5617 = vpack.c.b16 %v4577, %v4561
    %v5618 = vpack.c.b16 %v4578, %v4562
    %v5619 = vpack.c.b16 %v4579, %v4563
    %v5620 = vpack.c.b16 %v4580, %v4564
    %v5621 = vpack.c.b16 %v4581, %v4565
    %v5622 = vpack.c.b16 %v4582, %v4566
    %v5623 = vpack.c.b16 %v4583, %v4567
    %v5624 = vpack.c.b16 %v4600, %v4584
    %v5625 = vpack.c.b16 %v4601, %v4585
    %v5626 = vpack.c.b16 %v4602, %v4586
    %v5627 = vpack.c.b16 %v4603, %v4587
    %v5628 = vpack.c.b16 %v4604, %v4588
    %v5629 = vpack.c.b16 %v4605, %v4589
    %v5630 = vpack.c.b16 %v4606, %v4590
    %v5631 = vpack.c.b16 %v4607, %v4591
    %v5632 = vpack.c.b16 %v4608, %v4592
    %v5633 = vpack.c.b16 %v4609, %v4593
    %v5634 = vpack.c.b16 %v4610, %v4594
    %v5635 = vpack.c.b16 %v4611, %v4595
    %v5636 = vpack.c.b16 %v4612, %v4596
    %v5637 = vpack.c.b16 %v4613, %v4597
    %v5638 = vpack.c.b16 %v4614, %v4598
    %v5639 = vpack.c.b16 %v4615, %v4599
    %6664 = vmatpush.bf16.msra.mxu0 %v4728
    %6665 = vmatpush.bf16.msra.mxu0 %v4712
    %6666 = vmatpush.bf16.msra.mxu0 %v4696
    %6667 = vmatpush.bf16.msra.mxu0 %v4680
    %6668 = vmatpush.bf16.msra.mxu0 %v4664
    %6669 = vmatpush.bf16.msra.mxu0 %v4648
    %6670 = vmatpush.bf16.msra.mxu0 %v4632
    %6671 = vmatpush.bf16.msra.mxu0 %v4616
    %6672 = vmatmul.bf16.gmra.mxu0 %v476
    %v6673 = vpop.f32.mrf.mxu0
    %v6674 = vadd.f32 %v1512, %v6673
    %v6675 = vpop.f32.mrf.mxu0
    %v6676 = vadd.f32 %v1512, %v6675
    %6677 = vdwg.mxu0
    %6678 = vmatpush.bf16.msra.mxu0 %v4856
    %6679 = vmatpush.bf16.msra.mxu0 %v4840
    %6680 = vmatpush.bf16.msra.mxu0 %v4824
    %6681 = vmatpush.bf16.msra.mxu0 %v4808
    %6682 = vmatpush.bf16.msra.mxu0 %v4792
    %6683 = vmatpush.bf16.msra.mxu0 %v4776
    %6684 = vmatpush.bf16.msra.mxu0 %v4760
    %6685 = vmatpush.bf16.msra.mxu0 %v4744
    %6686 = vmatmul.bf16.gmra.mxu0 %v477
    %v6687 = vpop.f32.mrf.mxu0
    %v6688 = vadd.f32 %v6674, %v6687
    %v6689 = vpop.f32.mrf.mxu0
    %v6690 = vadd.f32 %v6676, %v6689
    %6691 = vdwg.mxu0
    %6692 = vmatpush.bf16.msra.mxu0 %v4984
    %6693 = vmatpush.bf16.msra.mxu0 %v4968
    %6694 = vmatpush.bf16.msra.mxu0 %v4952
    %6695 = vmatpush.bf16.msra.mxu0 %v4936
    %6696 = vmatpush.bf16.msra.mxu0 %v4920
    %6697 = vmatpush.bf16.msra.mxu0 %v4904
    %6698 = vmatpush.bf16.msra.mxu0 %v4888
    %6699 = vmatpush.bf16.msra.mxu0 %v4872
    %6700 = vmatmul.bf16.gmra.mxu0 %v478
    %v6701 = vpop.f32.mrf.mxu0
    %v6702 = vadd.f32 %v6688, %v6701
    %v6703 = vpop.f32.mrf.mxu0
    %v6704 = vadd.f32 %v6690, %v6703
    %6705 = vdwg.mxu0
    %6706 = vmatpush.bf16.msra.mxu0 %v5112
    %6707 = vmatpush.bf16.msra.mxu0 %v5096
    %6708 = vmatpush.bf16.msra.mxu0 %v5080
    %6709 = vmatpush.bf16.msra.mxu0 %v5064
    %6710 = vmatpush.bf16.msra.mxu0 %v5048
    %6711 = vmatpush.bf16.msra.mxu0 %v5032
    %6712 = vmatpush.bf16.msra.mxu0 %v5016
    %6713 = vmatpush.bf16.msra.mxu0 %v5000
    %6714 = vmatmul.bf16.gmra.mxu0 %v479
    %v6715 = vpop.f32.mrf.mxu0
    %v6716 = vadd.f32 %v6702, %v6715
    %v6717 = vpop.f32.mrf.mxu0
    %v6718 = vadd.f32 %v6704, %v6717
    %6719 = vdwg.mxu0
    %6720 = vmatpush.bf16.msra.mxu0 %v5240
    %6721 = vmatpush.bf16.msra.mxu0 %v5224
    %6722 = vmatpush.bf16.msra.mxu0 %v5208
    %6723 = vmatpush.bf16.msra.mxu0 %v5192
    %6724 = vmatpush.bf16.msra.mxu0 %v5176
    %6725 = vmatpush.bf16.msra.mxu0 %v5160
    %6726 = vmatpush.bf16.msra.mxu0 %v5144
    %6727 = vmatpush.bf16.msra.mxu0 %v5128
    %6728 = vmatmul.bf16.gmra.mxu0 %v480
    %v6729 = vpop.f32.mrf.mxu0
    %v6730 = vadd.f32 %v6716, %v6729
    %v6731 = vpop.f32.mrf.mxu0
    %v6732 = vadd.f32 %v6718, %v6731
    %6733 = vdwg.mxu0
    %6734 = vmatpush.bf16.msra.mxu0 %v5368
    %6735 = vmatpush.bf16.msra.mxu0 %v5352
    %6736 = vmatpush.bf16.msra.mxu0 %v5336
    %6737 = vmatpush.bf16.msra.mxu0 %v5320
    %6738 = vmatpush.bf16.msra.mxu0 %v5304
    %6739 = vmatpush.bf16.msra.mxu0 %v5288
    %6740 = vmatpush.bf16.msra.mxu0 %v5272
    %6741 = vmatpush.bf16.msra.mxu0 %v5256
    %6742 = vmatmul.bf16.gmra.mxu0 %v481
    %v6743 = vpop.f32.mrf.mxu0
    %v6744 = vadd.f32 %v6730, %v6743
    %v6745 = vpop.f32.mrf.mxu0
    %v6746 = vadd.f32 %v6732, %v6745
    %6747 = vdwg.mxu0
    %6748 = vmatpush.bf16.msra.mxu0 %v5496
    %6749 = vmatpush.bf16.msra.mxu0 %v5480
    %6750 = vmatpush.bf16.msra.mxu0 %v5464
    %6751 = vmatpush.bf16.msra.mxu0 %v5448
    %6752 = vmatpush.bf16.msra.mxu0 %v5432
    %6753 = vmatpush.bf16.msra.mxu0 %v5416
    %6754 = vmatpush.bf16.msra.mxu0 %v5400
    %6755 = vmatpush.bf16.msra.mxu0 %v5384
    %6756 = vmatmul.bf16.gmra.mxu0 %v482
    %v6757 = vpop.f32.mrf.mxu0
    %v6758 = vadd.f32 %v6744, %v6757
    %v6759 = vpop.f32.mrf.mxu0
    %v6760 = vadd.f32 %v6746, %v6759
    %6761 = vdwg.mxu0
    %6762 = vmatpush.bf16.msra.mxu0 %v5624
    %6763 = vmatpush.bf16.msra.mxu0 %v5608
    %6764 = vmatpush.bf16.msra.mxu0 %v5592
    %6765 = vmatpush.bf16.msra.mxu0 %v5576
    %6766 = vmatpush.bf16.msra.mxu0 %v5560
    %6767 = vmatpush.bf16.msra.mxu0 %v5544
    %6768 = vmatpush.bf16.msra.mxu0 %v5528
    %6769 = vmatpush.bf16.msra.mxu0 %v5512
    %6770 = vmatmul.bf16.gmra.mxu0 %v483
    %v6771 = vpop.f32.mrf.mxu0
    %v6772 = vadd.f32 %v6758, %v6771
    %v6773 = vpop.f32.mrf.mxu0
    %v6774 = vadd.f32 %v6760, %v6773
    %6775 = vdwg.mxu0
    %6776 = vmatpush.bf16.msra.mxu0 %v4729
    %6777 = vmatpush.bf16.msra.mxu0 %v4713
    %6778 = vmatpush.bf16.msra.mxu0 %v4697
    %6779 = vmatpush.bf16.msra.mxu0 %v4681
    %6780 = vmatpush.bf16.msra.mxu0 %v4665
    %6781 = vmatpush.bf16.msra.mxu0 %v4649
    %6782 = vmatpush.bf16.msra.mxu0 %v4633
    %6783 = vmatpush.bf16.msra.mxu0 %v4617
    %6784 = vmatmul.bf16.gmra.mxu0 %v476
    %v6785 = vpop.f32.mrf.mxu0
    %v6786 = vadd.f32 %v1513, %v6785
    %v6787 = vpop.f32.mrf.mxu0
    %v6788 = vadd.f32 %v1513, %v6787
    %6789 = vdwg.mxu0
    %6790 = vmatpush.bf16.msra.mxu0 %v4857
    %6791 = vmatpush.bf16.msra.mxu0 %v4841
    %6792 = vmatpush.bf16.msra.mxu0 %v4825
    %6793 = vmatpush.bf16.msra.mxu0 %v4809
    %6794 = vmatpush.bf16.msra.mxu0 %v4793
    %6795 = vmatpush.bf16.msra.mxu0 %v4777
    %6796 = vmatpush.bf16.msra.mxu0 %v4761
    %6797 = vmatpush.bf16.msra.mxu0 %v4745
    %6798 = vmatmul.bf16.gmra.mxu0 %v477
    %v6799 = vpop.f32.mrf.mxu0
    %v6800 = vadd.f32 %v6786, %v6799
    %v6801 = vpop.f32.mrf.mxu0
    %v6802 = vadd.f32 %v6788, %v6801
    %6803 = vdwg.mxu0
    %6804 = vmatpush.bf16.msra.mxu0 %v4985
    %6805 = vmatpush.bf16.msra.mxu0 %v4969
    %6806 = vmatpush.bf16.msra.mxu0 %v4953
    %6807 = vmatpush.bf16.msra.mxu0 %v4937
    %6808 = vmatpush.bf16.msra.mxu0 %v4921
    %6809 = vmatpush.bf16.msra.mxu0 %v4905
    %6810 = vmatpush.bf16.msra.mxu0 %v4889
    %6811 = vmatpush.bf16.msra.mxu0 %v4873
    %6812 = vmatmul.bf16.gmra.mxu0 %v478
    %v6813 = vpop.f32.mrf.mxu0
    %v6814 = vadd.f32 %v6800, %v6813
    %v6815 = vpop.f32.mrf.mxu0
    %v6816 = vadd.f32 %v6802, %v6815
    %6817 = vdwg.mxu0
    %6818 = vmatpush.bf16.msra.mxu0 %v5113
    %6819 = vmatpush.bf16.msra.mxu0 %v5097
    %6820 = vmatpush.bf16.msra.mxu0 %v5081
    %6821 = vmatpush.bf16.msra.mxu0 %v5065
    %6822 = vmatpush.bf16.msra.mxu0 %v5049
    %6823 = vmatpush.bf16.msra.mxu0 %v5033
    %6824 = vmatpush.bf16.msra.mxu0 %v5017
    %6825 = vmatpush.bf16.msra.mxu0 %v5001
    %6826 = vmatmul.bf16.gmra.mxu0 %v479
    %v6827 = vpop.f32.mrf.mxu0
    %v6828 = vadd.f32 %v6814, %v6827
    %v6829 = vpop.f32.mrf.mxu0
    %v6830 = vadd.f32 %v6816, %v6829
    %6831 = vdwg.mxu0
    %6832 = vmatpush.bf16.msra.mxu0 %v5241
    %6833 = vmatpush.bf16.msra.mxu0 %v5225
    %6834 = vmatpush.bf16.msra.mxu0 %v5209
    %6835 = vmatpush.bf16.msra.mxu0 %v5193
    %6836 = vmatpush.bf16.msra.mxu0 %v5177
    %6837 = vmatpush.bf16.msra.mxu0 %v5161
    %6838 = vmatpush.bf16.msra.mxu0 %v5145
    %6839 = vmatpush.bf16.msra.mxu0 %v5129
    %6840 = vmatmul.bf16.gmra.mxu0 %v480
    %v6841 = vpop.f32.mrf.mxu0
    %v6842 = vadd.f32 %v6828, %v6841
    %v6843 = vpop.f32.mrf.mxu0
    %v6844 = vadd.f32 %v6830, %v6843
    %6845 = vdwg.mxu0
    %6846 = vmatpush.bf16.msra.mxu0 %v5369
    %6847 = vmatpush.bf16.msra.mxu0 %v5353
    %6848 = vmatpush.bf16.msra.mxu0 %v5337
    %6849 = vmatpush.bf16.msra.mxu0 %v5321
    %6850 = vmatpush.bf16.msra.mxu0 %v5305
    %6851 = vmatpush.bf16.msra.mxu0 %v5289
    %6852 = vmatpush.bf16.msra.mxu0 %v5273
    %6853 = vmatpush.bf16.msra.mxu0 %v5257
    %6854 = vmatmul.bf16.gmra.mxu0 %v481
    %v6855 = vpop.f32.mrf.mxu0
    %v6856 = vadd.f32 %v6842, %v6855
    %v6857 = vpop.f32.mrf.mxu0
    %v6858 = vadd.f32 %v6844, %v6857
    %6859 = vdwg.mxu0
    %6860 = vmatpush.bf16.msra.mxu0 %v5497
    %6861 = vmatpush.bf16.msra.mxu0 %v5481
    %6862 = vmatpush.bf16.msra.mxu0 %v5465
    %6863 = vmatpush.bf16.msra.mxu0 %v5449
    %6864 = vmatpush.bf16.msra.mxu0 %v5433
    %6865 = vmatpush.bf16.msra.mxu0 %v5417
    %6866 = vmatpush.bf16.msra.mxu0 %v5401
    %6867 = vmatpush.bf16.msra.mxu0 %v5385
    %6868 = vmatmul.bf16.gmra.mxu0 %v482
    %v6869 = vpop.f32.mrf.mxu0
    %v6870 = vadd.f32 %v6856, %v6869
    %v6871 = vpop.f32.mrf.mxu0
    %v6872 = vadd.f32 %v6858, %v6871
    %6873 = vdwg.mxu0
    %6874 = vmatpush.bf16.msra.mxu0 %v5625
    %6875 = vmatpush.bf16.msra.mxu0 %v5609
    %6876 = vmatpush.bf16.msra.mxu0 %v5593
    %6877 = vmatpush.bf16.msra.mxu0 %v5577
    %6878 = vmatpush.bf16.msra.mxu0 %v5561
    %6879 = vmatpush.bf16.msra.mxu0 %v5545
    %6880 = vmatpush.bf16.msra.mxu0 %v5529
    %6881 = vmatpush.bf16.msra.mxu0 %v5513
    %6882 = vmatmul.bf16.gmra.mxu0 %v483
    %v6883 = vpop.f32.mrf.mxu0
    %v6884 = vadd.f32 %v6870, %v6883
    %v6885 = vpop.f32.mrf.mxu0
    %v6886 = vadd.f32 %v6872, %v6885
    %6887 = vdwg.mxu0
    %6888 = vmatpush.bf16.msra.mxu0 %v4730
    %6889 = vmatpush.bf16.msra.mxu0 %v4714
    %6890 = vmatpush.bf16.msra.mxu0 %v4698
    %6891 = vmatpush.bf16.msra.mxu0 %v4682
    %6892 = vmatpush.bf16.msra.mxu0 %v4666
    %6893 = vmatpush.bf16.msra.mxu0 %v4650
    %6894 = vmatpush.bf16.msra.mxu0 %v4634
    %6895 = vmatpush.bf16.msra.mxu0 %v4618
    %6896 = vmatmul.bf16.gmra.mxu0 %v476
    %v6897 = vpop.f32.mrf.mxu0
    %v6898 = vadd.f32 %v1514, %v6897
    %v6899 = vpop.f32.mrf.mxu0
    %v6900 = vadd.f32 %v1514, %v6899
    %6901 = vdwg.mxu0
    %6902 = vmatpush.bf16.msra.mxu0 %v4858
    %6903 = vmatpush.bf16.msra.mxu0 %v4842
    %6904 = vmatpush.bf16.msra.mxu0 %v4826
    %6905 = vmatpush.bf16.msra.mxu0 %v4810
    %6906 = vmatpush.bf16.msra.mxu0 %v4794
    %6907 = vmatpush.bf16.msra.mxu0 %v4778
    %6908 = vmatpush.bf16.msra.mxu0 %v4762
    %6909 = vmatpush.bf16.msra.mxu0 %v4746
    %6910 = vmatmul.bf16.gmra.mxu0 %v477
    %v6911 = vpop.f32.mrf.mxu0
    %v6912 = vadd.f32 %v6898, %v6911
    %v6913 = vpop.f32.mrf.mxu0
    %v6914 = vadd.f32 %v6900, %v6913
    %6915 = vdwg.mxu0
    %6916 = vmatpush.bf16.msra.mxu0 %v4986
    %6917 = vmatpush.bf16.msra.mxu0 %v4970
    %6918 = vmatpush.bf16.msra.mxu0 %v4954
    %6919 = vmatpush.bf16.msra.mxu0 %v4938
    %6920 = vmatpush.bf16.msra.mxu0 %v4922
    %6921 = vmatpush.bf16.msra.mxu0 %v4906
    %6922 = vmatpush.bf16.msra.mxu0 %v4890
    %6923 = vmatpush.bf16.msra.mxu0 %v4874
    %6924 = vmatmul.bf16.gmra.mxu0 %v478
    %v6925 = vpop.f32.mrf.mxu0
    %v6926 = vadd.f32 %v6912, %v6925
    %v6927 = vpop.f32.mrf.mxu0
    %v6928 = vadd.f32 %v6914, %v6927
    %6929 = vdwg.mxu0
    %6930 = vmatpush.bf16.msra.mxu0 %v5114
    %6931 = vmatpush.bf16.msra.mxu0 %v5098
    %6932 = vmatpush.bf16.msra.mxu0 %v5082
    %6933 = vmatpush.bf16.msra.mxu0 %v5066
    %6934 = vmatpush.bf16.msra.mxu0 %v5050
    %6935 = vmatpush.bf16.msra.mxu0 %v5034
    %6936 = vmatpush.bf16.msra.mxu0 %v5018
    %6937 = vmatpush.bf16.msra.mxu0 %v5002
    %6938 = vmatmul.bf16.gmra.mxu0 %v479
    %v6939 = vpop.f32.mrf.mxu0
    %v6940 = vadd.f32 %v6926, %v6939
    %v6941 = vpop.f32.mrf.mxu0
    %v6942 = vadd.f32 %v6928, %v6941
    %6943 = vdwg.mxu0
    %6944 = vmatpush.bf16.msra.mxu0 %v5242
    %6945 = vmatpush.bf16.msra.mxu0 %v5226
    %6946 = vmatpush.bf16.msra.mxu0 %v5210
    %6947 = vmatpush.bf16.msra.mxu0 %v5194
    %6948 = vmatpush.bf16.msra.mxu0 %v5178
    %6949 = vmatpush.bf16.msra.mxu0 %v5162
    %6950 = vmatpush.bf16.msra.mxu0 %v5146
    %6951 = vmatpush.bf16.msra.mxu0 %v5130
    %6952 = vmatmul.bf16.gmra.mxu0 %v480
    %v6953 = vpop.f32.mrf.mxu0
    %v6954 = vadd.f32 %v6940, %v6953
    %v6955 = vpop.f32.mrf.mxu0
    %v6956 = vadd.f32 %v6942, %v6955
    %6957 = vdwg.mxu0
    %6958 = vmatpush.bf16.msra.mxu0 %v5370
    %6959 = vmatpush.bf16.msra.mxu0 %v5354
    %6960 = vmatpush.bf16.msra.mxu0 %v5338
    %6961 = vmatpush.bf16.msra.mxu0 %v5322
    %6962 = vmatpush.bf16.msra.mxu0 %v5306
    %6963 = vmatpush.bf16.msra.mxu0 %v5290
    %6964 = vmatpush.bf16.msra.mxu0 %v5274
    %6965 = vmatpush.bf16.msra.mxu0 %v5258
    %6966 = vmatmul.bf16.gmra.mxu0 %v481
    %v6967 = vpop.f32.mrf.mxu0
    %v6968 = vadd.f32 %v6954, %v6967
    %v6969 = vpop.f32.mrf.mxu0
    %v6970 = vadd.f32 %v6956, %v6969
    %6971 = vdwg.mxu0
    %6972 = vmatpush.bf16.msra.mxu0 %v5498
    %6973 = vmatpush.bf16.msra.mxu0 %v5482
    %6974 = vmatpush.bf16.msra.mxu0 %v5466
    %6975 = vmatpush.bf16.msra.mxu0 %v5450
    %6976 = vmatpush.bf16.msra.mxu0 %v5434
    %6977 = vmatpush.bf16.msra.mxu0 %v5418
    %6978 = vmatpush.bf16.msra.mxu0 %v5402
    %6979 = vmatpush.bf16.msra.mxu0 %v5386
    %6980 = vmatmul.bf16.gmra.mxu0 %v482
    %v6981 = vpop.f32.mrf.mxu0
    %v6982 = vadd.f32 %v6968, %v6981
    %v6983 = vpop.f32.mrf.mxu0
    %v6984 = vadd.f32 %v6970, %v6983
    %6985 = vdwg.mxu0
    %6986 = vmatpush.bf16.msra.mxu0 %v5626
    %6987 = vmatpush.bf16.msra.mxu0 %v5610
    %6988 = vmatpush.bf16.msra.mxu0 %v5594
    %6989 = vmatpush.bf16.msra.mxu0 %v5578
    %6990 = vmatpush.bf16.msra.mxu0 %v5562
    %6991 = vmatpush.bf16.msra.mxu0 %v5546
    %6992 = vmatpush.bf16.msra.mxu0 %v5530
    %6993 = vmatpush.bf16.msra.mxu0 %v5514
    %6994 = vmatmul.bf16.gmra.mxu0 %v483
    %v6995 = vpop.f32.mrf.mxu0
    %v6996 = vadd.f32 %v6982, %v6995
    %v6997 = vpop.f32.mrf.mxu0
    %v6998 = vadd.f32 %v6984, %v6997
    %6999 = vdwg.mxu0
    %7000 = vmatpush.bf16.msra.mxu0 %v4731
    %7001 = vmatpush.bf16.msra.mxu0 %v4715
    %7002 = vmatpush.bf16.msra.mxu0 %v4699
    %7003 = vmatpush.bf16.msra.mxu0 %v4683
    %7004 = vmatpush.bf16.msra.mxu0 %v4667
    %7005 = vmatpush.bf16.msra.mxu0 %v4651
    %7006 = vmatpush.bf16.msra.mxu0 %v4635
    %7007 = vmatpush.bf16.msra.mxu0 %v4619
    %7008 = vmatmul.bf16.gmra.mxu0 %v476
    %v7009 = vpop.f32.mrf.mxu0
    %v7010 = vadd.f32 %v1515, %v7009
    %v7011 = vpop.f32.mrf.mxu0
    %v7012 = vadd.f32 %v1515, %v7011
    %7013 = vdwg.mxu0
    %7014 = vmatpush.bf16.msra.mxu0 %v4859
    %7015 = vmatpush.bf16.msra.mxu0 %v4843
    %7016 = vmatpush.bf16.msra.mxu0 %v4827
    %7017 = vmatpush.bf16.msra.mxu0 %v4811
    %7018 = vmatpush.bf16.msra.mxu0 %v4795
    %7019 = vmatpush.bf16.msra.mxu0 %v4779
    %7020 = vmatpush.bf16.msra.mxu0 %v4763
    %7021 = vmatpush.bf16.msra.mxu0 %v4747
    %7022 = vmatmul.bf16.gmra.mxu0 %v477
    %v7023 = vpop.f32.mrf.mxu0
    %v7024 = vadd.f32 %v7010, %v7023
    %v7025 = vpop.f32.mrf.mxu0
    %v7026 = vadd.f32 %v7012, %v7025
    %7027 = vdwg.mxu0
    %7028 = vmatpush.bf16.msra.mxu0 %v4987
    %7029 = vmatpush.bf16.msra.mxu0 %v4971
    %7030 = vmatpush.bf16.msra.mxu0 %v4955
    %7031 = vmatpush.bf16.msra.mxu0 %v4939
    %7032 = vmatpush.bf16.msra.mxu0 %v4923
    %7033 = vmatpush.bf16.msra.mxu0 %v4907
    %7034 = vmatpush.bf16.msra.mxu0 %v4891
    %7035 = vmatpush.bf16.msra.mxu0 %v4875
    %7036 = vmatmul.bf16.gmra.mxu0 %v478
    %v7037 = vpop.f32.mrf.mxu0
    %v7038 = vadd.f32 %v7024, %v7037
    %v7039 = vpop.f32.mrf.mxu0
    %v7040 = vadd.f32 %v7026, %v7039
    %7041 = vdwg.mxu0
    %7042 = vmatpush.bf16.msra.mxu0 %v5115
    %7043 = vmatpush.bf16.msra.mxu0 %v5099
    %7044 = vmatpush.bf16.msra.mxu0 %v5083
    %7045 = vmatpush.bf16.msra.mxu0 %v5067
    %7046 = vmatpush.bf16.msra.mxu0 %v5051
    %7047 = vmatpush.bf16.msra.mxu0 %v5035
    %7048 = vmatpush.bf16.msra.mxu0 %v5019
    %7049 = vmatpush.bf16.msra.mxu0 %v5003
    %7050 = vmatmul.bf16.gmra.mxu0 %v479
    %v7051 = vpop.f32.mrf.mxu0
    %v7052 = vadd.f32 %v7038, %v7051
    %v7053 = vpop.f32.mrf.mxu0
    %v7054 = vadd.f32 %v7040, %v7053
    %7055 = vdwg.mxu0
    %7056 = vmatpush.bf16.msra.mxu0 %v5243
    %7057 = vmatpush.bf16.msra.mxu0 %v5227
    %7058 = vmatpush.bf16.msra.mxu0 %v5211
    %7059 = vmatpush.bf16.msra.mxu0 %v5195
    %7060 = vmatpush.bf16.msra.mxu0 %v5179
    %7061 = vmatpush.bf16.msra.mxu0 %v5163
    %7062 = vmatpush.bf16.msra.mxu0 %v5147
    %7063 = vmatpush.bf16.msra.mxu0 %v5131
    %7064 = vmatmul.bf16.gmra.mxu0 %v480
    %v7065 = vpop.f32.mrf.mxu0
    %v7066 = vadd.f32 %v7052, %v7065
    %v7067 = vpop.f32.mrf.mxu0
    %v7068 = vadd.f32 %v7054, %v7067
    %7069 = vdwg.mxu0
    %7070 = vmatpush.bf16.msra.mxu0 %v5371
    %7071 = vmatpush.bf16.msra.mxu0 %v5355
    %7072 = vmatpush.bf16.msra.mxu0 %v5339
    %7073 = vmatpush.bf16.msra.mxu0 %v5323
    %7074 = vmatpush.bf16.msra.mxu0 %v5307
    %7075 = vmatpush.bf16.msra.mxu0 %v5291
    %7076 = vmatpush.bf16.msra.mxu0 %v5275
    %7077 = vmatpush.bf16.msra.mxu0 %v5259
    %7078 = vmatmul.bf16.gmra.mxu0 %v481
    %v7079 = vpop.f32.mrf.mxu0
    %v7080 = vadd.f32 %v7066, %v7079
    %v7081 = vpop.f32.mrf.mxu0
    %v7082 = vadd.f32 %v7068, %v7081
    %7083 = vdwg.mxu0
    %7084 = vmatpush.bf16.msra.mxu0 %v5499
    %7085 = vmatpush.bf16.msra.mxu0 %v5483
    %7086 = vmatpush.bf16.msra.mxu0 %v5467
    %7087 = vmatpush.bf16.msra.mxu0 %v5451
    %7088 = vmatpush.bf16.msra.mxu0 %v5435
    %7089 = vmatpush.bf16.msra.mxu0 %v5419
    %7090 = vmatpush.bf16.msra.mxu0 %v5403
    %7091 = vmatpush.bf16.msra.mxu0 %v5387
    %7092 = vmatmul.bf16.gmra.mxu0 %v482
    %v7093 = vpop.f32.mrf.mxu0
    %v7094 = vadd.f32 %v7080, %v7093
    %v7095 = vpop.f32.mrf.mxu0
    %v7096 = vadd.f32 %v7082, %v7095
    %7097 = vdwg.mxu0
    %7098 = vmatpush.bf16.msra.mxu0 %v5627
    %7099 = vmatpush.bf16.msra.mxu0 %v5611
    %7100 = vmatpush.bf16.msra.mxu0 %v5595
    %7101 = vmatpush.bf16.msra.mxu0 %v5579
    %7102 = vmatpush.bf16.msra.mxu0 %v5563
    %7103 = vmatpush.bf16.msra.mxu0 %v5547
    %7104 = vmatpush.bf16.msra.mxu0 %v5531
    %7105 = vmatpush.bf16.msra.mxu0 %v5515
    %7106 = vmatmul.bf16.gmra.mxu0 %v483
    %v7107 = vpop.f32.mrf.mxu0
    %v7108 = vadd.f32 %v7094, %v7107
    %v7109 = vpop.f32.mrf.mxu0
    %v7110 = vadd.f32 %v7096, %v7109
    %7111 = vdwg.mxu0
    %7112 = vmatpush.bf16.msra.mxu0 %v4732
    %7113 = vmatpush.bf16.msra.mxu0 %v4716
    %7114 = vmatpush.bf16.msra.mxu0 %v4700
    %7115 = vmatpush.bf16.msra.mxu0 %v4684
    %7116 = vmatpush.bf16.msra.mxu0 %v4668
    %7117 = vmatpush.bf16.msra.mxu0 %v4652
    %7118 = vmatpush.bf16.msra.mxu0 %v4636
    %7119 = vmatpush.bf16.msra.mxu0 %v4620
    %7120 = vmatmul.bf16.gmra.mxu0 %v476
    %v7121 = vpop.f32.mrf.mxu0
    %v7122 = vadd.f32 %v1516, %v7121
    %v7123 = vpop.f32.mrf.mxu0
    %v7124 = vadd.f32 %v1516, %v7123
    %7125 = vdwg.mxu0
    %7126 = vmatpush.bf16.msra.mxu0 %v4860
    %7127 = vmatpush.bf16.msra.mxu0 %v4844
    %7128 = vmatpush.bf16.msra.mxu0 %v4828
    %7129 = vmatpush.bf16.msra.mxu0 %v4812
    %7130 = vmatpush.bf16.msra.mxu0 %v4796
    %7131 = vmatpush.bf16.msra.mxu0 %v4780
    %7132 = vmatpush.bf16.msra.mxu0 %v4764
    %7133 = vmatpush.bf16.msra.mxu0 %v4748
    %7134 = vmatmul.bf16.gmra.mxu0 %v477
    %v7135 = vpop.f32.mrf.mxu0
    %v7136 = vadd.f32 %v7122, %v7135
    %v7137 = vpop.f32.mrf.mxu0
    %v7138 = vadd.f32 %v7124, %v7137
    %7139 = vdwg.mxu0
    %7140 = vmatpush.bf16.msra.mxu0 %v4988
    %7141 = vmatpush.bf16.msra.mxu0 %v4972
    %7142 = vmatpush.bf16.msra.mxu0 %v4956
    %7143 = vmatpush.bf16.msra.mxu0 %v4940
    %7144 = vmatpush.bf16.msra.mxu0 %v4924
    %7145 = vmatpush.bf16.msra.mxu0 %v4908
    %7146 = vmatpush.bf16.msra.mxu0 %v4892
    %7147 = vmatpush.bf16.msra.mxu0 %v4876
    %7148 = vmatmul.bf16.gmra.mxu0 %v478
    %v7149 = vpop.f32.mrf.mxu0
    %v7150 = vadd.f32 %v7136, %v7149
    %v7151 = vpop.f32.mrf.mxu0
    %v7152 = vadd.f32 %v7138, %v7151
    %7153 = vdwg.mxu0
    %7154 = vmatpush.bf16.msra.mxu0 %v5116
    %7155 = vmatpush.bf16.msra.mxu0 %v5100
    %7156 = vmatpush.bf16.msra.mxu0 %v5084
    %7157 = vmatpush.bf16.msra.mxu0 %v5068
    %7158 = vmatpush.bf16.msra.mxu0 %v5052
    %7159 = vmatpush.bf16.msra.mxu0 %v5036
    %7160 = vmatpush.bf16.msra.mxu0 %v5020
    %7161 = vmatpush.bf16.msra.mxu0 %v5004
    %7162 = vmatmul.bf16.gmra.mxu0 %v479
    %v7163 = vpop.f32.mrf.mxu0
    %v7164 = vadd.f32 %v7150, %v7163
    %v7165 = vpop.f32.mrf.mxu0
    %v7166 = vadd.f32 %v7152, %v7165
    %7167 = vdwg.mxu0
    %7168 = vmatpush.bf16.msra.mxu0 %v5244
    %7169 = vmatpush.bf16.msra.mxu0 %v5228
    %7170 = vmatpush.bf16.msra.mxu0 %v5212
    %7171 = vmatpush.bf16.msra.mxu0 %v5196
    %7172 = vmatpush.bf16.msra.mxu0 %v5180
    %7173 = vmatpush.bf16.msra.mxu0 %v5164
    %7174 = vmatpush.bf16.msra.mxu0 %v5148
    %7175 = vmatpush.bf16.msra.mxu0 %v5132
    %7176 = vmatmul.bf16.gmra.mxu0 %v480
    %v7177 = vpop.f32.mrf.mxu0
    %v7178 = vadd.f32 %v7164, %v7177
    %v7179 = vpop.f32.mrf.mxu0
    %v7180 = vadd.f32 %v7166, %v7179
    %7181 = vdwg.mxu0
    %7182 = vmatpush.bf16.msra.mxu0 %v5372
    %7183 = vmatpush.bf16.msra.mxu0 %v5356
    %7184 = vmatpush.bf16.msra.mxu0 %v5340
    %7185 = vmatpush.bf16.msra.mxu0 %v5324
    %7186 = vmatpush.bf16.msra.mxu0 %v5308
    %7187 = vmatpush.bf16.msra.mxu0 %v5292
    %7188 = vmatpush.bf16.msra.mxu0 %v5276
    %7189 = vmatpush.bf16.msra.mxu0 %v5260
    %7190 = vmatmul.bf16.gmra.mxu0 %v481
    %v7191 = vpop.f32.mrf.mxu0
    %v7192 = vadd.f32 %v7178, %v7191
    %v7193 = vpop.f32.mrf.mxu0
    %v7194 = vadd.f32 %v7180, %v7193
    %7195 = vdwg.mxu0
    %7196 = vmatpush.bf16.msra.mxu0 %v5500
    %7197 = vmatpush.bf16.msra.mxu0 %v5484
    %7198 = vmatpush.bf16.msra.mxu0 %v5468
    %7199 = vmatpush.bf16.msra.mxu0 %v5452
    %7200 = vmatpush.bf16.msra.mxu0 %v5436
    %7201 = vmatpush.bf16.msra.mxu0 %v5420
    %7202 = vmatpush.bf16.msra.mxu0 %v5404
    %7203 = vmatpush.bf16.msra.mxu0 %v5388
    %7204 = vmatmul.bf16.gmra.mxu0 %v482
    %v7205 = vpop.f32.mrf.mxu0
    %v7206 = vadd.f32 %v7192, %v7205
    %v7207 = vpop.f32.mrf.mxu0
    %v7208 = vadd.f32 %v7194, %v7207
    %7209 = vdwg.mxu0
    %7210 = vmatpush.bf16.msra.mxu0 %v5628
    %7211 = vmatpush.bf16.msra.mxu0 %v5612
    %7212 = vmatpush.bf16.msra.mxu0 %v5596
    %7213 = vmatpush.bf16.msra.mxu0 %v5580
    %7214 = vmatpush.bf16.msra.mxu0 %v5564
    %7215 = vmatpush.bf16.msra.mxu0 %v5548
    %7216 = vmatpush.bf16.msra.mxu0 %v5532
    %7217 = vmatpush.bf16.msra.mxu0 %v5516
    %7218 = vmatmul.bf16.gmra.mxu0 %v483
    %v7219 = vpop.f32.mrf.mxu0
    %v7220 = vadd.f32 %v7206, %v7219
    %v7221 = vpop.f32.mrf.mxu0
    %v7222 = vadd.f32 %v7208, %v7221
    %7223 = vdwg.mxu0
    %7224 = vmatpush.bf16.msra.mxu0 %v4733
    %7225 = vmatpush.bf16.msra.mxu0 %v4717
    %7226 = vmatpush.bf16.msra.mxu0 %v4701
    %7227 = vmatpush.bf16.msra.mxu0 %v4685
    %7228 = vmatpush.bf16.msra.mxu0 %v4669
    %7229 = vmatpush.bf16.msra.mxu0 %v4653
    %7230 = vmatpush.bf16.msra.mxu0 %v4637
    %7231 = vmatpush.bf16.msra.mxu0 %v4621
    %7232 = vmatmul.bf16.gmra.mxu0 %v476
    %v7233 = vpop.f32.mrf.mxu0
    %v7234 = vadd.f32 %v1517, %v7233
    %v7235 = vpop.f32.mrf.mxu0
    %v7236 = vadd.f32 %v1517, %v7235
    %7237 = vdwg.mxu0
    %7238 = vmatpush.bf16.msra.mxu0 %v4861
    %7239 = vmatpush.bf16.msra.mxu0 %v4845
    %7240 = vmatpush.bf16.msra.mxu0 %v4829
    %7241 = vmatpush.bf16.msra.mxu0 %v4813
    %7242 = vmatpush.bf16.msra.mxu0 %v4797
    %7243 = vmatpush.bf16.msra.mxu0 %v4781
    %7244 = vmatpush.bf16.msra.mxu0 %v4765
    %7245 = vmatpush.bf16.msra.mxu0 %v4749
    %7246 = vmatmul.bf16.gmra.mxu0 %v477
    %v7247 = vpop.f32.mrf.mxu0
    %v7248 = vadd.f32 %v7234, %v7247
    %v7249 = vpop.f32.mrf.mxu0
    %v7250 = vadd.f32 %v7236, %v7249
    %7251 = vdwg.mxu0
    %7252 = vmatpush.bf16.msra.mxu0 %v4989
    %7253 = vmatpush.bf16.msra.mxu0 %v4973
    %7254 = vmatpush.bf16.msra.mxu0 %v4957
    %7255 = vmatpush.bf16.msra.mxu0 %v4941
    %7256 = vmatpush.bf16.msra.mxu0 %v4925
    %7257 = vmatpush.bf16.msra.mxu0 %v4909
    %7258 = vmatpush.bf16.msra.mxu0 %v4893
    %7259 = vmatpush.bf16.msra.mxu0 %v4877
    %7260 = vmatmul.bf16.gmra.mxu0 %v478
    %v7261 = vpop.f32.mrf.mxu0
    %v7262 = vadd.f32 %v7248, %v7261
    %v7263 = vpop.f32.mrf.mxu0
    %v7264 = vadd.f32 %v7250, %v7263
    %7265 = vdwg.mxu0
    %7266 = vmatpush.bf16.msra.mxu0 %v5117
    %7267 = vmatpush.bf16.msra.mxu0 %v5101
    %7268 = vmatpush.bf16.msra.mxu0 %v5085
    %7269 = vmatpush.bf16.msra.mxu0 %v5069
    %7270 = vmatpush.bf16.msra.mxu0 %v5053
    %7271 = vmatpush.bf16.msra.mxu0 %v5037
    %7272 = vmatpush.bf16.msra.mxu0 %v5021
    %7273 = vmatpush.bf16.msra.mxu0 %v5005
    %7274 = vmatmul.bf16.gmra.mxu0 %v479
    %v7275 = vpop.f32.mrf.mxu0
    %v7276 = vadd.f32 %v7262, %v7275
    %v7277 = vpop.f32.mrf.mxu0
    %v7278 = vadd.f32 %v7264, %v7277
    %7279 = vdwg.mxu0
    %7280 = vmatpush.bf16.msra.mxu0 %v5245
    %7281 = vmatpush.bf16.msra.mxu0 %v5229
    %7282 = vmatpush.bf16.msra.mxu0 %v5213
    %7283 = vmatpush.bf16.msra.mxu0 %v5197
    %7284 = vmatpush.bf16.msra.mxu0 %v5181
    %7285 = vmatpush.bf16.msra.mxu0 %v5165
    %7286 = vmatpush.bf16.msra.mxu0 %v5149
    %7287 = vmatpush.bf16.msra.mxu0 %v5133
    %7288 = vmatmul.bf16.gmra.mxu0 %v480
    %v7289 = vpop.f32.mrf.mxu0
    %v7290 = vadd.f32 %v7276, %v7289
    %v7291 = vpop.f32.mrf.mxu0
    %v7292 = vadd.f32 %v7278, %v7291
    %7293 = vdwg.mxu0
    %7294 = vmatpush.bf16.msra.mxu0 %v5373
    %7295 = vmatpush.bf16.msra.mxu0 %v5357
    %7296 = vmatpush.bf16.msra.mxu0 %v5341
    %7297 = vmatpush.bf16.msra.mxu0 %v5325
    %7298 = vmatpush.bf16.msra.mxu0 %v5309
    %7299 = vmatpush.bf16.msra.mxu0 %v5293
    %7300 = vmatpush.bf16.msra.mxu0 %v5277
    %7301 = vmatpush.bf16.msra.mxu0 %v5261
    %7302 = vmatmul.bf16.gmra.mxu0 %v481
    %v7303 = vpop.f32.mrf.mxu0
    %v7304 = vadd.f32 %v7290, %v7303
    %v7305 = vpop.f32.mrf.mxu0
    %v7306 = vadd.f32 %v7292, %v7305
    %7307 = vdwg.mxu0
    %7308 = vmatpush.bf16.msra.mxu0 %v5501
    %7309 = vmatpush.bf16.msra.mxu0 %v5485
    %7310 = vmatpush.bf16.msra.mxu0 %v5469
    %7311 = vmatpush.bf16.msra.mxu0 %v5453
    %7312 = vmatpush.bf16.msra.mxu0 %v5437
    %7313 = vmatpush.bf16.msra.mxu0 %v5421
    %7314 = vmatpush.bf16.msra.mxu0 %v5405
    %7315 = vmatpush.bf16.msra.mxu0 %v5389
    %7316 = vmatmul.bf16.gmra.mxu0 %v482
    %v7317 = vpop.f32.mrf.mxu0
    %v7318 = vadd.f32 %v7304, %v7317
    %v7319 = vpop.f32.mrf.mxu0
    %v7320 = vadd.f32 %v7306, %v7319
    %7321 = vdwg.mxu0
    %7322 = vmatpush.bf16.msra.mxu0 %v5629
    %7323 = vmatpush.bf16.msra.mxu0 %v5613
    %7324 = vmatpush.bf16.msra.mxu0 %v5597
    %7325 = vmatpush.bf16.msra.mxu0 %v5581
    %7326 = vmatpush.bf16.msra.mxu0 %v5565
    %7327 = vmatpush.bf16.msra.mxu0 %v5549
    %7328 = vmatpush.bf16.msra.mxu0 %v5533
    %7329 = vmatpush.bf16.msra.mxu0 %v5517
    %7330 = vmatmul.bf16.gmra.mxu0 %v483
    %v7331 = vpop.f32.mrf.mxu0
    %v7332 = vadd.f32 %v7318, %v7331
    %v7333 = vpop.f32.mrf.mxu0
    %v7334 = vadd.f32 %v7320, %v7333
    %7335 = vdwg.mxu0
    %7336 = vmatpush.bf16.msra.mxu0 %v4734
    %7337 = vmatpush.bf16.msra.mxu0 %v4718
    %7338 = vmatpush.bf16.msra.mxu0 %v4702
    %7339 = vmatpush.bf16.msra.mxu0 %v4686
    %7340 = vmatpush.bf16.msra.mxu0 %v4670
    %7341 = vmatpush.bf16.msra.mxu0 %v4654
    %7342 = vmatpush.bf16.msra.mxu0 %v4638
    %7343 = vmatpush.bf16.msra.mxu0 %v4622
    %7344 = vmatmul.bf16.gmra.mxu0 %v476
    %v7345 = vpop.f32.mrf.mxu0
    %v7346 = vadd.f32 %v1518, %v7345
    %v7347 = vpop.f32.mrf.mxu0
    %v7348 = vadd.f32 %v1518, %v7347
    %7349 = vdwg.mxu0
    %7350 = vmatpush.bf16.msra.mxu0 %v4862
    %7351 = vmatpush.bf16.msra.mxu0 %v4846
    %7352 = vmatpush.bf16.msra.mxu0 %v4830
    %7353 = vmatpush.bf16.msra.mxu0 %v4814
    %7354 = vmatpush.bf16.msra.mxu0 %v4798
    %7355 = vmatpush.bf16.msra.mxu0 %v4782
    %7356 = vmatpush.bf16.msra.mxu0 %v4766
    %7357 = vmatpush.bf16.msra.mxu0 %v4750
    %7358 = vmatmul.bf16.gmra.mxu0 %v477
    %v7359 = vpop.f32.mrf.mxu0
    %v7360 = vadd.f32 %v7346, %v7359
    %v7361 = vpop.f32.mrf.mxu0
    %v7362 = vadd.f32 %v7348, %v7361
    %7363 = vdwg.mxu0
    %7364 = vmatpush.bf16.msra.mxu0 %v4990
    %7365 = vmatpush.bf16.msra.mxu0 %v4974
    %7366 = vmatpush.bf16.msra.mxu0 %v4958
    %7367 = vmatpush.bf16.msra.mxu0 %v4942
    %7368 = vmatpush.bf16.msra.mxu0 %v4926
    %7369 = vmatpush.bf16.msra.mxu0 %v4910
    %7370 = vmatpush.bf16.msra.mxu0 %v4894
    %7371 = vmatpush.bf16.msra.mxu0 %v4878
    %7372 = vmatmul.bf16.gmra.mxu0 %v478
    %v7373 = vpop.f32.mrf.mxu0
    %v7374 = vadd.f32 %v7360, %v7373
    %v7375 = vpop.f32.mrf.mxu0
    %v7376 = vadd.f32 %v7362, %v7375
    %7377 = vdwg.mxu0
    %7378 = vmatpush.bf16.msra.mxu0 %v5118
    %7379 = vmatpush.bf16.msra.mxu0 %v5102
    %7380 = vmatpush.bf16.msra.mxu0 %v5086
    %7381 = vmatpush.bf16.msra.mxu0 %v5070
    %7382 = vmatpush.bf16.msra.mxu0 %v5054
    %7383 = vmatpush.bf16.msra.mxu0 %v5038
    %7384 = vmatpush.bf16.msra.mxu0 %v5022
    %7385 = vmatpush.bf16.msra.mxu0 %v5006
    %7386 = vmatmul.bf16.gmra.mxu0 %v479
    %v7387 = vpop.f32.mrf.mxu0
    %v7388 = vadd.f32 %v7374, %v7387
    %v7389 = vpop.f32.mrf.mxu0
    %v7390 = vadd.f32 %v7376, %v7389
    %7391 = vdwg.mxu0
    %7392 = vmatpush.bf16.msra.mxu0 %v5246
    %7393 = vmatpush.bf16.msra.mxu0 %v5230
    %7394 = vmatpush.bf16.msra.mxu0 %v5214
    %7395 = vmatpush.bf16.msra.mxu0 %v5198
    %7396 = vmatpush.bf16.msra.mxu0 %v5182
    %7397 = vmatpush.bf16.msra.mxu0 %v5166
    %7398 = vmatpush.bf16.msra.mxu0 %v5150
    %7399 = vmatpush.bf16.msra.mxu0 %v5134
    %7400 = vmatmul.bf16.gmra.mxu0 %v480
    %v7401 = vpop.f32.mrf.mxu0
    %v7402 = vadd.f32 %v7388, %v7401
    %v7403 = vpop.f32.mrf.mxu0
    %v7404 = vadd.f32 %v7390, %v7403
    %7405 = vdwg.mxu0
    %7406 = vmatpush.bf16.msra.mxu0 %v5374
    %7407 = vmatpush.bf16.msra.mxu0 %v5358
    %7408 = vmatpush.bf16.msra.mxu0 %v5342
    %7409 = vmatpush.bf16.msra.mxu0 %v5326
    %7410 = vmatpush.bf16.msra.mxu0 %v5310
    %7411 = vmatpush.bf16.msra.mxu0 %v5294
    %7412 = vmatpush.bf16.msra.mxu0 %v5278
    %7413 = vmatpush.bf16.msra.mxu0 %v5262
    %7414 = vmatmul.bf16.gmra.mxu0 %v481
    %v7415 = vpop.f32.mrf.mxu0
    %v7416 = vadd.f32 %v7402, %v7415
    %v7417 = vpop.f32.mrf.mxu0
    %v7418 = vadd.f32 %v7404, %v7417
    %7419 = vdwg.mxu0
    %7420 = vmatpush.bf16.msra.mxu0 %v5502
    %7421 = vmatpush.bf16.msra.mxu0 %v5486
    %7422 = vmatpush.bf16.msra.mxu0 %v5470
    %7423 = vmatpush.bf16.msra.mxu0 %v5454
    %7424 = vmatpush.bf16.msra.mxu0 %v5438
    %7425 = vmatpush.bf16.msra.mxu0 %v5422
    %7426 = vmatpush.bf16.msra.mxu0 %v5406
    %7427 = vmatpush.bf16.msra.mxu0 %v5390
    %7428 = vmatmul.bf16.gmra.mxu0 %v482
    %v7429 = vpop.f32.mrf.mxu0
    %v7430 = vadd.f32 %v7416, %v7429
    %v7431 = vpop.f32.mrf.mxu0
    %v7432 = vadd.f32 %v7418, %v7431
    %7433 = vdwg.mxu0
    %7434 = vmatpush.bf16.msra.mxu0 %v5630
    %7435 = vmatpush.bf16.msra.mxu0 %v5614
    %7436 = vmatpush.bf16.msra.mxu0 %v5598
    %7437 = vmatpush.bf16.msra.mxu0 %v5582
    %7438 = vmatpush.bf16.msra.mxu0 %v5566
    %7439 = vmatpush.bf16.msra.mxu0 %v5550
    %7440 = vmatpush.bf16.msra.mxu0 %v5534
    %7441 = vmatpush.bf16.msra.mxu0 %v5518
    %7442 = vmatmul.bf16.gmra.mxu0 %v483
    %v7443 = vpop.f32.mrf.mxu0
    %v7444 = vadd.f32 %v7430, %v7443
    %v7445 = vpop.f32.mrf.mxu0
    %v7446 = vadd.f32 %v7432, %v7445
    %7447 = vdwg.mxu0
    %7448 = vmatpush.bf16.msra.mxu0 %v4735
    %7449 = vmatpush.bf16.msra.mxu0 %v4719
    %7450 = vmatpush.bf16.msra.mxu0 %v4703
    %7451 = vmatpush.bf16.msra.mxu0 %v4687
    %7452 = vmatpush.bf16.msra.mxu0 %v4671
    %7453 = vmatpush.bf16.msra.mxu0 %v4655
    %7454 = vmatpush.bf16.msra.mxu0 %v4639
    %7455 = vmatpush.bf16.msra.mxu0 %v4623
    %7456 = vmatmul.bf16.gmra.mxu0 %v476
    %v7457 = vpop.f32.mrf.mxu0
    %v7458 = vadd.f32 %v1519, %v7457
    %v7459 = vpop.f32.mrf.mxu0
    %v7460 = vadd.f32 %v1519, %v7459
    %7461 = vdwg.mxu0
    %7462 = vmatpush.bf16.msra.mxu0 %v4863
    %7463 = vmatpush.bf16.msra.mxu0 %v4847
    %7464 = vmatpush.bf16.msra.mxu0 %v4831
    %7465 = vmatpush.bf16.msra.mxu0 %v4815
    %7466 = vmatpush.bf16.msra.mxu0 %v4799
    %7467 = vmatpush.bf16.msra.mxu0 %v4783
    %7468 = vmatpush.bf16.msra.mxu0 %v4767
    %7469 = vmatpush.bf16.msra.mxu0 %v4751
    %7470 = vmatmul.bf16.gmra.mxu0 %v477
    %v7471 = vpop.f32.mrf.mxu0
    %v7472 = vadd.f32 %v7458, %v7471
    %v7473 = vpop.f32.mrf.mxu0
    %v7474 = vadd.f32 %v7460, %v7473
    %7475 = vdwg.mxu0
    %7476 = vmatpush.bf16.msra.mxu0 %v4991
    %7477 = vmatpush.bf16.msra.mxu0 %v4975
    %7478 = vmatpush.bf16.msra.mxu0 %v4959
    %7479 = vmatpush.bf16.msra.mxu0 %v4943
    %7480 = vmatpush.bf16.msra.mxu0 %v4927
    %7481 = vmatpush.bf16.msra.mxu0 %v4911
    %7482 = vmatpush.bf16.msra.mxu0 %v4895
    %7483 = vmatpush.bf16.msra.mxu0 %v4879
    %7484 = vmatmul.bf16.gmra.mxu0 %v478
    %v7485 = vpop.f32.mrf.mxu0
    %v7486 = vadd.f32 %v7472, %v7485
    %v7487 = vpop.f32.mrf.mxu0
    %v7488 = vadd.f32 %v7474, %v7487
    %7489 = vdwg.mxu0
    %7490 = vmatpush.bf16.msra.mxu0 %v5119
    %7491 = vmatpush.bf16.msra.mxu0 %v5103
    %7492 = vmatpush.bf16.msra.mxu0 %v5087
    %7493 = vmatpush.bf16.msra.mxu0 %v5071
    %7494 = vmatpush.bf16.msra.mxu0 %v5055
    %7495 = vmatpush.bf16.msra.mxu0 %v5039
    %7496 = vmatpush.bf16.msra.mxu0 %v5023
    %7497 = vmatpush.bf16.msra.mxu0 %v5007
    %7498 = vmatmul.bf16.gmra.mxu0 %v479
    %v7499 = vpop.f32.mrf.mxu0
    %v7500 = vadd.f32 %v7486, %v7499
    %v7501 = vpop.f32.mrf.mxu0
    %v7502 = vadd.f32 %v7488, %v7501
    %7503 = vdwg.mxu0
    %7504 = vmatpush.bf16.msra.mxu0 %v5247
    %7505 = vmatpush.bf16.msra.mxu0 %v5231
    %7506 = vmatpush.bf16.msra.mxu0 %v5215
    %7507 = vmatpush.bf16.msra.mxu0 %v5199
    %7508 = vmatpush.bf16.msra.mxu0 %v5183
    %7509 = vmatpush.bf16.msra.mxu0 %v5167
    %7510 = vmatpush.bf16.msra.mxu0 %v5151
    %7511 = vmatpush.bf16.msra.mxu0 %v5135
    %7512 = vmatmul.bf16.gmra.mxu0 %v480
    %v7513 = vpop.f32.mrf.mxu0
    %v7514 = vadd.f32 %v7500, %v7513
    %v7515 = vpop.f32.mrf.mxu0
    %v7516 = vadd.f32 %v7502, %v7515
    %7517 = vdwg.mxu0
    %7518 = vmatpush.bf16.msra.mxu0 %v5375
    %7519 = vmatpush.bf16.msra.mxu0 %v5359
    %7520 = vmatpush.bf16.msra.mxu0 %v5343
    %7521 = vmatpush.bf16.msra.mxu0 %v5327
    %7522 = vmatpush.bf16.msra.mxu0 %v5311
    %7523 = vmatpush.bf16.msra.mxu0 %v5295
    %7524 = vmatpush.bf16.msra.mxu0 %v5279
    %7525 = vmatpush.bf16.msra.mxu0 %v5263
    %7526 = vmatmul.bf16.gmra.mxu0 %v481
    %v7527 = vpop.f32.mrf.mxu0
    %v7528 = vadd.f32 %v7514, %v7527
    %v7529 = vpop.f32.mrf.mxu0
    %v7530 = vadd.f32 %v7516, %v7529
    %7531 = vdwg.mxu0
    %7532 = vmatpush.bf16.msra.mxu0 %v5503
    %7533 = vmatpush.bf16.msra.mxu0 %v5487
    %7534 = vmatpush.bf16.msra.mxu0 %v5471
    %7535 = vmatpush.bf16.msra.mxu0 %v5455
    %7536 = vmatpush.bf16.msra.mxu0 %v5439
    %7537 = vmatpush.bf16.msra.mxu0 %v5423
    %7538 = vmatpush.bf16.msra.mxu0 %v5407
    %7539 = vmatpush.bf16.msra.mxu0 %v5391
    %7540 = vmatmul.bf16.gmra.mxu0 %v482
    %v7541 = vpop.f32.mrf.mxu0
    %v7542 = vadd.f32 %v7528, %v7541
    %v7543 = vpop.f32.mrf.mxu0
    %v7544 = vadd.f32 %v7530, %v7543
    %7545 = vdwg.mxu0
    %7546 = vmatpush.bf16.msra.mxu0 %v5631
    %7547 = vmatpush.bf16.msra.mxu0 %v5615
    %7548 = vmatpush.bf16.msra.mxu0 %v5599
    %7549 = vmatpush.bf16.msra.mxu0 %v5583
    %7550 = vmatpush.bf16.msra.mxu0 %v5567
    %7551 = vmatpush.bf16.msra.mxu0 %v5551
    %7552 = vmatpush.bf16.msra.mxu0 %v5535
    %7553 = vmatpush.bf16.msra.mxu0 %v5519
    %7554 = vmatmul.bf16.gmra.mxu0 %v483
    %v7555 = vpop.f32.mrf.mxu0
    %v7556 = vadd.f32 %v7542, %v7555
    %v7557 = vpop.f32.mrf.mxu0
    %v7558 = vadd.f32 %v7544, %v7557
    %7559 = vdwg.mxu0
    %7560 = vmatpush.bf16.msra.mxu0 %v4736
    %7561 = vmatpush.bf16.msra.mxu0 %v4720
    %7562 = vmatpush.bf16.msra.mxu0 %v4704
    %7563 = vmatpush.bf16.msra.mxu0 %v4688
    %7564 = vmatpush.bf16.msra.mxu0 %v4672
    %7565 = vmatpush.bf16.msra.mxu0 %v4656
    %7566 = vmatpush.bf16.msra.mxu0 %v4640
    %7567 = vmatpush.bf16.msra.mxu0 %v4624
    %7568 = vmatmul.bf16.gmra.mxu0 %v476
    %v7569 = vpop.f32.mrf.mxu0
    %v7570 = vadd.f32 %v1520, %v7569
    %v7571 = vpop.f32.mrf.mxu0
    %v7572 = vadd.f32 %v1520, %v7571
    %7573 = vdwg.mxu0
    %7574 = vmatpush.bf16.msra.mxu0 %v4864
    %7575 = vmatpush.bf16.msra.mxu0 %v4848
    %7576 = vmatpush.bf16.msra.mxu0 %v4832
    %7577 = vmatpush.bf16.msra.mxu0 %v4816
    %7578 = vmatpush.bf16.msra.mxu0 %v4800
    %7579 = vmatpush.bf16.msra.mxu0 %v4784
    %7580 = vmatpush.bf16.msra.mxu0 %v4768
    %7581 = vmatpush.bf16.msra.mxu0 %v4752
    %7582 = vmatmul.bf16.gmra.mxu0 %v477
    %v7583 = vpop.f32.mrf.mxu0
    %v7584 = vadd.f32 %v7570, %v7583
    %v7585 = vpop.f32.mrf.mxu0
    %v7586 = vadd.f32 %v7572, %v7585
    %7587 = vdwg.mxu0
    %7588 = vmatpush.bf16.msra.mxu0 %v4992
    %7589 = vmatpush.bf16.msra.mxu0 %v4976
    %7590 = vmatpush.bf16.msra.mxu0 %v4960
    %7591 = vmatpush.bf16.msra.mxu0 %v4944
    %7592 = vmatpush.bf16.msra.mxu0 %v4928
    %7593 = vmatpush.bf16.msra.mxu0 %v4912
    %7594 = vmatpush.bf16.msra.mxu0 %v4896
    %7595 = vmatpush.bf16.msra.mxu0 %v4880
    %7596 = vmatmul.bf16.gmra.mxu0 %v478
    %v7597 = vpop.f32.mrf.mxu0
    %v7598 = vadd.f32 %v7584, %v7597
    %v7599 = vpop.f32.mrf.mxu0
    %v7600 = vadd.f32 %v7586, %v7599
    %7601 = vdwg.mxu0
    %7602 = vmatpush.bf16.msra.mxu0 %v5120
    %7603 = vmatpush.bf16.msra.mxu0 %v5104
    %7604 = vmatpush.bf16.msra.mxu0 %v5088
    %7605 = vmatpush.bf16.msra.mxu0 %v5072
    %7606 = vmatpush.bf16.msra.mxu0 %v5056
    %7607 = vmatpush.bf16.msra.mxu0 %v5040
    %7608 = vmatpush.bf16.msra.mxu0 %v5024
    %7609 = vmatpush.bf16.msra.mxu0 %v5008
    %7610 = vmatmul.bf16.gmra.mxu0 %v479
    %v7611 = vpop.f32.mrf.mxu0
    %v7612 = vadd.f32 %v7598, %v7611
    %v7613 = vpop.f32.mrf.mxu0
    %v7614 = vadd.f32 %v7600, %v7613
    %7615 = vdwg.mxu0
    %7616 = vmatpush.bf16.msra.mxu0 %v5248
    %7617 = vmatpush.bf16.msra.mxu0 %v5232
    %7618 = vmatpush.bf16.msra.mxu0 %v5216
    %7619 = vmatpush.bf16.msra.mxu0 %v5200
    %7620 = vmatpush.bf16.msra.mxu0 %v5184
    %7621 = vmatpush.bf16.msra.mxu0 %v5168
    %7622 = vmatpush.bf16.msra.mxu0 %v5152
    %7623 = vmatpush.bf16.msra.mxu0 %v5136
    %7624 = vmatmul.bf16.gmra.mxu0 %v480
    %v7625 = vpop.f32.mrf.mxu0
    %v7626 = vadd.f32 %v7612, %v7625
    %v7627 = vpop.f32.mrf.mxu0
    %v7628 = vadd.f32 %v7614, %v7627
    %7629 = vdwg.mxu0
    %7630 = vmatpush.bf16.msra.mxu0 %v5376
    %7631 = vmatpush.bf16.msra.mxu0 %v5360
    %7632 = vmatpush.bf16.msra.mxu0 %v5344
    %7633 = vmatpush.bf16.msra.mxu0 %v5328
    %7634 = vmatpush.bf16.msra.mxu0 %v5312
    %7635 = vmatpush.bf16.msra.mxu0 %v5296
    %7636 = vmatpush.bf16.msra.mxu0 %v5280
    %7637 = vmatpush.bf16.msra.mxu0 %v5264
    %7638 = vmatmul.bf16.gmra.mxu0 %v481
    %v7639 = vpop.f32.mrf.mxu0
    %v7640 = vadd.f32 %v7626, %v7639
    %v7641 = vpop.f32.mrf.mxu0
    %v7642 = vadd.f32 %v7628, %v7641
    %7643 = vdwg.mxu0
    %7644 = vmatpush.bf16.msra.mxu0 %v5504
    %7645 = vmatpush.bf16.msra.mxu0 %v5488
    %7646 = vmatpush.bf16.msra.mxu0 %v5472
    %7647 = vmatpush.bf16.msra.mxu0 %v5456
    %7648 = vmatpush.bf16.msra.mxu0 %v5440
    %7649 = vmatpush.bf16.msra.mxu0 %v5424
    %7650 = vmatpush.bf16.msra.mxu0 %v5408
    %7651 = vmatpush.bf16.msra.mxu0 %v5392
    %7652 = vmatmul.bf16.gmra.mxu0 %v482
    %v7653 = vpop.f32.mrf.mxu0
    %v7654 = vadd.f32 %v7640, %v7653
    %v7655 = vpop.f32.mrf.mxu0
    %v7656 = vadd.f32 %v7642, %v7655
    %7657 = vdwg.mxu0
    %7658 = vmatpush.bf16.msra.mxu0 %v5632
    %7659 = vmatpush.bf16.msra.mxu0 %v5616
    %7660 = vmatpush.bf16.msra.mxu0 %v5600
    %7661 = vmatpush.bf16.msra.mxu0 %v5584
    %7662 = vmatpush.bf16.msra.mxu0 %v5568
    %7663 = vmatpush.bf16.msra.mxu0 %v5552
    %7664 = vmatpush.bf16.msra.mxu0 %v5536
    %7665 = vmatpush.bf16.msra.mxu0 %v5520
    %7666 = vmatmul.bf16.gmra.mxu0 %v483
    %v7667 = vpop.f32.mrf.mxu0
    %v7668 = vadd.f32 %v7654, %v7667
    %v7669 = vpop.f32.mrf.mxu0
    %v7670 = vadd.f32 %v7656, %v7669
    %7671 = vdwg.mxu0
    %7672 = vmatpush.bf16.msra.mxu0 %v4737
    %7673 = vmatpush.bf16.msra.mxu0 %v4721
    %7674 = vmatpush.bf16.msra.mxu0 %v4705
    %7675 = vmatpush.bf16.msra.mxu0 %v4689
    %7676 = vmatpush.bf16.msra.mxu0 %v4673
    %7677 = vmatpush.bf16.msra.mxu0 %v4657
    %7678 = vmatpush.bf16.msra.mxu0 %v4641
    %7679 = vmatpush.bf16.msra.mxu0 %v4625
    %7680 = vmatmul.bf16.gmra.mxu0 %v476
    %v7681 = vpop.f32.mrf.mxu0
    %v7682 = vadd.f32 %v1521, %v7681
    %v7683 = vpop.f32.mrf.mxu0
    %v7684 = vadd.f32 %v1521, %v7683
    %7685 = vdwg.mxu0
    %7686 = vmatpush.bf16.msra.mxu0 %v4865
    %7687 = vmatpush.bf16.msra.mxu0 %v4849
    %7688 = vmatpush.bf16.msra.mxu0 %v4833
    %7689 = vmatpush.bf16.msra.mxu0 %v4817
    %7690 = vmatpush.bf16.msra.mxu0 %v4801
    %7691 = vmatpush.bf16.msra.mxu0 %v4785
    %7692 = vmatpush.bf16.msra.mxu0 %v4769
    %7693 = vmatpush.bf16.msra.mxu0 %v4753
    %7694 = vmatmul.bf16.gmra.mxu0 %v477
    %v7695 = vpop.f32.mrf.mxu0
    %v7696 = vadd.f32 %v7682, %v7695
    %v7697 = vpop.f32.mrf.mxu0
    %v7698 = vadd.f32 %v7684, %v7697
    %7699 = vdwg.mxu0
    %7700 = vmatpush.bf16.msra.mxu0 %v4993
    %7701 = vmatpush.bf16.msra.mxu0 %v4977
    %7702 = vmatpush.bf16.msra.mxu0 %v4961
    %7703 = vmatpush.bf16.msra.mxu0 %v4945
    %7704 = vmatpush.bf16.msra.mxu0 %v4929
    %7705 = vmatpush.bf16.msra.mxu0 %v4913
    %7706 = vmatpush.bf16.msra.mxu0 %v4897
    %7707 = vmatpush.bf16.msra.mxu0 %v4881
    %7708 = vmatmul.bf16.gmra.mxu0 %v478
    %v7709 = vpop.f32.mrf.mxu0
    %v7710 = vadd.f32 %v7696, %v7709
    %v7711 = vpop.f32.mrf.mxu0
    %v7712 = vadd.f32 %v7698, %v7711
    %7713 = vdwg.mxu0
    %7714 = vmatpush.bf16.msra.mxu0 %v5121
    %7715 = vmatpush.bf16.msra.mxu0 %v5105
    %7716 = vmatpush.bf16.msra.mxu0 %v5089
    %7717 = vmatpush.bf16.msra.mxu0 %v5073
    %7718 = vmatpush.bf16.msra.mxu0 %v5057
    %7719 = vmatpush.bf16.msra.mxu0 %v5041
    %7720 = vmatpush.bf16.msra.mxu0 %v5025
    %7721 = vmatpush.bf16.msra.mxu0 %v5009
    %7722 = vmatmul.bf16.gmra.mxu0 %v479
    %v7723 = vpop.f32.mrf.mxu0
    %v7724 = vadd.f32 %v7710, %v7723
    %v7725 = vpop.f32.mrf.mxu0
    %v7726 = vadd.f32 %v7712, %v7725
    %7727 = vdwg.mxu0
    %7728 = vmatpush.bf16.msra.mxu0 %v5249
    %7729 = vmatpush.bf16.msra.mxu0 %v5233
    %7730 = vmatpush.bf16.msra.mxu0 %v5217
    %7731 = vmatpush.bf16.msra.mxu0 %v5201
    %7732 = vmatpush.bf16.msra.mxu0 %v5185
    %7733 = vmatpush.bf16.msra.mxu0 %v5169
    %7734 = vmatpush.bf16.msra.mxu0 %v5153
    %7735 = vmatpush.bf16.msra.mxu0 %v5137
    %7736 = vmatmul.bf16.gmra.mxu0 %v480
    %v7737 = vpop.f32.mrf.mxu0
    %v7738 = vadd.f32 %v7724, %v7737
    %v7739 = vpop.f32.mrf.mxu0
    %v7740 = vadd.f32 %v7726, %v7739
    %7741 = vdwg.mxu0
    %7742 = vmatpush.bf16.msra.mxu0 %v5377
    %7743 = vmatpush.bf16.msra.mxu0 %v5361
    %7744 = vmatpush.bf16.msra.mxu0 %v5345
    %7745 = vmatpush.bf16.msra.mxu0 %v5329
    %7746 = vmatpush.bf16.msra.mxu0 %v5313
    %7747 = vmatpush.bf16.msra.mxu0 %v5297
    %7748 = vmatpush.bf16.msra.mxu0 %v5281
    %7749 = vmatpush.bf16.msra.mxu0 %v5265
    %7750 = vmatmul.bf16.gmra.mxu0 %v481
    %v7751 = vpop.f32.mrf.mxu0
    %v7752 = vadd.f32 %v7738, %v7751
    %v7753 = vpop.f32.mrf.mxu0
    %v7754 = vadd.f32 %v7740, %v7753
    %7755 = vdwg.mxu0
    %7756 = vmatpush.bf16.msra.mxu0 %v5505
    %7757 = vmatpush.bf16.msra.mxu0 %v5489
    %7758 = vmatpush.bf16.msra.mxu0 %v5473
    %7759 = vmatpush.bf16.msra.mxu0 %v5457
    %7760 = vmatpush.bf16.msra.mxu0 %v5441
    %7761 = vmatpush.bf16.msra.mxu0 %v5425
    %7762 = vmatpush.bf16.msra.mxu0 %v5409
    %7763 = vmatpush.bf16.msra.mxu0 %v5393
    %7764 = vmatmul.bf16.gmra.mxu0 %v482
    %v7765 = vpop.f32.mrf.mxu0
    %v7766 = vadd.f32 %v7752, %v7765
    %v7767 = vpop.f32.mrf.mxu0
    %v7768 = vadd.f32 %v7754, %v7767
    %7769 = vdwg.mxu0
    %7770 = vmatpush.bf16.msra.mxu0 %v5633
    %7771 = vmatpush.bf16.msra.mxu0 %v5617
    %7772 = vmatpush.bf16.msra.mxu0 %v5601
    %7773 = vmatpush.bf16.msra.mxu0 %v5585
    %7774 = vmatpush.bf16.msra.mxu0 %v5569
    %7775 = vmatpush.bf16.msra.mxu0 %v5553
    %7776 = vmatpush.bf16.msra.mxu0 %v5537
    %7777 = vmatpush.bf16.msra.mxu0 %v5521
    %7778 = vmatmul.bf16.gmra.mxu0 %v483
    %v7779 = vpop.f32.mrf.mxu0
    %v7780 = vadd.f32 %v7766, %v7779
    %v7781 = vpop.f32.mrf.mxu0
    %v7782 = vadd.f32 %v7768, %v7781
    %7783 = vdwg.mxu0
    %7784 = vmatpush.bf16.msra.mxu0 %v4738
    %7785 = vmatpush.bf16.msra.mxu0 %v4722
    %7786 = vmatpush.bf16.msra.mxu0 %v4706
    %7787 = vmatpush.bf16.msra.mxu0 %v4690
    %7788 = vmatpush.bf16.msra.mxu0 %v4674
    %7789 = vmatpush.bf16.msra.mxu0 %v4658
    %7790 = vmatpush.bf16.msra.mxu0 %v4642
    %7791 = vmatpush.bf16.msra.mxu0 %v4626
    %7792 = vmatmul.bf16.gmra.mxu0 %v476
    %v7793 = vpop.f32.mrf.mxu0
    %v7794 = vadd.f32 %v1522, %v7793
    %v7795 = vpop.f32.mrf.mxu0
    %v7796 = vadd.f32 %v1522, %v7795
    %7797 = vdwg.mxu0
    %7798 = vmatpush.bf16.msra.mxu0 %v4866
    %7799 = vmatpush.bf16.msra.mxu0 %v4850
    %7800 = vmatpush.bf16.msra.mxu0 %v4834
    %7801 = vmatpush.bf16.msra.mxu0 %v4818
    %7802 = vmatpush.bf16.msra.mxu0 %v4802
    %7803 = vmatpush.bf16.msra.mxu0 %v4786
    %7804 = vmatpush.bf16.msra.mxu0 %v4770
    %7805 = vmatpush.bf16.msra.mxu0 %v4754
    %7806 = vmatmul.bf16.gmra.mxu0 %v477
    %v7807 = vpop.f32.mrf.mxu0
    %v7808 = vadd.f32 %v7794, %v7807
    %v7809 = vpop.f32.mrf.mxu0
    %v7810 = vadd.f32 %v7796, %v7809
    %7811 = vdwg.mxu0
    %7812 = vmatpush.bf16.msra.mxu0 %v4994
    %7813 = vmatpush.bf16.msra.mxu0 %v4978
    %7814 = vmatpush.bf16.msra.mxu0 %v4962
    %7815 = vmatpush.bf16.msra.mxu0 %v4946
    %7816 = vmatpush.bf16.msra.mxu0 %v4930
    %7817 = vmatpush.bf16.msra.mxu0 %v4914
    %7818 = vmatpush.bf16.msra.mxu0 %v4898
    %7819 = vmatpush.bf16.msra.mxu0 %v4882
    %7820 = vmatmul.bf16.gmra.mxu0 %v478
    %v7821 = vpop.f32.mrf.mxu0
    %v7822 = vadd.f32 %v7808, %v7821
    %v7823 = vpop.f32.mrf.mxu0
    %v7824 = vadd.f32 %v7810, %v7823
    %7825 = vdwg.mxu0
    %7826 = vmatpush.bf16.msra.mxu0 %v5122
    %7827 = vmatpush.bf16.msra.mxu0 %v5106
    %7828 = vmatpush.bf16.msra.mxu0 %v5090
    %7829 = vmatpush.bf16.msra.mxu0 %v5074
    %7830 = vmatpush.bf16.msra.mxu0 %v5058
    %7831 = vmatpush.bf16.msra.mxu0 %v5042
    %7832 = vmatpush.bf16.msra.mxu0 %v5026
    %7833 = vmatpush.bf16.msra.mxu0 %v5010
    %7834 = vmatmul.bf16.gmra.mxu0 %v479
    %v7835 = vpop.f32.mrf.mxu0
    %v7836 = vadd.f32 %v7822, %v7835
    %v7837 = vpop.f32.mrf.mxu0
    %v7838 = vadd.f32 %v7824, %v7837
    %7839 = vdwg.mxu0
    %7840 = vmatpush.bf16.msra.mxu0 %v5250
    %7841 = vmatpush.bf16.msra.mxu0 %v5234
    %7842 = vmatpush.bf16.msra.mxu0 %v5218
    %7843 = vmatpush.bf16.msra.mxu0 %v5202
    %7844 = vmatpush.bf16.msra.mxu0 %v5186
    %7845 = vmatpush.bf16.msra.mxu0 %v5170
    %7846 = vmatpush.bf16.msra.mxu0 %v5154
    %7847 = vmatpush.bf16.msra.mxu0 %v5138
    %7848 = vmatmul.bf16.gmra.mxu0 %v480
    %v7849 = vpop.f32.mrf.mxu0
    %v7850 = vadd.f32 %v7836, %v7849
    %v7851 = vpop.f32.mrf.mxu0
    %v7852 = vadd.f32 %v7838, %v7851
    %7853 = vdwg.mxu0
    %7854 = vmatpush.bf16.msra.mxu0 %v5378
    %7855 = vmatpush.bf16.msra.mxu0 %v5362
    %7856 = vmatpush.bf16.msra.mxu0 %v5346
    %7857 = vmatpush.bf16.msra.mxu0 %v5330
    %7858 = vmatpush.bf16.msra.mxu0 %v5314
    %7859 = vmatpush.bf16.msra.mxu0 %v5298
    %7860 = vmatpush.bf16.msra.mxu0 %v5282
    %7861 = vmatpush.bf16.msra.mxu0 %v5266
    %7862 = vmatmul.bf16.gmra.mxu0 %v481
    %v7863 = vpop.f32.mrf.mxu0
    %v7864 = vadd.f32 %v7850, %v7863
    %v7865 = vpop.f32.mrf.mxu0
    %v7866 = vadd.f32 %v7852, %v7865
    %7867 = vdwg.mxu0
    %7868 = vmatpush.bf16.msra.mxu0 %v5506
    %7869 = vmatpush.bf16.msra.mxu0 %v5490
    %7870 = vmatpush.bf16.msra.mxu0 %v5474
    %7871 = vmatpush.bf16.msra.mxu0 %v5458
    %7872 = vmatpush.bf16.msra.mxu0 %v5442
    %7873 = vmatpush.bf16.msra.mxu0 %v5426
    %7874 = vmatpush.bf16.msra.mxu0 %v5410
    %7875 = vmatpush.bf16.msra.mxu0 %v5394
    %7876 = vmatmul.bf16.gmra.mxu0 %v482
    %v7877 = vpop.f32.mrf.mxu0
    %v7878 = vadd.f32 %v7864, %v7877
    %v7879 = vpop.f32.mrf.mxu0
    %v7880 = vadd.f32 %v7866, %v7879
    %7881 = vdwg.mxu0
    %7882 = vmatpush.bf16.msra.mxu0 %v5634
    %7883 = vmatpush.bf16.msra.mxu0 %v5618
    %7884 = vmatpush.bf16.msra.mxu0 %v5602
    %7885 = vmatpush.bf16.msra.mxu0 %v5586
    %7886 = vmatpush.bf16.msra.mxu0 %v5570
    %7887 = vmatpush.bf16.msra.mxu0 %v5554
    %7888 = vmatpush.bf16.msra.mxu0 %v5538
    %7889 = vmatpush.bf16.msra.mxu0 %v5522
    %7890 = vmatmul.bf16.gmra.mxu0 %v483
    %v7891 = vpop.f32.mrf.mxu0
    %v7892 = vadd.f32 %v7878, %v7891
    %v7893 = vpop.f32.mrf.mxu0
    %v7894 = vadd.f32 %v7880, %v7893
    %7895 = vdwg.mxu0
    %7896 = vmatpush.bf16.msra.mxu0 %v4739
    %7897 = vmatpush.bf16.msra.mxu0 %v4723
    %7898 = vmatpush.bf16.msra.mxu0 %v4707
    %7899 = vmatpush.bf16.msra.mxu0 %v4691
    %7900 = vmatpush.bf16.msra.mxu0 %v4675
    %7901 = vmatpush.bf16.msra.mxu0 %v4659
    %7902 = vmatpush.bf16.msra.mxu0 %v4643
    %7903 = vmatpush.bf16.msra.mxu0 %v4627
    %7904 = vmatmul.bf16.gmra.mxu0 %v476
    %v7905 = vpop.f32.mrf.mxu0
    %v7906 = vadd.f32 %v1523, %v7905
    %v7907 = vpop.f32.mrf.mxu0
    %v7908 = vadd.f32 %v1523, %v7907
    %7909 = vdwg.mxu0
    %7910 = vmatpush.bf16.msra.mxu0 %v4867
    %7911 = vmatpush.bf16.msra.mxu0 %v4851
    %7912 = vmatpush.bf16.msra.mxu0 %v4835
    %7913 = vmatpush.bf16.msra.mxu0 %v4819
    %7914 = vmatpush.bf16.msra.mxu0 %v4803
    %7915 = vmatpush.bf16.msra.mxu0 %v4787
    %7916 = vmatpush.bf16.msra.mxu0 %v4771
    %7917 = vmatpush.bf16.msra.mxu0 %v4755
    %7918 = vmatmul.bf16.gmra.mxu0 %v477
    %v7919 = vpop.f32.mrf.mxu0
    %v7920 = vadd.f32 %v7906, %v7919
    %v7921 = vpop.f32.mrf.mxu0
    %v7922 = vadd.f32 %v7908, %v7921
    %7923 = vdwg.mxu0
    %7924 = vmatpush.bf16.msra.mxu0 %v4995
    %7925 = vmatpush.bf16.msra.mxu0 %v4979
    %7926 = vmatpush.bf16.msra.mxu0 %v4963
    %7927 = vmatpush.bf16.msra.mxu0 %v4947
    %7928 = vmatpush.bf16.msra.mxu0 %v4931
    %7929 = vmatpush.bf16.msra.mxu0 %v4915
    %7930 = vmatpush.bf16.msra.mxu0 %v4899
    %7931 = vmatpush.bf16.msra.mxu0 %v4883
    %7932 = vmatmul.bf16.gmra.mxu0 %v478
    %v7933 = vpop.f32.mrf.mxu0
    %v7934 = vadd.f32 %v7920, %v7933
    %v7935 = vpop.f32.mrf.mxu0
    %v7936 = vadd.f32 %v7922, %v7935
    %7937 = vdwg.mxu0
    %7938 = vmatpush.bf16.msra.mxu0 %v5123
    %7939 = vmatpush.bf16.msra.mxu0 %v5107
    %7940 = vmatpush.bf16.msra.mxu0 %v5091
    %7941 = vmatpush.bf16.msra.mxu0 %v5075
    %7942 = vmatpush.bf16.msra.mxu0 %v5059
    %7943 = vmatpush.bf16.msra.mxu0 %v5043
    %7944 = vmatpush.bf16.msra.mxu0 %v5027
    %7945 = vmatpush.bf16.msra.mxu0 %v5011
    %7946 = vmatmul.bf16.gmra.mxu0 %v479
    %v7947 = vpop.f32.mrf.mxu0
    %v7948 = vadd.f32 %v7934, %v7947
    %v7949 = vpop.f32.mrf.mxu0
    %v7950 = vadd.f32 %v7936, %v7949
    %7951 = vdwg.mxu0
    %7952 = vmatpush.bf16.msra.mxu0 %v5251
    %7953 = vmatpush.bf16.msra.mxu0 %v5235
    %7954 = vmatpush.bf16.msra.mxu0 %v5219
    %7955 = vmatpush.bf16.msra.mxu0 %v5203
    %7956 = vmatpush.bf16.msra.mxu0 %v5187
    %7957 = vmatpush.bf16.msra.mxu0 %v5171
    %7958 = vmatpush.bf16.msra.mxu0 %v5155
    %7959 = vmatpush.bf16.msra.mxu0 %v5139
    %7960 = vmatmul.bf16.gmra.mxu0 %v480
    %v7961 = vpop.f32.mrf.mxu0
    %v7962 = vadd.f32 %v7948, %v7961
    %v7963 = vpop.f32.mrf.mxu0
    %v7964 = vadd.f32 %v7950, %v7963
    %7965 = vdwg.mxu0
    %7966 = vmatpush.bf16.msra.mxu0 %v5379
    %7967 = vmatpush.bf16.msra.mxu0 %v5363
    %7968 = vmatpush.bf16.msra.mxu0 %v5347
    %7969 = vmatpush.bf16.msra.mxu0 %v5331
    %7970 = vmatpush.bf16.msra.mxu0 %v5315
    %7971 = vmatpush.bf16.msra.mxu0 %v5299
    %7972 = vmatpush.bf16.msra.mxu0 %v5283
    %7973 = vmatpush.bf16.msra.mxu0 %v5267
    %7974 = vmatmul.bf16.gmra.mxu0 %v481
    %v7975 = vpop.f32.mrf.mxu0
    %v7976 = vadd.f32 %v7962, %v7975
    %v7977 = vpop.f32.mrf.mxu0
    %v7978 = vadd.f32 %v7964, %v7977
    %7979 = vdwg.mxu0
    %7980 = vmatpush.bf16.msra.mxu0 %v5507
    %7981 = vmatpush.bf16.msra.mxu0 %v5491
    %7982 = vmatpush.bf16.msra.mxu0 %v5475
    %7983 = vmatpush.bf16.msra.mxu0 %v5459
    %7984 = vmatpush.bf16.msra.mxu0 %v5443
    %7985 = vmatpush.bf16.msra.mxu0 %v5427
    %7986 = vmatpush.bf16.msra.mxu0 %v5411
    %7987 = vmatpush.bf16.msra.mxu0 %v5395
    %7988 = vmatmul.bf16.gmra.mxu0 %v482
    %v7989 = vpop.f32.mrf.mxu0
    %v7990 = vadd.f32 %v7976, %v7989
    %v7991 = vpop.f32.mrf.mxu0
    %v7992 = vadd.f32 %v7978, %v7991
    %7993 = vdwg.mxu0
    %7994 = vmatpush.bf16.msra.mxu0 %v5635
    %7995 = vmatpush.bf16.msra.mxu0 %v5619
    %7996 = vmatpush.bf16.msra.mxu0 %v5603
    %7997 = vmatpush.bf16.msra.mxu0 %v5587
    %7998 = vmatpush.bf16.msra.mxu0 %v5571
    %7999 = vmatpush.bf16.msra.mxu0 %v5555
    %8000 = vmatpush.bf16.msra.mxu0 %v5539
    %8001 = vmatpush.bf16.msra.mxu0 %v5523
    %8002 = vmatmul.bf16.gmra.mxu0 %v483
    %v8003 = vpop.f32.mrf.mxu0
    %v8004 = vadd.f32 %v7990, %v8003
    %v8005 = vpop.f32.mrf.mxu0
    %v8006 = vadd.f32 %v7992, %v8005
    %8007 = vdwg.mxu0
    %8008 = vmatpush.bf16.msra.mxu0 %v4740
    %8009 = vmatpush.bf16.msra.mxu0 %v4724
    %8010 = vmatpush.bf16.msra.mxu0 %v4708
    %8011 = vmatpush.bf16.msra.mxu0 %v4692
    %8012 = vmatpush.bf16.msra.mxu0 %v4676
    %8013 = vmatpush.bf16.msra.mxu0 %v4660
    %8014 = vmatpush.bf16.msra.mxu0 %v4644
    %8015 = vmatpush.bf16.msra.mxu0 %v4628
    %8016 = vmatmul.bf16.gmra.mxu0 %v476
    %v8017 = vpop.f32.mrf.mxu0
    %v8018 = vadd.f32 %v1524, %v8017
    %v8019 = vpop.f32.mrf.mxu0
    %v8020 = vadd.f32 %v1524, %v8019
    %8021 = vdwg.mxu0
    %8022 = vmatpush.bf16.msra.mxu0 %v4868
    %8023 = vmatpush.bf16.msra.mxu0 %v4852
    %8024 = vmatpush.bf16.msra.mxu0 %v4836
    %8025 = vmatpush.bf16.msra.mxu0 %v4820
    %8026 = vmatpush.bf16.msra.mxu0 %v4804
    %8027 = vmatpush.bf16.msra.mxu0 %v4788
    %8028 = vmatpush.bf16.msra.mxu0 %v4772
    %8029 = vmatpush.bf16.msra.mxu0 %v4756
    %8030 = vmatmul.bf16.gmra.mxu0 %v477
    %v8031 = vpop.f32.mrf.mxu0
    %v8032 = vadd.f32 %v8018, %v8031
    %v8033 = vpop.f32.mrf.mxu0
    %v8034 = vadd.f32 %v8020, %v8033
    %8035 = vdwg.mxu0
    %8036 = vmatpush.bf16.msra.mxu0 %v4996
    %8037 = vmatpush.bf16.msra.mxu0 %v4980
    %8038 = vmatpush.bf16.msra.mxu0 %v4964
    %8039 = vmatpush.bf16.msra.mxu0 %v4948
    %8040 = vmatpush.bf16.msra.mxu0 %v4932
    %8041 = vmatpush.bf16.msra.mxu0 %v4916
    %8042 = vmatpush.bf16.msra.mxu0 %v4900
    %8043 = vmatpush.bf16.msra.mxu0 %v4884
    %8044 = vmatmul.bf16.gmra.mxu0 %v478
    %v8045 = vpop.f32.mrf.mxu0
    %v8046 = vadd.f32 %v8032, %v8045
    %v8047 = vpop.f32.mrf.mxu0
    %v8048 = vadd.f32 %v8034, %v8047
    %8049 = vdwg.mxu0
    %8050 = vmatpush.bf16.msra.mxu0 %v5124
    %8051 = vmatpush.bf16.msra.mxu0 %v5108
    %8052 = vmatpush.bf16.msra.mxu0 %v5092
    %8053 = vmatpush.bf16.msra.mxu0 %v5076
    %8054 = vmatpush.bf16.msra.mxu0 %v5060
    %8055 = vmatpush.bf16.msra.mxu0 %v5044
    %8056 = vmatpush.bf16.msra.mxu0 %v5028
    %8057 = vmatpush.bf16.msra.mxu0 %v5012
    %8058 = vmatmul.bf16.gmra.mxu0 %v479
    %v8059 = vpop.f32.mrf.mxu0
    %v8060 = vadd.f32 %v8046, %v8059
    %v8061 = vpop.f32.mrf.mxu0
    %v8062 = vadd.f32 %v8048, %v8061
    %8063 = vdwg.mxu0
    %8064 = vmatpush.bf16.msra.mxu0 %v5252
    %8065 = vmatpush.bf16.msra.mxu0 %v5236
    %8066 = vmatpush.bf16.msra.mxu0 %v5220
    %8067 = vmatpush.bf16.msra.mxu0 %v5204
    %8068 = vmatpush.bf16.msra.mxu0 %v5188
    %8069 = vmatpush.bf16.msra.mxu0 %v5172
    %8070 = vmatpush.bf16.msra.mxu0 %v5156
    %8071 = vmatpush.bf16.msra.mxu0 %v5140
    %8072 = vmatmul.bf16.gmra.mxu0 %v480
    %v8073 = vpop.f32.mrf.mxu0
    %v8074 = vadd.f32 %v8060, %v8073
    %v8075 = vpop.f32.mrf.mxu0
    %v8076 = vadd.f32 %v8062, %v8075
    %8077 = vdwg.mxu0
    %8078 = vmatpush.bf16.msra.mxu0 %v5380
    %8079 = vmatpush.bf16.msra.mxu0 %v5364
    %8080 = vmatpush.bf16.msra.mxu0 %v5348
    %8081 = vmatpush.bf16.msra.mxu0 %v5332
    %8082 = vmatpush.bf16.msra.mxu0 %v5316
    %8083 = vmatpush.bf16.msra.mxu0 %v5300
    %8084 = vmatpush.bf16.msra.mxu0 %v5284
    %8085 = vmatpush.bf16.msra.mxu0 %v5268
    %8086 = vmatmul.bf16.gmra.mxu0 %v481
    %v8087 = vpop.f32.mrf.mxu0
    %v8088 = vadd.f32 %v8074, %v8087
    %v8089 = vpop.f32.mrf.mxu0
    %v8090 = vadd.f32 %v8076, %v8089
    %8091 = vdwg.mxu0
    %8092 = vmatpush.bf16.msra.mxu0 %v5508
    %8093 = vmatpush.bf16.msra.mxu0 %v5492
    %8094 = vmatpush.bf16.msra.mxu0 %v5476
    %8095 = vmatpush.bf16.msra.mxu0 %v5460
    %8096 = vmatpush.bf16.msra.mxu0 %v5444
    %8097 = vmatpush.bf16.msra.mxu0 %v5428
    %8098 = vmatpush.bf16.msra.mxu0 %v5412
    %8099 = vmatpush.bf16.msra.mxu0 %v5396
    %8100 = vmatmul.bf16.gmra.mxu0 %v482
    %v8101 = vpop.f32.mrf.mxu0
    %v8102 = vadd.f32 %v8088, %v8101
    %v8103 = vpop.f32.mrf.mxu0
    %v8104 = vadd.f32 %v8090, %v8103
    %8105 = vdwg.mxu0
    %8106 = vmatpush.bf16.msra.mxu0 %v5636
    %8107 = vmatpush.bf16.msra.mxu0 %v5620
    %8108 = vmatpush.bf16.msra.mxu0 %v5604
    %8109 = vmatpush.bf16.msra.mxu0 %v5588
    %8110 = vmatpush.bf16.msra.mxu0 %v5572
    %8111 = vmatpush.bf16.msra.mxu0 %v5556
    %8112 = vmatpush.bf16.msra.mxu0 %v5540
    %8113 = vmatpush.bf16.msra.mxu0 %v5524
    %8114 = vmatmul.bf16.gmra.mxu0 %v483
    %v8115 = vpop.f32.mrf.mxu0
    %v8116 = vadd.f32 %v8102, %v8115
    %v8117 = vpop.f32.mrf.mxu0
    %v8118 = vadd.f32 %v8104, %v8117
    %8119 = vdwg.mxu0
    %8120 = vmatpush.bf16.msra.mxu0 %v4741
    %8121 = vmatpush.bf16.msra.mxu0 %v4725
    %8122 = vmatpush.bf16.msra.mxu0 %v4709
    %8123 = vmatpush.bf16.msra.mxu0 %v4693
    %8124 = vmatpush.bf16.msra.mxu0 %v4677
    %8125 = vmatpush.bf16.msra.mxu0 %v4661
    %8126 = vmatpush.bf16.msra.mxu0 %v4645
    %8127 = vmatpush.bf16.msra.mxu0 %v4629
    %8128 = vmatmul.bf16.gmra.mxu0 %v476
    %v8129 = vpop.f32.mrf.mxu0
    %v8130 = vadd.f32 %v1525, %v8129
    %v8131 = vpop.f32.mrf.mxu0
    %v8132 = vadd.f32 %v1525, %v8131
    %8133 = vdwg.mxu0
    %8134 = vmatpush.bf16.msra.mxu0 %v4869
    %8135 = vmatpush.bf16.msra.mxu0 %v4853
    %8136 = vmatpush.bf16.msra.mxu0 %v4837
    %8137 = vmatpush.bf16.msra.mxu0 %v4821
    %8138 = vmatpush.bf16.msra.mxu0 %v4805
    %8139 = vmatpush.bf16.msra.mxu0 %v4789
    %8140 = vmatpush.bf16.msra.mxu0 %v4773
    %8141 = vmatpush.bf16.msra.mxu0 %v4757
    %8142 = vmatmul.bf16.gmra.mxu0 %v477
    %v8143 = vpop.f32.mrf.mxu0
    %v8144 = vadd.f32 %v8130, %v8143
    %v8145 = vpop.f32.mrf.mxu0
    %v8146 = vadd.f32 %v8132, %v8145
    %8147 = vdwg.mxu0
    %8148 = vmatpush.bf16.msra.mxu0 %v4997
    %8149 = vmatpush.bf16.msra.mxu0 %v4981
    %8150 = vmatpush.bf16.msra.mxu0 %v4965
    %8151 = vmatpush.bf16.msra.mxu0 %v4949
    %8152 = vmatpush.bf16.msra.mxu0 %v4933
    %8153 = vmatpush.bf16.msra.mxu0 %v4917
    %8154 = vmatpush.bf16.msra.mxu0 %v4901
    %8155 = vmatpush.bf16.msra.mxu0 %v4885
    %8156 = vmatmul.bf16.gmra.mxu0 %v478
    %v8157 = vpop.f32.mrf.mxu0
    %v8158 = vadd.f32 %v8144, %v8157
    %v8159 = vpop.f32.mrf.mxu0
    %v8160 = vadd.f32 %v8146, %v8159
    %8161 = vdwg.mxu0
    %8162 = vmatpush.bf16.msra.mxu0 %v5125
    %8163 = vmatpush.bf16.msra.mxu0 %v5109
    %8164 = vmatpush.bf16.msra.mxu0 %v5093
    %8165 = vmatpush.bf16.msra.mxu0 %v5077
    %8166 = vmatpush.bf16.msra.mxu0 %v5061
    %8167 = vmatpush.bf16.msra.mxu0 %v5045
    %8168 = vmatpush.bf16.msra.mxu0 %v5029
    %8169 = vmatpush.bf16.msra.mxu0 %v5013
    %8170 = vmatmul.bf16.gmra.mxu0 %v479
    %v8171 = vpop.f32.mrf.mxu0
    %v8172 = vadd.f32 %v8158, %v8171
    %v8173 = vpop.f32.mrf.mxu0
    %v8174 = vadd.f32 %v8160, %v8173
    %8175 = vdwg.mxu0
    %8176 = vmatpush.bf16.msra.mxu0 %v5253
    %8177 = vmatpush.bf16.msra.mxu0 %v5237
    %8178 = vmatpush.bf16.msra.mxu0 %v5221
    %8179 = vmatpush.bf16.msra.mxu0 %v5205
    %8180 = vmatpush.bf16.msra.mxu0 %v5189
    %8181 = vmatpush.bf16.msra.mxu0 %v5173
    %8182 = vmatpush.bf16.msra.mxu0 %v5157
    %8183 = vmatpush.bf16.msra.mxu0 %v5141
    %8184 = vmatmul.bf16.gmra.mxu0 %v480
    %v8185 = vpop.f32.mrf.mxu0
    %v8186 = vadd.f32 %v8172, %v8185
    %v8187 = vpop.f32.mrf.mxu0
    %v8188 = vadd.f32 %v8174, %v8187
    %8189 = vdwg.mxu0
    %8190 = vmatpush.bf16.msra.mxu0 %v5381
    %8191 = vmatpush.bf16.msra.mxu0 %v5365
    %8192 = vmatpush.bf16.msra.mxu0 %v5349
    %8193 = vmatpush.bf16.msra.mxu0 %v5333
    %8194 = vmatpush.bf16.msra.mxu0 %v5317
    %8195 = vmatpush.bf16.msra.mxu0 %v5301
    %8196 = vmatpush.bf16.msra.mxu0 %v5285
    %8197 = vmatpush.bf16.msra.mxu0 %v5269
    %8198 = vmatmul.bf16.gmra.mxu0 %v481
    %v8199 = vpop.f32.mrf.mxu0
    %v8200 = vadd.f32 %v8186, %v8199
    %v8201 = vpop.f32.mrf.mxu0
    %v8202 = vadd.f32 %v8188, %v8201
    %8203 = vdwg.mxu0
    %8204 = vmatpush.bf16.msra.mxu0 %v5509
    %8205 = vmatpush.bf16.msra.mxu0 %v5493
    %8206 = vmatpush.bf16.msra.mxu0 %v5477
    %8207 = vmatpush.bf16.msra.mxu0 %v5461
    %8208 = vmatpush.bf16.msra.mxu0 %v5445
    %8209 = vmatpush.bf16.msra.mxu0 %v5429
    %8210 = vmatpush.bf16.msra.mxu0 %v5413
    %8211 = vmatpush.bf16.msra.mxu0 %v5397
    %8212 = vmatmul.bf16.gmra.mxu0 %v482
    %v8213 = vpop.f32.mrf.mxu0
    %v8214 = vadd.f32 %v8200, %v8213
    %v8215 = vpop.f32.mrf.mxu0
    %v8216 = vadd.f32 %v8202, %v8215
    %8217 = vdwg.mxu0
    %8218 = vmatpush.bf16.msra.mxu0 %v5637
    %8219 = vmatpush.bf16.msra.mxu0 %v5621
    %8220 = vmatpush.bf16.msra.mxu0 %v5605
    %8221 = vmatpush.bf16.msra.mxu0 %v5589
    %8222 = vmatpush.bf16.msra.mxu0 %v5573
    %8223 = vmatpush.bf16.msra.mxu0 %v5557
    %8224 = vmatpush.bf16.msra.mxu0 %v5541
    %8225 = vmatpush.bf16.msra.mxu0 %v5525
    %8226 = vmatmul.bf16.gmra.mxu0 %v483
    %v8227 = vpop.f32.mrf.mxu0
    %v8228 = vadd.f32 %v8214, %v8227
    %v8229 = vpop.f32.mrf.mxu0
    %v8230 = vadd.f32 %v8216, %v8229
    %8231 = vdwg.mxu0
    %8232 = vmatpush.bf16.msra.mxu0 %v4742
    %8233 = vmatpush.bf16.msra.mxu0 %v4726
    %8234 = vmatpush.bf16.msra.mxu0 %v4710
    %8235 = vmatpush.bf16.msra.mxu0 %v4694
    %8236 = vmatpush.bf16.msra.mxu0 %v4678
    %8237 = vmatpush.bf16.msra.mxu0 %v4662
    %8238 = vmatpush.bf16.msra.mxu0 %v4646
    %8239 = vmatpush.bf16.msra.mxu0 %v4630
    %8240 = vmatmul.bf16.gmra.mxu0 %v476
    %v8241 = vpop.f32.mrf.mxu0
    %v8242 = vadd.f32 %v1526, %v8241
    %v8243 = vpop.f32.mrf.mxu0
    %v8244 = vadd.f32 %v1526, %v8243
    %8245 = vdwg.mxu0
    %8246 = vmatpush.bf16.msra.mxu0 %v4870
    %8247 = vmatpush.bf16.msra.mxu0 %v4854
    %8248 = vmatpush.bf16.msra.mxu0 %v4838
    %8249 = vmatpush.bf16.msra.mxu0 %v4822
    %8250 = vmatpush.bf16.msra.mxu0 %v4806
    %8251 = vmatpush.bf16.msra.mxu0 %v4790
    %8252 = vmatpush.bf16.msra.mxu0 %v4774
    %8253 = vmatpush.bf16.msra.mxu0 %v4758
    %8254 = vmatmul.bf16.gmra.mxu0 %v477
    %v8255 = vpop.f32.mrf.mxu0
    %v8256 = vadd.f32 %v8242, %v8255
    %v8257 = vpop.f32.mrf.mxu0
    %v8258 = vadd.f32 %v8244, %v8257
    %8259 = vdwg.mxu0
    %8260 = vmatpush.bf16.msra.mxu0 %v4998
    %8261 = vmatpush.bf16.msra.mxu0 %v4982
    %8262 = vmatpush.bf16.msra.mxu0 %v4966
    %8263 = vmatpush.bf16.msra.mxu0 %v4950
    %8264 = vmatpush.bf16.msra.mxu0 %v4934
    %8265 = vmatpush.bf16.msra.mxu0 %v4918
    %8266 = vmatpush.bf16.msra.mxu0 %v4902
    %8267 = vmatpush.bf16.msra.mxu0 %v4886
    %8268 = vmatmul.bf16.gmra.mxu0 %v478
    %v8269 = vpop.f32.mrf.mxu0
    %v8270 = vadd.f32 %v8256, %v8269
    %v8271 = vpop.f32.mrf.mxu0
    %v8272 = vadd.f32 %v8258, %v8271
    %8273 = vdwg.mxu0
    %8274 = vmatpush.bf16.msra.mxu0 %v5126
    %8275 = vmatpush.bf16.msra.mxu0 %v5110
    %8276 = vmatpush.bf16.msra.mxu0 %v5094
    %8277 = vmatpush.bf16.msra.mxu0 %v5078
    %8278 = vmatpush.bf16.msra.mxu0 %v5062
    %8279 = vmatpush.bf16.msra.mxu0 %v5046
    %8280 = vmatpush.bf16.msra.mxu0 %v5030
    %8281 = vmatpush.bf16.msra.mxu0 %v5014
    %8282 = vmatmul.bf16.gmra.mxu0 %v479
    %v8283 = vpop.f32.mrf.mxu0
    %v8284 = vadd.f32 %v8270, %v8283
    %v8285 = vpop.f32.mrf.mxu0
    %v8286 = vadd.f32 %v8272, %v8285
    %8287 = vdwg.mxu0
    %8288 = vmatpush.bf16.msra.mxu0 %v5254
    %8289 = vmatpush.bf16.msra.mxu0 %v5238
    %8290 = vmatpush.bf16.msra.mxu0 %v5222
    %8291 = vmatpush.bf16.msra.mxu0 %v5206
    %8292 = vmatpush.bf16.msra.mxu0 %v5190
    %8293 = vmatpush.bf16.msra.mxu0 %v5174
    %8294 = vmatpush.bf16.msra.mxu0 %v5158
    %8295 = vmatpush.bf16.msra.mxu0 %v5142
    %8296 = vmatmul.bf16.gmra.mxu0 %v480
    %v8297 = vpop.f32.mrf.mxu0
    %v8298 = vadd.f32 %v8284, %v8297
    %v8299 = vpop.f32.mrf.mxu0
    %v8300 = vadd.f32 %v8286, %v8299
    %8301 = vdwg.mxu0
    %8302 = vmatpush.bf16.msra.mxu0 %v5382
    %8303 = vmatpush.bf16.msra.mxu0 %v5366
    %8304 = vmatpush.bf16.msra.mxu0 %v5350
    %8305 = vmatpush.bf16.msra.mxu0 %v5334
    %8306 = vmatpush.bf16.msra.mxu0 %v5318
    %8307 = vmatpush.bf16.msra.mxu0 %v5302
    %8308 = vmatpush.bf16.msra.mxu0 %v5286
    %8309 = vmatpush.bf16.msra.mxu0 %v5270
    %8310 = vmatmul.bf16.gmra.mxu0 %v481
    %v8311 = vpop.f32.mrf.mxu0
    %v8312 = vadd.f32 %v8298, %v8311
    %v8313 = vpop.f32.mrf.mxu0
    %v8314 = vadd.f32 %v8300, %v8313
    %8315 = vdwg.mxu0
    %8316 = vmatpush.bf16.msra.mxu0 %v5510
    %8317 = vmatpush.bf16.msra.mxu0 %v5494
    %8318 = vmatpush.bf16.msra.mxu0 %v5478
    %8319 = vmatpush.bf16.msra.mxu0 %v5462
    %8320 = vmatpush.bf16.msra.mxu0 %v5446
    %8321 = vmatpush.bf16.msra.mxu0 %v5430
    %8322 = vmatpush.bf16.msra.mxu0 %v5414
    %8323 = vmatpush.bf16.msra.mxu0 %v5398
    %8324 = vmatmul.bf16.gmra.mxu0 %v482
    %v8325 = vpop.f32.mrf.mxu0
    %v8326 = vadd.f32 %v8312, %v8325
    %v8327 = vpop.f32.mrf.mxu0
    %v8328 = vadd.f32 %v8314, %v8327
    %8329 = vdwg.mxu0
    %8330 = vmatpush.bf16.msra.mxu0 %v5638
    %8331 = vmatpush.bf16.msra.mxu0 %v5622
    %8332 = vmatpush.bf16.msra.mxu0 %v5606
    %8333 = vmatpush.bf16.msra.mxu0 %v5590
    %8334 = vmatpush.bf16.msra.mxu0 %v5574
    %8335 = vmatpush.bf16.msra.mxu0 %v5558
    %8336 = vmatpush.bf16.msra.mxu0 %v5542
    %8337 = vmatpush.bf16.msra.mxu0 %v5526
    %8338 = vmatmul.bf16.gmra.mxu0 %v483
    %v8339 = vpop.f32.mrf.mxu0
    %v8340 = vadd.f32 %v8326, %v8339
    %v8341 = vpop.f32.mrf.mxu0
    %v8342 = vadd.f32 %v8328, %v8341
    %8343 = vdwg.mxu0
    %8344 = vmatpush.bf16.msra.mxu0 %v4743
    %8345 = vmatpush.bf16.msra.mxu0 %v4727
    %8346 = vmatpush.bf16.msra.mxu0 %v4711
    %8347 = vmatpush.bf16.msra.mxu0 %v4695
    %8348 = vmatpush.bf16.msra.mxu0 %v4679
    %8349 = vmatpush.bf16.msra.mxu0 %v4663
    %8350 = vmatpush.bf16.msra.mxu0 %v4647
    %8351 = vmatpush.bf16.msra.mxu0 %v4631
    %8352 = vmatmul.bf16.gmra.mxu0 %v476
    %v8353 = vpop.f32.mrf.mxu0
    %v8354 = vadd.f32 %v1527, %v8353
    %v8355 = vpop.f32.mrf.mxu0
    %v8356 = vadd.f32 %v1527, %v8355
    %8357 = vdwg.mxu0
    %8358 = vmatpush.bf16.msra.mxu0 %v4871
    %8359 = vmatpush.bf16.msra.mxu0 %v4855
    %8360 = vmatpush.bf16.msra.mxu0 %v4839
    %8361 = vmatpush.bf16.msra.mxu0 %v4823
    %8362 = vmatpush.bf16.msra.mxu0 %v4807
    %8363 = vmatpush.bf16.msra.mxu0 %v4791
    %8364 = vmatpush.bf16.msra.mxu0 %v4775
    %8365 = vmatpush.bf16.msra.mxu0 %v4759
    %8366 = vmatmul.bf16.gmra.mxu0 %v477
    %v8367 = vpop.f32.mrf.mxu0
    %v8368 = vadd.f32 %v8354, %v8367
    %v8369 = vpop.f32.mrf.mxu0
    %v8370 = vadd.f32 %v8356, %v8369
    %8371 = vdwg.mxu0
    %8372 = vmatpush.bf16.msra.mxu0 %v4999
    %8373 = vmatpush.bf16.msra.mxu0 %v4983
    %8374 = vmatpush.bf16.msra.mxu0 %v4967
    %8375 = vmatpush.bf16.msra.mxu0 %v4951
    %8376 = vmatpush.bf16.msra.mxu0 %v4935
    %8377 = vmatpush.bf16.msra.mxu0 %v4919
    %8378 = vmatpush.bf16.msra.mxu0 %v4903
    %8379 = vmatpush.bf16.msra.mxu0 %v4887
    %8380 = vmatmul.bf16.gmra.mxu0 %v478
    %v8381 = vpop.f32.mrf.mxu0
    %v8382 = vadd.f32 %v8368, %v8381
    %v8383 = vpop.f32.mrf.mxu0
    %v8384 = vadd.f32 %v8370, %v8383
    %8385 = vdwg.mxu0
    %8386 = vmatpush.bf16.msra.mxu0 %v5127
    %8387 = vmatpush.bf16.msra.mxu0 %v5111
    %8388 = vmatpush.bf16.msra.mxu0 %v5095
    %8389 = vmatpush.bf16.msra.mxu0 %v5079
    %8390 = vmatpush.bf16.msra.mxu0 %v5063
    %8391 = vmatpush.bf16.msra.mxu0 %v5047
    %8392 = vmatpush.bf16.msra.mxu0 %v5031
    %8393 = vmatpush.bf16.msra.mxu0 %v5015
    %8394 = vmatmul.bf16.gmra.mxu0 %v479
    %v8395 = vpop.f32.mrf.mxu0
    %v8396 = vadd.f32 %v8382, %v8395
    %v8397 = vpop.f32.mrf.mxu0
    %v8398 = vadd.f32 %v8384, %v8397
    %8399 = vdwg.mxu0
    %8400 = vmatpush.bf16.msra.mxu0 %v5255
    %8401 = vmatpush.bf16.msra.mxu0 %v5239
    %8402 = vmatpush.bf16.msra.mxu0 %v5223
    %8403 = vmatpush.bf16.msra.mxu0 %v5207
    %8404 = vmatpush.bf16.msra.mxu0 %v5191
    %8405 = vmatpush.bf16.msra.mxu0 %v5175
    %8406 = vmatpush.bf16.msra.mxu0 %v5159
    %8407 = vmatpush.bf16.msra.mxu0 %v5143
    %8408 = vmatmul.bf16.gmra.mxu0 %v480
    %v8409 = vpop.f32.mrf.mxu0
    %v8410 = vadd.f32 %v8396, %v8409
    %v8411 = vpop.f32.mrf.mxu0
    %v8412 = vadd.f32 %v8398, %v8411
    %8413 = vdwg.mxu0
    %8414 = vmatpush.bf16.msra.mxu0 %v5383
    %8415 = vmatpush.bf16.msra.mxu0 %v5367
    %8416 = vmatpush.bf16.msra.mxu0 %v5351
    %8417 = vmatpush.bf16.msra.mxu0 %v5335
    %8418 = vmatpush.bf16.msra.mxu0 %v5319
    %8419 = vmatpush.bf16.msra.mxu0 %v5303
    %8420 = vmatpush.bf16.msra.mxu0 %v5287
    %8421 = vmatpush.bf16.msra.mxu0 %v5271
    %8422 = vmatmul.bf16.gmra.mxu0 %v481
    %v8423 = vpop.f32.mrf.mxu0
    %v8424 = vadd.f32 %v8410, %v8423
    %v8425 = vpop.f32.mrf.mxu0
    %v8426 = vadd.f32 %v8412, %v8425
    %8427 = vdwg.mxu0
    %8428 = vmatpush.bf16.msra.mxu0 %v5511
    %8429 = vmatpush.bf16.msra.mxu0 %v5495
    %8430 = vmatpush.bf16.msra.mxu0 %v5479
    %8431 = vmatpush.bf16.msra.mxu0 %v5463
    %8432 = vmatpush.bf16.msra.mxu0 %v5447
    %8433 = vmatpush.bf16.msra.mxu0 %v5431
    %8434 = vmatpush.bf16.msra.mxu0 %v5415
    %8435 = vmatpush.bf16.msra.mxu0 %v5399
    %8436 = vmatmul.bf16.gmra.mxu0 %v482
    %v8437 = vpop.f32.mrf.mxu0
    %v8438 = vadd.f32 %v8424, %v8437
    %v8439 = vpop.f32.mrf.mxu0
    %v8440 = vadd.f32 %v8426, %v8439
    %8441 = vdwg.mxu0
    %8442 = vmatpush.bf16.msra.mxu0 %v5639
    %8443 = vmatpush.bf16.msra.mxu0 %v5623
    %8444 = vmatpush.bf16.msra.mxu0 %v5607
    %8445 = vmatpush.bf16.msra.mxu0 %v5591
    %8446 = vmatpush.bf16.msra.mxu0 %v5575
    %8447 = vmatpush.bf16.msra.mxu0 %v5559
    %8448 = vmatpush.bf16.msra.mxu0 %v5543
    %8449 = vmatpush.bf16.msra.mxu0 %v5527
    %8450 = vmatmul.bf16.gmra.mxu0 %v483
    %v8451 = vpop.f32.mrf.mxu0
    %v8452 = vadd.f32 %v8438, %v8451
    %v8453 = vpop.f32.mrf.mxu0
    %v8454 = vadd.f32 %v8440, %v8453
    %8455 = vdwg.mxu0
    %v8456 = vmax.f32 %v6772, 0.0
    %v8457 = vmax.f32 %v6884, 0.0
    %v8458 = vmax.f32 %v6996, 0.0
    %v8459 = vmax.f32 %v7108, 0.0
    %v8460 = vmax.f32 %v7220, 0.0
    %v8461 = vmax.f32 %v7332, 0.0
    %v8462 = vmax.f32 %v7444, 0.0
    %v8463 = vmax.f32 %v7556, 0.0
    %v8464 = vmax.f32 %v7668, 0.0
    %v8465 = vmax.f32 %v7780, 0.0
    %v8466 = vmax.f32 %v7892, 0.0
    %v8467 = vmax.f32 %v8004, 0.0
    %v8468 = vmax.f32 %v8116, 0.0
    %v8469 = vmax.f32 %v8228, 0.0
    %v8470 = vmax.f32 %v8340, 0.0
    %v8471 = vmax.f32 %v8452, 0.0
    %v8472 = vmax.f32 %v6774, 0.0
    %v8473 = vmax.f32 %v6886, 0.0
    %v8474 = vmax.f32 %v6998, 0.0
    %v8475 = vmax.f32 %v7110, 0.0
    %v8476 = vmax.f32 %v7222, 0.0
    %v8477 = vmax.f32 %v7334, 0.0
    %v8478 = vmax.f32 %v7446, 0.0
    %v8479 = vmax.f32 %v7558, 0.0
    %v8480 = vmax.f32 %v7670, 0.0
    %v8481 = vmax.f32 %v7782, 0.0
    %v8482 = vmax.f32 %v7894, 0.0
    %v8483 = vmax.f32 %v8006, 0.0
    %v8484 = vmax.f32 %v8118, 0.0
    %v8485 = vmax.f32 %v8230, 0.0
    %v8486 = vmax.f32 %v8342, 0.0
    %v8487 = vmax.f32 %v8454, 0.0
    %v8488 = vpack.c.bf16 %v8472, %v8456
    %v8489 = vpack.c.bf16 %v8473, %v8457
    %v8490 = vpack.c.bf16 %v8474, %v8458
    %v8491 = vpack.c.bf16 %v8475, %v8459
    %v8492 = vpack.c.bf16 %v8476, %v8460
    %v8493 = vpack.c.bf16 %v8477, %v8461
    %v8494 = vpack.c.bf16 %v8478, %v8462
    %v8495 = vpack.c.bf16 %v8479, %v8463
    %v8496 = vpack.c.bf16 %v8480, %v8464
    %v8497 = vpack.c.bf16 %v8481, %v8465
    %v8498 = vpack.c.bf16 %v8482, %v8466
    %v8499 = vpack.c.bf16 %v8483, %v8467
    %v8500 = vpack.c.bf16 %v8484, %v8468
    %v8501 = vpack.c.bf16 %v8485, %v8469
    %v8502 = vpack.c.bf16 %v8486, %v8470
    %v8503 = vpack.c.bf16 %v8487, %v8471
    %v8504 = vld [vmem:[#allocation11] sm:$0xf]
    %v8505 = vld [vmem:[#allocation11 + $0x4] sm:$0xf]
    %v8506 = vld [vmem:[#allocation11 + $0x8] sm:$0xf]
    %v8507 = vld [vmem:[#allocation11 + $0xc] sm:$0xf]
    %v8508 = vld [vmem:[#allocation11 + $0x10] sm:$0xf]
    %v8509 = vld [vmem:[#allocation11 + $0x14] sm:$0xf]
    %v8510 = vld [vmem:[#allocation11 + $0x18] sm:$0xf]
    %v8511 = vld [vmem:[#allocation11 + $0x1c] sm:$0xf]
    %v8512 = vld [vmem:[#allocation11 + $0x20] sm:$0xf]
    %v8513 = vld [vmem:[#allocation11 + $0x24] sm:$0xf]
    %v8514 = vld [vmem:[#allocation11 + $0x28] sm:$0xf]
    %v8515 = vld [vmem:[#allocation11 + $0x2c] sm:$0xf]
    %v8516 = vld [vmem:[#allocation11 + $0x30] sm:$0xf]
    %v8517 = vld [vmem:[#allocation11 + $0x34] sm:$0xf]
    %v8518 = vld [vmem:[#allocation11 + $0x38] sm:$0xf]
    %v8519 = vld [vmem:[#allocation11 + $0x3c] sm:$0xf]
    %v8520 = vld [vmem:[#allocation11 + $0x40] sm:$0xf]
    %v8521 = vld [vmem:[#allocation11 + $0x44] sm:$0xf]
    %v8522 = vld [vmem:[#allocation11 + $0x48] sm:$0xf]
    %v8523 = vld [vmem:[#allocation11 + $0x4c] sm:$0xf]
    %v8524 = vld [vmem:[#allocation11 + $0x50] sm:$0xf]
    %v8525 = vld [vmem:[#allocation11 + $0x54] sm:$0xf]
    %v8526 = vld [vmem:[#allocation11 + $0x58] sm:$0xf]
    %v8527 = vld [vmem:[#allocation11 + $0x5c] sm:$0xf]
    %v8528 = vld [vmem:[#allocation11 + $0x60] sm:$0xf]
    %v8529 = vld [vmem:[#allocation11 + $0x64] sm:$0xf]
    %v8530 = vld [vmem:[#allocation11 + $0x68] sm:$0xf]
    %v8531 = vld [vmem:[#allocation11 + $0x6c] sm:$0xf]
    %v8532 = vld [vmem:[#allocation11 + $0x70] sm:$0xf]
    %v8533 = vld [vmem:[#allocation11 + $0x74] sm:$0xf]
    %v8534 = vld [vmem:[#allocation11 + $0x78] sm:$0xf]
    %v8535 = vld [vmem:[#allocation11 + $0x7c] sm:$0xf]
    %v8536 = vld [vmem:[#allocation11 + $0x80] sm:$0xf]
    %v8537 = vld [vmem:[#allocation11 + $0x84] sm:$0xf]
    %v8538 = vld [vmem:[#allocation11 + $0x88] sm:$0xf]
    %v8539 = vld [vmem:[#allocation11 + $0x8c] sm:$0xf]
    %v8540 = vld [vmem:[#allocation11 + $0x90] sm:$0xf]
    %v8541 = vld [vmem:[#allocation11 + $0x94] sm:$0xf]
    %v8542 = vld [vmem:[#allocation11 + $0x98] sm:$0xf]
    %v8543 = vld [vmem:[#allocation11 + $0x9c] sm:$0xf]
    %v8544 = vld [vmem:[#allocation11 + $0xa0] sm:$0xf]
    %v8545 = vld [vmem:[#allocation11 + $0xa4] sm:$0xf]
    %v8546 = vld [vmem:[#allocation11 + $0xa8] sm:$0xf]
    %v8547 = vld [vmem:[#allocation11 + $0xac] sm:$0xf]
    %v8548 = vld [vmem:[#allocation11 + $0xb0] sm:$0xf]
    %v8549 = vld [vmem:[#allocation11 + $0xb4] sm:$0xf]
    %v8550 = vld [vmem:[#allocation11 + $0xb8] sm:$0xf]
    %v8551 = vld [vmem:[#allocation11 + $0xbc] sm:$0xf]
    %v8552 = vld [vmem:[#allocation11 + $0xc0] sm:$0xf]
    %v8553 = vld [vmem:[#allocation11 + $0xc4] sm:$0xf]
    %v8554 = vld [vmem:[#allocation11 + $0xc8] sm:$0xf]
    %v8555 = vld [vmem:[#allocation11 + $0xcc] sm:$0xf]
    %v8556 = vld [vmem:[#allocation11 + $0xd0] sm:$0xf]
    %v8557 = vld [vmem:[#allocation11 + $0xd4] sm:$0xf]
    %v8558 = vld [vmem:[#allocation11 + $0xd8] sm:$0xf]
    %v8559 = vld [vmem:[#allocation11 + $0xdc] sm:$0xf]
    %v8560 = vld [vmem:[#allocation11 + $0xe0] sm:$0xf]
    %v8561 = vld [vmem:[#allocation11 + $0xe4] sm:$0xf]
    %v8562 = vld [vmem:[#allocation11 + $0xe8] sm:$0xf]
    %v8563 = vld [vmem:[#allocation11 + $0xec] sm:$0xf]
    %v8564 = vld [vmem:[#allocation11 + $0xf0] sm:$0xf]
    %v8565 = vld [vmem:[#allocation11 + $0xf4] sm:$0xf]
    %v8566 = vld [vmem:[#allocation11 + $0xf8] sm:$0xf]
    %v8567 = vld [vmem:[#allocation11 + $0xfc] sm:$0xf]
    %v8568 = vld [vmem:[#allocation11 + $0x100] sm:$0xf]
    %v8569 = vld [vmem:[#allocation11 + $0x104] sm:$0xf]
    %v8570 = vld [vmem:[#allocation11 + $0x108] sm:$0xf]
    %v8571 = vld [vmem:[#allocation11 + $0x10c] sm:$0xf]
    %v8572 = vld [vmem:[#allocation11 + $0x110] sm:$0xf]
    %v8573 = vld [vmem:[#allocation11 + $0x114] sm:$0xf]
    %v8574 = vld [vmem:[#allocation11 + $0x118] sm:$0xf]
    %v8575 = vld [vmem:[#allocation11 + $0x11c] sm:$0xf]
    %v8576 = vld [vmem:[#allocation11 + $0x120] sm:$0xf]
    %v8577 = vld [vmem:[#allocation11 + $0x124] sm:$0xf]
    %v8578 = vld [vmem:[#allocation11 + $0x128] sm:$0xf]
    %v8579 = vld [vmem:[#allocation11 + $0x12c] sm:$0xf]
    %v8580 = vld [vmem:[#allocation11 + $0x130] sm:$0xf]
    %v8581 = vld [vmem:[#allocation11 + $0x134] sm:$0xf]
    %v8582 = vld [vmem:[#allocation11 + $0x138] sm:$0xf]
    %v8583 = vld [vmem:[#allocation11 + $0x13c] sm:$0xf]
    %v8584 = vld [vmem:[#allocation11 + $0x140] sm:$0xf]
    %v8585 = vld [vmem:[#allocation11 + $0x144] sm:$0xf]
    %v8586 = vld [vmem:[#allocation11 + $0x148] sm:$0xf]
    %v8587 = vld [vmem:[#allocation11 + $0x14c] sm:$0xf]
    %v8588 = vld [vmem:[#allocation11 + $0x150] sm:$0xf]
    %v8589 = vld [vmem:[#allocation11 + $0x154] sm:$0xf]
    %v8590 = vld [vmem:[#allocation11 + $0x158] sm:$0xf]
    %v8591 = vld [vmem:[#allocation11 + $0x15c] sm:$0xf]
    %v8592 = vld [vmem:[#allocation11 + $0x160] sm:$0xf]
    %v8593 = vld [vmem:[#allocation11 + $0x164] sm:$0xf]
    %v8594 = vld [vmem:[#allocation11 + $0x168] sm:$0xf]
    %v8595 = vld [vmem:[#allocation11 + $0x16c] sm:$0xf]
    %v8596 = vld [vmem:[#allocation11 + $0x170] sm:$0xf]
    %v8597 = vld [vmem:[#allocation11 + $0x174] sm:$0xf]
    %v8598 = vld [vmem:[#allocation11 + $0x178] sm:$0xf]
    %v8599 = vld [vmem:[#allocation11 + $0x17c] sm:$0xf]
    %v8600 = vld [vmem:[#allocation11 + $0x180] sm:$0xf]
    %v8601 = vld [vmem:[#allocation11 + $0x184] sm:$0xf]
    %v8602 = vld [vmem:[#allocation11 + $0x188] sm:$0xf]
    %v8603 = vld [vmem:[#allocation11 + $0x18c] sm:$0xf]
    %v8604 = vld [vmem:[#allocation11 + $0x190] sm:$0xf]
    %v8605 = vld [vmem:[#allocation11 + $0x194] sm:$0xf]
    %v8606 = vld [vmem:[#allocation11 + $0x198] sm:$0xf]
    %v8607 = vld [vmem:[#allocation11 + $0x19c] sm:$0xf]
    %v8608 = vld [vmem:[#allocation11 + $0x1a0] sm:$0xf]
    %v8609 = vld [vmem:[#allocation11 + $0x1a4] sm:$0xf]
    %v8610 = vld [vmem:[#allocation11 + $0x1a8] sm:$0xf]
    %v8611 = vld [vmem:[#allocation11 + $0x1ac] sm:$0xf]
    %v8612 = vld [vmem:[#allocation11 + $0x1b0] sm:$0xf]
    %v8613 = vld [vmem:[#allocation11 + $0x1b4] sm:$0xf]
    %v8614 = vld [vmem:[#allocation11 + $0x1b8] sm:$0xf]
    %v8615 = vld [vmem:[#allocation11 + $0x1bc] sm:$0xf]
    %v8616 = vld [vmem:[#allocation11 + $0x1c0] sm:$0xf]
    %v8617 = vld [vmem:[#allocation11 + $0x1c4] sm:$0xf]
    %v8618 = vld [vmem:[#allocation11 + $0x1c8] sm:$0xf]
    %v8619 = vld [vmem:[#allocation11 + $0x1cc] sm:$0xf]
    %v8620 = vld [vmem:[#allocation11 + $0x1d0] sm:$0xf]
    %v8621 = vld [vmem:[#allocation11 + $0x1d4] sm:$0xf]
    %v8622 = vld [vmem:[#allocation11 + $0x1d8] sm:$0xf]
    %v8623 = vld [vmem:[#allocation11 + $0x1dc] sm:$0xf]
    %v8624 = vld [vmem:[#allocation11 + $0x1e0] sm:$0xf]
    %v8625 = vld [vmem:[#allocation11 + $0x1e4] sm:$0xf]
    %v8626 = vld [vmem:[#allocation11 + $0x1e8] sm:$0xf]
    %v8627 = vld [vmem:[#allocation11 + $0x1ec] sm:$0xf]
    %v8628 = vld [vmem:[#allocation11 + $0x1f0] sm:$0xf]
    %v8629 = vld [vmem:[#allocation11 + $0x1f4] sm:$0xf]
    %v8630 = vld [vmem:[#allocation11 + $0x1f8] sm:$0xf]
    %v8631 = vld [vmem:[#allocation11 + $0x1fc] sm:$0xf]
    %v8632 = vld [vmem:[#allocation11 + $0x200] sm:$0xf]
    %v8633 = vld [vmem:[#allocation11 + $0x204] sm:$0xf]
    %v8634 = vld [vmem:[#allocation11 + $0x208] sm:$0xf]
    %v8635 = vld [vmem:[#allocation11 + $0x20c] sm:$0xf]
    %v8636 = vld [vmem:[#allocation11 + $0x210] sm:$0xf]
    %v8637 = vld [vmem:[#allocation11 + $0x214] sm:$0xf]
    %v8638 = vld [vmem:[#allocation11 + $0x218] sm:$0xf]
    %v8639 = vld [vmem:[#allocation11 + $0x21c] sm:$0xf]
    %v8640 = vld [vmem:[#allocation11 + $0x220] sm:$0xf]
    %v8641 = vld [vmem:[#allocation11 + $0x224] sm:$0xf]
    %v8642 = vld [vmem:[#allocation11 + $0x228] sm:$0xf]
    %v8643 = vld [vmem:[#allocation11 + $0x22c] sm:$0xf]
    %v8644 = vld [vmem:[#allocation11 + $0x230] sm:$0xf]
    %v8645 = vld [vmem:[#allocation11 + $0x234] sm:$0xf]
    %v8646 = vld [vmem:[#allocation11 + $0x238] sm:$0xf]
    %v8647 = vld [vmem:[#allocation11 + $0x23c] sm:$0xf]
    %v8648 = vld [vmem:[#allocation11 + $0x240] sm:$0xf]
    %v8649 = vld [vmem:[#allocation11 + $0x244] sm:$0xf]
    %v8650 = vld [vmem:[#allocation11 + $0x248] sm:$0xf]
    %v8651 = vld [vmem:[#allocation11 + $0x24c] sm:$0xf]
    %v8652 = vld [vmem:[#allocation11 + $0x250] sm:$0xf]
    %v8653 = vld [vmem:[#allocation11 + $0x254] sm:$0xf]
    %v8654 = vld [vmem:[#allocation11 + $0x258] sm:$0xf]
    %v8655 = vld [vmem:[#allocation11 + $0x25c] sm:$0xf]
    %v8656 = vld [vmem:[#allocation11 + $0x260] sm:$0xf]
    %v8657 = vld [vmem:[#allocation11 + $0x264] sm:$0xf]
    %v8658 = vld [vmem:[#allocation11 + $0x268] sm:$0xf]
    %v8659 = vld [vmem:[#allocation11 + $0x26c] sm:$0xf]
    %v8660 = vld [vmem:[#allocation11 + $0x270] sm:$0xf]
    %v8661 = vld [vmem:[#allocation11 + $0x274] sm:$0xf]
    %v8662 = vld [vmem:[#allocation11 + $0x278] sm:$0xf]
    %v8663 = vld [vmem:[#allocation11 + $0x27c] sm:$0xf]
    %v8664 = vld [vmem:[#allocation11 + $0x280] sm:$0xf]
    %v8665 = vld [vmem:[#allocation11 + $0x284] sm:$0xf]
    %v8666 = vld [vmem:[#allocation11 + $0x288] sm:$0xf]
    %v8667 = vld [vmem:[#allocation11 + $0x28c] sm:$0xf]
    %v8668 = vld [vmem:[#allocation11 + $0x290] sm:$0xf]
    %v8669 = vld [vmem:[#allocation11 + $0x294] sm:$0xf]
    %v8670 = vld [vmem:[#allocation11 + $0x298] sm:$0xf]
    %v8671 = vld [vmem:[#allocation11 + $0x29c] sm:$0xf]
    %v8672 = vld [vmem:[#allocation11 + $0x2a0] sm:$0xf]
    %v8673 = vld [vmem:[#allocation11 + $0x2a4] sm:$0xf]
    %v8674 = vld [vmem:[#allocation11 + $0x2a8] sm:$0xf]
    %v8675 = vld [vmem:[#allocation11 + $0x2ac] sm:$0xf]
    %v8676 = vld [vmem:[#allocation11 + $0x2b0] sm:$0xf]
    %v8677 = vld [vmem:[#allocation11 + $0x2b4] sm:$0xf]
    %v8678 = vld [vmem:[#allocation11 + $0x2b8] sm:$0xf]
    %v8679 = vld [vmem:[#allocation11 + $0x2bc] sm:$0xf]
    %v8680 = vld [vmem:[#allocation11 + $0x2c0] sm:$0xf]
    %v8681 = vld [vmem:[#allocation11 + $0x2c4] sm:$0xf]
    %v8682 = vld [vmem:[#allocation11 + $0x2c8] sm:$0xf]
    %v8683 = vld [vmem:[#allocation11 + $0x2cc] sm:$0xf]
    %v8684 = vld [vmem:[#allocation11 + $0x2d0] sm:$0xf]
    %v8685 = vld [vmem:[#allocation11 + $0x2d4] sm:$0xf]
    %v8686 = vld [vmem:[#allocation11 + $0x2d8] sm:$0xf]
    %v8687 = vld [vmem:[#allocation11 + $0x2dc] sm:$0xf]
    %v8688 = vld [vmem:[#allocation11 + $0x2e0] sm:$0xf]
    %v8689 = vld [vmem:[#allocation11 + $0x2e4] sm:$0xf]
    %v8690 = vld [vmem:[#allocation11 + $0x2e8] sm:$0xf]
    %v8691 = vld [vmem:[#allocation11 + $0x2ec] sm:$0xf]
    %v8692 = vld [vmem:[#allocation11 + $0x2f0] sm:$0xf]
    %v8693 = vld [vmem:[#allocation11 + $0x2f4] sm:$0xf]
    %v8694 = vld [vmem:[#allocation11 + $0x2f8] sm:$0xf]
    %v8695 = vld [vmem:[#allocation11 + $0x2fc] sm:$0xf]
    %v8696 = vld [vmem:[#allocation11 + $0x300] sm:$0xf]
    %v8697 = vld [vmem:[#allocation11 + $0x304] sm:$0xf]
    %v8698 = vld [vmem:[#allocation11 + $0x308] sm:$0xf]
    %v8699 = vld [vmem:[#allocation11 + $0x30c] sm:$0xf]
    %v8700 = vld [vmem:[#allocation11 + $0x310] sm:$0xf]
    %v8701 = vld [vmem:[#allocation11 + $0x314] sm:$0xf]
    %v8702 = vld [vmem:[#allocation11 + $0x318] sm:$0xf]
    %v8703 = vld [vmem:[#allocation11 + $0x31c] sm:$0xf]
    %v8704 = vld [vmem:[#allocation11 + $0x320] sm:$0xf]
    %v8705 = vld [vmem:[#allocation11 + $0x324] sm:$0xf]
    %v8706 = vld [vmem:[#allocation11 + $0x328] sm:$0xf]
    %v8707 = vld [vmem:[#allocation11 + $0x32c] sm:$0xf]
    %v8708 = vld [vmem:[#allocation11 + $0x330] sm:$0xf]
    %v8709 = vld [vmem:[#allocation11 + $0x334] sm:$0xf]
    %v8710 = vld [vmem:[#allocation11 + $0x338] sm:$0xf]
    %v8711 = vld [vmem:[#allocation11 + $0x33c] sm:$0xf]
    %v8712 = vld [vmem:[#allocation11 + $0x340] sm:$0xf]
    %v8713 = vld [vmem:[#allocation11 + $0x344] sm:$0xf]
    %v8714 = vld [vmem:[#allocation11 + $0x348] sm:$0xf]
    %v8715 = vld [vmem:[#allocation11 + $0x34c] sm:$0xf]
    %v8716 = vld [vmem:[#allocation11 + $0x350] sm:$0xf]
    %v8717 = vld [vmem:[#allocation11 + $0x354] sm:$0xf]
    %v8718 = vld [vmem:[#allocation11 + $0x358] sm:$0xf]
    %v8719 = vld [vmem:[#allocation11 + $0x35c] sm:$0xf]
    %v8720 = vld [vmem:[#allocation11 + $0x360] sm:$0xf]
    %v8721 = vld [vmem:[#allocation11 + $0x364] sm:$0xf]
    %v8722 = vld [vmem:[#allocation11 + $0x368] sm:$0xf]
    %v8723 = vld [vmem:[#allocation11 + $0x36c] sm:$0xf]
    %v8724 = vld [vmem:[#allocation11 + $0x370] sm:$0xf]
    %v8725 = vld [vmem:[#allocation11 + $0x374] sm:$0xf]
    %v8726 = vld [vmem:[#allocation11 + $0x378] sm:$0xf]
    %v8727 = vld [vmem:[#allocation11 + $0x37c] sm:$0xf]
    %v8728 = vld [vmem:[#allocation11 + $0x380] sm:$0xf]
    %v8729 = vld [vmem:[#allocation11 + $0x384] sm:$0xf]
    %v8730 = vld [vmem:[#allocation11 + $0x388] sm:$0xf]
    %v8731 = vld [vmem:[#allocation11 + $0x38c] sm:$0xf]
    %v8732 = vld [vmem:[#allocation11 + $0x390] sm:$0xf]
    %v8733 = vld [vmem:[#allocation11 + $0x394] sm:$0xf]
    %v8734 = vld [vmem:[#allocation11 + $0x398] sm:$0xf]
    %v8735 = vld [vmem:[#allocation11 + $0x39c] sm:$0xf]
    %v8736 = vld [vmem:[#allocation11 + $0x3a0] sm:$0xf]
    %v8737 = vld [vmem:[#allocation11 + $0x3a4] sm:$0xf]
    %v8738 = vld [vmem:[#allocation11 + $0x3a8] sm:$0xf]
    %v8739 = vld [vmem:[#allocation11 + $0x3ac] sm:$0xf]
    %v8740 = vld [vmem:[#allocation11 + $0x3b0] sm:$0xf]
    %v8741 = vld [vmem:[#allocation11 + $0x3b4] sm:$0xf]
    %v8742 = vld [vmem:[#allocation11 + $0x3b8] sm:$0xf]
    %v8743 = vld [vmem:[#allocation11 + $0x3bc] sm:$0xf]
    %v8744 = vld [vmem:[#allocation11 + $0x3c0] sm:$0xf]
    %v8745 = vld [vmem:[#allocation11 + $0x3c4] sm:$0xf]
    %v8746 = vld [vmem:[#allocation11 + $0x3c8] sm:$0xf]
    %v8747 = vld [vmem:[#allocation11 + $0x3cc] sm:$0xf]
    %v8748 = vld [vmem:[#allocation11 + $0x3d0] sm:$0xf]
    %v8749 = vld [vmem:[#allocation11 + $0x3d4] sm:$0xf]
    %v8750 = vld [vmem:[#allocation11 + $0x3d8] sm:$0xf]
    %v8751 = vld [vmem:[#allocation11 + $0x3dc] sm:$0xf]
    %v8752 = vld [vmem:[#allocation11 + $0x3e0] sm:$0xf]
    %v8753 = vld [vmem:[#allocation11 + $0x3e4] sm:$0xf]
    %v8754 = vld [vmem:[#allocation11 + $0x3e8] sm:$0xf]
    %v8755 = vld [vmem:[#allocation11 + $0x3ec] sm:$0xf]
    %v8756 = vld [vmem:[#allocation11 + $0x3f0] sm:$0xf]
    %v8757 = vld [vmem:[#allocation11 + $0x3f4] sm:$0xf]
    %v8758 = vld [vmem:[#allocation11 + $0x3f8] sm:$0xf]
    %v8759 = vld [vmem:[#allocation11 + $0x3fc] sm:$0xf]
    %v8760 = vld [vmem:[#allocation13] sm:$0x1]
    %v8762 = vperm.slane %v8760, 0
    %v9020 = vunpack.c.l.b16 %v8504
    %v9021 = vunpack.c.l.b16 %v8505
    %v9022 = vunpack.c.l.b16 %v8506
    %v9023 = vunpack.c.l.b16 %v8507
    %v9024 = vunpack.c.l.b16 %v8508
    %v9025 = vunpack.c.l.b16 %v8509
    %v9026 = vunpack.c.l.b16 %v8510
    %v9027 = vunpack.c.l.b16 %v8511
    %v9028 = vunpack.c.l.b16 %v8512
    %v9029 = vunpack.c.l.b16 %v8513
    %v9030 = vunpack.c.l.b16 %v8514
    %v9031 = vunpack.c.l.b16 %v8515
    %v9032 = vunpack.c.l.b16 %v8516
    %v9033 = vunpack.c.l.b16 %v8517
    %v9034 = vunpack.c.l.b16 %v8518
    %v9035 = vunpack.c.l.b16 %v8519
    %v9036 = vunpack.c.l.b16 %v8520
    %v9037 = vunpack.c.l.b16 %v8521
    %v9038 = vunpack.c.l.b16 %v8522
    %v9039 = vunpack.c.l.b16 %v8523
    %v9040 = vunpack.c.l.b16 %v8524
    %v9041 = vunpack.c.l.b16 %v8525
    %v9042 = vunpack.c.l.b16 %v8526
    %v9043 = vunpack.c.l.b16 %v8527
    %v9044 = vunpack.c.l.b16 %v8528
    %v9045 = vunpack.c.l.b16 %v8529
    %v9046 = vunpack.c.l.b16 %v8530
    %v9047 = vunpack.c.l.b16 %v8531
    %v9048 = vunpack.c.l.b16 %v8532
    %v9049 = vunpack.c.l.b16 %v8533
    %v9050 = vunpack.c.l.b16 %v8534
    %v9051 = vunpack.c.l.b16 %v8535
    %v9052 = vunpack.c.l.b16 %v8536
    %v9053 = vunpack.c.l.b16 %v8537
    %v9054 = vunpack.c.l.b16 %v8538
    %v9055 = vunpack.c.l.b16 %v8539
    %v9056 = vunpack.c.l.b16 %v8540
    %v9057 = vunpack.c.l.b16 %v8541
    %v9058 = vunpack.c.l.b16 %v8542
    %v9059 = vunpack.c.l.b16 %v8543
    %v9060 = vunpack.c.l.b16 %v8544
    %v9061 = vunpack.c.l.b16 %v8545
    %v9062 = vunpack.c.l.b16 %v8546
    %v9063 = vunpack.c.l.b16 %v8547
    %v9064 = vunpack.c.l.b16 %v8548
    %v9065 = vunpack.c.l.b16 %v8549
    %v9066 = vunpack.c.l.b16 %v8550
    %v9067 = vunpack.c.l.b16 %v8551
    %v9068 = vunpack.c.l.b16 %v8552
    %v9069 = vunpack.c.l.b16 %v8553
    %v9070 = vunpack.c.l.b16 %v8554
    %v9071 = vunpack.c.l.b16 %v8555
    %v9072 = vunpack.c.l.b16 %v8556
    %v9073 = vunpack.c.l.b16 %v8557
    %v9074 = vunpack.c.l.b16 %v8558
    %v9075 = vunpack.c.l.b16 %v8559
    %v9076 = vunpack.c.l.b16 %v8560
    %v9077 = vunpack.c.l.b16 %v8561
    %v9078 = vunpack.c.l.b16 %v8562
    %v9079 = vunpack.c.l.b16 %v8563
    %v9080 = vunpack.c.l.b16 %v8564
    %v9081 = vunpack.c.l.b16 %v8565
    %v9082 = vunpack.c.l.b16 %v8566
    %v9083 = vunpack.c.l.b16 %v8567
    %v9084 = vunpack.c.l.b16 %v8568
    %v9085 = vunpack.c.l.b16 %v8569
    %v9086 = vunpack.c.l.b16 %v8570
    %v9087 = vunpack.c.l.b16 %v8571
    %v9088 = vunpack.c.l.b16 %v8572
    %v9089 = vunpack.c.l.b16 %v8573
    %v9090 = vunpack.c.l.b16 %v8574
    %v9091 = vunpack.c.l.b16 %v8575
    %v9092 = vunpack.c.l.b16 %v8576
    %v9093 = vunpack.c.l.b16 %v8577
    %v9094 = vunpack.c.l.b16 %v8578
    %v9095 = vunpack.c.l.b16 %v8579
    %v9096 = vunpack.c.l.b16 %v8580
    %v9097 = vunpack.c.l.b16 %v8581
    %v9098 = vunpack.c.l.b16 %v8582
    %v9099 = vunpack.c.l.b16 %v8583
    %v9100 = vunpack.c.l.b16 %v8584
    %v9101 = vunpack.c.l.b16 %v8585
    %v9102 = vunpack.c.l.b16 %v8586
    %v9103 = vunpack.c.l.b16 %v8587
    %v9104 = vunpack.c.l.b16 %v8588
    %v9105 = vunpack.c.l.b16 %v8589
    %v9106 = vunpack.c.l.b16 %v8590
    %v9107 = vunpack.c.l.b16 %v8591
    %v9108 = vunpack.c.l.b16 %v8592
    %v9109 = vunpack.c.l.b16 %v8593
    %v9110 = vunpack.c.l.b16 %v8594
    %v9111 = vunpack.c.l.b16 %v8595
    %v9112 = vunpack.c.l.b16 %v8596
    %v9113 = vunpack.c.l.b16 %v8597
    %v9114 = vunpack.c.l.b16 %v8598
    %v9115 = vunpack.c.l.b16 %v8599
    %v9116 = vunpack.c.l.b16 %v8600
    %v9117 = vunpack.c.l.b16 %v8601
    %v9118 = vunpack.c.l.b16 %v8602
    %v9119 = vunpack.c.l.b16 %v8603
    %v9120 = vunpack.c.l.b16 %v8604
    %v9121 = vunpack.c.l.b16 %v8605
    %v9122 = vunpack.c.l.b16 %v8606
    %v9123 = vunpack.c.l.b16 %v8607
    %v9124 = vunpack.c.l.b16 %v8608
    %v9125 = vunpack.c.l.b16 %v8609
    %v9126 = vunpack.c.l.b16 %v8610
    %v9127 = vunpack.c.l.b16 %v8611
    %v9128 = vunpack.c.l.b16 %v8612
    %v9129 = vunpack.c.l.b16 %v8613
    %v9130 = vunpack.c.l.b16 %v8614
    %v9131 = vunpack.c.l.b16 %v8615
    %v9132 = vunpack.c.l.b16 %v8616
    %v9133 = vunpack.c.l.b16 %v8617
    %v9134 = vunpack.c.l.b16 %v8618
    %v9135 = vunpack.c.l.b16 %v8619
    %v9136 = vunpack.c.l.b16 %v8620
    %v9137 = vunpack.c.l.b16 %v8621
    %v9138 = vunpack.c.l.b16 %v8622
    %v9139 = vunpack.c.l.b16 %v8623
    %v9140 = vunpack.c.l.b16 %v8624
    %v9141 = vunpack.c.l.b16 %v8625
    %v9142 = vunpack.c.l.b16 %v8626
    %v9143 = vunpack.c.l.b16 %v8627
    %v9144 = vunpack.c.l.b16 %v8628
    %v9145 = vunpack.c.l.b16 %v8629
    %v9146 = vunpack.c.l.b16 %v8630
    %v9147 = vunpack.c.l.b16 %v8631
    %v9148 = vunpack.c.l.b16 %v8632
    %v9149 = vunpack.c.l.b16 %v8633
    %v9150 = vunpack.c.l.b16 %v8634
    %v9151 = vunpack.c.l.b16 %v8635
    %v9152 = vunpack.c.l.b16 %v8636
    %v9153 = vunpack.c.l.b16 %v8637
    %v9154 = vunpack.c.l.b16 %v8638
    %v9155 = vunpack.c.l.b16 %v8639
    %v9156 = vunpack.c.l.b16 %v8640
    %v9157 = vunpack.c.l.b16 %v8641
    %v9158 = vunpack.c.l.b16 %v8642
    %v9159 = vunpack.c.l.b16 %v8643
    %v9160 = vunpack.c.l.b16 %v8644
    %v9161 = vunpack.c.l.b16 %v8645
    %v9162 = vunpack.c.l.b16 %v8646
    %v9163 = vunpack.c.l.b16 %v8647
    %v9164 = vunpack.c.l.b16 %v8648
    %v9165 = vunpack.c.l.b16 %v8649
    %v9166 = vunpack.c.l.b16 %v8650
    %v9167 = vunpack.c.l.b16 %v8651
    %v9168 = vunpack.c.l.b16 %v8652
    %v9169 = vunpack.c.l.b16 %v8653
    %v9170 = vunpack.c.l.b16 %v8654
    %v9171 = vunpack.c.l.b16 %v8655
    %v9172 = vunpack.c.l.b16 %v8656
    %v9173 = vunpack.c.l.b16 %v8657
    %v9174 = vunpack.c.l.b16 %v8658
    %v9175 = vunpack.c.l.b16 %v8659
    %v9176 = vunpack.c.l.b16 %v8660
    %v9177 = vunpack.c.l.b16 %v8661
    %v9178 = vunpack.c.l.b16 %v8662
    %v9179 = vunpack.c.l.b16 %v8663
    %v9180 = vunpack.c.l.b16 %v8664
    %v9181 = vunpack.c.l.b16 %v8665
    %v9182 = vunpack.c.l.b16 %v8666
    %v9183 = vunpack.c.l.b16 %v8667
    %v9184 = vunpack.c.l.b16 %v8668
    %v9185 = vunpack.c.l.b16 %v8669
    %v9186 = vunpack.c.l.b16 %v8670
    %v9187 = vunpack.c.l.b16 %v8671
    %v9188 = vunpack.c.l.b16 %v8672
    %v9189 = vunpack.c.l.b16 %v8673
    %v9190 = vunpack.c.l.b16 %v8674
    %v9191 = vunpack.c.l.b16 %v8675
    %v9192 = vunpack.c.l.b16 %v8676
    %v9193 = vunpack.c.l.b16 %v8677
    %v9194 = vunpack.c.l.b16 %v8678
    %v9195 = vunpack.c.l.b16 %v8679
    %v9196 = vunpack.c.l.b16 %v8680
    %v9197 = vunpack.c.l.b16 %v8681
    %v9198 = vunpack.c.l.b16 %v8682
    %v9199 = vunpack.c.l.b16 %v8683
    %v9200 = vunpack.c.l.b16 %v8684
    %v9201 = vunpack.c.l.b16 %v8685
    %v9202 = vunpack.c.l.b16 %v8686
    %v9203 = vunpack.c.l.b16 %v8687
    %v9204 = vunpack.c.l.b16 %v8688
    %v9205 = vunpack.c.l.b16 %v8689
    %v9206 = vunpack.c.l.b16 %v8690
    %v9207 = vunpack.c.l.b16 %v8691
    %v9208 = vunpack.c.l.b16 %v8692
    %v9209 = vunpack.c.l.b16 %v8693
    %v9210 = vunpack.c.l.b16 %v8694
    %v9211 = vunpack.c.l.b16 %v8695
    %v9212 = vunpack.c.l.b16 %v8696
    %v9213 = vunpack.c.l.b16 %v8697
    %v9214 = vunpack.c.l.b16 %v8698
    %v9215 = vunpack.c.l.b16 %v8699
    %v9216 = vunpack.c.l.b16 %v8700
    %v9217 = vunpack.c.l.b16 %v8701
    %v9218 = vunpack.c.l.b16 %v8702
    %v9219 = vunpack.c.l.b16 %v8703
    %v9220 = vunpack.c.l.b16 %v8704
    %v9221 = vunpack.c.l.b16 %v8705
    %v9222 = vunpack.c.l.b16 %v8706
    %v9223 = vunpack.c.l.b16 %v8707
    %v9224 = vunpack.c.l.b16 %v8708
    %v9225 = vunpack.c.l.b16 %v8709
    %v9226 = vunpack.c.l.b16 %v8710
    %v9227 = vunpack.c.l.b16 %v8711
    %v9228 = vunpack.c.l.b16 %v8712
    %v9229 = vunpack.c.l.b16 %v8713
    %v9230 = vunpack.c.l.b16 %v8714
    %v9231 = vunpack.c.l.b16 %v8715
    %v9232 = vunpack.c.l.b16 %v8716
    %v9233 = vunpack.c.l.b16 %v8717
    %v9234 = vunpack.c.l.b16 %v8718
    %v9235 = vunpack.c.l.b16 %v8719
    %v9236 = vunpack.c.l.b16 %v8720
    %v9237 = vunpack.c.l.b16 %v8721
    %v9238 = vunpack.c.l.b16 %v8722
    %v9239 = vunpack.c.l.b16 %v8723
    %v9240 = vunpack.c.l.b16 %v8724
    %v9241 = vunpack.c.l.b16 %v8725
    %v9242 = vunpack.c.l.b16 %v8726
    %v9243 = vunpack.c.l.b16 %v8727
    %v9244 = vunpack.c.l.b16 %v8728
    %v9245 = vunpack.c.l.b16 %v8729
    %v9246 = vunpack.c.l.b16 %v8730
    %v9247 = vunpack.c.l.b16 %v8731
    %v9248 = vunpack.c.l.b16 %v8732
    %v9249 = vunpack.c.l.b16 %v8733
    %v9250 = vunpack.c.l.b16 %v8734
    %v9251 = vunpack.c.l.b16 %v8735
    %v9252 = vunpack.c.l.b16 %v8736
    %v9253 = vunpack.c.l.b16 %v8737
    %v9254 = vunpack.c.l.b16 %v8738
    %v9255 = vunpack.c.l.b16 %v8739
    %v9256 = vunpack.c.l.b16 %v8740
    %v9257 = vunpack.c.l.b16 %v8741
    %v9258 = vunpack.c.l.b16 %v8742
    %v9259 = vunpack.c.l.b16 %v8743
    %v9260 = vunpack.c.l.b16 %v8744
    %v9261 = vunpack.c.l.b16 %v8745
    %v9262 = vunpack.c.l.b16 %v8746
    %v9263 = vunpack.c.l.b16 %v8747
    %v9264 = vunpack.c.l.b16 %v8748
    %v9265 = vunpack.c.l.b16 %v8749
    %v9266 = vunpack.c.l.b16 %v8750
    %v9267 = vunpack.c.l.b16 %v8751
    %v9268 = vunpack.c.l.b16 %v8752
    %v9269 = vunpack.c.l.b16 %v8753
    %v9270 = vunpack.c.l.b16 %v8754
    %v9271 = vunpack.c.l.b16 %v8755
    %v9272 = vunpack.c.l.b16 %v8756
    %v9273 = vunpack.c.l.b16 %v8757
    %v9274 = vunpack.c.l.b16 %v8758
    %v9275 = vunpack.c.l.b16 %v8759
    %v9276 = vpack.c.b16 %v9021, %v9020
    %v9277 = vpack.c.b16 %v9023, %v9022
    %v9278 = vpack.c.b16 %v9025, %v9024
    %v9279 = vpack.c.b16 %v9027, %v9026
    %v9280 = vpack.c.b16 %v9029, %v9028
    %v9281 = vpack.c.b16 %v9031, %v9030
    %v9282 = vpack.c.b16 %v9033, %v9032
    %v9283 = vpack.c.b16 %v9035, %v9034
    %v9284 = vpack.c.b16 %v9037, %v9036
    %v9285 = vpack.c.b16 %v9039, %v9038
    %v9286 = vpack.c.b16 %v9041, %v9040
    %v9287 = vpack.c.b16 %v9043, %v9042
    %v9288 = vpack.c.b16 %v9045, %v9044
    %v9289 = vpack.c.b16 %v9047, %v9046
    %v9290 = vpack.c.b16 %v9049, %v9048
    %v9291 = vpack.c.b16 %v9051, %v9050
    %v9292 = vpack.c.b16 %v9053, %v9052
    %v9293 = vpack.c.b16 %v9055, %v9054
    %v9294 = vpack.c.b16 %v9057, %v9056
    %v9295 = vpack.c.b16 %v9059, %v9058
    %v9296 = vpack.c.b16 %v9061, %v9060
    %v9297 = vpack.c.b16 %v9063, %v9062
    %v9298 = vpack.c.b16 %v9065, %v9064
    %v9299 = vpack.c.b16 %v9067, %v9066
    %v9300 = vpack.c.b16 %v9069, %v9068
    %v9301 = vpack.c.b16 %v9071, %v9070
    %v9302 = vpack.c.b16 %v9073, %v9072
    %v9303 = vpack.c.b16 %v9075, %v9074
    %v9304 = vpack.c.b16 %v9077, %v9076
    %v9305 = vpack.c.b16 %v9079, %v9078
    %v9306 = vpack.c.b16 %v9081, %v9080
    %v9307 = vpack.c.b16 %v9083, %v9082
    %v9308 = vpack.c.b16 %v9085, %v9084
    %v9309 = vpack.c.b16 %v9087, %v9086
    %v9310 = vpack.c.b16 %v9089, %v9088
    %v9311 = vpack.c.b16 %v9091, %v9090
    %v9312 = vpack.c.b16 %v9093, %v9092
    %v9313 = vpack.c.b16 %v9095, %v9094
    %v9314 = vpack.c.b16 %v9097, %v9096
    %v9315 = vpack.c.b16 %v9099, %v9098
    %v9316 = vpack.c.b16 %v9101, %v9100
    %v9317 = vpack.c.b16 %v9103, %v9102
    %v9318 = vpack.c.b16 %v9105, %v9104
    %v9319 = vpack.c.b16 %v9107, %v9106
    %v9320 = vpack.c.b16 %v9109, %v9108
    %v9321 = vpack.c.b16 %v9111, %v9110
    %v9322 = vpack.c.b16 %v9113, %v9112
    %v9323 = vpack.c.b16 %v9115, %v9114
    %v9324 = vpack.c.b16 %v9117, %v9116
    %v9325 = vpack.c.b16 %v9119, %v9118
    %v9326 = vpack.c.b16 %v9121, %v9120
    %v9327 = vpack.c.b16 %v9123, %v9122
    %v9328 = vpack.c.b16 %v9125, %v9124
    %v9329 = vpack.c.b16 %v9127, %v9126
    %v9330 = vpack.c.b16 %v9129, %v9128
    %v9331 = vpack.c.b16 %v9131, %v9130
    %v9332 = vpack.c.b16 %v9133, %v9132
    %v9333 = vpack.c.b16 %v9135, %v9134
    %v9334 = vpack.c.b16 %v9137, %v9136
    %v9335 = vpack.c.b16 %v9139, %v9138
    %v9336 = vpack.c.b16 %v9141, %v9140
    %v9337 = vpack.c.b16 %v9143, %v9142
    %v9338 = vpack.c.b16 %v9145, %v9144
    %v9339 = vpack.c.b16 %v9147, %v9146
    %v9340 = vpack.c.b16 %v9149, %v9148
    %v9341 = vpack.c.b16 %v9151, %v9150
    %v9342 = vpack.c.b16 %v9153, %v9152
    %v9343 = vpack.c.b16 %v9155, %v9154
    %v9344 = vpack.c.b16 %v9157, %v9156
    %v9345 = vpack.c.b16 %v9159, %v9158
    %v9346 = vpack.c.b16 %v9161, %v9160
    %v9347 = vpack.c.b16 %v9163, %v9162
    %v9348 = vpack.c.b16 %v9165, %v9164
    %v9349 = vpack.c.b16 %v9167, %v9166
    %v9350 = vpack.c.b16 %v9169, %v9168
    %v9351 = vpack.c.b16 %v9171, %v9170
    %v9352 = vpack.c.b16 %v9173, %v9172
    %v9353 = vpack.c.b16 %v9175, %v9174
    %v9354 = vpack.c.b16 %v9177, %v9176
    %v9355 = vpack.c.b16 %v9179, %v9178
    %v9356 = vpack.c.b16 %v9181, %v9180
    %v9357 = vpack.c.b16 %v9183, %v9182
    %v9358 = vpack.c.b16 %v9185, %v9184
    %v9359 = vpack.c.b16 %v9187, %v9186
    %v9360 = vpack.c.b16 %v9189, %v9188
    %v9361 = vpack.c.b16 %v9191, %v9190
    %v9362 = vpack.c.b16 %v9193, %v9192
    %v9363 = vpack.c.b16 %v9195, %v9194
    %v9364 = vpack.c.b16 %v9197, %v9196
    %v9365 = vpack.c.b16 %v9199, %v9198
    %v9366 = vpack.c.b16 %v9201, %v9200
    %v9367 = vpack.c.b16 %v9203, %v9202
    %v9368 = vpack.c.b16 %v9205, %v9204
    %v9369 = vpack.c.b16 %v9207, %v9206
    %v9370 = vpack.c.b16 %v9209, %v9208
    %v9371 = vpack.c.b16 %v9211, %v9210
    %v9372 = vpack.c.b16 %v9213, %v9212
    %v9373 = vpack.c.b16 %v9215, %v9214
    %v9374 = vpack.c.b16 %v9217, %v9216
    %v9375 = vpack.c.b16 %v9219, %v9218
    %v9376 = vpack.c.b16 %v9221, %v9220
    %v9377 = vpack.c.b16 %v9223, %v9222
    %v9378 = vpack.c.b16 %v9225, %v9224
    %v9379 = vpack.c.b16 %v9227, %v9226
    %v9380 = vpack.c.b16 %v9229, %v9228
    %v9381 = vpack.c.b16 %v9231, %v9230
    %v9382 = vpack.c.b16 %v9233, %v9232
    %v9383 = vpack.c.b16 %v9235, %v9234
    %v9384 = vpack.c.b16 %v9237, %v9236
    %v9385 = vpack.c.b16 %v9239, %v9238
    %v9386 = vpack.c.b16 %v9241, %v9240
    %v9387 = vpack.c.b16 %v9243, %v9242
    %v9388 = vpack.c.b16 %v9245, %v9244
    %v9389 = vpack.c.b16 %v9247, %v9246
    %v9390 = vpack.c.b16 %v9249, %v9248
    %v9391 = vpack.c.b16 %v9251, %v9250
    %v9392 = vpack.c.b16 %v9253, %v9252
    %v9393 = vpack.c.b16 %v9255, %v9254
    %v9394 = vpack.c.b16 %v9257, %v9256
    %v9395 = vpack.c.b16 %v9259, %v9258
    %v9396 = vpack.c.b16 %v9261, %v9260
    %v9397 = vpack.c.b16 %v9263, %v9262
    %v9398 = vpack.c.b16 %v9265, %v9264
    %v9399 = vpack.c.b16 %v9267, %v9266
    %v9400 = vpack.c.b16 %v9269, %v9268
    %v9401 = vpack.c.b16 %v9271, %v9270
    %v9402 = vpack.c.b16 %v9273, %v9272
    %v9403 = vpack.c.b16 %v9275, %v9274
    %9532 = vmatpush.bf16.msra.mxu0 %v9283
    %9533 = vmatpush.bf16.msra.mxu0 %v9282
    %9534 = vmatpush.bf16.msra.mxu0 %v9281
    %9535 = vmatpush.bf16.msra.mxu0 %v9280
    %9536 = vmatpush.bf16.msra.mxu0 %v9279
    %9537 = vmatpush.bf16.msra.mxu0 %v9278
    %9538 = vmatpush.bf16.msra.mxu0 %v9277
    %9539 = vmatpush.bf16.msra.mxu0 %v9276
    %9540 = vmatmul.bf16.gmra.mxu0 %v8488
    %v9541 = vpop.f32.mrf.mxu0
    %v9542 = vadd.f32 %v8762, %v9541
    %v9543 = vpop.f32.mrf.mxu0
    %v9544 = vadd.f32 %v8762, %v9543
    %9545 = vdwg.mxu0
    %9546 = vmatpush.bf16.msra.mxu0 %v9291
    %9547 = vmatpush.bf16.msra.mxu0 %v9290
    %9548 = vmatpush.bf16.msra.mxu0 %v9289
    %9549 = vmatpush.bf16.msra.mxu0 %v9288
    %9550 = vmatpush.bf16.msra.mxu0 %v9287
    %9551 = vmatpush.bf16.msra.mxu0 %v9286
    %9552 = vmatpush.bf16.msra.mxu0 %v9285
    %9553 = vmatpush.bf16.msra.mxu0 %v9284
    %9554 = vmatmul.bf16.gmra.mxu0 %v8489
    %v9555 = vpop.f32.mrf.mxu0
    %v9556 = vadd.f32 %v9542, %v9555
    %v9557 = vpop.f32.mrf.mxu0
    %v9558 = vadd.f32 %v9544, %v9557
    %9559 = vdwg.mxu0
    %9560 = vmatpush.bf16.msra.mxu0 %v9299
    %9561 = vmatpush.bf16.msra.mxu0 %v9298
    %9562 = vmatpush.bf16.msra.mxu0 %v9297
    %9563 = vmatpush.bf16.msra.mxu0 %v9296
    %9564 = vmatpush.bf16.msra.mxu0 %v9295
    %9565 = vmatpush.bf16.msra.mxu0 %v9294
    %9566 = vmatpush.bf16.msra.mxu0 %v9293
    %9567 = vmatpush.bf16.msra.mxu0 %v9292
    %9568 = vmatmul.bf16.gmra.mxu0 %v8490
    %v9569 = vpop.f32.mrf.mxu0
    %v9570 = vadd.f32 %v9556, %v9569
    %v9571 = vpop.f32.mrf.mxu0
    %v9572 = vadd.f32 %v9558, %v9571
    %9573 = vdwg.mxu0
    %9574 = vmatpush.bf16.msra.mxu0 %v9307
    %9575 = vmatpush.bf16.msra.mxu0 %v9306
    %9576 = vmatpush.bf16.msra.mxu0 %v9305
    %9577 = vmatpush.bf16.msra.mxu0 %v9304
    %9578 = vmatpush.bf16.msra.mxu0 %v9303
    %9579 = vmatpush.bf16.msra.mxu0 %v9302
    %9580 = vmatpush.bf16.msra.mxu0 %v9301
    %9581 = vmatpush.bf16.msra.mxu0 %v9300
    %9582 = vmatmul.bf16.gmra.mxu0 %v8491
    %v9583 = vpop.f32.mrf.mxu0
    %v9584 = vadd.f32 %v9570, %v9583
    %v9585 = vpop.f32.mrf.mxu0
    %v9586 = vadd.f32 %v9572, %v9585
    %9587 = vdwg.mxu0
    %9588 = vmatpush.bf16.msra.mxu0 %v9315
    %9589 = vmatpush.bf16.msra.mxu0 %v9314
    %9590 = vmatpush.bf16.msra.mxu0 %v9313
    %9591 = vmatpush.bf16.msra.mxu0 %v9312
    %9592 = vmatpush.bf16.msra.mxu0 %v9311
    %9593 = vmatpush.bf16.msra.mxu0 %v9310
    %9594 = vmatpush.bf16.msra.mxu0 %v9309
    %9595 = vmatpush.bf16.msra.mxu0 %v9308
    %9596 = vmatmul.bf16.gmra.mxu0 %v8492
    %v9597 = vpop.f32.mrf.mxu0
    %v9598 = vadd.f32 %v9584, %v9597
    %v9599 = vpop.f32.mrf.mxu0
    %v9600 = vadd.f32 %v9586, %v9599
    %9601 = vdwg.mxu0
    %9602 = vmatpush.bf16.msra.mxu0 %v9323
    %9603 = vmatpush.bf16.msra.mxu0 %v9322
    %9604 = vmatpush.bf16.msra.mxu0 %v9321
    %9605 = vmatpush.bf16.msra.mxu0 %v9320
    %9606 = vmatpush.bf16.msra.mxu0 %v9319
    %9607 = vmatpush.bf16.msra.mxu0 %v9318
    %9608 = vmatpush.bf16.msra.mxu0 %v9317
    %9609 = vmatpush.bf16.msra.mxu0 %v9316
    %9610 = vmatmul.bf16.gmra.mxu0 %v8493
    %v9611 = vpop.f32.mrf.mxu0
    %v9612 = vadd.f32 %v9598, %v9611
    %v9613 = vpop.f32.mrf.mxu0
    %v9614 = vadd.f32 %v9600, %v9613
    %9615 = vdwg.mxu0
    %9616 = vmatpush.bf16.msra.mxu0 %v9331
    %9617 = vmatpush.bf16.msra.mxu0 %v9330
    %9618 = vmatpush.bf16.msra.mxu0 %v9329
    %9619 = vmatpush.bf16.msra.mxu0 %v9328
    %9620 = vmatpush.bf16.msra.mxu0 %v9327
    %9621 = vmatpush.bf16.msra.mxu0 %v9326
    %9622 = vmatpush.bf16.msra.mxu0 %v9325
    %9623 = vmatpush.bf16.msra.mxu0 %v9324
    %9624 = vmatmul.bf16.gmra.mxu0 %v8494
    %v9625 = vpop.f32.mrf.mxu0
    %v9626 = vadd.f32 %v9612, %v9625
    %v9627 = vpop.f32.mrf.mxu0
    %v9628 = vadd.f32 %v9614, %v9627
    %9629 = vdwg.mxu0
    %9630 = vmatpush.bf16.msra.mxu0 %v9339
    %9631 = vmatpush.bf16.msra.mxu0 %v9338
    %9632 = vmatpush.bf16.msra.mxu0 %v9337
    %9633 = vmatpush.bf16.msra.mxu0 %v9336
    %9634 = vmatpush.bf16.msra.mxu0 %v9335
    %9635 = vmatpush.bf16.msra.mxu0 %v9334
    %9636 = vmatpush.bf16.msra.mxu0 %v9333
    %9637 = vmatpush.bf16.msra.mxu0 %v9332
    %9638 = vmatmul.bf16.gmra.mxu0 %v8495
    %v9639 = vpop.f32.mrf.mxu0
    %v9640 = vadd.f32 %v9626, %v9639
    %v9641 = vpop.f32.mrf.mxu0
    %v9642 = vadd.f32 %v9628, %v9641
    %9643 = vdwg.mxu0
    %9644 = vmatpush.bf16.msra.mxu0 %v9347
    %9645 = vmatpush.bf16.msra.mxu0 %v9346
    %9646 = vmatpush.bf16.msra.mxu0 %v9345
    %9647 = vmatpush.bf16.msra.mxu0 %v9344
    %9648 = vmatpush.bf16.msra.mxu0 %v9343
    %9649 = vmatpush.bf16.msra.mxu0 %v9342
    %9650 = vmatpush.bf16.msra.mxu0 %v9341
    %9651 = vmatpush.bf16.msra.mxu0 %v9340
    %9652 = vmatmul.bf16.gmra.mxu0 %v8496
    %v9653 = vpop.f32.mrf.mxu0
    %v9654 = vadd.f32 %v9640, %v9653
    %v9655 = vpop.f32.mrf.mxu0
    %v9656 = vadd.f32 %v9642, %v9655
    %9657 = vdwg.mxu0
    %9658 = vmatpush.bf16.msra.mxu0 %v9355
    %9659 = vmatpush.bf16.msra.mxu0 %v9354
    %9660 = vmatpush.bf16.msra.mxu0 %v9353
    %9661 = vmatpush.bf16.msra.mxu0 %v9352
    %9662 = vmatpush.bf16.msra.mxu0 %v9351
    %9663 = vmatpush.bf16.msra.mxu0 %v9350
    %9664 = vmatpush.bf16.msra.mxu0 %v9349
    %9665 = vmatpush.bf16.msra.mxu0 %v9348
    %9666 = vmatmul.bf16.gmra.mxu0 %v8497
    %v9667 = vpop.f32.mrf.mxu0
    %v9668 = vadd.f32 %v9654, %v9667
    %v9669 = vpop.f32.mrf.mxu0
    %v9670 = vadd.f32 %v9656, %v9669
    %9671 = vdwg.mxu0
    %9672 = vmatpush.bf16.msra.mxu0 %v9363
    %9673 = vmatpush.bf16.msra.mxu0 %v9362
    %9674 = vmatpush.bf16.msra.mxu0 %v9361
    %9675 = vmatpush.bf16.msra.mxu0 %v9360
    %9676 = vmatpush.bf16.msra.mxu0 %v9359
    %9677 = vmatpush.bf16.msra.mxu0 %v9358
    %9678 = vmatpush.bf16.msra.mxu0 %v9357
    %9679 = vmatpush.bf16.msra.mxu0 %v9356
    %9680 = vmatmul.bf16.gmra.mxu0 %v8498
    %v9681 = vpop.f32.mrf.mxu0
    %v9682 = vadd.f32 %v9668, %v9681
    %v9683 = vpop.f32.mrf.mxu0
    %v9684 = vadd.f32 %v9670, %v9683
    %9685 = vdwg.mxu0
    %9686 = vmatpush.bf16.msra.mxu0 %v9371
    %9687 = vmatpush.bf16.msra.mxu0 %v9370
    %9688 = vmatpush.bf16.msra.mxu0 %v9369
    %9689 = vmatpush.bf16.msra.mxu0 %v9368
    %9690 = vmatpush.bf16.msra.mxu0 %v9367
    %9691 = vmatpush.bf16.msra.mxu0 %v9366
    %9692 = vmatpush.bf16.msra.mxu0 %v9365
    %9693 = vmatpush.bf16.msra.mxu0 %v9364
    %9694 = vmatmul.bf16.gmra.mxu0 %v8499
    %v9695 = vpop.f32.mrf.mxu0
    %v9696 = vadd.f32 %v9682, %v9695
    %v9697 = vpop.f32.mrf.mxu0
    %v9698 = vadd.f32 %v9684, %v9697
    %9699 = vdwg.mxu0
    %9700 = vmatpush.bf16.msra.mxu0 %v9379
    %9701 = vmatpush.bf16.msra.mxu0 %v9378
    %9702 = vmatpush.bf16.msra.mxu0 %v9377
    %9703 = vmatpush.bf16.msra.mxu0 %v9376
    %9704 = vmatpush.bf16.msra.mxu0 %v9375
    %9705 = vmatpush.bf16.msra.mxu0 %v9374
    %9706 = vmatpush.bf16.msra.mxu0 %v9373
    %9707 = vmatpush.bf16.msra.mxu0 %v9372
    %9708 = vmatmul.bf16.gmra.mxu0 %v8500
    %v9709 = vpop.f32.mrf.mxu0
    %v9710 = vadd.f32 %v9696, %v9709
    %v9711 = vpop.f32.mrf.mxu0
    %v9712 = vadd.f32 %v9698, %v9711
    %9713 = vdwg.mxu0
    %9714 = vmatpush.bf16.msra.mxu0 %v9387
    %9715 = vmatpush.bf16.msra.mxu0 %v9386
    %9716 = vmatpush.bf16.msra.mxu0 %v9385
    %9717 = vmatpush.bf16.msra.mxu0 %v9384
    %9718 = vmatpush.bf16.msra.mxu0 %v9383
    %9719 = vmatpush.bf16.msra.mxu0 %v9382
    %9720 = vmatpush.bf16.msra.mxu0 %v9381
    %9721 = vmatpush.bf16.msra.mxu0 %v9380
    %9722 = vmatmul.bf16.gmra.mxu0 %v8501
    %v9723 = vpop.f32.mrf.mxu0
    %v9724 = vadd.f32 %v9710, %v9723
    %v9725 = vpop.f32.mrf.mxu0
    %v9726 = vadd.f32 %v9712, %v9725
    %9727 = vdwg.mxu0
    %9728 = vmatpush.bf16.msra.mxu0 %v9395
    %9729 = vmatpush.bf16.msra.mxu0 %v9394
    %9730 = vmatpush.bf16.msra.mxu0 %v9393
    %9731 = vmatpush.bf16.msra.mxu0 %v9392
    %9732 = vmatpush.bf16.msra.mxu0 %v9391
    %9733 = vmatpush.bf16.msra.mxu0 %v9390
    %9734 = vmatpush.bf16.msra.mxu0 %v9389
    %9735 = vmatpush.bf16.msra.mxu0 %v9388
    %9736 = vmatmul.bf16.gmra.mxu0 %v8502
    %v9737 = vpop.f32.mrf.mxu0
    %v9738 = vadd.f32 %v9724, %v9737
    %v9739 = vpop.f32.mrf.mxu0
    %v9740 = vadd.f32 %v9726, %v9739
    %9741 = vdwg.mxu0
    %9742 = vmatpush.bf16.msra.mxu0 %v9403
    %9743 = vmatpush.bf16.msra.mxu0 %v9402
    %9744 = vmatpush.bf16.msra.mxu0 %v9401
    %9745 = vmatpush.bf16.msra.mxu0 %v9400
    %9746 = vmatpush.bf16.msra.mxu0 %v9399
    %9747 = vmatpush.bf16.msra.mxu0 %v9398
    %9748 = vmatpush.bf16.msra.mxu0 %v9397
    %9749 = vmatpush.bf16.msra.mxu0 %v9396
    %9750 = vmatmul.bf16.gmra.mxu0 %v8503
    %v9751 = vpop.f32.mrf.mxu0
    %v9752 = vadd.f32 %v9738, %v9751
    %v9753 = vpop.f32.mrf.mxu0
    %v9754 = vadd.f32 %v9740, %v9753
    %9755 = vdwg.mxu0
    %9756 = vst [vmem:[#allocation14] sm:$0xff] %v9752
    %9757 = vst [vmem:[#allocation14 + $0x8] sm:$0x3] %v9754
    // Predicated region
    $region58: #{tpu_custom_call.1} parent=1 // pred_check
      _
    $region59: #{tpu_custom_call.1} parent=1 // pred_check_branch
      %9759 = sbr.rel (0) target = $region61
    $region60: #{tpu_custom_call.1} parent=1 // pred_region
      %9761 = vsyncadd [#allocation4], 0
      %s9762 = sshll.u32 [#allocation14], 4
      %s9763 = int_to_ptr.vmem [resolvable:$true] %s9762
      %s9764 = sshll.u32 %s7, 4
      %s9765 = int_to_ptr.hbm [resolvable:$true] %s9764
      %9770 = dma.vmem_to_hbm [thread:$0]  %s9763, 256, %s9765, [#allocation4], 128, 128, 8
    $region61: #{tpu_custom_call.1} parent=1 // pred_fallthru
      _
    // Predicated region
    $region62: #{tpu_custom_call.1} parent=1 // pred_check
      _
    $region63: #{tpu_custom_call.1} parent=1 // pred_check_branch
      %9772 = sbr.rel (0) target = $region65
    $region64: #{tpu_custom_call.1} parent=1 // pred_region
      %9774 = dma.done [#allocation4], 256
    $region65: #{tpu_custom_call.1} parent=1 // pred_fallthru
      _
    %9775 = vsyncpa [#allocation3], 1
    %9776 = vsyncpa [#allocation6], 1
    %9777 = vsyncpa [#allocation9], 1
    %9778 = vsyncpa [#allocation12], 1
    %9779 = vsyncpa [#allocation4], 1

</llo_original>
